<compile_context>
chip_gen: v6e
topology: v6e:2x2x1
jax: 0.10.0
libtpu: 0.0.40
codegen_flags: <defaults>
</compile_context>

<pallas_src>
import functools
import math

import jax
import jax.numpy as jnp
from jax import lax
from jax.experimental import pallas as pl
from jax.experimental.pallas import tpu as pltpu


_VMEM_LIMIT = 32 * 1024 * 1024      # <= v6e/v7x scoped default, well under v7x 64 MiB physical
_ROW_TILE_TARGET = 512              # ~512-row tiles keep the HBM DMA near roofline


def _cparams(*sems):
    return pltpu.CompilerParams(dimension_semantics=sems,
                                vmem_limit_bytes=_VMEM_LIMIT)


def _row_tile(n, target=_ROW_TILE_TARGET):
    """Pick a row-block size (multiple of 8 when < n) and the padded row count."""
    if n <= target:
        return n, n
    for t in range(target, 7, -8):            # prefer a tile that divides n exactly
        if n % t == 0:
            return t, n
    return target, ((n + target - 1) // target) * target


def _pad_rows(x, n_pad):
    return x if x.shape[0] == n_pad else jnp.pad(x, ((0, n_pad - x.shape[0]), (0, 0)))


def _softplus(x):
    # torch.nn.functional.softplus (threshold=20); clamp inside exp to avoid inf.
    return jnp.where(x > 20.0, x, jnp.log1p(jnp.exp(jnp.minimum(x, 20.0))))


def _gelu_exact(x):
    # Exact (erf-based) GELU.  erf is evaluated with Abramowitz&Stegun 7.1.26
    # (|err| < 1.5e-7, i.e. f32-exact in practice) using only exp/mul/where so we
    # do not depend on an erf_p Mosaic lowering.
    # TODO(synk): switch to lax.erf when erf_p lowering is guaranteed on TPU Pallas.
    s = x * 0.7071067811865476
    sa = jnp.abs(s)
    t = 1.0 / (1.0 + 0.3275911 * sa)
    poly = ((((1.061405429 * t - 1.453152027) * t + 1.421413741) * t
             - 0.284496736) * t + 0.254829592) * t
    erf_abs = 1.0 - poly * jnp.exp(-sa * sa)
    erf = jnp.where(s >= 0.0, erf_abs, -erf_abs)
    return 0.5 * x * (1.0 + erf)


# ----------------------------------------------------------------------------
# Depthwise 3x3 conv (+ optional SiLU, + optional fused residual add)
# ----------------------------------------------------------------------------

def _dwconv3x3_kernel(xp_ref, w_ref, b_ref, o_ref, *, apply_silu, residual):
    H, W = o_ref.shape[1], o_ref.shape[2]
    xp = xp_ref[0, :, :, :].astype(jnp.float32)          # (H+2, W+2, C) zero-padded
    acc = jnp.zeros(o_ref.shape[1:], jnp.float32)
    for ky in range(3):
        for kx in range(3):
            acc = acc + xp[ky:ky + H, kx:kx + W, :] * w_ref[ky, kx, :]
    acc = acc + b_ref[0, :]
    if apply_silu:
        acc = acc * jax.nn.sigmoid(acc)
    if residual:
        # interior of the zero-padded tile == the original x (fused `x + conv(x)`)
        acc = acc + xp[1:1 + H, 1:1 + W, :]
    o_ref[0, :, :, :] = acc.astype(o_ref.dtype)


def dwconv3x3(x_nhwc, w_kkc, bias_c, apply_silu=False, residual=False):
    B, H, W, C = x_nhwc.shape
    xp = jnp.pad(x_nhwc, ((0, 0), (1, 1), (1, 1), (0, 0)))     # zero pad (torch Conv2d)
    return pl.pallas_call(
        functools.partial(_dwconv3x3_kernel, apply_silu=apply_silu, residual=residual),
        out_shape=jax.ShapeDtypeStruct((B, H, W, C), x_nhwc.dtype),
        grid=(B,),
        in_specs=[
            pl.BlockSpec((1, H + 2, W + 2, C), lambda b: (b, 0, 0, 0)),
            pl.BlockSpec((3, 3, C), lambda b: (0, 0, 0)),
            pl.BlockSpec((1, C), lambda b: (0, 0)),
        ],
        out_specs=pl.BlockSpec((1, H, W, C), lambda b: (b, 0, 0, 0)),
        compiler_params=_cparams("parallel"),
    )(xp, w_kkc, bias_c.reshape(1, C))


# ----------------------------------------------------------------------------
# StateFusion: sum of depthwise 3x3 convs at dilation 1/3/5 (alpha pre-folded)
# ----------------------------------------------------------------------------

def _state_fusion_kernel(hp_ref, k1_ref, k2_ref, k3_ref, o_ref):
    H, W = o_ref.shape[1], o_ref.shape[2]
    hp = hp_ref[0, :, :, :].astype(jnp.float32)          # (H+10, W+10, C) replicate-padded
    acc = jnp.zeros(o_ref.shape[1:], jnp.float32)
    for dil, kref in ((1, k1_ref), (3, k2_ref), (5, k3_ref)):
        off = 5 - dil
        for ky in range(3):
            for kx in range(3):
                y0 = off + ky * dil
                x0 = off + kx * dil
                acc = acc + hp[y0:y0 + H, x0:x0 + W, :] * kref[ky, kx, :]
    o_ref[0, :, :, :] = acc.astype(o_ref.dtype)


def state_fusion(h_nhwc, w1, w2, w3):
    B, H, W, C = h_nhwc.shape
    hp = jnp.pad(h_nhwc, ((0, 0), (5, 5), (5, 5), (0, 0)), mode="edge")  # replicate pad
    return pl.pallas_call(
        _state_fusion_kernel,
        out_shape=jax.ShapeDtypeStruct((B, H, W, C), h_nhwc.dtype),
        grid=(B,),
        in_specs=[
            pl.BlockSpec((1, H + 10, W + 10, C), lambda b: (b, 0, 0, 0)),
            pl.BlockSpec((3, 3, C), lambda b: (0, 0, 0)),
            pl.BlockSpec((3, 3, C), lambda b: (0, 0, 0)),
            pl.BlockSpec((3, 3, C), lambda b: (0, 0, 0)),
        ],
        out_specs=pl.BlockSpec((1, H, W, C), lambda b: (b, 0, 0, 0)),
        compiler_params=_cparams("parallel"),
    )(hp, w1, w2, w3)


# ----------------------------------------------------------------------------
# Fused LayerNorm + matmul (bias-free):  y = LN(x) @ W     (row-tiled)
# ----------------------------------------------------------------------------

def _ln_matmul_kernel(x_ref, g_ref, b_ref, w_ref, o_ref, *, eps):
    x = x_ref[...].astype(jnp.float32)
    mu = jnp.mean(x, axis=-1, keepdims=True)
    xc = x - mu
    var = jnp.mean(xc * xc, axis=-1, keepdims=True)
    xn = xc * lax.rsqrt(var + eps) * g_ref[0, :] + b_ref[0, :]
    y = jnp.dot(xn, w_ref[...], preferred_element_type=jnp.float32)
    o_ref[...] = y.astype(o_ref.dtype)


def ln_matmul(x_2d, gamma, beta, w_in_out, eps):
    N, Cin = x_2d.shape
    Cout = w_in_out.shape[1]
    t, Np = _row_tile(N)
    xp = _pad_rows(x_2d, Np)
    out = pl.pallas_call(
        functools.partial(_ln_matmul_kernel, eps=eps),
        out_shape=jax.ShapeDtypeStruct((Np, Cout), x_2d.dtype),
        grid=(Np // t,),
        in_specs=[
            pl.BlockSpec((t, Cin), lambda i: (i, 0)),
            pl.BlockSpec((1, Cin), lambda i: (0, 0)),
            pl.BlockSpec((1, Cin), lambda i: (0, 0)),
            pl.BlockSpec((Cin, Cout), lambda i: (0, 0)),
        ],
        out_specs=pl.BlockSpec((t, Cout), lambda i: (i, 0)),
        compiler_params=_cparams("parallel"),
    )(xp, gamma.reshape(1, Cin), beta.reshape(1, Cin), w_in_out)
    return out[:N] if Np != N else out


# ----------------------------------------------------------------------------
# Selective scan (d_state == 1), with the x_proj/dt_proj fold fused in-kernel.
# Grid = (batch, L-chunks); hidden-state carry lives in VMEM across L-chunks.
# ----------------------------------------------------------------------------

def _scan_kernel(xs_ref, wdt_ref, wb_ref, a_ref, dtb_ref, o_ref,
                 dA_ref, dBu_ref, hcar_ref, hchunk_ref):
    @pl.when(pl.program_id(1) == 0)
    def _():
        hcar_ref[...] = jnp.zeros_like(hcar_ref)

    Lc = o_ref.shape[1]
    xs = xs_ref[0, :, :].astype(jnp.float32)                              # (Lc, D)
    # folded dt projection (one MXU matmul) + B projection (lane reduction)
    dts = jnp.dot(xs, wdt_ref[...], preferred_element_type=jnp.float32)   # (Lc, D)
    dt = _softplus(dts + dtb_ref[0, :])                                   # (Lc, D)
    bs = jnp.sum(xs * wb_ref[0, :], axis=-1, keepdims=True)               # (Lc, 1)
    dA_ref[...] = jnp.exp(dt * a_ref[0, :])                               # (Lc, D)
    dBu_ref[...] = dt * bs * xs                                           # (Lc, D)

    h0 = hcar_ref[...]                                                    # (1, D)
    nfull = Lc // 8
    rem = Lc % 8

    def chunk_body(c, h):
        base = pl.multiple_of(c * 8, 8)
        dA_c = dA_ref[pl.ds(base, 8), :]
        dBu_c = dBu_ref[pl.ds(base, 8), :]
        for i in range(8):                                # unrolled 8-step recurrence
            h = dA_c[i:i + 1, :] * h + dBu_c[i:i + 1, :]
            hchunk_ref[pl.ds(i, 1), :] = h
        o_ref[0, pl.ds(base, 8), :] = hchunk_ref[...].astype(o_ref.dtype)
        return h

    h = lax.fori_loop(0, nfull, chunk_body, h0)
    if rem:                                               # static tail (Lc is static)
        base = nfull * 8
        for i in range(rem):
            h = dA_ref[pl.ds(base + i, 1), :] * h + dBu_ref[pl.ds(base + i, 1), :]
            o_ref[0, pl.ds(base + i, 1), :] = h.astype(o_ref.dtype)
    hcar_ref[...] = h


def selective_scan(xs_bld, wdt_fold, wb_row, a_d, dtb_d):
    B, L, D = xs_bld.shape
    Lc, Lp = _row_tile(L)
    if Lp != L:
        xs_bld = jnp.pad(xs_bld, ((0, 0), (0, Lp - L), (0, 0)))
    out = pl.pallas_call(
        _scan_kernel,
        out_shape=jax.ShapeDtypeStruct((B, Lp, D), jnp.float32),
        grid=(B, Lp // Lc),
        in_specs=[
            pl.BlockSpec((1, Lc, D), lambda b, l: (b, l, 0)),
            pl.BlockSpec((D, D), lambda b, l: (0, 0)),
            pl.BlockSpec((1, D), lambda b, l: (0, 0)),
            pl.BlockSpec((1, D), lambda b, l: (0, 0)),
            pl.BlockSpec((1, D), lambda b, l: (0, 0)),
        ],
        out_specs=pl.BlockSpec((1, Lc, D), lambda b, l: (b, l, 0)),
        scratch_shapes=[
            pltpu.VMEM((Lc, D), jnp.float32),   # dA
            pltpu.VMEM((Lc, D), jnp.float32),   # dBu
            pltpu.VMEM((1, D), jnp.float32),    # hidden-state carry
            pltpu.VMEM((8, D), jnp.float32),    # chunk staging for dense stores
        ],
        compiler_params=_cparams("parallel", "arbitrary"),
    )(xs_bld, wdt_fold, wb_row.reshape(1, D), a_d.reshape(1, D), dtb_d.reshape(1, D))
    return out[:, :L] if Lp != L else out


# ----------------------------------------------------------------------------
# SSM post: y = h*Cs + xs*Ds ; out_norm ; *silu(z) ; out_proj ; + residual
# (Cs is re-projected from xs in-kernel so it never round-trips HBM.)
# ----------------------------------------------------------------------------

def _ssm_post_out_kernel(h_ref, xs_ref, z_ref, r_ref, wc_ref, d_ref,
                         g_ref, bt_ref, wo_ref, o_ref, *, eps):
    h = h_ref[...].astype(jnp.float32)
    xs = xs_ref[...].astype(jnp.float32)
    cs = jnp.sum(xs * wc_ref[0, :], axis=-1, keepdims=True)        # Cs = xs @ wc
    y = h * cs + xs * d_ref[0, :]
    mu = jnp.mean(y, axis=-1, keepdims=True)
    yc = y - mu
    var = jnp.mean(yc * yc, axis=-1, keepdims=True)
    yn = yc * lax.rsqrt(var + eps) * g_ref[0, :] + bt_ref[0, :]
    z = z_ref[...].astype(jnp.float32)
    y = yn * (z * jax.nn.sigmoid(z))
    out = r_ref[...].astype(jnp.float32) + jnp.dot(
        y, wo_ref[...], preferred_element_type=jnp.float32)
    o_ref[...] = out.astype(o_ref.dtype)


def ssm_post_out(h_2d, xs_2d, z_2d, resid_2d, wc_row, ds_d, gamma, beta,
                 w_out, eps=1e-5):
    N, D = h_2d.shape
    C = w_out.shape[1]
    t, Np = _row_tile(N)
    h_2d, xs_2d, z_2d, resid_2d = (_pad_rows(a, Np)
                                   for a in (h_2d, xs_2d, z_2d, resid_2d))
    out = pl.pallas_call(
        functools.partial(_ssm_post_out_kernel, eps=eps),
        out_shape=jax.ShapeDtypeStruct((Np, C), jnp.float32),
        grid=(Np // t,),
        in_specs=[
            pl.BlockSpec((t, D), lambda i: (i, 0)),
            pl.BlockSpec((t, D), lambda i: (i, 0)),
            pl.BlockSpec((t, D), lambda i: (i, 0)),
            pl.BlockSpec((t, C), lambda i: (i, 0)),
            pl.BlockSpec((1, D), lambda i: (0, 0)),
            pl.BlockSpec((1, D), lambda i: (0, 0)),
            pl.BlockSpec((1, D), lambda i: (0, 0)),
            pl.BlockSpec((1, D), lambda i: (0, 0)),
            pl.BlockSpec((D, C), lambda i: (0, 0)),
        ],
        out_specs=pl.BlockSpec((t, C), lambda i: (i, 0)),
        compiler_params=_cparams("parallel"),
    )(h_2d, xs_2d, z_2d, resid_2d, wc_row.reshape(1, D), ds_d.reshape(1, D),
      gamma.reshape(1, D), beta.reshape(1, D), w_out)
    return out[:N] if Np != N else out


# ----------------------------------------------------------------------------
# Fused MLP block: out = x + fc2(GELU(fc1(LN(x))))      (row-tiled)
# ----------------------------------------------------------------------------

def _mlp_kernel(x_ref, g_ref, b_ref, w1_ref, b1_ref, w2_ref, b2_ref, o_ref, *, eps):
    x = x_ref[...].astype(jnp.float32)
    mu = jnp.mean(x, axis=-1, keepdims=True)
    xc = x - mu
    var = jnp.mean(xc * xc, axis=-1, keepdims=True)
    xn = xc * lax.rsqrt(var + eps) * g_ref[0, :] + b_ref[0, :]
    h = jnp.dot(xn, w1_ref[...], preferred_element_type=jnp.float32) + b1_ref[0, :]
    h = _gelu_exact(h)
    y = jnp.dot(h, w2_ref[...], preferred_element_type=jnp.float32) + b2_ref[0, :]
    o_ref[...] = (x + y).astype(o_ref.dtype)


def mlp_block(x_2d, gamma, beta, w1, b1, w2, b2, eps=1e-6):
    N, C = x_2d.shape
    Hm = w1.shape[1]
    t, Np = _row_tile(N)
    xp = _pad_rows(x_2d, Np)
    out = pl.pallas_call(
        functools.partial(_mlp_kernel, eps=eps),
        out_shape=jax.ShapeDtypeStruct((Np, C), x_2d.dtype),
        grid=(Np // t,),
        in_specs=[
            pl.BlockSpec((t, C), lambda i: (i, 0)),
            pl.BlockSpec((1, C), lambda i: (0, 0)),
            pl.BlockSpec((1, C), lambda i: (0, 0)),
            pl.BlockSpec((C, Hm), lambda i: (0, 0)),
            pl.BlockSpec((1, Hm), lambda i: (0, 0)),
            pl.BlockSpec((Hm, C), lambda i: (0, 0)),
            pl.BlockSpec((1, C), lambda i: (0, 0)),
        ],
        out_specs=pl.BlockSpec((t, C), lambda i: (i, 0)),
        compiler_params=_cparams("parallel"),
    )(xp, gamma.reshape(1, C), beta.reshape(1, C), w1, b1.reshape(1, Hm),
      w2, b2.reshape(1, C))
    return out[:N] if Np != N else out


# ----------------------------------------------------------------------------
# Parameters (deterministic, synthetic; shapes match the PyTorch module)
# ----------------------------------------------------------------------------

def init_params(key, C, d_state=1, expand=2, mlp_ratio=4.0,
                dt_min=1e-3, dt_max=0.1, dt_scale=1.0, dt_init_floor=1e-4):
    D = expand * C
    R = math.ceil(C / 16)                 # dt_rank = 'auto'
    Hm = int(C * mlp_ratio)
    ks = jax.random.split(key, 16)

    def u(k, shape, scale):
        return jax.random.uniform(k, shape, jnp.float32, -scale, scale)

    p = {}
    p["cpe1_w"] = u(ks[0], (3, 3, C), 1.0 / 3.0)
    p["cpe1_b"] = u(ks[1], (C,), 1.0 / 3.0)
    p["cpe2_w"] = u(ks[2], (3, 3, C), 1.0 / 3.0)
    p["cpe2_b"] = u(ks[3], (C,), 1.0 / 3.0)
    p["ln1_g"] = jnp.ones((C,), jnp.float32); p["ln1_b"] = jnp.zeros((C,), jnp.float32)
    p["ln2_g"] = jnp.ones((C,), jnp.float32); p["ln2_b"] = jnp.zeros((C,), jnp.float32)
    p["in_proj_w"] = u(ks[4], (2 * D, C), 1.0 / math.sqrt(C))        # bias=False
    p["conv2d_w"] = u(ks[5], (3, 3, D), 1.0 / 3.0)
    p["conv2d_b"] = u(ks[6], (D,), 1.0 / 3.0)
    p["x_proj_w"] = u(ks[7], (R + 2 * d_state, D), 1.0 / math.sqrt(D))
    dt_init_std = (R ** -0.5) * dt_scale
    p["dt_projs_w"] = u(ks[8], (D, R), dt_init_std)
    dt = jnp.exp(jax.random.uniform(ks[9], (D,), jnp.float32)
                 * (math.log(dt_max) - math.log(dt_min)) + math.log(dt_min))
    dt = jnp.maximum(dt, dt_init_floor)
    p["dt_projs_b"] = dt + jnp.log(-jnp.expm1(-dt))
    p["A_logs"] = jnp.log(jnp.broadcast_to(
        jnp.arange(1, d_state + 1, dtype=jnp.float32), (D, d_state)))
    p["Ds"] = jnp.ones((D,), jnp.float32)
    p["sf_k3"] = jnp.ones((3, 3, D), jnp.float32)
    p["sf_k31"] = jnp.ones((3, 3, D), jnp.float32)
    p["sf_k32"] = jnp.ones((3, 3, D), jnp.float32)
    p["sf_alpha"] = jnp.ones((3,), jnp.float32)
    p["out_norm_g"] = jnp.ones((D,), jnp.float32)
    p["out_norm_b"] = jnp.zeros((D,), jnp.float32)
    p["out_proj_w"] = u(ks[10], (C, D), 1.0 / math.sqrt(D))          # bias=False
    p["fc1_w"] = u(ks[11], (Hm, C), 1.0 / math.sqrt(C))
    p["fc1_b"] = u(ks[12], (Hm,), 1.0 / math.sqrt(C))
    p["fc2_w"] = u(ks[13], (C, Hm), 1.0 / math.sqrt(Hm))
    p["fc2_b"] = u(ks[14], (C,), 1.0 / math.sqrt(Hm))
    return p


def prepare_params(p):
    """One-time parameter prep: pre-transpose weights to (in, out), fold the
    bias-free dt_projs into x_proj, fold alpha into the StateFusion kernels."""
    D, R = p["dt_projs_w"].shape
    d_state = p["A_logs"].shape[1]
    assert d_state == 1
    xw = p["x_proj_w"]                               # (R + 2, D) torch (out, in)
    q = dict(
        cpe1_w=p["cpe1_w"], cpe1_b=p["cpe1_b"],
        cpe2_w=p["cpe2_w"], cpe2_b=p["cpe2_b"],
        ln1_g=p["ln1_g"], ln1_b=p["ln1_b"],
        ln2_g=p["ln2_g"], ln2_b=p["ln2_b"],
        in_proj_wT=p["in_proj_w"].T,                 # (C, 2D)
        conv2d_w=p["conv2d_w"], conv2d_b=p["conv2d_b"],
        wdt_fold=(p["dt_projs_w"] @ xw[:R]).T,       # (D, D) exact fold (both bias-free)
        wb_row=xw[R],                                # (D,)  B projection row
        wc_row=xw[R + 1],                            # (D,)  C projection row
        dt_projs_b=p["dt_projs_b"],
        A=-jnp.exp(p["A_logs"][:, 0]),               # (D,)
        Ds=p["Ds"],
        sf_w1=p["sf_alpha"][0] * p["sf_k3"],
        sf_w2=p["sf_alpha"][1] * p["sf_k31"],
        sf_w3=p["sf_alpha"][2] * p["sf_k32"],
        out_norm_g=p["out_norm_g"], out_norm_b=p["out_norm_b"],
        out_proj_wT=p["out_proj_w"].T,               # (D, C)
        fc1_wT=p["fc1_w"].T, fc1_b=p["fc1_b"],
        fc2_wT=p["fc2_w"].T, fc2_b=p["fc2_b"],
    )
    return q


# ----------------------------------------------------------------------------
# Forward pass (SpatialMambaBlock)
# ----------------------------------------------------------------------------

def spatial_mamba_block(x_nchw, pp, d_state=1, expand=2):
    assert d_state == 1, "SpatialMambaBlock uses d_state=1 (required by h*Cs broadcast)"
    B, C, H, W = x_nchw.shape
    D = expand * C
    x = jnp.transpose(x_nchw, (0, 2, 3, 1))                      # NHWC

    # ---- x = x + cpe1(x)  (residual fused into the conv kernel) ----
    x = dwconv3x3(x, pp["cpe1_w"], pp["cpe1_b"], residual=True)

    # ---- attention branch: torch permute(0,3,2,1) == spatial transpose in NHWC ----
    t = jnp.transpose(x, (0, 2, 1, 3))                           # (B, W, H, C)
    Hs, Ws = W, H                                                # spatial dims the SSM sees
    L = Hs * Ws
    N = B * L
    t2 = t.reshape(N, C)
    xz = ln_matmul(t2, pp["ln1_g"], pp["ln1_b"], pp["in_proj_wT"], eps=1e-6)   # (N, 2D)
    x_in, z = xz[:, :D], xz[:, D:]
    x_conv = dwconv3x3(x_in.reshape(B, Hs, Ws, D), pp["conv2d_w"], pp["conv2d_b"],
                       apply_silu=True)
    xs = x_conv.reshape(B, L, D)
    h_seq = selective_scan(xs, pp["wdt_fold"], pp["wb_row"], pp["A"],
                           pp["dt_projs_b"])                     # (B, L, D)
    h_sf = state_fusion(h_seq.reshape(B, Hs, Ws, D),
                        pp["sf_w1"], pp["sf_w2"], pp["sf_w3"])
    y = ssm_post_out(h_sf.reshape(N, D), xs.reshape(N, D), z, t2,
                     pp["wc_row"], pp["Ds"], pp["out_norm_g"], pp["out_norm_b"],
                     pp["out_proj_wT"], eps=1e-5)                # includes +t residual
    x = jnp.transpose(y.reshape(B, Hs, Ws, C), (0, 2, 1, 3))     # back to (B, H, W, C)

    # ---- x = x + cpe2(x) ----
    x = dwconv3x3(x, pp["cpe2_w"], pp["cpe2_b"], residual=True)

    # ---- MLP branch (spatial permutes cancel for the per-pixel LN/MLP/residual) ----
    xf = mlp_block(x.reshape(B * H * W, C), pp["ln2_g"], pp["ln2_b"],
                   pp["fc1_wT"], pp["fc1_b"], pp["fc2_wT"], pp["fc2_b"], eps=1e-6)
    x = xf.reshape(B, H, W, C)

    return jnp.transpose(x, (0, 3, 1, 2))                        # back to NCHW


# ----------------------------------------------------------------------------

if __name__ == "__main__":
    key = jax.random.PRNGKey(0)
    kx, kp = jax.random.split(key)
    B, C, H, W = 2, 32, 8, 8          # hidden_dim=32 -> d_inner=64, dt_rank=2, d_state=1
    x = jax.random.normal(kx, (B, C, H, W), jnp.float32)
    params = init_params(kp, C)
    pp = prepare_params(params)

    fwd = jax.jit(spatial_mamba_block)
    out = jax.block_until_ready(fwd(x, pp))

    assert out.shape == (B, C, H, W)
    assert bool(jnp.all(jnp.isfinite(out)))
    print("KERNEL_OK")
</pallas_src>

<mosaic_0001>
module attributes {stable_mosaic.version = 11 : i64} {
  func.func @_dwconv3x3_kernel(%arg0: i32, %arg1: memref<1x10x10x32xf32, #tpu.memory_space<vmem>>, %arg2: memref<3x3x32xf32, #tpu.memory_space<vmem>>, %arg3: memref<1x32xf32, #tpu.memory_space<vmem>>, %arg4: memref<1x8x8x32xf32, #tpu.memory_space<vmem>>) attributes {dimension_semantics = [#tpu.dimension_semantics<parallel>], iteration_bounds = array<i64: 2>, scalar_prefetch = 0 : i64, scratch_operands = 0 : i64, tpu.core_type = #tpu.core_type<tc>, window_params = [{transform_indices = @transform_0, window_bounds = array<i64: 1, 10, 10, 32>}, {pipeline_mode = #tpu.pipeline_mode<synchronous>, transform_indices = @transform_1, window_bounds = array<i64: 3, 3, 32>}, {pipeline_mode = #tpu.pipeline_mode<synchronous>, transform_indices = @transform_2, window_bounds = array<i64: 1, 32>}, {transform_indices = @transform_3, window_bounds = array<i64: 1, 8, 8, 32>}]} {
    %c0 = arith.constant 0 : index
    %c0_0 = arith.constant 0 : index
    %c0_1 = arith.constant 0 : index
    %c0_2 = arith.constant 0 : index
    %0 = vector.load %arg1[%c0, %c0_0, %c0_1, %c0_2] : memref<1x10x10x32xf32, #tpu.memory_space<vmem>>, vector<1x10x10x32xf32>
    %1 = vector.shape_cast %0 : vector<1x10x10x32xf32> to vector<10x10x32xf32>
    %cst = arith.constant 0.000000e+00 : f32
    %2 = vector.broadcast %cst : f32 to vector<8x8x32xf32>
    %3 = vector.extract_strided_slice %1 {offsets = [0, 0, 0], sizes = [8, 8, 32], strides = [1, 1, 1]} : vector<10x10x32xf32> to vector<8x8x32xf32>
    %c0_3 = arith.constant 0 : index
    %c0_4 = arith.constant 0 : index
    %c0_5 = arith.constant 0 : index
    %4 = vector.load %arg2[%c0_3, %c0_4, %c0_5] : memref<3x3x32xf32, #tpu.memory_space<vmem>>, vector<1x1x32xf32>
    %5 = vector.shape_cast %4 : vector<1x1x32xf32> to vector<32xf32>
    %6 = vector.shape_cast %5 : vector<32xf32> to vector<1x1x32xf32>
    %7 = vector.broadcast %6 : vector<1x1x32xf32> to vector<8x8x32xf32>
    %8 = arith.mulf %3, %7 : vector<8x8x32xf32>
    %9 = arith.addf %2, %8 : vector<8x8x32xf32>
    %10 = vector.extract_strided_slice %1 {offsets = [0, 1, 0], sizes = [8, 8, 32], strides = [1, 1, 1]} : vector<10x10x32xf32> to vector<8x8x32xf32>
    %c0_6 = arith.constant 0 : index
    %c1 = arith.constant 1 : index
    %c0_7 = arith.constant 0 : index
    %11 = vector.load %arg2[%c0_6, %c1, %c0_7] : memref<3x3x32xf32, #tpu.memory_space<vmem>>, vector<1x1x32xf32>
    %12 = vector.shape_cast %11 : vector<1x1x32xf32> to vector<32xf32>
    %13 = vector.shape_cast %12 : vector<32xf32> to vector<1x1x32xf32>
    %14 = vector.broadcast %13 : vector<1x1x32xf32> to vector<8x8x32xf32>
    %15 = arith.mulf %10, %14 : vector<8x8x32xf32>
    %16 = arith.addf %9, %15 : vector<8x8x32xf32>
    %17 = vector.extract_strided_slice %1 {offsets = [0, 2, 0], sizes = [8, 8, 32], strides = [1, 1, 1]} : vector<10x10x32xf32> to vector<8x8x32xf32>
    %c0_8 = arith.constant 0 : index
    %c2 = arith.constant 2 : index
    %c0_9 = arith.constant 0 : index
    %18 = vector.load %arg2[%c0_8, %c2, %c0_9] : memref<3x3x32xf32, #tpu.memory_space<vmem>>, vector<1x1x32xf32>
    %19 = vector.shape_cast %18 : vector<1x1x32xf32> to vector<32xf32>
    %20 = vector.shape_cast %19 : vector<32xf32> to vector<1x1x32xf32>
    %21 = vector.broadcast %20 : vector<1x1x32xf32> to vector<8x8x32xf32>
    %22 = arith.mulf %17, %21 : vector<8x8x32xf32>
    %23 = arith.addf %16, %22 : vector<8x8x32xf32>
    %24 = vector.extract_strided_slice %1 {offsets = [1, 0, 0], sizes = [8, 8, 32], strides = [1, 1, 1]} : vector<10x10x32xf32> to vector<8x8x32xf32>
    %c1_10 = arith.constant 1 : index
    %c0_11 = arith.constant 0 : index
    %c0_12 = arith.constant 0 : index
    %25 = vector.load %arg2[%c1_10, %c0_11, %c0_12] : memref<3x3x32xf32, #tpu.memory_space<vmem>>, vector<1x1x32xf32>
    %26 = vector.shape_cast %25 : vector<1x1x32xf32> to vector<32xf32>
    %27 = vector.shape_cast %26 : vector<32xf32> to vector<1x1x32xf32>
    %28 = vector.broadcast %27 : vector<1x1x32xf32> to vector<8x8x32xf32>
    %29 = arith.mulf %24, %28 : vector<8x8x32xf32>
    %30 = arith.addf %23, %29 : vector<8x8x32xf32>
    %31 = vector.extract_strided_slice %1 {offsets = [1, 1, 0], sizes = [8, 8, 32], strides = [1, 1, 1]} : vector<10x10x32xf32> to vector<8x8x32xf32>
    %c1_13 = arith.constant 1 : index
    %c1_14 = arith.constant 1 : index
    %c0_15 = arith.constant 0 : index
    %32 = vector.load %arg2[%c1_13, %c1_14, %c0_15] : memref<3x3x32xf32, #tpu.memory_space<vmem>>, vector<1x1x32xf32>
    %33 = vector.shape_cast %32 : vector<1x1x32xf32> to vector<32xf32>
    %34 = vector.shape_cast %33 : vector<32xf32> to vector<1x1x32xf32>
    %35 = vector.broadcast %34 : vector<1x1x32xf32> to vector<8x8x32xf32>
    %36 = arith.mulf %31, %35 : vector<8x8x32xf32>
    %37 = arith.addf %30, %36 : vector<8x8x32xf32>
    %38 = vector.extract_strided_slice %1 {offsets = [1, 2, 0], sizes = [8, 8, 32], strides = [1, 1, 1]} : vector<10x10x32xf32> to vector<8x8x32xf32>
    %c1_16 = arith.constant 1 : index
    %c2_17 = arith.constant 2 : index
    %c0_18 = arith.constant 0 : index
    %39 = vector.load %arg2[%c1_16, %c2_17, %c0_18] : memref<3x3x32xf32, #tpu.memory_space<vmem>>, vector<1x1x32xf32>
    %40 = vector.shape_cast %39 : vector<1x1x32xf32> to vector<32xf32>
    %41 = vector.shape_cast %40 : vector<32xf32> to vector<1x1x32xf32>
    %42 = vector.broadcast %41 : vector<1x1x32xf32> to vector<8x8x32xf32>
    %43 = arith.mulf %38, %42 : vector<8x8x32xf32>
    %44 = arith.addf %37, %43 : vector<8x8x32xf32>
    %45 = vector.extract_strided_slice %1 {offsets = [2, 0, 0], sizes = [8, 8, 32], strides = [1, 1, 1]} : vector<10x10x32xf32> to vector<8x8x32xf32>
    %c2_19 = arith.constant 2 : index
    %c0_20 = arith.constant 0 : index
    %c0_21 = arith.constant 0 : index
    %46 = vector.load %arg2[%c2_19, %c0_20, %c0_21] : memref<3x3x32xf32, #tpu.memory_space<vmem>>, vector<1x1x32xf32>
    %47 = vector.shape_cast %46 : vector<1x1x32xf32> to vector<32xf32>
    %48 = vector.shape_cast %47 : vector<32xf32> to vector<1x1x32xf32>
    %49 = vector.broadcast %48 : vector<1x1x32xf32> to vector<8x8x32xf32>
    %50 = arith.mulf %45, %49 : vector<8x8x32xf32>
    %51 = arith.addf %44, %50 : vector<8x8x32xf32>
    %52 = vector.extract_strided_slice %1 {offsets = [2, 1, 0], sizes = [8, 8, 32], strides = [1, 1, 1]} : vector<10x10x32xf32> to vector<8x8x32xf32>
    %c2_22 = arith.constant 2 : index
    %c1_23 = arith.constant 1 : index
    %c0_24 = arith.constant 0 : index
    %53 = vector.load %arg2[%c2_22, %c1_23, %c0_24] : memref<3x3x32xf32, #tpu.memory_space<vmem>>, vector<1x1x32xf32>
    %54 = vector.shape_cast %53 : vector<1x1x32xf32> to vector<32xf32>
    %55 = vector.shape_cast %54 : vector<32xf32> to vector<1x1x32xf32>
    %56 = vector.broadcast %55 : vector<1x1x32xf32> to vector<8x8x32xf32>
    %57 = arith.mulf %52, %56 : vector<8x8x32xf32>
    %58 = arith.addf %51, %57 : vector<8x8x32xf32>
    %59 = vector.extract_strided_slice %1 {offsets = [2, 2, 0], sizes = [8, 8, 32], strides = [1, 1, 1]} : vector<10x10x32xf32> to vector<8x8x32xf32>
    %c2_25 = arith.constant 2 : index
    %c2_26 = arith.constant 2 : index
    %c0_27 = arith.constant 0 : index
    %60 = vector.load %arg2[%c2_25, %c2_26, %c0_27] : memref<3x3x32xf32, #tpu.memory_space<vmem>>, vector<1x1x32xf32>
    %61 = vector.shape_cast %60 : vector<1x1x32xf32> to vector<32xf32>
    %62 = vector.shape_cast %61 : vector<32xf32> to vector<1x1x32xf32>
    %63 = vector.broadcast %62 : vector<1x1x32xf32> to vector<8x8x32xf32>
    %64 = arith.mulf %59, %63 : vector<8x8x32xf32>
    %65 = arith.addf %58, %64 : vector<8x8x32xf32>
    %c0_28 = arith.constant 0 : index
    %c0_29 = arith.constant 0 : index
    %66 = vector.load %arg3[%c0_28, %c0_29] : memref<1x32xf32, #tpu.memory_space<vmem>>, vector<1x32xf32>
    %67 = vector.shape_cast %66 : vector<1x32xf32> to vector<32xf32>
    %68 = vector.shape_cast %67 : vector<32xf32> to vector<1x1x32xf32>
    %69 = vector.broadcast %68 : vector<1x1x32xf32> to vector<8x8x32xf32>
    %70 = arith.addf %65, %69 : vector<8x8x32xf32>
    %71 = vector.extract_strided_slice %1 {offsets = [1, 1, 0], sizes = [8, 8, 32], strides = [1, 1, 1]} : vector<10x10x32xf32> to vector<8x8x32xf32>
    %72 = arith.addf %70, %71 : vector<8x8x32xf32>
    %c0_30 = arith.constant 0 : index
    %c0_31 = arith.constant 0 : index
    %c0_32 = arith.constant 0 : index
    %c0_33 = arith.constant 0 : index
    %73 = vector.load %arg4[%c0_30, %c0_31, %c0_32, %c0_33] : memref<1x8x8x32xf32, #tpu.memory_space<vmem>>, vector<1x8x8x32xf32>
    %74 = vector.shape_cast %73 : vector<1x8x8x32xf32> to vector<8x8x32xf32>
    %75 = vector.shape_cast %72 : vector<8x8x32xf32> to vector<1x8x8x32xf32>
    tpu.vector_store %arg4[%c0_30, %c0_31, %c0_32, %c0_33], %75 {strides = array<i32>} : memref<1x8x8x32xf32, #tpu.memory_space<vmem>>, vector<1x8x8x32xf32>,
    return
  }
  func.func @transform_0(%arg0: i32) -> (i32, i32, i32, i32) {
    %c0_i32 = arith.constant 0 : i32
    %c0_i32_0 = arith.constant 0 : i32
    %c0_i32_1 = arith.constant 0 : i32
    %c0_i32_2 = arith.constant 0 : i32
    return %arg0, %c0_i32, %c0_i32_0, %c0_i32_1 : i32, i32, i32, i32
  }
  func.func @transform_1(%arg0: i32) -> (i32, i32, i32) {
    %c0_i32 = arith.constant 0 : i32
    %c0_i32_0 = arith.constant 0 : i32
    %c0_i32_1 = arith.constant 0 : i32
    %c0_i32_2 = arith.constant 0 : i32
    return %c0_i32, %c0_i32_0, %c0_i32_1 : i32, i32, i32
  }
  func.func @transform_2(%arg0: i32) -> (i32, i32) {
    %c0_i32 = arith.constant 0 : i32
    %c0_i32_0 = arith.constant 0 : i32
    %c0_i32_1 = arith.constant 0 : i32
    return %c0_i32, %c0_i32_0 : i32, i32
  }
  func.func @transform_3(%arg0: i32) -> (i32, i32, i32, i32) {
    %c0_i32 = arith.constant 0 : i32
    %c0_i32_0 = arith.constant 0 : i32
    %c0_i32_1 = arith.constant 0 : i32
    %c0_i32_2 = arith.constant 0 : i32
    return %arg0, %c0_i32, %c0_i32_0, %c0_i32_1 : i32, i32, i32, i32
  }
}

module attributes {stable_mosaic.version = 11 : i64} {
  func.func @_ln_matmul_kernel(%arg0: i32, %arg1: memref<128x32xf32, #tpu.memory_space<vmem>>, %arg2: memref<1x32xf32, #tpu.memory_space<vmem>>, %arg3: memref<1x32xf32, #tpu.memory_space<vmem>>, %arg4: memref<32x128xf32, #tpu.memory_space<vmem>>, %arg5: memref<128x128xf32, #tpu.memory_space<vmem>>) attributes {dimension_semantics = [#tpu.dimension_semantics<parallel>], iteration_bounds = array<i64: 1>, scalar_prefetch = 0 : i64, scratch_operands = 0 : i64, tpu.core_type = #tpu.core_type<tc>, window_params = [{transform_indices = @transform_0, window_bounds = array<i64: 128, 32>}, {pipeline_mode = #tpu.pipeline_mode<synchronous>, transform_indices = @transform_1, window_bounds = array<i64: 1, 32>}, {pipeline_mode = #tpu.pipeline_mode<synchronous>, transform_indices = @transform_2, window_bounds = array<i64: 1, 32>}, {pipeline_mode = #tpu.pipeline_mode<synchronous>, transform_indices = @transform_3, window_bounds = array<i64: 32, 128>}, {transform_indices = @transform_4, window_bounds = array<i64: 128, 128>}]} {
    %c0 = arith.constant 0 : index
    %c0_0 = arith.constant 0 : index
    %0 = vector.load %arg1[%c0, %c0_0] : memref<128x32xf32, #tpu.memory_space<vmem>>, vector<128x32xf32>
    %cst = arith.constant dense<0.000000e+00> : vector<128xf32>
    %1 = vector.multi_reduction <add>, %0, %cst [1] : vector<128x32xf32> to vector<128xf32>
    %2 = vector.shape_cast %1 : vector<128xf32> to vector<128x1xf32>
    %cst_1 = arith.constant 3.200000e+01 : f32
    %3 = vector.broadcast %cst_1 : f32 to vector<128x1xf32>
    %4 = arith.divf %2, %3 : vector<128x1xf32>
    %5 = vector.broadcast %4 : vector<128x1xf32> to vector<128x32xf32>
    %6 = arith.subf %0, %5 : vector<128x32xf32>
    %7 = arith.mulf %6, %6 : vector<128x32xf32>
    %cst_2 = arith.constant dense<0.000000e+00> : vector<128xf32>
    %8 = vector.multi_reduction <add>, %7, %cst_2 [1] : vector<128x32xf32> to vector<128xf32>
    %9 = vector.shape_cast %8 : vector<128xf32> to vector<128x1xf32>
    %cst_3 = arith.constant 3.200000e+01 : f32
    %10 = vector.broadcast %cst_3 : f32 to vector<128x1xf32>
    %11 = arith.divf %9, %10 : vector<128x1xf32>
    %cst_4 = arith.constant 9.99999997E-7 : f32
    %12 = vector.broadcast %cst_4 : f32 to vector<128x1xf32>
    %13 = arith.addf %11, %12 : vector<128x1xf32>
    %14 = math.rsqrt %13 : vector<128x1xf32>
    %15 = vector.broadcast %14 : vector<128x1xf32> to vector<128x32xf32>
    %16 = arith.mulf %6, %15 : vector<128x32xf32>
    %c0_5 = arith.constant 0 : index
    %c0_6 = arith.constant 0 : index
    %17 = vector.load %arg2[%c0_5, %c0_6] : memref<1x32xf32, #tpu.memory_space<vmem>>, vector<1x32xf32>
    %18 = vector.shape_cast %17 : vector<1x32xf32> to vector<32xf32>
    %19 = vector.shape_cast %18 : vector<32xf32> to vector<1x32xf32>
    %20 = vector.broadcast %19 : vector<1x32xf32> to vector<128x32xf32>
    %21 = arith.mulf %16, %20 : vector<128x32xf32>
    %c0_7 = arith.constant 0 : index
    %c0_8 = arith.constant 0 : index
    %22 = vector.load %arg3[%c0_7, %c0_8] : memref<1x32xf32, #tpu.memory_space<vmem>>, vector<1x32xf32>
    %23 = vector.shape_cast %22 : vector<1x32xf32> to vector<32xf32>
    %24 = vector.shape_cast %23 : vector<32xf32> to vector<1x32xf32>
    %25 = vector.broadcast %24 : vector<1x32xf32> to vector<128x32xf32>
    %26 = arith.addf %21, %25 : vector<128x32xf32>
    %c0_9 = arith.constant 0 : index
    %c0_10 = arith.constant 0 : index
    %27 = vector.load %arg4[%c0_9, %c0_10] : memref<32x128xf32, #tpu.memory_space<vmem>>, vector<32x128xf32>
    %cst_11 = arith.constant dense<0.000000e+00> : vector<128x128xf32>
    %28 = tpu.matmul %26, %27, %cst_11 {dimension_numbers = #tpu.dot_dimension_numbers<[1], [0], [0], [1], [0, 0, 1, 1], [], []>} : vector<128x32xf32>, vector<32x128xf32>, vector<128x128xf32> -> vector<128x128xf32>
    %c0_12 = arith.constant 0 : index
    %c0_13 = arith.constant 0 : index
    %29 = vector.load %arg5[%c0_12, %c0_13] : memref<128x128xf32, #tpu.memory_space<vmem>>, vector<128x128xf32>
    tpu.vector_store %arg5[%c0_12, %c0_13], %28 {strides = array<i32>} : memref<128x128xf32, #tpu.memory_space<vmem>>, vector<128x128xf32>,
    return
  }
  func.func @transform_0(%arg0: i32) -> (i32, i32) {
    %c0_i32 = arith.constant 0 : i32
    %c0_i32_0 = arith.constant 0 : i32
    return %arg0, %c0_i32 : i32, i32
  }
  func.func @transform_1(%arg0: i32) -> (i32, i32) {
    %c0_i32 = arith.constant 0 : i32
    %c0_i32_0 = arith.constant 0 : i32
    %c0_i32_1 = arith.constant 0 : i32
    return %c0_i32, %c0_i32_0 : i32, i32
  }
  func.func @transform_2(%arg0: i32) -> (i32, i32) {
    %c0_i32 = arith.constant 0 : i32
    %c0_i32_0 = arith.constant 0 : i32
    %c0_i32_1 = arith.constant 0 : i32
    return %c0_i32, %c0_i32_0 : i32, i32
  }
  func.func @transform_3(%arg0: i32) -> (i32, i32) {
    %c0_i32 = arith.constant 0 : i32
    %c0_i32_0 = arith.constant 0 : i32
    %c0_i32_1 = arith.constant 0 : i32
    return %c0_i32, %c0_i32_0 : i32, i32
  }
  func.func @transform_4(%arg0: i32) -> (i32, i32) {
    %c0_i32 = arith.constant 0 : i32
    %c0_i32_0 = arith.constant 0 : i32
    return %arg0, %c0_i32 : i32, i32
  }
}

module attributes {stable_mosaic.version = 11 : i64} {
  func.func @_dwconv3x3_kernel(%arg0: i32, %arg1: memref<1x10x10x64xf32, #tpu.memory_space<vmem>>, %arg2: memref<3x3x64xf32, #tpu.memory_space<vmem>>, %arg3: memref<1x64xf32, #tpu.memory_space<vmem>>, %arg4: memref<1x8x8x64xf32, #tpu.memory_space<vmem>>) attributes {dimension_semantics = [#tpu.dimension_semantics<parallel>], iteration_bounds = array<i64: 2>, scalar_prefetch = 0 : i64, scratch_operands = 0 : i64, tpu.core_type = #tpu.core_type<tc>, window_params = [{transform_indices = @transform_0, window_bounds = array<i64: 1, 10, 10, 64>}, {pipeline_mode = #tpu.pipeline_mode<synchronous>, transform_indices = @transform_1, window_bounds = array<i64: 3, 3, 64>}, {pipeline_mode = #tpu.pipeline_mode<synchronous>, transform_indices = @transform_2, window_bounds = array<i64: 1, 64>}, {transform_indices = @transform_3, window_bounds = array<i64: 1, 8, 8, 64>}]} {
    %c0 = arith.constant 0 : index
    %c0_0 = arith.constant 0 : index
    %c0_1 = arith.constant 0 : index
    %c0_2 = arith.constant 0 : index
    %0 = vector.load %arg1[%c0, %c0_0, %c0_1, %c0_2] : memref<1x10x10x64xf32, #tpu.memory_space<vmem>>, vector<1x10x10x64xf32>
    %1 = vector.shape_cast %0 : vector<1x10x10x64xf32> to vector<10x10x64xf32>
    %cst = arith.constant 0.000000e+00 : f32
    %2 = vector.broadcast %cst : f32 to vector<8x8x64xf32>
    %3 = vector.extract_strided_slice %1 {offsets = [0, 0, 0], sizes = [8, 8, 64], strides = [1, 1, 1]} : vector<10x10x64xf32> to vector<8x8x64xf32>
    %c0_3 = arith.constant 0 : index
    %c0_4 = arith.constant 0 : index
    %c0_5 = arith.constant 0 : index
    %4 = vector.load %arg2[%c0_3, %c0_4, %c0_5] : memref<3x3x64xf32, #tpu.memory_space<vmem>>, vector<1x1x64xf32>
    %5 = vector.shape_cast %4 : vector<1x1x64xf32> to vector<64xf32>
    %6 = vector.shape_cast %5 : vector<64xf32> to vector<1x1x64xf32>
    %7 = vector.broadcast %6 : vector<1x1x64xf32> to vector<8x8x64xf32>
    %8 = arith.mulf %3, %7 : vector<8x8x64xf32>
    %9 = arith.addf %2, %8 : vector<8x8x64xf32>
    %10 = vector.extract_strided_slice %1 {offsets = [0, 1, 0], sizes = [8, 8, 64], strides = [1, 1, 1]} : vector<10x10x64xf32> to vector<8x8x64xf32>
    %c0_6 = arith.constant 0 : index
    %c1 = arith.constant 1 : index
    %c0_7 = arith.constant 0 : index
    %11 = vector.load %arg2[%c0_6, %c1, %c0_7] : memref<3x3x64xf32, #tpu.memory_space<vmem>>, vector<1x1x64xf32>
    %12 = vector.shape_cast %11 : vector<1x1x64xf32> to vector<64xf32>
    %13 = vector.shape_cast %12 : vector<64xf32> to vector<1x1x64xf32>
    %14 = vector.broadcast %13 : vector<1x1x64xf32> to vector<8x8x64xf32>
    %15 = arith.mulf %10, %14 : vector<8x8x64xf32>
    %16 = arith.addf %9, %15 : vector<8x8x64xf32>
    %17 = vector.extract_strided_slice %1 {offsets = [0, 2, 0], sizes = [8, 8, 64], strides = [1, 1, 1]} : vector<10x10x64xf32> to vector<8x8x64xf32>
    %c0_8 = arith.constant 0 : index
    %c2 = arith.constant 2 : index
    %c0_9 = arith.constant 0 : index
    %18 = vector.load %arg2[%c0_8, %c2, %c0_9] : memref<3x3x64xf32, #tpu.memory_space<vmem>>, vector<1x1x64xf32>
    %19 = vector.shape_cast %18 : vector<1x1x64xf32> to vector<64xf32>
    %20 = vector.shape_cast %19 : vector<64xf32> to vector<1x1x64xf32>
    %21 = vector.broadcast %20 : vector<1x1x64xf32> to vector<8x8x64xf32>
    %22 = arith.mulf %17, %21 : vector<8x8x64xf32>
    %23 = arith.addf %16, %22 : vector<8x8x64xf32>
    %24 = vector.extract_strided_slice %1 {offsets = [1, 0, 0], sizes = [8, 8, 64], strides = [1, 1, 1]} : vector<10x10x64xf32> to vector<8x8x64xf32>
    %c1_10 = arith.constant 1 : index
    %c0_11 = arith.constant 0 : index
    %c0_12 = arith.constant 0 : index
    %25 = vector.load %arg2[%c1_10, %c0_11, %c0_12] : memref<3x3x64xf32, #tpu.memory_space<vmem>>, vector<1x1x64xf32>
    %26 = vector.shape_cast %25 : vector<1x1x64xf32> to vector<64xf32>
    %27 = vector.shape_cast %26 : vector<64xf32> to vector<1x1x64xf32>
    %28 = vector.broadcast %27 : vector<1x1x64xf32> to vector<8x8x64xf32>
    %29 = arith.mulf %24, %28 : vector<8x8x64xf32>
    %30 = arith.addf %23, %29 : vector<8x8x64xf32>
    %31 = vector.extract_strided_slice %1 {offsets = [1, 1, 0], sizes = [8, 8, 64], strides = [1, 1, 1]} : vector<10x10x64xf32> to vector<8x8x64xf32>
    %c1_13 = arith.constant 1 : index
    %c1_14 = arith.constant 1 : index
    %c0_15 = arith.constant 0 : index
    %32 = vector.load %arg2[%c1_13, %c1_14, %c0_15] : memref<3x3x64xf32, #tpu.memory_space<vmem>>, vector<1x1x64xf32>
    %33 = vector.shape_cast %32 : vector<1x1x64xf32> to vector<64xf32>
    %34 = vector.shape_cast %33 : vector<64xf32> to vector<1x1x64xf32>
    %35 = vector.broadcast %34 : vector<1x1x64xf32> to vector<8x8x64xf32>
    %36 = arith.mulf %31, %35 : vector<8x8x64xf32>
    %37 = arith.addf %30, %36 : vector<8x8x64xf32>
    %38 = vector.extract_strided_slice %1 {offsets = [1, 2, 0], sizes = [8, 8, 64], strides = [1, 1, 1]} : vector<10x10x64xf32> to vector<8x8x64xf32>
    %c1_16 = arith.constant 1 : index
    %c2_17 = arith.constant 2 : index
    %c0_18 = arith.constant 0 : index
    %39 = vector.load %arg2[%c1_16, %c2_17, %c0_18] : memref<3x3x64xf32, #tpu.memory_space<vmem>>, vector<1x1x64xf32>
    %40 = vector.shape_cast %39 : vector<1x1x64xf32> to vector<64xf32>
    %41 = vector.shape_cast %40 : vector<64xf32> to vector<1x1x64xf32>
    %42 = vector.broadcast %41 : vector<1x1x64xf32> to vector<8x8x64xf32>
    %43 = arith.mulf %38, %42 : vector<8x8x64xf32>
    %44 = arith.addf %37, %43 : vector<8x8x64xf32>
    %45 = vector.extract_strided_slice %1 {offsets = [2, 0, 0], sizes = [8, 8, 64], strides = [1, 1, 1]} : vector<10x10x64xf32> to vector<8x8x64xf32>
    %c2_19 = arith.constant 2 : index
    %c0_20 = arith.constant 0 : index
    %c0_21 = arith.constant 0 : index
    %46 = vector.load %arg2[%c2_19, %c0_20, %c0_21] : memref<3x3x64xf32, #tpu.memory_space<vmem>>, vector<1x1x64xf32>
    %47 = vector.shape_cast %46 : vector<1x1x64xf32> to vector<64xf32>
    %48 = vector.shape_cast %47 : vector<64xf32> to vector<1x1x64xf32>
    %49 = vector.broadcast %48 : vector<1x1x64xf32> to vector<8x8x64xf32>
    %50 = arith.mulf %45, %49 : vector<8x8x64xf32>
    %51 = arith.addf %44, %50 : vector<8x8x64xf32>
    %52 = vector.extract_strided_slice %1 {offsets = [2, 1, 0], sizes = [8, 8, 64], strides = [1, 1, 1]} : vector<10x10x64xf32> to vector<8x8x64xf32>
    %c2_22 = arith.constant 2 : index
    %c1_23 = arith.constant 1 : index
    %c0_24 = arith.constant 0 : index
    %53 = vector.load %arg2[%c2_22, %c1_23, %c0_24] : memref<3x3x64xf32, #tpu.memory_space<vmem>>, vector<1x1x64xf32>
    %54 = vector.shape_cast %53 : vector<1x1x64xf32> to vector<64xf32>
    %55 = vector.shape_cast %54 : vector<64xf32> to vector<1x1x64xf32>
    %56 = vector.broadcast %55 : vector<1x1x64xf32> to vector<8x8x64xf32>
    %57 = arith.mulf %52, %56 : vector<8x8x64xf32>
    %58 = arith.addf %51, %57 : vector<8x8x64xf32>
    %59 = vector.extract_strided_slice %1 {offsets = [2, 2, 0], sizes = [8, 8, 64], strides = [1, 1, 1]} : vector<10x10x64xf32> to vector<8x8x64xf32>
    %c2_25 = arith.constant 2 : index
    %c2_26 = arith.constant 2 : index
    %c0_27 = arith.constant 0 : index
    %60 = vector.load %arg2[%c2_25, %c2_26, %c0_27] : memref<3x3x64xf32, #tpu.memory_space<vmem>>, vector<1x1x64xf32>
    %61 = vector.shape_cast %60 : vector<1x1x64xf32> to vector<64xf32>
    %62 = vector.shape_cast %61 : vector<64xf32> to vector<1x1x64xf32>
    %63 = vector.broadcast %62 : vector<1x1x64xf32> to vector<8x8x64xf32>
    %64 = arith.mulf %59, %63 : vector<8x8x64xf32>
    %65 = arith.addf %58, %64 : vector<8x8x64xf32>
    %c0_28 = arith.constant 0 : index
    %c0_29 = arith.constant 0 : index
    %66 = vector.load %arg3[%c0_28, %c0_29] : memref<1x64xf32, #tpu.memory_space<vmem>>, vector<1x64xf32>
    %67 = vector.shape_cast %66 : vector<1x64xf32> to vector<64xf32>
    %68 = vector.shape_cast %67 : vector<64xf32> to vector<1x1x64xf32>
    %69 = vector.broadcast %68 : vector<1x1x64xf32> to vector<8x8x64xf32>
    %70 = arith.addf %65, %69 : vector<8x8x64xf32>
    %71 = arith.negf %70 : vector<8x8x64xf32>
    %72 = math.exp %71 : vector<8x8x64xf32>
    %cst_30 = arith.constant 1.000000e+00 : f32
    %73 = vector.broadcast %cst_30 : f32 to vector<8x8x64xf32>
    %74 = arith.addf %73, %72 : vector<8x8x64xf32>
    %75 = arith.divf %73, %74 : vector<8x8x64xf32>
    %76 = arith.mulf %70, %75 : vector<8x8x64xf32>
    %c0_31 = arith.constant 0 : index
    %c0_32 = arith.constant 0 : index
    %c0_33 = arith.constant 0 : index
    %c0_34 = arith.constant 0 : index
    %77 = vector.load %arg4[%c0_31, %c0_32, %c0_33, %c0_34] : memref<1x8x8x64xf32, #tpu.memory_space<vmem>>, vector<1x8x8x64xf32>
    %78 = vector.shape_cast %77 : vector<1x8x8x64xf32> to vector<8x8x64xf32>
    %79 = vector.shape_cast %76 : vector<8x8x64xf32> to vector<1x8x8x64xf32>
    tpu.vector_store %arg4[%c0_31, %c0_32, %c0_33, %c0_34], %79 {strides = array<i32>} : memref<1x8x8x64xf32, #tpu.memory_space<vmem>>, vector<1x8x8x64xf32>,
    return
  }
  func.func @transform_0(%arg0: i32) -> (i32, i32, i32, i32) {
    %c0_i32 = arith.constant 0 : i32
    %c0_i32_0 = arith.constant 0 : i32
    %c0_i32_1 = arith.constant 0 : i32
    %c0_i32_2 = arith.constant 0 : i32
    return %arg0, %c0_i32, %c0_i32_0, %c0_i32_1 : i32, i32, i32, i32
  }
  func.func @transform_1(%arg0: i32) -> (i32, i32, i32) {
    %c0_i32 = arith.constant 0 : i32
    %c0_i32_0 = arith.constant 0 : i32
    %c0_i32_1 = arith.constant 0 : i32
    %c0_i32_2 = arith.constant 0 : i32
    return %c0_i32, %c0_i32_0, %c0_i32_1 : i32, i32, i32
  }
  func.func @transform_2(%arg0: i32) -> (i32, i32) {
    %c0_i32 = arith.constant 0 : i32
    %c0_i32_0 = arith.constant 0 : i32
    %c0_i32_1 = arith.constant 0 : i32
    return %c0_i32, %c0_i32_0 : i32, i32
  }
  func.func @transform_3(%arg0: i32) -> (i32, i32, i32, i32) {
    %c0_i32 = arith.constant 0 : i32
    %c0_i32_0 = arith.constant 0 : i32
    %c0_i32_1 = arith.constant 0 : i32
    %c0_i32_2 = arith.constant 0 : i32
    return %arg0, %c0_i32, %c0_i32_0, %c0_i32_1 : i32, i32, i32, i32
  }
}

module attributes {stable_mosaic.version = 11 : i64} {
  func.func @_scan_kernel(%arg0: i32, %arg1: i32, %arg2: memref<1x64x64xf32, #tpu.memory_space<vmem>>, %arg3: memref<64x64xf32, #tpu.memory_space<vmem>>, %arg4: memref<1x64xf32, #tpu.memory_space<vmem>>, %arg5: memref<1x64xf32, #tpu.memory_space<vmem>>, %arg6: memref<1x64xf32, #tpu.memory_space<vmem>>, %arg7: memref<1x64x64xf32, #tpu.memory_space<vmem>>, %arg8: memref<64x64xf32, #tpu.memory_space<vmem>>, %arg9: memref<64x64xf32, #tpu.memory_space<vmem>>, %arg10: memref<1x64xf32, #tpu.memory_space<vmem>>, %arg11: memref<8x64xf32, #tpu.memory_space<vmem>>) attributes {dimension_semantics = [#tpu.dimension_semantics<parallel>, #tpu.dimension_semantics<arbitrary>], iteration_bounds = array<i64: 2, 1>, scalar_prefetch = 0 : i64, scratch_operands = 4 : i64, tpu.core_type = #tpu.core_type<tc>, window_params = [{transform_indices = @transform_0, window_bounds = array<i64: 1, 64, 64>}, {pipeline_mode = #tpu.pipeline_mode<synchronous>, transform_indices = @transform_1, window_bounds = array<i64: 64, 64>}, {pipeline_mode = #tpu.pipeline_mode<synchronous>, transform_indices = @transform_2, window_bounds = array<i64: 1, 64>}, {pipeline_mode = #tpu.pipeline_mode<synchronous>, transform_indices = @transform_3, window_bounds = array<i64: 1, 64>}, {pipeline_mode = #tpu.pipeline_mode<synchronous>, transform_indices = @transform_4, window_bounds = array<i64: 1, 64>}, {transform_indices = @transform_5, window_bounds = array<i64: 1, 64, 64>}]} {
    %c0_i32 = arith.constant 0 : i32
    %0 = arith.cmpi eq, %arg1, %c0_i32 : i32
    %1 = arith.extui %0 : i1 to i32
    %c0_i32_0 = arith.constant 0 : i32
    %2 = arith.cmpi ne, %1, %c0_i32_0 : i32
    scf.if %2 {
      %cst_24 = arith.constant 0.000000e+00 : f32
      %41 = vector.broadcast %cst_24 : f32 to vector<1x64xf32>
      %c0_25 = arith.constant 0 : index
      %c0_26 = arith.constant 0 : index
      %42 = vector.load %arg10[%c0_25, %c0_26] : memref<1x64xf32, #tpu.memory_space<vmem>>, vector<1x64xf32>
      tpu.vector_store %arg10[%c0_25, %c0_26], %41 {strides = array<i32>} : memref<1x64xf32, #tpu.memory_space<vmem>>, vector<1x64xf32>,
    } else {
    }
    %c0 = arith.constant 0 : index
    %c0_1 = arith.constant 0 : index
    %c0_2 = arith.constant 0 : index
    %3 = vector.load %arg2[%c0, %c0_1, %c0_2] : memref<1x64x64xf32, #tpu.memory_space<vmem>>, vector<1x64x64xf32>
    %4 = vector.shape_cast %3 : vector<1x64x64xf32> to vector<64x64xf32>
    %c0_3 = arith.constant 0 : index
    %c0_4 = arith.constant 0 : index
    %5 = vector.load %arg3[%c0_3, %c0_4] : memref<64x64xf32, #tpu.memory_space<vmem>>, vector<64x64xf32>
    %cst = arith.constant dense<0.000000e+00> : vector<64x64xf32>
    %6 = tpu.matmul %4, %5, %cst {dimension_numbers = #tpu.dot_dimension_numbers<[1], [0], [0], [1], [0, 0, 1, 1], [], []>} : vector<64x64xf32>, vector<64x64xf32>, vector<64x64xf32> -> vector<64x64xf32>
    %c0_5 = arith.constant 0 : index
    %c0_6 = arith.constant 0 : index
    %7 = vector.load %arg6[%c0_5, %c0_6] : memref<1x64xf32, #tpu.memory_space<vmem>>, vector<1x64xf32>
    %8 = vector.shape_cast %7 : vector<1x64xf32> to vector<64xf32>
    %9 = vector.shape_cast %8 : vector<64xf32> to vector<1x64xf32>
    %10 = vector.broadcast %9 : vector<1x64xf32> to vector<64x64xf32>
    %11 = arith.addf %6, %10 : vector<64x64xf32>
    %cst_7 = arith.constant 2.000000e+01 : f32
    %12 = vector.broadcast %cst_7 : f32 to vector<64x64xf32>
    %13 = arith.cmpf ogt, %11, %12 : vector<64x64xf32>
    %cst_8 = arith.constant 2.000000e+01 : f32
    %14 = vector.broadcast %cst_8 : f32 to vector<64x64xf32>
    %15 = arith.minimumf %11, %14 : vector<64x64xf32>
    %16 = math.exp %15 : vector<64x64xf32>
    %17 = math.log1p %16 : vector<64x64xf32>
    %18 = arith.select %13, %11, %17 : vector<64x64xi1>, vector<64x64xf32>
    %c0_9 = arith.constant 0 : index
    %c0_10 = arith.constant 0 : index
    %19 = vector.load %arg4[%c0_9, %c0_10] : memref<1x64xf32, #tpu.memory_space<vmem>>, vector<1x64xf32>
    %20 = vector.shape_cast %19 : vector<1x64xf32> to vector<64xf32>
    %21 = vector.shape_cast %20 : vector<64xf32> to vector<1x64xf32>
    %22 = vector.broadcast %21 : vector<1x64xf32> to vector<64x64xf32>
    %23 = arith.mulf %4, %22 : vector<64x64xf32>
    %cst_11 = arith.constant dense<0.000000e+00> : vector<64xf32>
    %24 = vector.multi_reduction <add>, %23, %cst_11 [1] : vector<64x64xf32> to vector<64xf32>
    %25 = vector.shape_cast %24 : vector<64xf32> to vector<64x1xf32>
    %c0_12 = arith.constant 0 : index
    %c0_13 = arith.constant 0 : index
    %26 = vector.load %arg5[%c0_12, %c0_13] : memref<1x64xf32, #tpu.memory_space<vmem>>, vector<1x64xf32>
    %27 = vector.shape_cast %26 : vector<1x64xf32> to vector<64xf32>
    %28 = vector.shape_cast %27 : vector<64xf32> to vector<1x64xf32>
    %29 = vector.broadcast %28 : vector<1x64xf32> to vector<64x64xf32>
    %30 = arith.mulf %18, %29 : vector<64x64xf32>
    %31 = math.exp %30 : vector<64x64xf32>
    %c0_14 = arith.constant 0 : index
    %c0_15 = arith.constant 0 : index
    %32 = vector.load %arg8[%c0_14, %c0_15] : memref<64x64xf32, #tpu.memory_space<vmem>>, vector<64x64xf32>
    tpu.vector_store %arg8[%c0_14, %c0_15], %31 {strides = array<i32>} : memref<64x64xf32, #tpu.memory_space<vmem>>, vector<64x64xf32>,
    %33 = vector.broadcast %25 : vector<64x1xf32> to vector<64x64xf32>
    %34 = arith.mulf %18, %33 : vector<64x64xf32>
    %35 = arith.mulf %34, %4 : vector<64x64xf32>
    %c0_16 = arith.constant 0 : index
    %c0_17 = arith.constant 0 : index
    %36 = vector.load %arg9[%c0_16, %c0_17] : memref<64x64xf32, #tpu.memory_space<vmem>>, vector<64x64xf32>
    tpu.vector_store %arg9[%c0_16, %c0_17], %35 {strides = array<i32>} : memref<64x64xf32, #tpu.memory_space<vmem>>, vector<64x64xf32>,
    %c0_18 = arith.constant 0 : index
    %c0_19 = arith.constant 0 : index
    %37 = vector.load %arg10[%c0_18, %c0_19] : memref<1x64xf32, #tpu.memory_space<vmem>>, vector<1x64xf32>
    %c0_i32_20 = arith.constant 0 : i32
    %c8_i32 = arith.constant 8 : i32
    %38 = arith.addi %c0_i32_20, %c8_i32 : i32
    %c1_i32 = arith.constant 1 : i32
    %39 = scf.for %arg12 = %c0_i32_20 to %38 step %c1_i32 iter_args(%arg13 = %37) -> (vector<1x64xf32>)  : i32 {
      %c8_i32_24 = arith.constant 8 : i32
      %41 = arith.muli %arg12, %c8_i32_24 : i32
      %42 = tpu.assume_multiple %41, 8 : i32
      %43 = arith.index_cast %42 : i32 to index
      %c0_25 = arith.constant 0 : index
      %44 = vector.load %arg8[%43, %c0_25] : memref<64x64xf32, #tpu.memory_space<vmem>>, vector<8x64xf32>
      %45 = arith.index_cast %42 : i32 to index
      %c0_26 = arith.constant 0 : index
      %46 = vector.load %arg9[%45, %c0_26] : memref<64x64xf32, #tpu.memory_space<vmem>>, vector<8x64xf32>
      %47 = vector.extract_strided_slice %44 {offsets = [0, 0], sizes = [1, 64], strides = [1, 1]} : vector<8x64xf32> to vector<1x64xf32>
      %48 = arith.mulf %47, %arg13 : vector<1x64xf32>
      %49 = vector.extract_strided_slice %46 {offsets = [0, 0], sizes = [1, 64], strides = [1, 1]} : vector<8x64xf32> to vector<1x64xf32>
      %50 = arith.addf %48, %49 : vector<1x64xf32>
      %c0_27 = arith.constant 0 : index
      %c0_28 = arith.constant 0 : index
      %51 = vector.load %arg11[%c0_27, %c0_28] : memref<8x64xf32, #tpu.memory_space<vmem>>, vector<1x64xf32>
      tpu.vector_store %arg11[%c0_27, %c0_28], %50 {strides = array<i32>} : memref<8x64xf32, #tpu.memory_space<vmem>>, vector<1x64xf32>,
      %52 = vector.extract_strided_slice %44 {offsets = [1, 0], sizes = [1, 64], strides = [1, 1]} : vector<8x64xf32> to vector<1x64xf32>
      %53 = arith.mulf %52, %50 : vector<1x64xf32>
      %54 = vector.extract_strided_slice %46 {offsets = [1, 0], sizes = [1, 64], strides = [1, 1]} : vector<8x64xf32> to vector<1x64xf32>
      %55 = arith.addf %53, %54 : vector<1x64xf32>
      %c1 = arith.constant 1 : index
      %c0_29 = arith.constant 0 : index
      %56 = vector.load %arg11[%c1, %c0_29] : memref<8x64xf32, #tpu.memory_space<vmem>>, vector<1x64xf32>
      tpu.vector_store %arg11[%c1, %c0_29], %55 {strides = array<i32>} : memref<8x64xf32, #tpu.memory_space<vmem>>, vector<1x64xf32>,
      %57 = vector.extract_strided_slice %44 {offsets = [2, 0], sizes = [1, 64], strides = [1, 1]} : vector<8x64xf32> to vector<1x64xf32>
      %58 = arith.mulf %57, %55 : vector<1x64xf32>
      %59 = vector.extract_strided_slice %46 {offsets = [2, 0], sizes = [1, 64], strides = [1, 1]} : vector<8x64xf32> to vector<1x64xf32>
      %60 = arith.addf %58, %59 : vector<1x64xf32>
      %c2 = arith.constant 2 : index
      %c0_30 = arith.constant 0 : index
      %61 = vector.load %arg11[%c2, %c0_30] : memref<8x64xf32, #tpu.memory_space<vmem>>, vector<1x64xf32>
      tpu.vector_store %arg11[%c2, %c0_30], %60 {strides = array<i32>} : memref<8x64xf32, #tpu.memory_space<vmem>>, vector<1x64xf32>,
      %62 = vector.extract_strided_slice %44 {offsets = [3, 0], sizes = [1, 64], strides = [1, 1]} : vector<8x64xf32> to vector<1x64xf32>
      %63 = arith.mulf %62, %60 : vector<1x64xf32>
      %64 = vector.extract_strided_slice %46 {offsets = [3, 0], sizes = [1, 64], strides = [1, 1]} : vector<8x64xf32> to vector<1x64xf32>
      %65 = arith.addf %63, %64 : vector<1x64xf32>
      %c3 = arith.constant 3 : index
      %c0_31 = arith.constant 0 : index
      %66 = vector.load %arg11[%c3, %c0_31] : memref<8x64xf32, #tpu.memory_space<vmem>>, vector<1x64xf32>
      tpu.vector_store %arg11[%c3, %c0_31], %65 {strides = array<i32>} : memref<8x64xf32, #tpu.memory_space<vmem>>, vector<1x64xf32>,
      %67 = vector.extract_strided_slice %44 {offsets = [4, 0], sizes = [1, 64], strides = [1, 1]} : vector<8x64xf32> to vector<1x64xf32>
      %68 = arith.mulf %67, %65 : vector<1x64xf32>
      %69 = vector.extract_strided_slice %46 {offsets = [4, 0], sizes = [1, 64], strides = [1, 1]} : vector<8x64xf32> to vector<1x64xf32>
      %70 = arith.addf %68, %69 : vector<1x64xf32>
      %c4 = arith.constant 4 : index
      %c0_32 = arith.constant 0 : index
      %71 = vector.load %arg11[%c4, %c0_32] : memref<8x64xf32, #tpu.memory_space<vmem>>, vector<1x64xf32>
      tpu.vector_store %arg11[%c4, %c0_32], %70 {strides = array<i32>} : memref<8x64xf32, #tpu.memory_space<vmem>>, vector<1x64xf32>,
      %72 = vector.extract_strided_slice %44 {offsets = [5, 0], sizes = [1, 64], strides = [1, 1]} : vector<8x64xf32> to vector<1x64xf32>
      %73 = arith.mulf %72, %70 : vector<1x64xf32>
      %74 = vector.extract_strided_slice %46 {offsets = [5, 0], sizes = [1, 64], strides = [1, 1]} : vector<8x64xf32> to vector<1x64xf32>
      %75 = arith.addf %73, %74 : vector<1x64xf32>
      %c5 = arith.constant 5 : index
      %c0_33 = arith.constant 0 : index
      %76 = vector.load %arg11[%c5, %c0_33] : memref<8x64xf32, #tpu.memory_space<vmem>>, vector<1x64xf32>
      tpu.vector_store %arg11[%c5, %c0_33], %75 {strides = array<i32>} : memref<8x64xf32, #tpu.memory_space<vmem>>, vector<1x64xf32>,
      %77 = vector.extract_strided_slice %44 {offsets = [6, 0], sizes = [1, 64], strides = [1, 1]} : vector<8x64xf32> to vector<1x64xf32>
      %78 = arith.mulf %77, %75 : vector<1x64xf32>
      %79 = vector.extract_strided_slice %46 {offsets = [6, 0], sizes = [1, 64], strides = [1, 1]} : vector<8x64xf32> to vector<1x64xf32>
      %80 = arith.addf %78, %79 : vector<1x64xf32>
      %c6 = arith.constant 6 : index
      %c0_34 = arith.constant 0 : index
      %81 = vector.load %arg11[%c6, %c0_34] : memref<8x64xf32, #tpu.memory_space<vmem>>, vector<1x64xf32>
      tpu.vector_store %arg11[%c6, %c0_34], %80 {strides = array<i32>} : memref<8x64xf32, #tpu.memory_space<vmem>>, vector<1x64xf32>,
      %82 = vector.extract_strided_slice %44 {offsets = [7, 0], sizes = [1, 64], strides = [1, 1]} : vector<8x64xf32> to vector<1x64xf32>
      %83 = arith.mulf %82, %80 : vector<1x64xf32>
      %84 = vector.extract_strided_slice %46 {offsets = [7, 0], sizes = [1, 64], strides = [1, 1]} : vector<8x64xf32> to vector<1x64xf32>
      %85 = arith.addf %83, %84 : vector<1x64xf32>
      %c7 = arith.constant 7 : index
      %c0_35 = arith.constant 0 : index
      %86 = vector.load %arg11[%c7, %c0_35] : memref<8x64xf32, #tpu.memory_space<vmem>>, vector<1x64xf32>
      tpu.vector_store %arg11[%c7, %c0_35], %85 {strides = array<i32>} : memref<8x64xf32, #tpu.memory_space<vmem>>, vector<1x64xf32>,
      %c0_36 = arith.constant 0 : index
      %c0_37 = arith.constant 0 : index
      %87 = vector.load %arg11[%c0_36, %c0_37] : memref<8x64xf32, #tpu.memory_space<vmem>>, vector<8x64xf32>
      %c0_38 = arith.constant 0 : index
      %88 = arith.index_cast %42 : i32 to index
      %c0_39 = arith.constant 0 : index
      %89 = vector.load %arg7[%c0_38, %88, %c0_39] : memref<1x64x64xf32, #tpu.memory_space<vmem>>, vector<1x8x64xf32>
      %90 = vector.shape_cast %89 : vector<1x8x64xf32> to vector<8x64xf32>
      %91 = vector.shape_cast %87 : vector<8x64xf32> to vector<1x8x64xf32>
      tpu.vector_store %arg7[%c0_38, %88, %c0_39], %91 {strides = array<i32>} : memref<1x64x64xf32, #tpu.memory_space<vmem>>, vector<1x8x64xf32>,
      scf.yield %85 : vector<1x64xf32>
    }
    %c8_i32_21 = arith.constant 8 : i32
    %c0_22 = arith.constant 0 : index
    %c0_23 = arith.constant 0 : index
    %40 = vector.load %arg10[%c0_22, %c0_23] : memref<1x64xf32, #tpu.memory_space<vmem>>, vector<1x64xf32>
    tpu.vector_store %arg10[%c0_22, %c0_23], %39 {strides = array<i32>} : memref<1x64xf32, #tpu.memory_space<vmem>>, vector<1x64xf32>,
    return
  }
  func.func @transform_0(%arg0: i32, %arg1: i32) -> (i32, i32, i32) {
    %c0_i32 = arith.constant 0 : i32
    %c0_i32_0 = arith.constant 0 : i32
    return %arg0, %arg1, %c0_i32 : i32, i32, i32
  }
  func.func @transform_1(%arg0: i32, %arg1: i32) -> (i32, i32) {
    %c0_i32 = arith.constant 0 : i32
    %c0_i32_0 = arith.constant 0 : i32
    %c0_i32_1 = arith.constant 0 : i32
    return %c0_i32, %c0_i32_0 : i32, i32
  }
  func.func @transform_2(%arg0: i32, %arg1: i32) -> (i32, i32) {
    %c0_i32 = arith.constant 0 : i32
    %c0_i32_0 = arith.constant 0 : i32
    %c0_i32_1 = arith.constant 0 : i32
    return %c0_i32, %c0_i32_0 : i32, i32
  }
  func.func @transform_3(%arg0: i32, %arg1: i32) -> (i32, i32) {
    %c0_i32 = arith.constant 0 : i32
    %c0_i32_0 = arith.constant 0 : i32
    %c0_i32_1 = arith.constant 0 : i32
    return %c0_i32, %c0_i32_0 : i32, i32
  }
  func.func @transform_4(%arg0: i32, %arg1: i32) -> (i32, i32) {
    %c0_i32 = arith.constant 0 : i32
    %c0_i32_0 = arith.constant 0 : i32
    %c0_i32_1 = arith.constant 0 : i32
    return %c0_i32, %c0_i32_0 : i32, i32
  }
  func.func @transform_5(%arg0: i32, %arg1: i32) -> (i32, i32, i32) {
    %c0_i32 = arith.constant 0 : i32
    %c0_i32_0 = arith.constant 0 : i32
    return %arg0, %arg1, %c0_i32 : i32, i32, i32
  }
}

module attributes {stable_mosaic.version = 11 : i64} {
  func.func @_state_fusion_kernel(%arg0: i32, %arg1: memref<1x18x18x64xf32, #tpu.memory_space<vmem>>, %arg2: memref<3x3x64xf32, #tpu.memory_space<vmem>>, %arg3: memref<3x3x64xf32, #tpu.memory_space<vmem>>, %arg4: memref<3x3x64xf32, #tpu.memory_space<vmem>>, %arg5: memref<1x8x8x64xf32, #tpu.memory_space<vmem>>) attributes {dimension_semantics = [#tpu.dimension_semantics<parallel>], iteration_bounds = array<i64: 2>, scalar_prefetch = 0 : i64, scratch_operands = 0 : i64, tpu.core_type = #tpu.core_type<tc>, window_params = [{transform_indices = @transform_0, window_bounds = array<i64: 1, 18, 18, 64>}, {pipeline_mode = #tpu.pipeline_mode<synchronous>, transform_indices = @transform_1, window_bounds = array<i64: 3, 3, 64>}, {pipeline_mode = #tpu.pipeline_mode<synchronous>, transform_indices = @transform_2, window_bounds = array<i64: 3, 3, 64>}, {pipeline_mode = #tpu.pipeline_mode<synchronous>, transform_indices = @transform_3, window_bounds = array<i64: 3, 3, 64>}, {transform_indices = @transform_4, window_bounds = array<i64: 1, 8, 8, 64>}]} {
    %c0 = arith.constant 0 : index
    %c0_0 = arith.constant 0 : index
    %c0_1 = arith.constant 0 : index
    %c0_2 = arith.constant 0 : index
    %0 = vector.load %arg1[%c0, %c0_0, %c0_1, %c0_2] : memref<1x18x18x64xf32, #tpu.memory_space<vmem>>, vector<1x18x18x64xf32>
    %1 = vector.shape_cast %0 : vector<1x18x18x64xf32> to vector<18x18x64xf32>
    %cst = arith.constant 0.000000e+00 : f32
    %2 = vector.broadcast %cst : f32 to vector<8x8x64xf32>
    %3 = vector.extract_strided_slice %1 {offsets = [4, 4, 0], sizes = [8, 8, 64], strides = [1, 1, 1]} : vector<18x18x64xf32> to vector<8x8x64xf32>
    %c0_3 = arith.constant 0 : index
    %c0_4 = arith.constant 0 : index
    %c0_5 = arith.constant 0 : index
    %4 = vector.load %arg2[%c0_3, %c0_4, %c0_5] : memref<3x3x64xf32, #tpu.memory_space<vmem>>, vector<1x1x64xf32>
    %5 = vector.shape_cast %4 : vector<1x1x64xf32> to vector<64xf32>
    %6 = vector.shape_cast %5 : vector<64xf32> to vector<1x1x64xf32>
    %7 = vector.broadcast %6 : vector<1x1x64xf32> to vector<8x8x64xf32>
    %8 = arith.mulf %3, %7 : vector<8x8x64xf32>
    %9 = arith.addf %2, %8 : vector<8x8x64xf32>
    %10 = vector.extract_strided_slice %1 {offsets = [4, 5, 0], sizes = [8, 8, 64], strides = [1, 1, 1]} : vector<18x18x64xf32> to vector<8x8x64xf32>
    %c0_6 = arith.constant 0 : index
    %c1 = arith.constant 1 : index
    %c0_7 = arith.constant 0 : index
    %11 = vector.load %arg2[%c0_6, %c1, %c0_7] : memref<3x3x64xf32, #tpu.memory_space<vmem>>, vector<1x1x64xf32>
    %12 = vector.shape_cast %11 : vector<1x1x64xf32> to vector<64xf32>
    %13 = vector.shape_cast %12 : vector<64xf32> to vector<1x1x64xf32>
    %14 = vector.broadcast %13 : vector<1x1x64xf32> to vector<8x8x64xf32>
    %15 = arith.mulf %10, %14 : vector<8x8x64xf32>
    %16 = arith.addf %9, %15 : vector<8x8x64xf32>
    %17 = vector.extract_strided_slice %1 {offsets = [4, 6, 0], sizes = [8, 8, 64], strides = [1, 1, 1]} : vector<18x18x64xf32> to vector<8x8x64xf32>
    %c0_8 = arith.constant 0 : index
    %c2 = arith.constant 2 : index
    %c0_9 = arith.constant 0 : index
    %18 = vector.load %arg2[%c0_8, %c2, %c0_9] : memref<3x3x64xf32, #tpu.memory_space<vmem>>, vector<1x1x64xf32>
    %19 = vector.shape_cast %18 : vector<1x1x64xf32> to vector<64xf32>
    %20 = vector.shape_cast %19 : vector<64xf32> to vector<1x1x64xf32>
    %21 = vector.broadcast %20 : vector<1x1x64xf32> to vector<8x8x64xf32>
    %22 = arith.mulf %17, %21 : vector<8x8x64xf32>
    %23 = arith.addf %16, %22 : vector<8x8x64xf32>
    %24 = vector.extract_strided_slice %1 {offsets = [5, 4, 0], sizes = [8, 8, 64], strides = [1, 1, 1]} : vector<18x18x64xf32> to vector<8x8x64xf32>
    %c1_10 = arith.constant 1 : index
    %c0_11 = arith.constant 0 : index
    %c0_12 = arith.constant 0 : index
    %25 = vector.load %arg2[%c1_10, %c0_11, %c0_12] : memref<3x3x64xf32, #tpu.memory_space<vmem>>, vector<1x1x64xf32>
    %26 = vector.shape_cast %25 : vector<1x1x64xf32> to vector<64xf32>
    %27 = vector.shape_cast %26 : vector<64xf32> to vector<1x1x64xf32>
    %28 = vector.broadcast %27 : vector<1x1x64xf32> to vector<8x8x64xf32>
    %29 = arith.mulf %24, %28 : vector<8x8x64xf32>
    %30 = arith.addf %23, %29 : vector<8x8x64xf32>
    %31 = vector.extract_strided_slice %1 {offsets = [5, 5, 0], sizes = [8, 8, 64], strides = [1, 1, 1]} : vector<18x18x64xf32> to vector<8x8x64xf32>
    %c1_13 = arith.constant 1 : index
    %c1_14 = arith.constant 1 : index
    %c0_15 = arith.constant 0 : index
    %32 = vector.load %arg2[%c1_13, %c1_14, %c0_15] : memref<3x3x64xf32, #tpu.memory_space<vmem>>, vector<1x1x64xf32>
    %33 = vector.shape_cast %32 : vector<1x1x64xf32> to vector<64xf32>
    %34 = vector.shape_cast %33 : vector<64xf32> to vector<1x1x64xf32>
    %35 = vector.broadcast %34 : vector<1x1x64xf32> to vector<8x8x64xf32>
    %36 = arith.mulf %31, %35 : vector<8x8x64xf32>
    %37 = arith.addf %30, %36 : vector<8x8x64xf32>
    %38 = vector.extract_strided_slice %1 {offsets = [5, 6, 0], sizes = [8, 8, 64], strides = [1, 1, 1]} : vector<18x18x64xf32> to vector<8x8x64xf32>
    %c1_16 = arith.constant 1 : index
    %c2_17 = arith.constant 2 : index
    %c0_18 = arith.constant 0 : index
    %39 = vector.load %arg2[%c1_16, %c2_17, %c0_18] : memref<3x3x64xf32, #tpu.memory_space<vmem>>, vector<1x1x64xf32>
    %40 = vector.shape_cast %39 : vector<1x1x64xf32> to vector<64xf32>
    %41 = vector.shape_cast %40 : vector<64xf32> to vector<1x1x64xf32>
    %42 = vector.broadcast %41 : vector<1x1x64xf32> to vector<8x8x64xf32>
    %43 = arith.mulf %38, %42 : vector<8x8x64xf32>
    %44 = arith.addf %37, %43 : vector<8x8x64xf32>
    %45 = vector.extract_strided_slice %1 {offsets = [6, 4, 0], sizes = [8, 8, 64], strides = [1, 1, 1]} : vector<18x18x64xf32> to vector<8x8x64xf32>
    %c2_19 = arith.constant 2 : index
    %c0_20 = arith.constant 0 : index
    %c0_21 = arith.constant 0 : index
    %46 = vector.load %arg2[%c2_19, %c0_20, %c0_21] : memref<3x3x64xf32, #tpu.memory_space<vmem>>, vector<1x1x64xf32>
    %47 = vector.shape_cast %46 : vector<1x1x64xf32> to vector<64xf32>
    %48 = vector.shape_cast %47 : vector<64xf32> to vector<1x1x64xf32>
    %49 = vector.broadcast %48 : vector<1x1x64xf32> to vector<8x8x64xf32>
    %50 = arith.mulf %45, %49 : vector<8x8x64xf32>
    %51 = arith.addf %44, %50 : vector<8x8x64xf32>
    %52 = vector.extract_strided_slice %1 {offsets = [6, 5, 0], sizes = [8, 8, 64], strides = [1, 1, 1]} : vector<18x18x64xf32> to vector<8x8x64xf32>
    %c2_22 = arith.constant 2 : index
    %c1_23 = arith.constant 1 : index
    %c0_24 = arith.constant 0 : index
    %53 = vector.load %arg2[%c2_22, %c1_23, %c0_24] : memref<3x3x64xf32, #tpu.memory_space<vmem>>, vector<1x1x64xf32>
    %54 = vector.shape_cast %53 : vector<1x1x64xf32> to vector<64xf32>
    %55 = vector.shape_cast %54 : vector<64xf32> to vector<1x1x64xf32>
    %56 = vector.broadcast %55 : vector<1x1x64xf32> to vector<8x8x64xf32>
    %57 = arith.mulf %52, %56 : vector<8x8x64xf32>
    %58 = arith.addf %51, %57 : vector<8x8x64xf32>
    %59 = vector.extract_strided_slice %1 {offsets = [6, 6, 0], sizes = [8, 8, 64], strides = [1, 1, 1]} : vector<18x18x64xf32> to vector<8x8x64xf32>
    %c2_25 = arith.constant 2 : index
    %c2_26 = arith.constant 2 : index
    %c0_27 = arith.constant 0 : index
    %60 = vector.load %arg2[%c2_25, %c2_26, %c0_27] : memref<3x3x64xf32, #tpu.memory_space<vmem>>, vector<1x1x64xf32>
    %61 = vector.shape_cast %60 : vector<1x1x64xf32> to vector<64xf32>
    %62 = vector.shape_cast %61 : vector<64xf32> to vector<1x1x64xf32>
    %63 = vector.broadcast %62 : vector<1x1x64xf32> to vector<8x8x64xf32>
    %64 = arith.mulf %59, %63 : vector<8x8x64xf32>
    %65 = arith.addf %58, %64 : vector<8x8x64xf32>
    %66 = vector.extract_strided_slice %1 {offsets = [2, 2, 0], sizes = [8, 8, 64], strides = [1, 1, 1]} : vector<18x18x64xf32> to vector<8x8x64xf32>
    %c0_28 = arith.constant 0 : index
    %c0_29 = arith.constant 0 : index
    %c0_30 = arith.constant 0 : index
    %67 = vector.load %arg3[%c0_28, %c0_29, %c0_30] : memref<3x3x64xf32, #tpu.memory_space<vmem>>, vector<1x1x64xf32>
    %68 = vector.shape_cast %67 : vector<1x1x64xf32> to vector<64xf32>
    %69 = vector.shape_cast %68 : vector<64xf32> to vector<1x1x64xf32>
    %70 = vector.broadcast %69 : vector<1x1x64xf32> to vector<8x8x64xf32>
    %71 = arith.mulf %66, %70 : vector<8x8x64xf32>
    %72 = arith.addf %65, %71 : vector<8x8x64xf32>
    %73 = vector.extract_strided_slice %1 {offsets = [2, 5, 0], sizes = [8, 8, 64], strides = [1, 1, 1]} : vector<18x18x64xf32> to vector<8x8x64xf32>
    %c0_31 = arith.constant 0 : index
    %c1_32 = arith.constant 1 : index
    %c0_33 = arith.constant 0 : index
    %74 = vector.load %arg3[%c0_31, %c1_32, %c0_33] : memref<3x3x64xf32, #tpu.memory_space<vmem>>, vector<1x1x64xf32>
    %75 = vector.shape_cast %74 : vector<1x1x64xf32> to vector<64xf32>
    %76 = vector.shape_cast %75 : vector<64xf32> to vector<1x1x64xf32>
    %77 = vector.broadcast %76 : vector<1x1x64xf32> to vector<8x8x64xf32>
    %78 = arith.mulf %73, %77 : vector<8x8x64xf32>
    %79 = arith.addf %72, %78 : vector<8x8x64xf32>
    %80 = vector.extract_strided_slice %1 {offsets = [2, 8, 0], sizes = [8, 8, 64], strides = [1, 1, 1]} : vector<18x18x64xf32> to vector<8x8x64xf32>
    %c0_34 = arith.constant 0 : index
    %c2_35 = arith.constant 2 : index
    %c0_36 = arith.constant 0 : index
    %81 = vector.load %arg3[%c0_34, %c2_35, %c0_36] : memref<3x3x64xf32, #tpu.memory_space<vmem>>, vector<1x1x64xf32>
    %82 = vector.shape_cast %81 : vector<1x1x64xf32> to vector<64xf32>
    %83 = vector.shape_cast %82 : vector<64xf32> to vector<1x1x64xf32>
    %84 = vector.broadcast %83 : vector<1x1x64xf32> to vector<8x8x64xf32>
    %85 = arith.mulf %80, %84 : vector<8x8x64xf32>
    %86 = arith.addf %79, %85 : vector<8x8x64xf32>
    %87 = vector.extract_strided_slice %1 {offsets = [5, 2, 0], sizes = [8, 8, 64], strides = [1, 1, 1]} : vector<18x18x64xf32> to vector<8x8x64xf32>
    %c1_37 = arith.constant 1 : index
    %c0_38 = arith.constant 0 : index
    %c0_39 = arith.constant 0 : index
    %88 = vector.load %arg3[%c1_37, %c0_38, %c0_39] : memref<3x3x64xf32, #tpu.memory_space<vmem>>, vector<1x1x64xf32>
    %89 = vector.shape_cast %88 : vector<1x1x64xf32> to vector<64xf32>
    %90 = vector.shape_cast %89 : vector<64xf32> to vector<1x1x64xf32>
    %91 = vector.broadcast %90 : vector<1x1x64xf32> to vector<8x8x64xf32>
    %92 = arith.mulf %87, %91 : vector<8x8x64xf32>
    %93 = arith.addf %86, %92 : vector<8x8x64xf32>
    %94 = vector.extract_strided_slice %1 {offsets = [5, 5, 0], sizes = [8, 8, 64], strides = [1, 1, 1]} : vector<18x18x64xf32> to vector<8x8x64xf32>
    %c1_40 = arith.constant 1 : index
    %c1_41 = arith.constant 1 : index
    %c0_42 = arith.constant 0 : index
    %95 = vector.load %arg3[%c1_40, %c1_41, %c0_42] : memref<3x3x64xf32, #tpu.memory_space<vmem>>, vector<1x1x64xf32>
    %96 = vector.shape_cast %95 : vector<1x1x64xf32> to vector<64xf32>
    %97 = vector.shape_cast %96 : vector<64xf32> to vector<1x1x64xf32>
    %98 = vector.broadcast %97 : vector<1x1x64xf32> to vector<8x8x64xf32>
    %99 = arith.mulf %94, %98 : vector<8x8x64xf32>
    %100 = arith.addf %93, %99 : vector<8x8x64xf32>
    %101 = vector.extract_strided_slice %1 {offsets = [5, 8, 0], sizes = [8, 8, 64], strides = [1, 1, 1]} : vector<18x18x64xf32> to vector<8x8x64xf32>
    %c1_43 = arith.constant 1 : index
    %c2_44 = arith.constant 2 : index
    %c0_45 = arith.constant 0 : index
    %102 = vector.load %arg3[%c1_43, %c2_44, %c0_45] : memref<3x3x64xf32, #tpu.memory_space<vmem>>, vector<1x1x64xf32>
    %103 = vector.shape_cast %102 : vector<1x1x64xf32> to vector<64xf32>
    %104 = vector.shape_cast %103 : vector<64xf32> to vector<1x1x64xf32>
    %105 = vector.broadcast %104 : vector<1x1x64xf32> to vector<8x8x64xf32>
    %106 = arith.mulf %101, %105 : vector<8x8x64xf32>
    %107 = arith.addf %100, %106 : vector<8x8x64xf32>
    %108 = vector.extract_strided_slice %1 {offsets = [8, 2, 0], sizes = [8, 8, 64], strides = [1, 1, 1]} : vector<18x18x64xf32> to vector<8x8x64xf32>
    %c2_46 = arith.constant 2 : index
    %c0_47 = arith.constant 0 : index
    %c0_48 = arith.constant 0 : index
    %109 = vector.load %arg3[%c2_46, %c0_47, %c0_48] : memref<3x3x64xf32, #tpu.memory_space<vmem>>, vector<1x1x64xf32>
    %110 = vector.shape_cast %109 : vector<1x1x64xf32> to vector<64xf32>
    %111 = vector.shape_cast %110 : vector<64xf32> to vector<1x1x64xf32>
    %112 = vector.broadcast %111 : vector<1x1x64xf32> to vector<8x8x64xf32>
    %113 = arith.mulf %108, %112 : vector<8x8x64xf32>
    %114 = arith.addf %107, %113 : vector<8x8x64xf32>
    %115 = vector.extract_strided_slice %1 {offsets = [8, 5, 0], sizes = [8, 8, 64], strides = [1, 1, 1]} : vector<18x18x64xf32> to vector<8x8x64xf32>
    %c2_49 = arith.constant 2 : index
    %c1_50 = arith.constant 1 : index
    %c0_51 = arith.constant 0 : index
    %116 = vector.load %arg3[%c2_49, %c1_50, %c0_51] : memref<3x3x64xf32, #tpu.memory_space<vmem>>, vector<1x1x64xf32>
    %117 = vector.shape_cast %116 : vector<1x1x64xf32> to vector<64xf32>
    %118 = vector.shape_cast %117 : vector<64xf32> to vector<1x1x64xf32>
    %119 = vector.broadcast %118 : vector<1x1x64xf32> to vector<8x8x64xf32>
    %120 = arith.mulf %115, %119 : vector<8x8x64xf32>
    %121 = arith.addf %114, %120 : vector<8x8x64xf32>
    %122 = vector.extract_strided_slice %1 {offsets = [8, 8, 0], sizes = [8, 8, 64], strides = [1, 1, 1]} : vector<18x18x64xf32> to vector<8x8x64xf32>
    %c2_52 = arith.constant 2 : index
    %c2_53 = arith.constant 2 : index
    %c0_54 = arith.constant 0 : index
    %123 = vector.load %arg3[%c2_52, %c2_53, %c0_54] : memref<3x3x64xf32, #tpu.memory_space<vmem>>, vector<1x1x64xf32>
    %124 = vector.shape_cast %123 : vector<1x1x64xf32> to vector<64xf32>
    %125 = vector.shape_cast %124 : vector<64xf32> to vector<1x1x64xf32>
    %126 = vector.broadcast %125 : vector<1x1x64xf32> to vector<8x8x64xf32>
    %127 = arith.mulf %122, %126 : vector<8x8x64xf32>
    %128 = arith.addf %121, %127 : vector<8x8x64xf32>
    %129 = vector.extract_strided_slice %1 {offsets = [0, 0, 0], sizes = [8, 8, 64], strides = [1, 1, 1]} : vector<18x18x64xf32> to vector<8x8x64xf32>
    %c0_55 = arith.constant 0 : index
    %c0_56 = arith.constant 0 : index
    %c0_57 = arith.constant 0 : index
    %130 = vector.load %arg4[%c0_55, %c0_56, %c0_57] : memref<3x3x64xf32, #tpu.memory_space<vmem>>, vector<1x1x64xf32>
    %131 = vector.shape_cast %130 : vector<1x1x64xf32> to vector<64xf32>
    %132 = vector.shape_cast %131 : vector<64xf32> to vector<1x1x64xf32>
    %133 = vector.broadcast %132 : vector<1x1x64xf32> to vector<8x8x64xf32>
    %134 = arith.mulf %129, %133 : vector<8x8x64xf32>
    %135 = arith.addf %128, %134 : vector<8x8x64xf32>
    %136 = vector.extract_strided_slice %1 {offsets = [0, 5, 0], sizes = [8, 8, 64], strides = [1, 1, 1]} : vector<18x18x64xf32> to vector<8x8x64xf32>
    %c0_58 = arith.constant 0 : index
    %c1_59 = arith.constant 1 : index
    %c0_60 = arith.constant 0 : index
    %137 = vector.load %arg4[%c0_58, %c1_59, %c0_60] : memref<3x3x64xf32, #tpu.memory_space<vmem>>, vector<1x1x64xf32>
    %138 = vector.shape_cast %137 : vector<1x1x64xf32> to vector<64xf32>
    %139 = vector.shape_cast %138 : vector<64xf32> to vector<1x1x64xf32>
    %140 = vector.broadcast %139 : vector<1x1x64xf32> to vector<8x8x64xf32>
    %141 = arith.mulf %136, %140 : vector<8x8x64xf32>
    %142 = arith.addf %135, %141 : vector<8x8x64xf32>
    %143 = vector.extract_strided_slice %1 {offsets = [0, 10, 0], sizes = [8, 8, 64], strides = [1, 1, 1]} : vector<18x18x64xf32> to vector<8x8x64xf32>
    %c0_61 = arith.constant 0 : index
    %c2_62 = arith.constant 2 : index
    %c0_63 = arith.constant 0 : index
    %144 = vector.load %arg4[%c0_61, %c2_62, %c0_63] : memref<3x3x64xf32, #tpu.memory_space<vmem>>, vector<1x1x64xf32>
    %145 = vector.shape_cast %144 : vector<1x1x64xf32> to vector<64xf32>
    %146 = vector.shape_cast %145 : vector<64xf32> to vector<1x1x64xf32>
    %147 = vector.broadcast %146 : vector<1x1x64xf32> to vector<8x8x64xf32>
    %148 = arith.mulf %143, %147 : vector<8x8x64xf32>
    %149 = arith.addf %142, %148 : vector<8x8x64xf32>
    %150 = vector.extract_strided_slice %1 {offsets = [5, 0, 0], sizes = [8, 8, 64], strides = [1, 1, 1]} : vector<18x18x64xf32> to vector<8x8x64xf32>
    %c1_64 = arith.constant 1 : index
    %c0_65 = arith.constant 0 : index
    %c0_66 = arith.constant 0 : index
    %151 = vector.load %arg4[%c1_64, %c0_65, %c0_66] : memref<3x3x64xf32, #tpu.memory_space<vmem>>, vector<1x1x64xf32>
    %152 = vector.shape_cast %151 : vector<1x1x64xf32> to vector<64xf32>
    %153 = vector.shape_cast %152 : vector<64xf32> to vector<1x1x64xf32>
    %154 = vector.broadcast %153 : vector<1x1x64xf32> to vector<8x8x64xf32>
    %155 = arith.mulf %150, %154 : vector<8x8x64xf32>
    %156 = arith.addf %149, %155 : vector<8x8x64xf32>
    %157 = vector.extract_strided_slice %1 {offsets = [5, 5, 0], sizes = [8, 8, 64], strides = [1, 1, 1]} : vector<18x18x64xf32> to vector<8x8x64xf32>
    %c1_67 = arith.constant 1 : index
    %c1_68 = arith.constant 1 : index
    %c0_69 = arith.constant 0 : index
    %158 = vector.load %arg4[%c1_67, %c1_68, %c0_69] : memref<3x3x64xf32, #tpu.memory_space<vmem>>, vector<1x1x64xf32>
    %159 = vector.shape_cast %158 : vector<1x1x64xf32> to vector<64xf32>
    %160 = vector.shape_cast %159 : vector<64xf32> to vector<1x1x64xf32>
    %161 = vector.broadcast %160 : vector<1x1x64xf32> to vector<8x8x64xf32>
    %162 = arith.mulf %157, %161 : vector<8x8x64xf32>
    %163 = arith.addf %156, %162 : vector<8x8x64xf32>
    %164 = vector.extract_strided_slice %1 {offsets = [5, 10, 0], sizes = [8, 8, 64], strides = [1, 1, 1]} : vector<18x18x64xf32> to vector<8x8x64xf32>
    %c1_70 = arith.constant 1 : index
    %c2_71 = arith.constant 2 : index
    %c0_72 = arith.constant 0 : index
    %165 = vector.load %arg4[%c1_70, %c2_71, %c0_72] : memref<3x3x64xf32, #tpu.memory_space<vmem>>, vector<1x1x64xf32>
    %166 = vector.shape_cast %165 : vector<1x1x64xf32> to vector<64xf32>
    %167 = vector.shape_cast %166 : vector<64xf32> to vector<1x1x64xf32>
    %168 = vector.broadcast %167 : vector<1x1x64xf32> to vector<8x8x64xf32>
    %169 = arith.mulf %164, %168 : vector<8x8x64xf32>
    %170 = arith.addf %163, %169 : vector<8x8x64xf32>
    %171 = vector.extract_strided_slice %1 {offsets = [10, 0, 0], sizes = [8, 8, 64], strides = [1, 1, 1]} : vector<18x18x64xf32> to vector<8x8x64xf32>
    %c2_73 = arith.constant 2 : index
    %c0_74 = arith.constant 0 : index
    %c0_75 = arith.constant 0 : index
    %172 = vector.load %arg4[%c2_73, %c0_74, %c0_75] : memref<3x3x64xf32, #tpu.memory_space<vmem>>, vector<1x1x64xf32>
    %173 = vector.shape_cast %172 : vector<1x1x64xf32> to vector<64xf32>
    %174 = vector.shape_cast %173 : vector<64xf32> to vector<1x1x64xf32>
    %175 = vector.broadcast %174 : vector<1x1x64xf32> to vector<8x8x64xf32>
    %176 = arith.mulf %171, %175 : vector<8x8x64xf32>
    %177 = arith.addf %170, %176 : vector<8x8x64xf32>
    %178 = vector.extract_strided_slice %1 {offsets = [10, 5, 0], sizes = [8, 8, 64], strides = [1, 1, 1]} : vector<18x18x64xf32> to vector<8x8x64xf32>
    %c2_76 = arith.constant 2 : index
    %c1_77 = arith.constant 1 : index
    %c0_78 = arith.constant 0 : index
    %179 = vector.load %arg4[%c2_76, %c1_77, %c0_78] : memref<3x3x64xf32, #tpu.memory_space<vmem>>, vector<1x1x64xf32>
    %180 = vector.shape_cast %179 : vector<1x1x64xf32> to vector<64xf32>
    %181 = vector.shape_cast %180 : vector<64xf32> to vector<1x1x64xf32>
    %182 = vector.broadcast %181 : vector<1x1x64xf32> to vector<8x8x64xf32>
    %183 = arith.mulf %178, %182 : vector<8x8x64xf32>
    %184 = arith.addf %177, %183 : vector<8x8x64xf32>
    %185 = vector.extract_strided_slice %1 {offsets = [10, 10, 0], sizes = [8, 8, 64], strides = [1, 1, 1]} : vector<18x18x64xf32> to vector<8x8x64xf32>
    %c2_79 = arith.constant 2 : index
    %c2_80 = arith.constant 2 : index
    %c0_81 = arith.constant 0 : index
    %186 = vector.load %arg4[%c2_79, %c2_80, %c0_81] : memref<3x3x64xf32, #tpu.memory_space<vmem>>, vector<1x1x64xf32>
    %187 = vector.shape_cast %186 : vector<1x1x64xf32> to vector<64xf32>
    %188 = vector.shape_cast %187 : vector<64xf32> to vector<1x1x64xf32>
    %189 = vector.broadcast %188 : vector<1x1x64xf32> to vector<8x8x64xf32>
    %190 = arith.mulf %185, %189 : vector<8x8x64xf32>
    %191 = arith.addf %184, %190 : vector<8x8x64xf32>
    %c0_82 = arith.constant 0 : index
    %c0_83 = arith.constant 0 : index
    %c0_84 = arith.constant 0 : index
    %c0_85 = arith.constant 0 : index
    %192 = vector.load %arg5[%c0_82, %c0_83, %c0_84, %c0_85] : memref<1x8x8x64xf32, #tpu.memory_space<vmem>>, vector<1x8x8x64xf32>
    %193 = vector.shape_cast %192 : vector<1x8x8x64xf32> to vector<8x8x64xf32>
    %194 = vector.shape_cast %191 : vector<8x8x64xf32> to vector<1x8x8x64xf32>
    tpu.vector_store %arg5[%c0_82, %c0_83, %c0_84, %c0_85], %194 {strides = array<i32>} : memref<1x8x8x64xf32, #tpu.memory_space<vmem>>, vector<1x8x8x64xf32>,
    return
  }
  func.func @transform_0(%arg0: i32) -> (i32, i32, i32, i32) {
    %c0_i32 = arith.constant 0 : i32
    %c0_i32_0 = arith.constant 0 : i32
    %c0_i32_1 = arith.constant 0 : i32
    %c0_i32_2 = arith.constant 0 : i32
    return %arg0, %c0_i32, %c0_i32_0, %c0_i32_1 : i32, i32, i32, i32
  }
  func.func @transform_1(%arg0: i32) -> (i32, i32, i32) {
    %c0_i32 = arith.constant 0 : i32
    %c0_i32_0 = arith.constant 0 : i32
    %c0_i32_1 = arith.constant 0 : i32
    %c0_i32_2 = arith.constant 0 : i32
    return %c0_i32, %c0_i32_0, %c0_i32_1 : i32, i32, i32
  }
  func.func @transform_2(%arg0: i32) -> (i32, i32, i32) {
    %c0_i32 = arith.constant 0 : i32
    %c0_i32_0 = arith.constant 0 : i32
    %c0_i32_1 = arith.constant 0 : i32
    %c0_i32_2 = arith.constant 0 : i32
    return %c0_i32, %c0_i32_0, %c0_i32_1 : i32, i32, i32
  }
  func.func @transform_3(%arg0: i32) -> (i32, i32, i32) {
    %c0_i32 = arith.constant 0 : i32
    %c0_i32_0 = arith.constant 0 : i32
    %c0_i32_1 = arith.constant 0 : i32
    %c0_i32_2 = arith.constant 0 : i32
    return %c0_i32, %c0_i32_0, %c0_i32_1 : i32, i32, i32
  }
  func.func @transform_4(%arg0: i32) -> (i32, i32, i32, i32) {
    %c0_i32 = arith.constant 0 : i32
    %c0_i32_0 = arith.constant 0 : i32
    %c0_i32_1 = arith.constant 0 : i32
    %c0_i32_2 = arith.constant 0 : i32
    return %arg0, %c0_i32, %c0_i32_0, %c0_i32_1 : i32, i32, i32, i32
  }
}

module attributes {stable_mosaic.version = 11 : i64} {
  func.func @_ssm_post_out_kernel(%arg0: i32, %arg1: memref<128x64xf32, #tpu.memory_space<vmem>>, %arg2: memref<128x64xf32, #tpu.memory_space<vmem>>, %arg3: memref<128x64xf32, #tpu.memory_space<vmem>>, %arg4: memref<128x32xf32, #tpu.memory_space<vmem>>, %arg5: memref<1x64xf32, #tpu.memory_space<vmem>>, %arg6: memref<1x64xf32, #tpu.memory_space<vmem>>, %arg7: memref<1x64xf32, #tpu.memory_space<vmem>>, %arg8: memref<1x64xf32, #tpu.memory_space<vmem>>, %arg9: memref<64x32xf32, #tpu.memory_space<vmem>>, %arg10: memref<128x32xf32, #tpu.memory_space<vmem>>) attributes {dimension_semantics = [#tpu.dimension_semantics<parallel>], iteration_bounds = array<i64: 1>, scalar_prefetch = 0 : i64, scratch_operands = 0 : i64, tpu.core_type = #tpu.core_type<tc>, window_params = [{transform_indices = @transform_0, window_bounds = array<i64: 128, 64>}, {transform_indices = @transform_1, window_bounds = array<i64: 128, 64>}, {transform_indices = @transform_2, window_bounds = array<i64: 128, 64>}, {transform_indices = @transform_3, window_bounds = array<i64: 128, 32>}, {pipeline_mode = #tpu.pipeline_mode<synchronous>, transform_indices = @transform_4, window_bounds = array<i64: 1, 64>}, {pipeline_mode = #tpu.pipeline_mode<synchronous>, transform_indices = @transform_5, window_bounds = array<i64: 1, 64>}, {pipeline_mode = #tpu.pipeline_mode<synchronous>, transform_indices = @transform_6, window_bounds = array<i64: 1, 64>}, {pipeline_mode = #tpu.pipeline_mode<synchronous>, transform_indices = @transform_7, window_bounds = array<i64: 1, 64>}, {pipeline_mode = #tpu.pipeline_mode<synchronous>, transform_indices = @transform_8, window_bounds = array<i64: 64, 32>}, {transform_indices = @transform_9, window_bounds = array<i64: 128, 32>}]} {
    %c0 = arith.constant 0 : index
    %c0_0 = arith.constant 0 : index
    %0 = vector.load %arg1[%c0, %c0_0] : memref<128x64xf32, #tpu.memory_space<vmem>>, vector<128x64xf32>
    %c0_1 = arith.constant 0 : index
    %c0_2 = arith.constant 0 : index
    %1 = vector.load %arg2[%c0_1, %c0_2] : memref<128x64xf32, #tpu.memory_space<vmem>>, vector<128x64xf32>
    %c0_3 = arith.constant 0 : index
    %c0_4 = arith.constant 0 : index
    %2 = vector.load %arg5[%c0_3, %c0_4] : memref<1x64xf32, #tpu.memory_space<vmem>>, vector<1x64xf32>
    %3 = vector.shape_cast %2 : vector<1x64xf32> to vector<64xf32>
    %4 = vector.shape_cast %3 : vector<64xf32> to vector<1x64xf32>
    %5 = vector.broadcast %4 : vector<1x64xf32> to vector<128x64xf32>
    %6 = arith.mulf %1, %5 : vector<128x64xf32>
    %cst = arith.constant dense<0.000000e+00> : vector<128xf32>
    %7 = vector.multi_reduction <add>, %6, %cst [1] : vector<128x64xf32> to vector<128xf32>
    %8 = vector.shape_cast %7 : vector<128xf32> to vector<128x1xf32>
    %9 = vector.broadcast %8 : vector<128x1xf32> to vector<128x64xf32>
    %10 = arith.mulf %0, %9 : vector<128x64xf32>
    %c0_5 = arith.constant 0 : index
    %c0_6 = arith.constant 0 : index
    %11 = vector.load %arg6[%c0_5, %c0_6] : memref<1x64xf32, #tpu.memory_space<vmem>>, vector<1x64xf32>
    %12 = vector.shape_cast %11 : vector<1x64xf32> to vector<64xf32>
    %13 = vector.shape_cast %12 : vector<64xf32> to vector<1x64xf32>
    %14 = vector.broadcast %13 : vector<1x64xf32> to vector<128x64xf32>
    %15 = arith.mulf %1, %14 : vector<128x64xf32>
    %16 = arith.addf %10, %15 : vector<128x64xf32>
    %cst_7 = arith.constant dense<0.000000e+00> : vector<128xf32>
    %17 = vector.multi_reduction <add>, %16, %cst_7 [1] : vector<128x64xf32> to vector<128xf32>
    %18 = vector.shape_cast %17 : vector<128xf32> to vector<128x1xf32>
    %cst_8 = arith.constant 6.400000e+01 : f32
    %19 = vector.broadcast %cst_8 : f32 to vector<128x1xf32>
    %20 = arith.divf %18, %19 : vector<128x1xf32>
    %21 = vector.broadcast %20 : vector<128x1xf32> to vector<128x64xf32>
    %22 = arith.subf %16, %21 : vector<128x64xf32>
    %23 = arith.mulf %22, %22 : vector<128x64xf32>
    %cst_9 = arith.constant dense<0.000000e+00> : vector<128xf32>
    %24 = vector.multi_reduction <add>, %23, %cst_9 [1] : vector<128x64xf32> to vector<128xf32>
    %25 = vector.shape_cast %24 : vector<128xf32> to vector<128x1xf32>
    %cst_10 = arith.constant 6.400000e+01 : f32
    %26 = vector.broadcast %cst_10 : f32 to vector<128x1xf32>
    %27 = arith.divf %25, %26 : vector<128x1xf32>
    %cst_11 = arith.constant 9.99999974E-6 : f32
    %28 = vector.broadcast %cst_11 : f32 to vector<128x1xf32>
    %29 = arith.addf %27, %28 : vector<128x1xf32>
    %30 = math.rsqrt %29 : vector<128x1xf32>
    %31 = vector.broadcast %30 : vector<128x1xf32> to vector<128x64xf32>
    %32 = arith.mulf %22, %31 : vector<128x64xf32>
    %c0_12 = arith.constant 0 : index
    %c0_13 = arith.constant 0 : index
    %33 = vector.load %arg7[%c0_12, %c0_13] : memref<1x64xf32, #tpu.memory_space<vmem>>, vector<1x64xf32>
    %34 = vector.shape_cast %33 : vector<1x64xf32> to vector<64xf32>
    %35 = vector.shape_cast %34 : vector<64xf32> to vector<1x64xf32>
    %36 = vector.broadcast %35 : vector<1x64xf32> to vector<128x64xf32>
    %37 = arith.mulf %32, %36 : vector<128x64xf32>
    %c0_14 = arith.constant 0 : index
    %c0_15 = arith.constant 0 : index
    %38 = vector.load %arg8[%c0_14, %c0_15] : memref<1x64xf32, #tpu.memory_space<vmem>>, vector<1x64xf32>
    %39 = vector.shape_cast %38 : vector<1x64xf32> to vector<64xf32>
    %40 = vector.shape_cast %39 : vector<64xf32> to vector<1x64xf32>
    %41 = vector.broadcast %40 : vector<1x64xf32> to vector<128x64xf32>
    %42 = arith.addf %37, %41 : vector<128x64xf32>
    %c0_16 = arith.constant 0 : index
    %c0_17 = arith.constant 0 : index
    %43 = vector.load %arg3[%c0_16, %c0_17] : memref<128x64xf32, #tpu.memory_space<vmem>>, vector<128x64xf32>
    %44 = arith.negf %43 : vector<128x64xf32>
    %45 = math.exp %44 : vector<128x64xf32>
    %cst_18 = arith.constant 1.000000e+00 : f32
    %46 = vector.broadcast %cst_18 : f32 to vector<128x64xf32>
    %47 = arith.addf %46, %45 : vector<128x64xf32>
    %48 = arith.divf %46, %47 : vector<128x64xf32>
    %49 = arith.mulf %43, %48 : vector<128x64xf32>
    %50 = arith.mulf %42, %49 : vector<128x64xf32>
    %c0_19 = arith.constant 0 : index
    %c0_20 = arith.constant 0 : index
    %51 = vector.load %arg4[%c0_19, %c0_20] : memref<128x32xf32, #tpu.memory_space<vmem>>, vector<128x32xf32>
    %c0_21 = arith.constant 0 : index
    %c0_22 = arith.constant 0 : index
    %52 = vector.load %arg9[%c0_21, %c0_22] : memref<64x32xf32, #tpu.memory_space<vmem>>, vector<64x32xf32>
    %cst_23 = arith.constant dense<0.000000e+00> : vector<128x32xf32>
    %53 = tpu.matmul %50, %52, %cst_23 {dimension_numbers = #tpu.dot_dimension_numbers<[1], [0], [0], [1], [0, 0, 1, 1], [], []>} : vector<128x64xf32>, vector<64x32xf32>, vector<128x32xf32> -> vector<128x32xf32>
    %54 = arith.addf %51, %53 : vector<128x32xf32>
    %c0_24 = arith.constant 0 : index
    %c0_25 = arith.constant 0 : index
    %55 = vector.load %arg10[%c0_24, %c0_25] : memref<128x32xf32, #tpu.memory_space<vmem>>, vector<128x32xf32>
    tpu.vector_store %arg10[%c0_24, %c0_25], %54 {strides = array<i32>} : memref<128x32xf32, #tpu.memory_space<vmem>>, vector<128x32xf32>,
    return
  }
  func.func @transform_0(%arg0: i32) -> (i32, i32) {
    %c0_i32 = arith.constant 0 : i32
    %c0_i32_0 = arith.constant 0 : i32
    return %arg0, %c0_i32 : i32, i32
  }
  func.func @transform_1(%arg0: i32) -> (i32, i32) {
    %c0_i32 = arith.constant 0 : i32
    %c0_i32_0 = arith.constant 0 : i32
    return %arg0, %c0_i32 : i32, i32
  }
  func.func @transform_2(%arg0: i32) -> (i32, i32) {
    %c0_i32 = arith.constant 0 : i32
    %c0_i32_0 = arith.constant 0 : i32
    return %arg0, %c0_i32 : i32, i32
  }
  func.func @transform_3(%arg0: i32) -> (i32, i32) {
    %c0_i32 = arith.constant 0 : i32
    %c0_i32_0 = arith.constant 0 : i32
    return %arg0, %c0_i32 : i32, i32
  }
  func.func @transform_4(%arg0: i32) -> (i32, i32) {
    %c0_i32 = arith.constant 0 : i32
    %c0_i32_0 = arith.constant 0 : i32
    %c0_i32_1 = arith.constant 0 : i32
    return %c0_i32, %c0_i32_0 : i32, i32
  }
  func.func @transform_5(%arg0: i32) -> (i32, i32) {
    %c0_i32 = arith.constant 0 : i32
    %c0_i32_0 = arith.constant 0 : i32
    %c0_i32_1 = arith.constant 0 : i32
    return %c0_i32, %c0_i32_0 : i32, i32
  }
  func.func @transform_6(%arg0: i32) -> (i32, i32) {
    %c0_i32 = arith.constant 0 : i32
    %c0_i32_0 = arith.constant 0 : i32
    %c0_i32_1 = arith.constant 0 : i32
    return %c0_i32, %c0_i32_0 : i32, i32
  }
  func.func @transform_7(%arg0: i32) -> (i32, i32) {
    %c0_i32 = arith.constant 0 : i32
    %c0_i32_0 = arith.constant 0 : i32
    %c0_i32_1 = arith.constant 0 : i32
    return %c0_i32, %c0_i32_0 : i32, i32
  }
  func.func @transform_8(%arg0: i32) -> (i32, i32) {
    %c0_i32 = arith.constant 0 : i32
    %c0_i32_0 = arith.constant 0 : i32
    %c0_i32_1 = arith.constant 0 : i32
    return %c0_i32, %c0_i32_0 : i32, i32
  }
  func.func @transform_9(%arg0: i32) -> (i32, i32) {
    %c0_i32 = arith.constant 0 : i32
    %c0_i32_0 = arith.constant 0 : i32
    return %arg0, %c0_i32 : i32, i32
  }
}

module attributes {stable_mosaic.version = 11 : i64} {
  func.func @_mlp_kernel(%arg0: i32, %arg1: memref<128x32xf32, #tpu.memory_space<vmem>>, %arg2: memref<1x32xf32, #tpu.memory_space<vmem>>, %arg3: memref<1x32xf32, #tpu.memory_space<vmem>>, %arg4: memref<32x128xf32, #tpu.memory_space<vmem>>, %arg5: memref<1x128xf32, #tpu.memory_space<vmem>>, %arg6: memref<128x32xf32, #tpu.memory_space<vmem>>, %arg7: memref<1x32xf32, #tpu.memory_space<vmem>>, %arg8: memref<128x32xf32, #tpu.memory_space<vmem>>) attributes {dimension_semantics = [#tpu.dimension_semantics<parallel>], iteration_bounds = array<i64: 1>, scalar_prefetch = 0 : i64, scratch_operands = 0 : i64, tpu.core_type = #tpu.core_type<tc>, window_params = [{transform_indices = @transform_0, window_bounds = array<i64: 128, 32>}, {pipeline_mode = #tpu.pipeline_mode<synchronous>, transform_indices = @transform_1, window_bounds = array<i64: 1, 32>}, {pipeline_mode = #tpu.pipeline_mode<synchronous>, transform_indices = @transform_2, window_bounds = array<i64: 1, 32>}, {pipeline_mode = #tpu.pipeline_mode<synchronous>, transform_indices = @transform_3, window_bounds = array<i64: 32, 128>}, {pipeline_mode = #tpu.pipeline_mode<synchronous>, transform_indices = @transform_4, window_bounds = array<i64: 1, 128>}, {pipeline_mode = #tpu.pipeline_mode<synchronous>, transform_indices = @transform_5, window_bounds = array<i64: 128, 32>}, {pipeline_mode = #tpu.pipeline_mode<synchronous>, transform_indices = @transform_6, window_bounds = array<i64: 1, 32>}, {transform_indices = @transform_7, window_bounds = array<i64: 128, 32>}]} {
    %c0 = arith.constant 0 : index
    %c0_0 = arith.constant 0 : index
    %0 = vector.load %arg1[%c0, %c0_0] : memref<128x32xf32, #tpu.memory_space<vmem>>, vector<128x32xf32>
    %cst = arith.constant dense<0.000000e+00> : vector<128xf32>
    %1 = vector.multi_reduction <add>, %0, %cst [1] : vector<128x32xf32> to vector<128xf32>
    %2 = vector.shape_cast %1 : vector<128xf32> to vector<128x1xf32>
    %cst_1 = arith.constant 3.200000e+01 : f32
    %3 = vector.broadcast %cst_1 : f32 to vector<128x1xf32>
    %4 = arith.divf %2, %3 : vector<128x1xf32>
    %5 = vector.broadcast %4 : vector<128x1xf32> to vector<128x32xf32>
    %6 = arith.subf %0, %5 : vector<128x32xf32>
    %7 = arith.mulf %6, %6 : vector<128x32xf32>
    %cst_2 = arith.constant dense<0.000000e+00> : vector<128xf32>
    %8 = vector.multi_reduction <add>, %7, %cst_2 [1] : vector<128x32xf32> to vector<128xf32>
    %9 = vector.shape_cast %8 : vector<128xf32> to vector<128x1xf32>
    %cst_3 = arith.constant 3.200000e+01 : f32
    %10 = vector.broadcast %cst_3 : f32 to vector<128x1xf32>
    %11 = arith.divf %9, %10 : vector<128x1xf32>
    %cst_4 = arith.constant 9.99999997E-7 : f32
    %12 = vector.broadcast %cst_4 : f32 to vector<128x1xf32>
    %13 = arith.addf %11, %12 : vector<128x1xf32>
    %14 = math.rsqrt %13 : vector<128x1xf32>
    %15 = vector.broadcast %14 : vector<128x1xf32> to vector<128x32xf32>
    %16 = arith.mulf %6, %15 : vector<128x32xf32>
    %c0_5 = arith.constant 0 : index
    %c0_6 = arith.constant 0 : index
    %17 = vector.load %arg2[%c0_5, %c0_6] : memref<1x32xf32, #tpu.memory_space<vmem>>, vector<1x32xf32>
    %18 = vector.shape_cast %17 : vector<1x32xf32> to vector<32xf32>
    %19 = vector.shape_cast %18 : vector<32xf32> to vector<1x32xf32>
    %20 = vector.broadcast %19 : vector<1x32xf32> to vector<128x32xf32>
    %21 = arith.mulf %16, %20 : vector<128x32xf32>
    %c0_7 = arith.constant 0 : index
    %c0_8 = arith.constant 0 : index
    %22 = vector.load %arg3[%c0_7, %c0_8] : memref<1x32xf32, #tpu.memory_space<vmem>>, vector<1x32xf32>
    %23 = vector.shape_cast %22 : vector<1x32xf32> to vector<32xf32>
    %24 = vector.shape_cast %23 : vector<32xf32> to vector<1x32xf32>
    %25 = vector.broadcast %24 : vector<1x32xf32> to vector<128x32xf32>
    %26 = arith.addf %21, %25 : vector<128x32xf32>
    %c0_9 = arith.constant 0 : index
    %c0_10 = arith.constant 0 : index
    %27 = vector.load %arg4[%c0_9, %c0_10] : memref<32x128xf32, #tpu.memory_space<vmem>>, vector<32x128xf32>
    %cst_11 = arith.constant dense<0.000000e+00> : vector<128x128xf32>
    %28 = tpu.matmul %26, %27, %cst_11 {dimension_numbers = #tpu.dot_dimension_numbers<[1], [0], [0], [1], [0, 0, 1, 1], [], []>} : vector<128x32xf32>, vector<32x128xf32>, vector<128x128xf32> -> vector<128x128xf32>
    %c0_12 = arith.constant 0 : index
    %c0_13 = arith.constant 0 : index
    %29 = vector.load %arg5[%c0_12, %c0_13] : memref<1x128xf32, #tpu.memory_space<vmem>>, vector<1x128xf32>
    %30 = vector.shape_cast %29 : vector<1x128xf32> to vector<128xf32>
    %31 = vector.shape_cast %30 : vector<128xf32> to vector<1x128xf32>
    %32 = vector.broadcast %31 : vector<1x128xf32> to vector<128x128xf32>
    %33 = arith.addf %28, %32 : vector<128x128xf32>
    %cst_14 = arith.constant 0.707106769 : f32
    %34 = vector.broadcast %cst_14 : f32 to vector<128x128xf32>
    %35 = arith.mulf %33, %34 : vector<128x128xf32>
    %36 = math.absf %35 : vector<128x128xf32>
    %cst_15 = arith.constant 0.327591091 : f32
    %37 = vector.broadcast %cst_15 : f32 to vector<128x128xf32>
    %38 = arith.mulf %37, %36 : vector<128x128xf32>
    %cst_16 = arith.constant 1.000000e+00 : f32
    %39 = vector.broadcast %cst_16 : f32 to vector<128x128xf32>
    %40 = arith.addf %39, %38 : vector<128x128xf32>
    %cst_17 = arith.constant 1.000000e+00 : f32
    %41 = vector.broadcast %cst_17 : f32 to vector<128x128xf32>
    %42 = arith.divf %41, %40 : vector<128x128xf32>
    %cst_18 = arith.constant 1.06140542 : f32
    %43 = vector.broadcast %cst_18 : f32 to vector<128x128xf32>
    %44 = arith.mulf %43, %42 : vector<128x128xf32>
    %cst_19 = arith.constant 1.45315206 : f32
    %45 = vector.broadcast %cst_19 : f32 to vector<128x128xf32>
    %46 = arith.subf %44, %45 : vector<128x128xf32>
    %47 = arith.mulf %46, %42 : vector<128x128xf32>
    %cst_20 = arith.constant 1.42141378 : f32
    %48 = vector.broadcast %cst_20 : f32 to vector<128x128xf32>
    %49 = arith.addf %47, %48 : vector<128x128xf32>
    %50 = arith.mulf %49, %42 : vector<128x128xf32>
    %cst_21 = arith.constant 0.284496725 : f32
    %51 = vector.broadcast %cst_21 : f32 to vector<128x128xf32>
    %52 = arith.subf %50, %51 : vector<128x128xf32>
    %53 = arith.mulf %52, %42 : vector<128x128xf32>
    %cst_22 = arith.constant 0.254829586 : f32
    %54 = vector.broadcast %cst_22 : f32 to vector<128x128xf32>
    %55 = arith.addf %53, %54 : vector<128x128xf32>
    %56 = arith.mulf %55, %42 : vector<128x128xf32>
    %cst_23 = arith.constant 0.000000e+00 : f32
    %57 = vector.broadcast %cst_23 : f32 to vector<128x128xf32>
    %58 = arith.subf %57, %36 : vector<128x128xf32>
    %59 = arith.mulf %58, %36 : vector<128x128xf32>
    %60 = math.exp %59 : vector<128x128xf32>
    %61 = arith.mulf %56, %60 : vector<128x128xf32>
    %cst_24 = arith.constant 1.000000e+00 : f32
    %62 = vector.broadcast %cst_24 : f32 to vector<128x128xf32>
    %63 = arith.subf %62, %61 : vector<128x128xf32>
    %cst_25 = arith.constant 0.000000e+00 : f32
    %64 = vector.broadcast %cst_25 : f32 to vector<128x128xf32>
    %65 = arith.cmpf oge, %35, %64 : vector<128x128xf32>
    %cst_26 = arith.constant 0.000000e+00 : f32
    %66 = vector.broadcast %cst_26 : f32 to vector<128x128xf32>
    %67 = arith.subf %66, %63 : vector<128x128xf32>
    %68 = arith.select %65, %63, %67 : vector<128x128xi1>, vector<128x128xf32>
    %cst_27 = arith.constant 5.000000e-01 : f32
    %69 = vector.broadcast %cst_27 : f32 to vector<128x128xf32>
    %70 = arith.mulf %69, %33 : vector<128x128xf32>
    %cst_28 = arith.constant 1.000000e+00 : f32
    %71 = vector.broadcast %cst_28 : f32 to vector<128x128xf32>
    %72 = arith.addf %71, %68 : vector<128x128xf32>
    %73 = arith.mulf %70, %72 : vector<128x128xf32>
    %c0_29 = arith.constant 0 : index
    %c0_30 = arith.constant 0 : index
    %74 = vector.load %arg6[%c0_29, %c0_30] : memref<128x32xf32, #tpu.memory_space<vmem>>, vector<128x32xf32>
    %cst_31 = arith.constant dense<0.000000e+00> : vector<128x32xf32>
    %75 = tpu.matmul %73, %74, %cst_31 {dimension_numbers = #tpu.dot_dimension_numbers<[1], [0], [0], [1], [0, 0, 1, 1], [], []>} : vector<128x128xf32>, vector<128x32xf32>, vector<128x32xf32> -> vector<128x32xf32>
    %c0_32 = arith.constant 0 : index
    %c0_33 = arith.constant 0 : index
    %76 = vector.load %arg7[%c0_32, %c0_33] : memref<1x32xf32, #tpu.memory_space<vmem>>, vector<1x32xf32>
    %77 = vector.shape_cast %76 : vector<1x32xf32> to vector<32xf32>
    %78 = vector.shape_cast %77 : vector<32xf32> to vector<1x32xf32>
    %79 = vector.broadcast %78 : vector<1x32xf32> to vector<128x32xf32>
    %80 = arith.addf %75, %79 : vector<128x32xf32>
    %81 = arith.addf %0, %80 : vector<128x32xf32>
    %c0_34 = arith.constant 0 : index
    %c0_35 = arith.constant 0 : index
    %82 = vector.load %arg8[%c0_34, %c0_35] : memref<128x32xf32, #tpu.memory_space<vmem>>, vector<128x32xf32>
    tpu.vector_store %arg8[%c0_34, %c0_35], %81 {strides = array<i32>} : memref<128x32xf32, #tpu.memory_space<vmem>>, vector<128x32xf32>,
    return
  }
  func.func @transform_0(%arg0: i32) -> (i32, i32) {
    %c0_i32 = arith.constant 0 : i32
    %c0_i32_0 = arith.constant 0 : i32
    return %arg0, %c0_i32 : i32, i32
  }
  func.func @transform_1(%arg0: i32) -> (i32, i32) {
    %c0_i32 = arith.constant 0 : i32
    %c0_i32_0 = arith.constant 0 : i32
    %c0_i32_1 = arith.constant 0 : i32
    return %c0_i32, %c0_i32_0 : i32, i32
  }
  func.func @transform_2(%arg0: i32) -> (i32, i32) {
    %c0_i32 = arith.constant 0 : i32
    %c0_i32_0 = arith.constant 0 : i32
    %c0_i32_1 = arith.constant 0 : i32
    return %c0_i32, %c0_i32_0 : i32, i32
  }
  func.func @transform_3(%arg0: i32) -> (i32, i32) {
    %c0_i32 = arith.constant 0 : i32
    %c0_i32_0 = arith.constant 0 : i32
    %c0_i32_1 = arith.constant 0 : i32
    return %c0_i32, %c0_i32_0 : i32, i32
  }
  func.func @transform_4(%arg0: i32) -> (i32, i32) {
    %c0_i32 = arith.constant 0 : i32
    %c0_i32_0 = arith.constant 0 : i32
    %c0_i32_1 = arith.constant 0 : i32
    return %c0_i32, %c0_i32_0 : i32, i32
  }
  func.func @transform_5(%arg0: i32) -> (i32, i32) {
    %c0_i32 = arith.constant 0 : i32
    %c0_i32_0 = arith.constant 0 : i32
    %c0_i32_1 = arith.constant 0 : i32
    return %c0_i32, %c0_i32_0 : i32, i32
  }
  func.func @transform_6(%arg0: i32) -> (i32, i32) {
    %c0_i32 = arith.constant 0 : i32
    %c0_i32_0 = arith.constant 0 : i32
    %c0_i32_1 = arith.constant 0 : i32
    return %c0_i32, %c0_i32_0 : i32, i32
  }
  func.func @transform_7(%arg0: i32) -> (i32, i32) {
    %c0_i32 = arith.constant 0 : i32
    %c0_i32_0 = arith.constant 0 : i32
    return %arg0, %c0_i32 : i32, i32
  }
}

</mosaic_0001>

<llo_original>
// kernel: spatial_mamba_block.9
$region0: #{spatial_mamba_block.9}
  #allocation0 [shape = 'u32[]', space=smem, size = 0x4, offset = 0x4, fixed_abs, tag = 'smem constant byte address 0x4 - core index']
  #allocation1 [shape = 'u32[144,128]{1,0:T(1,128)}', space=vmem, size = 0x12000, scoped, tag = 'internal scratch']
  %s0 = inlined_call_operand.vmem [shape: f32[128,32], index: 0, kind: input, shape index: {}]
  %s1 = inlined_call_operand.vmem [shape: f32[1,32], index: 1, kind: input, shape index: {}]
  %s2 = inlined_call_operand.vmem [shape: f32[1,32], index: 2, kind: input, shape index: {}]
  %s3 = inlined_call_operand.vmem [shape: f32[32,128], index: 3, kind: input, shape index: {}]
  %s4 = inlined_call_operand.vmem [shape: f32[128,128], index: 4, kind: output, shape index: {}]
  %s5 = sld [smem:[#allocation0]]
  $region26: #{spatial_mamba_block.9} parent=0
    _
  %s7 = ssub.s32 1, %s5
  %s8 = scalar_select 0, %s7, %s5
  // Predicated region
  $region2: #{spatial_mamba_block.9} parent=0 // pred_check
    _
  $region3: #{spatial_mamba_block.9} parent=0 // pred_check_branch
    %10 = sbr.rel (0) target = $region5
  $region4: #{spatial_mamba_block.9} parent=0 // pred_region
    _
  $region5: #{spatial_mamba_block.9} parent=0 // pred_fallthru
    _
  // Predicated region
  $region6: #{spatial_mamba_block.9} parent=0 // pred_check
    _
  $region7: #{spatial_mamba_block.9} parent=0 // pred_check_branch
    %12 = sbr.rel (0) target = $region9
  $region8: #{spatial_mamba_block.9} parent=0 // pred_region
    _
  $region9: #{spatial_mamba_block.9} parent=0 // pred_fallthru
    _
  // Predicated region
  $region10: #{spatial_mamba_block.9} parent=0 // pred_check
    _
  $region11: #{spatial_mamba_block.9} parent=0 // pred_check_branch
    %14 = sbr.rel (0) target = $region13
  $region12: #{spatial_mamba_block.9} parent=0 // pred_region
    _
  $region13: #{spatial_mamba_block.9} parent=0 // pred_fallthru
    _
  // Predicated region
  $region14: #{spatial_mamba_block.9} parent=0 // pred_check
    _
  $region15: #{spatial_mamba_block.9} parent=0 // pred_check_branch
    %16 = sbr.rel (0) target = $region17
  $region16: #{spatial_mamba_block.9} parent=0 // pred_region
    _
  $region17: #{spatial_mamba_block.9} parent=0 // pred_fallthru
    _
  %v17 = vld [vmem:[%s0] sm:$0xff]
  %v18 = vld [vmem:[%s0 + $0x8] sm:$0xff]
  %v19 = vld [vmem:[%s0 + $0x10] sm:$0xff]
  %v20 = vld [vmem:[%s0 + $0x18] sm:$0xff]
  %v21 = vld [vmem:[%s0 + $0x20] sm:$0xff]
  %v22 = vld [vmem:[%s0 + $0x28] sm:$0xff]
  %v23 = vld [vmem:[%s0 + $0x30] sm:$0xff]
  %v24 = vld [vmem:[%s0 + $0x38] sm:$0xff]
  %v25 = vld [vmem:[%s0 + $0x40] sm:$0xff]
  %v26 = vld [vmem:[%s0 + $0x48] sm:$0xff]
  %v27 = vld [vmem:[%s0 + $0x50] sm:$0xff]
  %v28 = vld [vmem:[%s0 + $0x58] sm:$0xff]
  %v29 = vld [vmem:[%s0 + $0x60] sm:$0xff]
  %v30 = vld [vmem:[%s0 + $0x68] sm:$0xff]
  %v31 = vld [vmem:[%s0 + $0x70] sm:$0xff]
  %v32 = vld [vmem:[%s0 + $0x78] sm:$0xff]
  %vm33 = vcmask 261120
  %v34 = vsel %vm33, %v17, 0.0
  %35 = vadd.xlane.f32.xlu0 %v34
  %v36 = vpop.xlane.xlu0 %35
  %v37 = vsel %vm33, %v18, 0.0
  %38 = vadd.xlane.f32.xlu0 %v37
  %v39 = vpop.xlane.xlu0 %38
  %v40 = vsel %vm33, %v19, 0.0
  %41 = vadd.xlane.f32.xlu0 %v40
  %v42 = vpop.xlane.xlu0 %41
  %v43 = vsel %vm33, %v20, 0.0
  %44 = vadd.xlane.f32.xlu0 %v43
  %v45 = vpop.xlane.xlu0 %44
  %v46 = vsel %vm33, %v21, 0.0
  %47 = vadd.xlane.f32.xlu0 %v46
  %v48 = vpop.xlane.xlu0 %47
  %v49 = vsel %vm33, %v22, 0.0
  %50 = vadd.xlane.f32.xlu0 %v49
  %v51 = vpop.xlane.xlu0 %50
  %v52 = vsel %vm33, %v23, 0.0
  %53 = vadd.xlane.f32.xlu0 %v52
  %v54 = vpop.xlane.xlu0 %53
  %v55 = vsel %vm33, %v24, 0.0
  %56 = vadd.xlane.f32.xlu0 %v55
  %v57 = vpop.xlane.xlu0 %56
  %v58 = vsel %vm33, %v25, 0.0
  %59 = vadd.xlane.f32.xlu0 %v58
  %v60 = vpop.xlane.xlu0 %59
  %v61 = vsel %vm33, %v26, 0.0
  %62 = vadd.xlane.f32.xlu0 %v61
  %v63 = vpop.xlane.xlu0 %62
  %v64 = vsel %vm33, %v27, 0.0
  %65 = vadd.xlane.f32.xlu0 %v64
  %v66 = vpop.xlane.xlu0 %65
  %v67 = vsel %vm33, %v28, 0.0
  %68 = vadd.xlane.f32.xlu0 %v67
  %v69 = vpop.xlane.xlu0 %68
  %v70 = vsel %vm33, %v29, 0.0
  %71 = vadd.xlane.f32.xlu0 %v70
  %v72 = vpop.xlane.xlu0 %71
  %v73 = vsel %vm33, %v30, 0.0
  %74 = vadd.xlane.f32.xlu0 %v73
  %v75 = vpop.xlane.xlu0 %74
  %v76 = vsel %vm33, %v31, 0.0
  %77 = vadd.xlane.f32.xlu0 %v76
  %v78 = vpop.xlane.xlu0 %77
  %v79 = vsel %vm33, %v32, 0.0
  %80 = vadd.xlane.f32.xlu0 %v79
  %v81 = vpop.xlane.xlu0 %80
  %v82 = vrcp.pop 32.0
  %v83 = vmul.f32 %v36, %v82
  %v84 = vmul.f32 %v39, %v82
  %v85 = vmul.f32 %v42, %v82
  %v86 = vmul.f32 %v45, %v82
  %v87 = vmul.f32 %v48, %v82
  %v88 = vmul.f32 %v51, %v82
  %v89 = vmul.f32 %v54, %v82
  %v90 = vmul.f32 %v57, %v82
  %v91 = vmul.f32 %v60, %v82
  %v92 = vmul.f32 %v63, %v82
  %v93 = vmul.f32 %v66, %v82
  %v94 = vmul.f32 %v69, %v82
  %v95 = vmul.f32 %v72, %v82
  %v96 = vmul.f32 %v75, %v82
  %v97 = vmul.f32 %v78, %v82
  %v98 = vmul.f32 %v81, %v82
  %v99 = vsub.f32 %v17, %v83
  %v100 = vsub.f32 %v18, %v84
  %v101 = vsub.f32 %v19, %v85
  %v102 = vsub.f32 %v20, %v86
  %v103 = vsub.f32 %v21, %v87
  %v104 = vsub.f32 %v22, %v88
  %v105 = vsub.f32 %v23, %v89
  %v106 = vsub.f32 %v24, %v90
  %v107 = vsub.f32 %v25, %v91
  %v108 = vsub.f32 %v26, %v92
  %v109 = vsub.f32 %v27, %v93
  %v110 = vsub.f32 %v28, %v94
  %v111 = vsub.f32 %v29, %v95
  %v112 = vsub.f32 %v30, %v96
  %v113 = vsub.f32 %v31, %v97
  %v114 = vsub.f32 %v32, %v98
  %v115 = vmul.f32 %v99, %v99
  %v116 = vmul.f32 %v100, %v100
  %v117 = vmul.f32 %v101, %v101
  %v118 = vmul.f32 %v102, %v102
  %v119 = vmul.f32 %v103, %v103
  %v120 = vmul.f32 %v104, %v104
  %v121 = vmul.f32 %v105, %v105
  %v122 = vmul.f32 %v106, %v106
  %v123 = vmul.f32 %v107, %v107
  %v124 = vmul.f32 %v108, %v108
  %v125 = vmul.f32 %v109, %v109
  %v126 = vmul.f32 %v110, %v110
  %v127 = vmul.f32 %v111, %v111
  %v128 = vmul.f32 %v112, %v112
  %v129 = vmul.f32 %v113, %v113
  %v130 = vmul.f32 %v114, %v114
  %v131 = vsel %vm33, %v115, 0.0
  %132 = vadd.xlane.f32.xlu0 %v131
  %v133 = vpop.xlane.xlu0 %132
  %v134 = vsel %vm33, %v116, 0.0
  %135 = vadd.xlane.f32.xlu0 %v134
  %v136 = vpop.xlane.xlu0 %135
  %v137 = vsel %vm33, %v117, 0.0
  %138 = vadd.xlane.f32.xlu0 %v137
  %v139 = vpop.xlane.xlu0 %138
  %v140 = vsel %vm33, %v118, 0.0
  %141 = vadd.xlane.f32.xlu0 %v140
  %v142 = vpop.xlane.xlu0 %141
  %v143 = vsel %vm33, %v119, 0.0
  %144 = vadd.xlane.f32.xlu0 %v143
  %v145 = vpop.xlane.xlu0 %144
  %v146 = vsel %vm33, %v120, 0.0
  %147 = vadd.xlane.f32.xlu0 %v146
  %v148 = vpop.xlane.xlu0 %147
  %v149 = vsel %vm33, %v121, 0.0
  %150 = vadd.xlane.f32.xlu0 %v149
  %v151 = vpop.xlane.xlu0 %150
  %v152 = vsel %vm33, %v122, 0.0
  %153 = vadd.xlane.f32.xlu0 %v152
  %v154 = vpop.xlane.xlu0 %153
  %v155 = vsel %vm33, %v123, 0.0
  %156 = vadd.xlane.f32.xlu0 %v155
  %v157 = vpop.xlane.xlu0 %156
  %v158 = vsel %vm33, %v124, 0.0
  %159 = vadd.xlane.f32.xlu0 %v158
  %v160 = vpop.xlane.xlu0 %159
  %v161 = vsel %vm33, %v125, 0.0
  %162 = vadd.xlane.f32.xlu0 %v161
  %v163 = vpop.xlane.xlu0 %162
  %v164 = vsel %vm33, %v126, 0.0
  %165 = vadd.xlane.f32.xlu0 %v164
  %v166 = vpop.xlane.xlu0 %165
  %v167 = vsel %vm33, %v127, 0.0
  %168 = vadd.xlane.f32.xlu0 %v167
  %v169 = vpop.xlane.xlu0 %168
  %v170 = vsel %vm33, %v128, 0.0
  %171 = vadd.xlane.f32.xlu0 %v170
  %v172 = vpop.xlane.xlu0 %171
  %v173 = vsel %vm33, %v129, 0.0
  %174 = vadd.xlane.f32.xlu0 %v173
  %v175 = vpop.xlane.xlu0 %174
  %v176 = vsel %vm33, %v130, 0.0
  %177 = vadd.xlane.f32.xlu0 %v176
  %v178 = vpop.xlane.xlu0 %177
  %v179 = vmul.f32 %v133, %v82
  %v180 = vmul.f32 %v136, %v82
  %v181 = vmul.f32 %v139, %v82
  %v182 = vmul.f32 %v142, %v82
  %v183 = vmul.f32 %v145, %v82
  %v184 = vmul.f32 %v148, %v82
  %v185 = vmul.f32 %v151, %v82
  %v186 = vmul.f32 %v154, %v82
  %v187 = vmul.f32 %v157, %v82
  %v188 = vmul.f32 %v160, %v82
  %v189 = vmul.f32 %v163, %v82
  %v190 = vmul.f32 %v166, %v82
  %v191 = vmul.f32 %v169, %v82
  %v192 = vmul.f32 %v172, %v82
  %v193 = vmul.f32 %v175, %v82
  %v194 = vmul.f32 %v178, %v82
  %v195 = vadd.f32 %v179, 1e-06
  %v196 = vadd.f32 %v180, 1e-06
  %v197 = vadd.f32 %v181, 1e-06
  %v198 = vadd.f32 %v182, 1e-06
  %v199 = vadd.f32 %v183, 1e-06
  %v200 = vadd.f32 %v184, 1e-06
  %v201 = vadd.f32 %v185, 1e-06
  %v202 = vadd.f32 %v186, 1e-06
  %v203 = vadd.f32 %v187, 1e-06
  %v204 = vadd.f32 %v188, 1e-06
  %v205 = vadd.f32 %v189, 1e-06
  %v206 = vadd.f32 %v190, 1e-06
  %v207 = vadd.f32 %v191, 1e-06
  %v208 = vadd.f32 %v192, 1e-06
  %v209 = vadd.f32 %v193, 1e-06
  %v210 = vadd.f32 %v194, 1e-06
  %v211 = vrsqrt.pop %v195
  %v212 = vrsqrt.pop %v196
  %v213 = vrsqrt.pop %v197
  %v214 = vrsqrt.pop %v198
  %v215 = vrsqrt.pop %v199
  %v216 = vrsqrt.pop %v200
  %v217 = vrsqrt.pop %v201
  %v218 = vrsqrt.pop %v202
  %v219 = vrsqrt.pop %v203
  %v220 = vrsqrt.pop %v204
  %v221 = vrsqrt.pop %v205
  %v222 = vrsqrt.pop %v206
  %v223 = vrsqrt.pop %v207
  %v224 = vrsqrt.pop %v208
  %v225 = vrsqrt.pop %v209
  %v226 = vrsqrt.pop %v210
  %v227 = vmul.f32 %v99, %v211
  %v228 = vmul.f32 %v100, %v212
  %v229 = vmul.f32 %v101, %v213
  %v230 = vmul.f32 %v102, %v214
  %v231 = vmul.f32 %v103, %v215
  %v232 = vmul.f32 %v104, %v216
  %v233 = vmul.f32 %v105, %v217
  %v234 = vmul.f32 %v106, %v218
  %v235 = vmul.f32 %v107, %v219
  %v236 = vmul.f32 %v108, %v220
  %v237 = vmul.f32 %v109, %v221
  %v238 = vmul.f32 %v110, %v222
  %v239 = vmul.f32 %v111, %v223
  %v240 = vmul.f32 %v112, %v224
  %v241 = vmul.f32 %v113, %v225
  %v242 = vmul.f32 %v114, %v226
  %v243 = vld [vmem:[%s1] sm:$0x1]
  %v245 = vlaneseq
  %v246 = vshrl.u32 %v245, 7
  %v247 = vsub.s32 0, %v246
  %v248 = vrot.slane %v243, %v247
  %v250 = vmul.f32 %v227, %v248
  %v251 = vmul.f32 %v228, %v248
  %v252 = vmul.f32 %v229, %v248
  %v253 = vmul.f32 %v230, %v248
  %v254 = vmul.f32 %v231, %v248
  %v255 = vmul.f32 %v232, %v248
  %v256 = vmul.f32 %v233, %v248
  %v257 = vmul.f32 %v234, %v248
  %v258 = vmul.f32 %v235, %v248
  %v259 = vmul.f32 %v236, %v248
  %v260 = vmul.f32 %v237, %v248
  %v261 = vmul.f32 %v238, %v248
  %v262 = vmul.f32 %v239, %v248
  %v263 = vmul.f32 %v240, %v248
  %v264 = vmul.f32 %v241, %v248
  %v265 = vmul.f32 %v242, %v248
  %v266 = vld [vmem:[%s2] sm:$0x1]
  %v268 = vlaneseq
  %v269 = vshrl.u32 %v268, 7
  %v270 = vsub.s32 0, %v269
  %v271 = vrot.slane %v266, %v270
  %v273 = vadd.f32 %v250, %v271
  %v274 = vadd.f32 %v251, %v271
  %v275 = vadd.f32 %v252, %v271
  %v276 = vadd.f32 %v253, %v271
  %v277 = vadd.f32 %v254, %v271
  %v278 = vadd.f32 %v255, %v271
  %v279 = vadd.f32 %v256, %v271
  %v280 = vadd.f32 %v257, %v271
  %v281 = vadd.f32 %v258, %v271
  %v282 = vadd.f32 %v259, %v271
  %v283 = vadd.f32 %v260, %v271
  %v284 = vadd.f32 %v261, %v271
  %v285 = vadd.f32 %v262, %v271
  %v286 = vadd.f32 %v263, %v271
  %v287 = vadd.f32 %v264, %v271
  %v288 = vadd.f32 %v265, %v271
  %v289 = vld [vmem:[%s3] sm:$0xff]
  %v290 = vld [vmem:[%s3 + $0x8] sm:$0xff]
  %v291 = vld [vmem:[%s3 + $0x10] sm:$0xff]
  %v292 = vld [vmem:[%s3 + $0x18] sm:$0xff]
  %v294 = vsel %vm33, %v273, 0
  %v297 = vsel %vm33, %v274, 0
  %v300 = vsel %vm33, %v275, 0
  %v303 = vsel %vm33, %v276, 0
  %v306 = vsel %vm33, %v277, 0
  %v309 = vsel %vm33, %v278, 0
  %v312 = vsel %vm33, %v279, 0
  %v315 = vsel %vm33, %v280, 0
  %v318 = vsel %vm33, %v281, 0
  %v321 = vsel %vm33, %v282, 0
  %v324 = vsel %vm33, %v283, 0
  %v327 = vsel %vm33, %v284, 0
  %v330 = vsel %vm33, %v285, 0
  %v333 = vsel %vm33, %v286, 0
  %v336 = vsel %vm33, %v287, 0
  %v339 = vsel %vm33, %v288, 0
  %341 = vmatprep.subr.mxu0 0.0
  %342 = vmatpush1.msra.mxu0 0.0
  %343 = vmatprep.subr.mxu0 0.0
  %344 = vmatpush1.msra.mxu0 0.0
  %345 = vmatprep.subr.mxu0 0.0
  %346 = vmatpush1.msra.mxu0 0.0
  %347 = vmatprep.subr.mxu0 0.0
  %348 = vmatpush1.msra.mxu0 0.0
  %349 = vmatprep.subr.mxu0 0.0
  %350 = vmatpush1.msra.mxu0 0.0
  %351 = vmatprep.subr.mxu0 0.0
  %352 = vmatpush1.msra.mxu0 0.0
  %353 = vmatprep.subr.mxu0 0.0
  %354 = vmatpush1.msra.mxu0 0.0
  %355 = vmatprep.subr.mxu0 0.0
  %356 = vmatpush1.msra.mxu0 0.0
  %357 = vmatprep.subr.mxu0 0.0
  %358 = vmatpush1.msra.mxu0 0.0
  %359 = vmatprep.subr.mxu0 0.0
  %360 = vmatpush1.msra.mxu0 0.0
  %361 = vmatprep.subr.mxu0 0.0
  %362 = vmatpush1.msra.mxu0 0.0
  %363 = vmatprep.subr.mxu0 0.0
  %364 = vmatpush1.msra.mxu0 0.0
  %365 = vmatprep.subr.mxu0 0.0
  %366 = vmatpush1.msra.mxu0 %v292
  %367 = vmatprep.subr.mxu0 0.0
  %368 = vmatpush1.msra.mxu0 %v291
  %369 = vmatprep.subr.mxu0 0.0
  %370 = vmatpush1.msra.mxu0 %v290
  %371 = vmatprep.subr.mxu0 0.0
  %372 = vmatpush1.msra.mxu0 %v289
  %373 = vmatprep.subr.mxu0 0.0
  %374 = vmatpush2.msra.mxu0 0.0
  %375 = vmatprep.subr.mxu0 0.0
  %376 = vmatpush2.msra.mxu0 0.0
  %377 = vmatprep.subr.mxu0 0.0
  %378 = vmatpush2.msra.mxu0 0.0
  %379 = vmatprep.subr.mxu0 0.0
  %380 = vmatpush2.msra.mxu0 0.0
  %381 = vmatprep.subr.mxu0 0.0
  %382 = vmatpush2.msra.mxu0 0.0
  %383 = vmatprep.subr.mxu0 0.0
  %384 = vmatpush2.msra.mxu0 0.0
  %385 = vmatprep.subr.mxu0 0.0
  %386 = vmatpush2.msra.mxu0 0.0
  %387 = vmatprep.subr.mxu0 0.0
  %388 = vmatpush2.msra.mxu0 0.0
  %389 = vmatprep.subr.mxu0 0.0
  %390 = vmatpush2.msra.mxu0 0.0
  %391 = vmatprep.subr.mxu0 0.0
  %392 = vmatpush2.msra.mxu0 0.0
  %393 = vmatprep.subr.mxu0 0.0
  %394 = vmatpush2.msra.mxu0 0.0
  %395 = vmatprep.subr.mxu0 0.0
  %396 = vmatpush2.msra.mxu0 0.0
  %397 = vmatprep.subr.mxu0 0.0
  %398 = vmatpush2.msra.mxu0 0.0
  %399 = vmatprep.subr.mxu0 0.0
  %400 = vmatpush2.msra.mxu0 0.0
  %401 = vmatprep.subr.mxu0 0.0
  %402 = vmatpush2.msra.mxu0 0.0
  %403 = vmatprep.subr.mxu0 0.0
  %404 = vmatpush2.msra.mxu0 0.0
  %405 = vmatprep.mubr.f32.mxu0 0.0
  %406 = vmatmul.mubr.f32.gmra.mxu0 %v294
  %v407 = vpop.f32.mrf.mxu0
  %v408 = vadd.f32 0.0, %v407
  %v409 = vpop.f32.mrf.mxu0
  %410 = vmatprep.mubr.f32.mxu0 0.0
  %411 = vmatmul.mubr.f32.gmra.mxu0 %v297
  %v412 = vpop.f32.mrf.mxu0
  %v413 = vadd.f32 0.0, %v412
  %v414 = vpop.f32.mrf.mxu0
  %415 = vmatprep.mubr.f32.mxu0 0.0
  %416 = vmatmul.mubr.f32.gmra.mxu0 %v300
  %v417 = vpop.f32.mrf.mxu0
  %v418 = vadd.f32 0.0, %v417
  %v419 = vpop.f32.mrf.mxu0
  %420 = vmatprep.mubr.f32.mxu0 0.0
  %421 = vmatmul.mubr.f32.gmra.mxu0 %v303
  %v422 = vpop.f32.mrf.mxu0
  %v423 = vadd.f32 0.0, %v422
  %v424 = vpop.f32.mrf.mxu0
  %425 = vmatprep.mubr.f32.mxu0 0.0
  %426 = vmatmul.mubr.f32.gmra.mxu0 %v306
  %v427 = vpop.f32.mrf.mxu0
  %v428 = vadd.f32 0.0, %v427
  %v429 = vpop.f32.mrf.mxu0
  %430 = vmatprep.mubr.f32.mxu0 0.0
  %431 = vmatmul.mubr.f32.gmra.mxu0 %v309
  %v432 = vpop.f32.mrf.mxu0
  %v433 = vadd.f32 0.0, %v432
  %v434 = vpop.f32.mrf.mxu0
  %435 = vmatprep.mubr.f32.mxu0 0.0
  %436 = vmatmul.mubr.f32.gmra.mxu0 %v312
  %v437 = vpop.f32.mrf.mxu0
  %v438 = vadd.f32 0.0, %v437
  %v439 = vpop.f32.mrf.mxu0
  %440 = vmatprep.mubr.f32.mxu0 0.0
  %441 = vmatmul.mubr.f32.gmra.mxu0 %v315
  %v442 = vpop.f32.mrf.mxu0
  %v443 = vadd.f32 0.0, %v442
  %v444 = vpop.f32.mrf.mxu0
  %445 = vmatprep.mubr.f32.mxu0 0.0
  %446 = vmatmul.mubr.f32.gmra.mxu0 %v318
  %v447 = vpop.f32.mrf.mxu0
  %v448 = vadd.f32 0.0, %v447
  %v449 = vpop.f32.mrf.mxu0
  %450 = vmatprep.mubr.f32.mxu0 0.0
  %451 = vmatmul.mubr.f32.gmra.mxu0 %v321
  %v452 = vpop.f32.mrf.mxu0
  %v453 = vadd.f32 0.0, %v452
  %v454 = vpop.f32.mrf.mxu0
  %455 = vmatprep.mubr.f32.mxu0 0.0
  %456 = vmatmul.mubr.f32.gmra.mxu0 %v324
  %v457 = vpop.f32.mrf.mxu0
  %v458 = vadd.f32 0.0, %v457
  %v459 = vpop.f32.mrf.mxu0
  %460 = vmatprep.mubr.f32.mxu0 0.0
  %461 = vmatmul.mubr.f32.gmra.mxu0 %v327
  %v462 = vpop.f32.mrf.mxu0
  %v463 = vadd.f32 0.0, %v462
  %v464 = vpop.f32.mrf.mxu0
  %465 = vmatprep.mubr.f32.mxu0 0.0
  %466 = vmatmul.mubr.f32.gmra.mxu0 %v330
  %v467 = vpop.f32.mrf.mxu0
  %v468 = vadd.f32 0.0, %v467
  %v469 = vpop.f32.mrf.mxu0
  %470 = vmatprep.mubr.f32.mxu0 0.0
  %471 = vmatmul.mubr.f32.gmra.mxu0 %v333
  %v472 = vpop.f32.mrf.mxu0
  %v473 = vadd.f32 0.0, %v472
  %v474 = vpop.f32.mrf.mxu0
  %475 = vmatprep.mubr.f32.mxu0 0.0
  %476 = vmatmul.mubr.f32.gmra.mxu0 %v336
  %v477 = vpop.f32.mrf.mxu0
  %v478 = vadd.f32 0.0, %v477
  %v479 = vpop.f32.mrf.mxu0
  %480 = vmatprep.mubr.f32.mxu0 0.0
  %481 = vmatmul.mubr.f32.gmra.mxu0 %v339
  %v482 = vpop.f32.mrf.mxu0
  %v483 = vadd.f32 0.0, %v482
  %v484 = vpop.f32.mrf.mxu0
  %485 = vdwg.mxu0
  %486 = vst [vmem:[%s4] sm:$0xff] %v408
  %487 = vst [vmem:[%s4 + $0x8] sm:$0xff] %v413
  %488 = vst [vmem:[%s4 + $0x10] sm:$0xff] %v418
  %489 = vst [vmem:[%s4 + $0x18] sm:$0xff] %v423
  %490 = vst [vmem:[%s4 + $0x20] sm:$0xff] %v428
  %491 = vst [vmem:[%s4 + $0x28] sm:$0xff] %v433
  %492 = vst [vmem:[%s4 + $0x30] sm:$0xff] %v438
  %493 = vst [vmem:[%s4 + $0x38] sm:$0xff] %v443
  %494 = vst [vmem:[%s4 + $0x40] sm:$0xff] %v448
  %495 = vst [vmem:[%s4 + $0x48] sm:$0xff] %v453
  %496 = vst [vmem:[%s4 + $0x50] sm:$0xff] %v458
  %497 = vst [vmem:[%s4 + $0x58] sm:$0xff] %v463
  %498 = vst [vmem:[%s4 + $0x60] sm:$0xff] %v468
  %499 = vst [vmem:[%s4 + $0x68] sm:$0xff] %v473
  %500 = vst [vmem:[%s4 + $0x70] sm:$0xff] %v478
  %501 = vst [vmem:[%s4 + $0x78] sm:$0xff] %v483
  // Predicated region
  $region18: #{spatial_mamba_block.9} parent=0 // pred_check
    _
  $region19: #{spatial_mamba_block.9} parent=0 // pred_check_branch
    %503 = sbr.rel (0) target = $region21
  $region20: #{spatial_mamba_block.9} parent=0 // pred_region
    _
  $region21: #{spatial_mamba_block.9} parent=0 // pred_fallthru
    _
  // Predicated region
  $region22: #{spatial_mamba_block.9} parent=0 // pred_check
    _
  $region23: #{spatial_mamba_block.9} parent=0 // pred_check_branch
    %505 = sbr.rel (0) target = $region25
  $region24: #{spatial_mamba_block.9} parent=0 // pred_region
    _
  $region25: #{spatial_mamba_block.9} parent=0 // pred_fallthru
    _

// kernel: spatial_mamba_block.8
$region0: #{spatial_mamba_block.8}
  #allocation0 [shape = 'u32[]', space=smem, size = 0x4, offset = 0x4, fixed_abs, tag = 'smem constant byte address 0x4 - core index']
  #allocation1 [shape = 'u32[144,128]{1,0:T(1,128)}', space=vmem, size = 0x12000, scoped, tag = 'internal scratch']
  %s0 = inlined_call_operand.vmem [shape: f32[2,10,10,32], index: 0, kind: input, shape index: {}]
  %s1 = inlined_call_operand.vmem [shape: f32[3,3,32], index: 1, kind: input, shape index: {}]
  %s2 = inlined_call_operand.vmem [shape: f32[1,32], index: 2, kind: input, shape index: {}]
  %s3 = inlined_call_operand.vmem [shape: f32[2,8,8,32], index: 3, kind: output, shape index: {}]
  %s4 = sld [smem:[#allocation0]]
  $region45: #{spatial_mamba_block.8} parent=0
    _
  %s6 = ssub.s32 1, %s4
  %s7 = scalar_select 0, %s6, %s4
  loop: start=0, step=1, limit=4
  $region2: #{spatial_mamba_block.8} parent=0 // loop_pre_header
    _
  $region3: #{spatial_mamba_block.8} parent=0 // loop_header
    %s9 = sphi 0, %s13
    %p10 = scmp.ge.s32.totalorder %s9, 4
    %s19 = sphi 0, %s21
    %s22 = sphi 0, %s19
    %s23 = sphi 0, %s22
    %s39 = sphi 0, %s23
    %s43 = sphi 0, %s43
    %s45 = sphi 0, %s43
    %s46 = sphi 0, %s45
    %s60 = sphi 0, %s46
    %s64 = sphi 0, %s64
    %s66 = sphi 0, %s64
    %s67 = sphi 0, %s66
    %s81 = sphi 0, %s67
    %s87 = sphi 0, %s89
    %s90 = sphi 0, %s87
    %s91 = sphi 0, %s90
    %s107 = sphi 0, %s91
  $region4: #{spatial_mamba_block.8} parent=0 // loop_header_branch
    %12 = sbr.rel (%p10) target = $region8
  $region5: #{spatial_mamba_block.8} parent=0 // loop_body
    %s14 = ssub.s32 %s9, 1
    %s15 = ssub.s32 %s9, 2
    %s16 = sadd.s32 %s9, 1
    %s17 = ssub.s32 %s9, %s16
    %p18 = scmp.eq.s32.totalorder %s17, 0
    %s20 = sadd.s32 %s19, 1
    %s21 = scalar_select %p18, %s19, %s20
    %p24 = pneg %p18
    %p25 = scmp.eq.s32.totalorder %s9, 1
    %p26 = por %p24, %p25
    %p27 = scmp.ne.s32.totalorder %s19, %s22
    %p28 = scmp.eq.s32.totalorder %s9, 0
    %p29 = por %p27, %p28
    %p30 = scmp.ne.s32.totalorder %s19, %s22
    %p31 = scmp.eq.s32.totalorder %s14, 1
    %p32 = por %p30, %p31
    %p33 = scmp.ne.s32.totalorder %s22, %s23
    %p34 = scmp.eq.s32.totalorder %s14, 0
    %p35 = por %p33, %p34
    %p36 = scmp.ne.s32.totalorder %s22, %s23
    %p37 = scmp.eq.s32.totalorder %s15, 1
    %p38 = por %p36, %p37
    %p40 = scmp.ne.s32.totalorder %s23, %s39
    %p41 = scmp.eq.s32.totalorder %s15, 0
    %p42 = por %p40, %p41
    %s44 = sadd.s32 %s43, 1
    %p47 = scmp.eq.s32.totalorder %s9, 1
    %p48 = scmp.ne.s32.totalorder %s43, %s45
    %p49 = scmp.eq.s32.totalorder %s9, 0
    %p50 = por %p48, %p49
    %p51 = scmp.ne.s32.totalorder %s43, %s45
    %p52 = scmp.eq.s32.totalorder %s14, 1
    %p53 = por %p51, %p52
    %p54 = scmp.ne.s32.totalorder %s45, %s46
    %p55 = scmp.eq.s32.totalorder %s14, 0
    %p56 = por %p54, %p55
    %p57 = scmp.ne.s32.totalorder %s45, %s46
    %p58 = scmp.eq.s32.totalorder %s15, 1
    %p59 = por %p57, %p58
    %p61 = scmp.ne.s32.totalorder %s46, %s60
    %p62 = scmp.eq.s32.totalorder %s15, 0
    %p63 = por %p61, %p62
    %s65 = sadd.s32 %s64, 1
    %p68 = scmp.eq.s32.totalorder %s9, 1
    %p69 = scmp.ne.s32.totalorder %s64, %s66
    %p70 = scmp.eq.s32.totalorder %s9, 0
    %p71 = por %p69, %p70
    %p72 = scmp.ne.s32.totalorder %s64, %s66
    %p73 = scmp.eq.s32.totalorder %s14, 1
    %p74 = por %p72, %p73
    %p75 = scmp.ne.s32.totalorder %s66, %s67
    %p76 = scmp.eq.s32.totalorder %s14, 0
    %p77 = por %p75, %p76
    %p78 = scmp.ne.s32.totalorder %s66, %s67
    %p79 = scmp.eq.s32.totalorder %s15, 1
    %p80 = por %p78, %p79
    %p82 = scmp.ne.s32.totalorder %s67, %s81
    %p83 = scmp.eq.s32.totalorder %s15, 0
    %p84 = por %p82, %p83
    %s85 = ssub.s32 %s9, %s16
    %p86 = scmp.eq.s32.totalorder %s85, 0
    %s88 = sadd.s32 %s87, 1
    %s89 = scalar_select %p86, %s87, %s88
    %p92 = pneg %p86
    %p93 = scmp.eq.s32.totalorder %s9, 1
    %p94 = por %p92, %p93
    %p95 = scmp.ne.s32.totalorder %s87, %s90
    %p96 = scmp.eq.s32.totalorder %s9, 0
    %p97 = por %p95, %p96
    %p98 = scmp.ne.s32.totalorder %s87, %s90
    %p99 = scmp.eq.s32.totalorder %s14, 1
    %p100 = por %p98, %p99
    %p101 = scmp.ne.s32.totalorder %s90, %s91
    %p102 = scmp.eq.s32.totalorder %s14, 0
    %p103 = por %p101, %p102
    %p104 = scmp.ne.s32.totalorder %s90, %s91
    %p105 = scmp.eq.s32.totalorder %s15, 1
    %p106 = por %p104, %p105
    %p108 = scmp.ne.s32.totalorder %s91, %s107
    %p109 = scmp.eq.s32.totalorder %s15, 0
    %p110 = por %p108, %p109
    %p111 = scmp.le.s32.totalorder 1, %s9
    %p112 = scmp.lt.s32.totalorder %s9, 3
    %p113 = pnand %p111, %p112
    %p114 = pneg %p113
    // Predicated region
    $region9: #{spatial_mamba_block.8} parent=5 // pred_check
      _
    $region10: #{spatial_mamba_block.8} parent=5 // pred_check_branch
      %116 = sbr.rel (%p113) target = $region12
    $region11: #{spatial_mamba_block.8} parent=5 // pred_region
      %s117 = ssub.s32 %s9, 1
      // Predicated region
      $region13: #{spatial_mamba_block.8} parent=11 // pred_check
        %p118 = pneg %p56
      $region14: #{spatial_mamba_block.8} parent=11 // pred_check_branch
        %120 = sbr.rel (%p118) target = $region16
      $region15: #{spatial_mamba_block.8} parent=11 // pred_region
        _
      $region16: #{spatial_mamba_block.8} parent=11 // pred_fallthru
        _
      // Predicated region
      $region17: #{spatial_mamba_block.8} parent=11 // pred_check
        %p121 = pneg %p77
      $region18: #{spatial_mamba_block.8} parent=11 // pred_check_branch
        %123 = sbr.rel (%p121) target = $region20
      $region19: #{spatial_mamba_block.8} parent=11 // pred_region
        _
      $region20: #{spatial_mamba_block.8} parent=11 // pred_fallthru
        _
    $region12: #{spatial_mamba_block.8} parent=5 // pred_fallthru
      _
    %p124 = scmp.lt.s32.totalorder %s9, 2
    // Predicated region
    $region21: #{spatial_mamba_block.8} parent=5 // pred_check
      %p125 = pneg %p124
    $region22: #{spatial_mamba_block.8} parent=5 // pred_check_branch
      %127 = sbr.rel (%p125) target = $region24
    $region23: #{spatial_mamba_block.8} parent=5 // pred_region
      // Predicated region
      $region25: #{spatial_mamba_block.8} parent=23 // pred_check
        %p128 = pneg %p29
      $region26: #{spatial_mamba_block.8} parent=23 // pred_check_branch
        %130 = sbr.rel (%p128) target = $region28
      $region27: #{spatial_mamba_block.8} parent=23 // pred_region
        %p131 = scmp.lt.s32.totalorder %s9, 1
        %s132 = scalar_select %p131, %s9, 1
        %s133 = smul.addr %s132, 20
        %s134 = smul.addr %s133, 8
        %s135 = scalar_lea.vmem %s0, %s134
      $region28: #{spatial_mamba_block.8} parent=23 // pred_fallthru
        _
    $region24: #{spatial_mamba_block.8} parent=5 // pred_fallthru
      _
    %p136 = scmp.le.s32.totalorder 1, %s9
    %p137 = scmp.lt.s32.totalorder %s9, 3
    %p138 = pnand %p136, %p137
    %p139 = pneg %p138
    // Predicated region
    $region29: #{spatial_mamba_block.8} parent=5 // pred_check
      _
    $region30: #{spatial_mamba_block.8} parent=5 // pred_check_branch
      %141 = sbr.rel (%p138) target = $region32
    $region31: #{spatial_mamba_block.8} parent=5 // pred_region
      %s142 = ssub.s32 %s9, 1
      %p143 = scmp.lt.s32.totalorder %s14, 1
      %s144 = scalar_select %p143, %s14, 1
      %s145 = smul.addr %s144, 20
      %s146 = smul.addr %s145, 8
      %s147 = scalar_lea.vmem %s0, %s146
      %p148 = pneg %p35
      %p149 = pneg %p32
      %p150 = pneg %p56
      %p151 = pneg %p53
      %p152 = pneg %p77
      %p153 = pneg %p74
      %p154 = pneg %p103
      %p155 = pneg %p100
      %p156 = scmp.lt.s32.totalorder %s14, 1
      %s157 = scalar_select %p156, %s14, 1
      %s158 = smul.addr %s157, 8
      %s159 = smul.addr %s158, 8
      %s160 = scalar_lea.vmem %s3, %s159
      %p161 = scmp.lt.s32.totalorder %s14, 1
      %s162 = scalar_select %p161, %s14, 1
      %s163 = smul.addr %s162, 20
      %s164 = smul.addr %s163, 8
      %s165 = scalar_lea.vmem %s0, %s164
      %p166 = scmp.lt.s32.totalorder %s14, 1
      %s167 = scalar_select %p166, %s14, 1
      %s168 = smul.addr %s167, 8
      %s169 = smul.addr %s168, 8
      %s170 = scalar_lea.vmem %s3, %s169
      %v171 = vld [vmem:[%s165] sm:$0xff]
      %v172 = vld [vmem:[%s165 + $0x8] sm:$0x3]
      %v173 = vld [vmem:[%s165 + $0x10] sm:$0xff]
      %v174 = vld [vmem:[%s165 + $0x18] sm:$0x3]
      %v175 = vld [vmem:[%s165 + $0x20] sm:$0xff]
      %v176 = vld [vmem:[%s165 + $0x28] sm:$0x3]
      %v177 = vld [vmem:[%s165 + $0x30] sm:$0xff]
      %v178 = vld [vmem:[%s165 + $0x38] sm:$0x3]
      %v179 = vld [vmem:[%s165 + $0x40] sm:$0xff]
      %v180 = vld [vmem:[%s165 + $0x48] sm:$0x3]
      %v181 = vld [vmem:[%s165 + $0x50] sm:$0xff]
      %v182 = vld [vmem:[%s165 + $0x58] sm:$0x3]
      %v183 = vld [vmem:[%s165 + $0x60] sm:$0xff]
      %v184 = vld [vmem:[%s165 + $0x68] sm:$0x3]
      %v185 = vld [vmem:[%s165 + $0x70] sm:$0xff]
      %v186 = vld [vmem:[%s165 + $0x78] sm:$0x3]
      %v187 = vld [vmem:[%s165 + $0x80] sm:$0xff]
      %v188 = vld [vmem:[%s165 + $0x88] sm:$0x3]
      %v189 = vld [vmem:[%s165 + $0x90] sm:$0xff]
      %v190 = vld [vmem:[%s165 + $0x98] sm:$0x3]
      %v191 = vld [vmem:[%s1] sm:$0x1]
      %v192 = vlaneseq
      %v193 = vshrl.u32 %v192, 7
      %v194 = vsub.s32 0, %v193
      %v195 = vrot.slane %v191, %v194
      %v196 = vmul.f32 %v171, %v195
      %v197 = vmul.f32 %v173, %v195
      %v198 = vmul.f32 %v175, %v195
      %v199 = vmul.f32 %v177, %v195
      %v200 = vmul.f32 %v179, %v195
      %v201 = vmul.f32 %v181, %v195
      %v202 = vmul.f32 %v183, %v195
      %v203 = vmul.f32 %v185, %v195
      %v204 = vadd.f32 %v196, 0.0
      %v205 = vadd.f32 %v197, 0.0
      %v206 = vadd.f32 %v198, 0.0
      %v207 = vadd.f32 %v199, 0.0
      %v208 = vadd.f32 %v200, 0.0
      %v209 = vadd.f32 %v201, 0.0
      %v210 = vadd.f32 %v202, 0.0
      %v211 = vadd.f32 %v203, 0.0
      %v212 = vld [vmem:[%s1 + $0x1] sm:$0x1]
      %v213 = vlaneseq
      %v214 = vshrl.u32 %v213, 7
      %v215 = vsub.s32 0, %v214
      %v216 = vrot.slane %v212, %v215
      %v217 = vmul.f32 %v171, %v216
      %v218 = vmul.f32 %v172, %v216
      %v219 = vmul.f32 %v173, %v216
      %v220 = vmul.f32 %v174, %v216
      %v221 = vmul.f32 %v175, %v216
      %v222 = vmul.f32 %v176, %v216
      %v223 = vmul.f32 %v177, %v216
      %v224 = vmul.f32 %v178, %v216
      %v225 = vmul.f32 %v179, %v216
      %v226 = vmul.f32 %v180, %v216
      %v227 = vmul.f32 %v181, %v216
      %v228 = vmul.f32 %v182, %v216
      %v229 = vmul.f32 %v183, %v216
      %v230 = vmul.f32 %v184, %v216
      %v231 = vmul.f32 %v185, %v216
      %v232 = vmul.f32 %v186, %v216
      %vm249 = vcmask 1046528
      %v250 = vrot.slane %v217, 1
      %v251 = vrot.slane %v218, 1
      %v252 = vsel %vm249, %v250, %v251
      %v253 = vrot.slane %v219, 1
      %v254 = vrot.slane %v220, 1
      %v255 = vsel %vm249, %v253, %v254
      %v256 = vrot.slane %v221, 1
      %v257 = vrot.slane %v222, 1
      %v258 = vsel %vm249, %v256, %v257
      %v259 = vrot.slane %v223, 1
      %v260 = vrot.slane %v224, 1
      %v261 = vsel %vm249, %v259, %v260
      %v262 = vrot.slane %v225, 1
      %v263 = vrot.slane %v226, 1
      %v264 = vsel %vm249, %v262, %v263
      %v265 = vrot.slane %v227, 1
      %v266 = vrot.slane %v228, 1
      %v267 = vsel %vm249, %v265, %v266
      %v268 = vrot.slane %v229, 1
      %v269 = vrot.slane %v230, 1
      %v270 = vsel %vm249, %v268, %v269
      %v271 = vrot.slane %v231, 1
      %v272 = vrot.slane %v232, 1
      %v273 = vsel %vm249, %v271, %v272
      %v282 = vadd.f32 %v204, %v252
      %v283 = vadd.f32 %v205, %v255
      %v284 = vadd.f32 %v206, %v258
      %v285 = vadd.f32 %v207, %v261
      %v286 = vadd.f32 %v208, %v264
      %v287 = vadd.f32 %v209, %v267
      %v288 = vadd.f32 %v210, %v270
      %v289 = vadd.f32 %v211, %v273
      %v290 = vld [vmem:[%s1 + $0x2] sm:$0x1]
      %v291 = vlaneseq
      %v292 = vshrl.u32 %v291, 7
      %v293 = vsub.s32 0, %v292
      %v294 = vrot.slane %v290, %v293
      %v295 = vmul.f32 %v171, %v294
      %v296 = vmul.f32 %v172, %v294
      %v297 = vmul.f32 %v173, %v294
      %v298 = vmul.f32 %v174, %v294
      %v299 = vmul.f32 %v175, %v294
      %v300 = vmul.f32 %v176, %v294
      %v301 = vmul.f32 %v177, %v294
      %v302 = vmul.f32 %v178, %v294
      %v303 = vmul.f32 %v179, %v294
      %v304 = vmul.f32 %v180, %v294
      %v305 = vmul.f32 %v181, %v294
      %v306 = vmul.f32 %v182, %v294
      %v307 = vmul.f32 %v183, %v294
      %v308 = vmul.f32 %v184, %v294
      %v309 = vmul.f32 %v185, %v294
      %v310 = vmul.f32 %v186, %v294
      %vm327 = vcmask 1045504
      %v328 = vrot.slane %v295, 2
      %v329 = vrot.slane %v296, 2
      %v330 = vsel %vm327, %v328, %v329
      %v331 = vrot.slane %v297, 2
      %v332 = vrot.slane %v298, 2
      %v333 = vsel %vm327, %v331, %v332
      %v334 = vrot.slane %v299, 2
      %v335 = vrot.slane %v300, 2
      %v336 = vsel %vm327, %v334, %v335
      %v337 = vrot.slane %v301, 2
      %v338 = vrot.slane %v302, 2
      %v339 = vsel %vm327, %v337, %v338
      %v340 = vrot.slane %v303, 2
      %v341 = vrot.slane %v304, 2
      %v342 = vsel %vm327, %v340, %v341
      %v343 = vrot.slane %v305, 2
      %v344 = vrot.slane %v306, 2
      %v345 = vsel %vm327, %v343, %v344
      %v346 = vrot.slane %v307, 2
      %v347 = vrot.slane %v308, 2
      %v348 = vsel %vm327, %v346, %v347
      %v349 = vrot.slane %v309, 2
      %v350 = vrot.slane %v310, 2
      %v351 = vsel %vm327, %v349, %v350
      %v360 = vadd.f32 %v282, %v330
      %v361 = vadd.f32 %v283, %v333
      %v362 = vadd.f32 %v284, %v336
      %v363 = vadd.f32 %v285, %v339
      %v364 = vadd.f32 %v286, %v342
      %v365 = vadd.f32 %v287, %v345
      %v366 = vadd.f32 %v288, %v348
      %v367 = vadd.f32 %v289, %v351
      %s368 = scalar_lea.vmem %s1, 4
      %v369 = vld [vmem:[%s368] sm:$0x1]
      %v370 = vlaneseq
      %v371 = vshrl.u32 %v370, 7
      %v372 = vsub.s32 0, %v371
      %v373 = vrot.slane %v369, %v372
      %v374 = vmul.f32 %v173, %v373
      %v375 = vmul.f32 %v175, %v373
      %v376 = vmul.f32 %v177, %v373
      %v377 = vmul.f32 %v179, %v373
      %v378 = vmul.f32 %v181, %v373
      %v379 = vmul.f32 %v183, %v373
      %v380 = vmul.f32 %v185, %v373
      %v381 = vmul.f32 %v187, %v373
      %v382 = vadd.f32 %v360, %v374
      %v383 = vadd.f32 %v361, %v375
      %v384 = vadd.f32 %v362, %v376
      %v385 = vadd.f32 %v363, %v377
      %v386 = vadd.f32 %v364, %v378
      %v387 = vadd.f32 %v365, %v379
      %v388 = vadd.f32 %v366, %v380
      %v389 = vadd.f32 %v367, %v381
      %v390 = vld [vmem:[%s368 + $0x1] sm:$0x1]
      %v391 = vlaneseq
      %v392 = vshrl.u32 %v391, 7
      %v393 = vsub.s32 0, %v392
      %v394 = vrot.slane %v390, %v393
      %v395 = vmul.f32 %v173, %v394
      %v396 = vmul.f32 %v174, %v394
      %v397 = vmul.f32 %v175, %v394
      %v398 = vmul.f32 %v176, %v394
      %v399 = vmul.f32 %v177, %v394
      %v400 = vmul.f32 %v178, %v394
      %v401 = vmul.f32 %v179, %v394
      %v402 = vmul.f32 %v180, %v394
      %v403 = vmul.f32 %v181, %v394
      %v404 = vmul.f32 %v182, %v394
      %v405 = vmul.f32 %v183, %v394
      %v406 = vmul.f32 %v184, %v394
      %v407 = vmul.f32 %v185, %v394
      %v408 = vmul.f32 %v186, %v394
      %v409 = vmul.f32 %v187, %v394
      %v410 = vmul.f32 %v188, %v394
      %v427 = vrot.slane %v395, 1
      %v428 = vrot.slane %v396, 1
      %v429 = vsel %vm249, %v427, %v428
      %v430 = vrot.slane %v397, 1
      %v431 = vrot.slane %v398, 1
      %v432 = vsel %vm249, %v430, %v431
      %v433 = vrot.slane %v399, 1
      %v434 = vrot.slane %v400, 1
      %v435 = vsel %vm249, %v433, %v434
      %v436 = vrot.slane %v401, 1
      %v437 = vrot.slane %v402, 1
      %v438 = vsel %vm249, %v436, %v437
      %v439 = vrot.slane %v403, 1
      %v440 = vrot.slane %v404, 1
      %v441 = vsel %vm249, %v439, %v440
      %v442 = vrot.slane %v405, 1
      %v443 = vrot.slane %v406, 1
      %v444 = vsel %vm249, %v442, %v443
      %v445 = vrot.slane %v407, 1
      %v446 = vrot.slane %v408, 1
      %v447 = vsel %vm249, %v445, %v446
      %v448 = vrot.slane %v409, 1
      %v449 = vrot.slane %v410, 1
      %v450 = vsel %vm249, %v448, %v449
      %v459 = vadd.f32 %v382, %v429
      %v460 = vadd.f32 %v383, %v432
      %v461 = vadd.f32 %v384, %v435
      %v462 = vadd.f32 %v385, %v438
      %v463 = vadd.f32 %v386, %v441
      %v464 = vadd.f32 %v387, %v444
      %v465 = vadd.f32 %v388, %v447
      %v466 = vadd.f32 %v389, %v450
      %v467 = vld [vmem:[%s368 + $0x2] sm:$0x1]
      %v468 = vlaneseq
      %v469 = vshrl.u32 %v468, 7
      %v470 = vsub.s32 0, %v469
      %v471 = vrot.slane %v467, %v470
      %v472 = vmul.f32 %v173, %v471
      %v473 = vmul.f32 %v174, %v471
      %v474 = vmul.f32 %v175, %v471
      %v475 = vmul.f32 %v176, %v471
      %v476 = vmul.f32 %v177, %v471
      %v477 = vmul.f32 %v178, %v471
      %v478 = vmul.f32 %v179, %v471
      %v479 = vmul.f32 %v180, %v471
      %v480 = vmul.f32 %v181, %v471
      %v481 = vmul.f32 %v182, %v471
      %v482 = vmul.f32 %v183, %v471
      %v483 = vmul.f32 %v184, %v471
      %v484 = vmul.f32 %v185, %v471
      %v485 = vmul.f32 %v186, %v471
      %v486 = vmul.f32 %v187, %v471
      %v487 = vmul.f32 %v188, %v471
      %v504 = vrot.slane %v472, 2
      %v505 = vrot.slane %v473, 2
      %v506 = vsel %vm327, %v504, %v505
      %v507 = vrot.slane %v474, 2
      %v508 = vrot.slane %v475, 2
      %v509 = vsel %vm327, %v507, %v508
      %v510 = vrot.slane %v476, 2
      %v511 = vrot.slane %v477, 2
      %v512 = vsel %vm327, %v510, %v511
      %v513 = vrot.slane %v478, 2
      %v514 = vrot.slane %v479, 2
      %v515 = vsel %vm327, %v513, %v514
      %v516 = vrot.slane %v480, 2
      %v517 = vrot.slane %v481, 2
      %v518 = vsel %vm327, %v516, %v517
      %v519 = vrot.slane %v482, 2
      %v520 = vrot.slane %v483, 2
      %v521 = vsel %vm327, %v519, %v520
      %v522 = vrot.slane %v484, 2
      %v523 = vrot.slane %v485, 2
      %v524 = vsel %vm327, %v522, %v523
      %v525 = vrot.slane %v486, 2
      %v526 = vrot.slane %v487, 2
      %v527 = vsel %vm327, %v525, %v526
      %v536 = vadd.f32 %v459, %v506
      %v537 = vadd.f32 %v460, %v509
      %v538 = vadd.f32 %v461, %v512
      %v539 = vadd.f32 %v462, %v515
      %v540 = vadd.f32 %v463, %v518
      %v541 = vadd.f32 %v464, %v521
      %v542 = vadd.f32 %v465, %v524
      %v543 = vadd.f32 %v466, %v527
      %s544 = scalar_lea.vmem %s1, 8
      %v545 = vld [vmem:[%s544] sm:$0x1]
      %v546 = vlaneseq
      %v547 = vshrl.u32 %v546, 7
      %v548 = vsub.s32 0, %v547
      %v549 = vrot.slane %v545, %v548
      %v550 = vmul.f32 %v175, %v549
      %v551 = vmul.f32 %v177, %v549
      %v552 = vmul.f32 %v179, %v549
      %v553 = vmul.f32 %v181, %v549
      %v554 = vmul.f32 %v183, %v549
      %v555 = vmul.f32 %v185, %v549
      %v556 = vmul.f32 %v187, %v549
      %v557 = vmul.f32 %v189, %v549
      %v558 = vadd.f32 %v536, %v550
      %v559 = vadd.f32 %v537, %v551
      %v560 = vadd.f32 %v538, %v552
      %v561 = vadd.f32 %v539, %v553
      %v562 = vadd.f32 %v540, %v554
      %v563 = vadd.f32 %v541, %v555
      %v564 = vadd.f32 %v542, %v556
      %v565 = vadd.f32 %v543, %v557
      %v566 = vld [vmem:[%s544 + $0x1] sm:$0x1]
      %v567 = vlaneseq
      %v568 = vshrl.u32 %v567, 7
      %v569 = vsub.s32 0, %v568
      %v570 = vrot.slane %v566, %v569
      %v571 = vmul.f32 %v175, %v570
      %v572 = vmul.f32 %v176, %v570
      %v573 = vmul.f32 %v177, %v570
      %v574 = vmul.f32 %v178, %v570
      %v575 = vmul.f32 %v179, %v570
      %v576 = vmul.f32 %v180, %v570
      %v577 = vmul.f32 %v181, %v570
      %v578 = vmul.f32 %v182, %v570
      %v579 = vmul.f32 %v183, %v570
      %v580 = vmul.f32 %v184, %v570
      %v581 = vmul.f32 %v185, %v570
      %v582 = vmul.f32 %v186, %v570
      %v583 = vmul.f32 %v187, %v570
      %v584 = vmul.f32 %v188, %v570
      %v585 = vmul.f32 %v189, %v570
      %v586 = vmul.f32 %v190, %v570
      %v603 = vrot.slane %v571, 1
      %v604 = vrot.slane %v572, 1
      %v605 = vsel %vm249, %v603, %v604
      %v606 = vrot.slane %v573, 1
      %v607 = vrot.slane %v574, 1
      %v608 = vsel %vm249, %v606, %v607
      %v609 = vrot.slane %v575, 1
      %v610 = vrot.slane %v576, 1
      %v611 = vsel %vm249, %v609, %v610
      %v612 = vrot.slane %v577, 1
      %v613 = vrot.slane %v578, 1
      %v614 = vsel %vm249, %v612, %v613
      %v615 = vrot.slane %v579, 1
      %v616 = vrot.slane %v580, 1
      %v617 = vsel %vm249, %v615, %v616
      %v618 = vrot.slane %v581, 1
      %v619 = vrot.slane %v582, 1
      %v620 = vsel %vm249, %v618, %v619
      %v621 = vrot.slane %v583, 1
      %v622 = vrot.slane %v584, 1
      %v623 = vsel %vm249, %v621, %v622
      %v624 = vrot.slane %v585, 1
      %v625 = vrot.slane %v586, 1
      %v626 = vsel %vm249, %v624, %v625
      %v635 = vadd.f32 %v558, %v605
      %v636 = vadd.f32 %v559, %v608
      %v637 = vadd.f32 %v560, %v611
      %v638 = vadd.f32 %v561, %v614
      %v639 = vadd.f32 %v562, %v617
      %v640 = vadd.f32 %v563, %v620
      %v641 = vadd.f32 %v564, %v623
      %v642 = vadd.f32 %v565, %v626
      %v643 = vld [vmem:[%s544 + $0x2] sm:$0x1]
      %v644 = vlaneseq
      %v645 = vshrl.u32 %v644, 7
      %v646 = vsub.s32 0, %v645
      %v647 = vrot.slane %v643, %v646
      %v648 = vmul.f32 %v175, %v647
      %v649 = vmul.f32 %v176, %v647
      %v650 = vmul.f32 %v177, %v647
      %v651 = vmul.f32 %v178, %v647
      %v652 = vmul.f32 %v179, %v647
      %v653 = vmul.f32 %v180, %v647
      %v654 = vmul.f32 %v181, %v647
      %v655 = vmul.f32 %v182, %v647
      %v656 = vmul.f32 %v183, %v647
      %v657 = vmul.f32 %v184, %v647
      %v658 = vmul.f32 %v185, %v647
      %v659 = vmul.f32 %v186, %v647
      %v660 = vmul.f32 %v187, %v647
      %v661 = vmul.f32 %v188, %v647
      %v662 = vmul.f32 %v189, %v647
      %v663 = vmul.f32 %v190, %v647
      %v680 = vrot.slane %v648, 2
      %v681 = vrot.slane %v649, 2
      %v682 = vsel %vm327, %v680, %v681
      %v683 = vrot.slane %v650, 2
      %v684 = vrot.slane %v651, 2
      %v685 = vsel %vm327, %v683, %v684
      %v686 = vrot.slane %v652, 2
      %v687 = vrot.slane %v653, 2
      %v688 = vsel %vm327, %v686, %v687
      %v689 = vrot.slane %v654, 2
      %v690 = vrot.slane %v655, 2
      %v691 = vsel %vm327, %v689, %v690
      %v692 = vrot.slane %v656, 2
      %v693 = vrot.slane %v657, 2
      %v694 = vsel %vm327, %v692, %v693
      %v695 = vrot.slane %v658, 2
      %v696 = vrot.slane %v659, 2
      %v697 = vsel %vm327, %v695, %v696
      %v698 = vrot.slane %v660, 2
      %v699 = vrot.slane %v661, 2
      %v700 = vsel %vm327, %v698, %v699
      %v701 = vrot.slane %v662, 2
      %v702 = vrot.slane %v663, 2
      %v703 = vsel %vm327, %v701, %v702
      %v712 = vadd.f32 %v635, %v682
      %v713 = vadd.f32 %v636, %v685
      %v714 = vadd.f32 %v637, %v688
      %v715 = vadd.f32 %v638, %v691
      %v716 = vadd.f32 %v639, %v694
      %v717 = vadd.f32 %v640, %v697
      %v718 = vadd.f32 %v641, %v700
      %v719 = vadd.f32 %v642, %v703
      %v720 = vld [vmem:[%s2] sm:$0x1]
      %v722 = vlaneseq
      %v723 = vshrl.u32 %v722, 7
      %v724 = vsub.s32 0, %v723
      %v725 = vrot.slane %v720, %v724
      %v727 = vadd.f32 %v712, %v725
      %v728 = vadd.f32 %v713, %v725
      %v729 = vadd.f32 %v714, %v725
      %v730 = vadd.f32 %v715, %v725
      %v731 = vadd.f32 %v716, %v725
      %v732 = vadd.f32 %v717, %v725
      %v733 = vadd.f32 %v718, %v725
      %v734 = vadd.f32 %v719, %v725
      %v751 = vrot.slane %v173, 1
      %v752 = vrot.slane %v174, 1
      %v753 = vsel %vm249, %v751, %v752
      %v754 = vrot.slane %v175, 1
      %v755 = vrot.slane %v176, 1
      %v756 = vsel %vm249, %v754, %v755
      %v757 = vrot.slane %v177, 1
      %v758 = vrot.slane %v178, 1
      %v759 = vsel %vm249, %v757, %v758
      %v760 = vrot.slane %v179, 1
      %v761 = vrot.slane %v180, 1
      %v762 = vsel %vm249, %v760, %v761
      %v763 = vrot.slane %v181, 1
      %v764 = vrot.slane %v182, 1
      %v765 = vsel %vm249, %v763, %v764
      %v766 = vrot.slane %v183, 1
      %v767 = vrot.slane %v184, 1
      %v768 = vsel %vm249, %v766, %v767
      %v769 = vrot.slane %v185, 1
      %v770 = vrot.slane %v186, 1
      %v771 = vsel %vm249, %v769, %v770
      %v772 = vrot.slane %v187, 1
      %v773 = vrot.slane %v188, 1
      %v774 = vsel %vm249, %v772, %v773
      %v783 = vadd.f32 %v727, %v753
      %v784 = vadd.f32 %v728, %v756
      %v785 = vadd.f32 %v729, %v759
      %v786 = vadd.f32 %v730, %v762
      %v787 = vadd.f32 %v731, %v765
      %v788 = vadd.f32 %v732, %v768
      %v789 = vadd.f32 %v733, %v771
      %v790 = vadd.f32 %v734, %v774
      %vm791 = vcmask 261120
      %792 = vst.msk [vmem:[%s170] sm:$0xff] %vm791, %v783
      %793 = vst.msk [vmem:[%s170 + $0x8] sm:$0xff] %vm791, %v784
      %794 = vst.msk [vmem:[%s170 + $0x10] sm:$0xff] %vm791, %v785
      %795 = vst.msk [vmem:[%s170 + $0x18] sm:$0xff] %vm791, %v786
      %796 = vst.msk [vmem:[%s170 + $0x20] sm:$0xff] %vm791, %v787
      %797 = vst.msk [vmem:[%s170 + $0x28] sm:$0xff] %vm791, %v788
      %798 = vst.msk [vmem:[%s170 + $0x30] sm:$0xff] %vm791, %v789
      %799 = vst.msk [vmem:[%s170 + $0x38] sm:$0xff] %vm791, %v790
      %p800 = scmp.lt.s32.totalorder %s14, 1
      %s801 = scalar_select %p800, %s14, 1
      %s802 = smul.addr %s801, 8
      %s803 = smul.addr %s802, 8
      %s804 = scalar_lea.vmem %s3, %s803
      // Predicated region
      $region33: #{spatial_mamba_block.8} parent=31 // pred_check
        %p805 = pneg %p100
      $region34: #{spatial_mamba_block.8} parent=31 // pred_check_branch
        %807 = sbr.rel (%p805) target = $region36
      $region35: #{spatial_mamba_block.8} parent=31 // pred_region
        _
      $region36: #{spatial_mamba_block.8} parent=31 // pred_fallthru
        _
    $region32: #{spatial_mamba_block.8} parent=5 // pred_fallthru
      _
    %p808 = scmp.le.s32.totalorder 2, %s9
    // Predicated region
    $region37: #{spatial_mamba_block.8} parent=5 // pred_check
      %p809 = pneg %p808
    $region38: #{spatial_mamba_block.8} parent=5 // pred_check_branch
      %811 = sbr.rel (%p809) target = $region40
    $region39: #{spatial_mamba_block.8} parent=5 // pred_region
      %s812 = ssub.s32 %s9, 2
      // Predicated region
      $region41: #{spatial_mamba_block.8} parent=39 // pred_check
        %p813 = pneg %p106
      $region42: #{spatial_mamba_block.8} parent=39 // pred_check_branch
        %815 = sbr.rel (%p813) target = $region44
      $region43: #{spatial_mamba_block.8} parent=39 // pred_region
        %p816 = scmp.lt.s32.totalorder %s15, 1
        %s817 = scalar_select %p816, %s15, 1
        %s818 = smul.addr %s817, 8
        %s819 = smul.addr %s818, 8
        %s820 = scalar_lea.vmem %s3, %s819
      $region44: #{spatial_mamba_block.8} parent=39 // pred_fallthru
        _
    $region40: #{spatial_mamba_block.8} parent=5 // pred_fallthru
      _
  $region6: #{spatial_mamba_block.8} parent=0 // loop_footer
    %s13 = sadd.s32 1, %s9
  $region7: #{spatial_mamba_block.8} parent=0 // loop_footer_branch
    %8 = sbr.rel target = $region3
  $region8: #{spatial_mamba_block.8} parent=0 // loop_exit
    _

// kernel: spatial_mamba_block.10
$region0: #{spatial_mamba_block.10}
  #allocation0 [shape = 'u32[]', space=smem, size = 0x4, offset = 0x4, fixed_abs, tag = 'smem constant byte address 0x4 - core index']
  #allocation1 [shape = 'u32[144,128]{1,0:T(1,128)}', space=vmem, size = 0x12000, scoped, tag = 'internal scratch']
  %s0 = inlined_call_operand.vmem [shape: f32[2,10,10,64], index: 0, kind: input, shape index: {}]
  %s1 = inlined_call_operand.vmem [shape: f32[3,3,64], index: 1, kind: input, shape index: {}]
  %s2 = inlined_call_operand.vmem [shape: f32[1,64], index: 2, kind: input, shape index: {}]
  %s3 = inlined_call_operand.vmem [shape: f32[2,8,8,64], index: 3, kind: output, shape index: {}]
  %s4 = sld [smem:[#allocation0]]
  $region45: #{spatial_mamba_block.10} parent=0
    _
  %s6 = ssub.s32 1, %s4
  %s7 = scalar_select 0, %s6, %s4
  loop: start=0, step=1, limit=4
  $region2: #{spatial_mamba_block.10} parent=0 // loop_pre_header
    _
  $region3: #{spatial_mamba_block.10} parent=0 // loop_header
    %s9 = sphi 0, %s13
    %p10 = scmp.ge.s32.totalorder %s9, 4
    %s19 = sphi 0, %s21
    %s22 = sphi 0, %s19
    %s23 = sphi 0, %s22
    %s39 = sphi 0, %s23
    %s43 = sphi 0, %s43
    %s45 = sphi 0, %s43
    %s46 = sphi 0, %s45
    %s60 = sphi 0, %s46
    %s64 = sphi 0, %s64
    %s66 = sphi 0, %s64
    %s67 = sphi 0, %s66
    %s81 = sphi 0, %s67
    %s87 = sphi 0, %s89
    %s90 = sphi 0, %s87
    %s91 = sphi 0, %s90
    %s107 = sphi 0, %s91
  $region4: #{spatial_mamba_block.10} parent=0 // loop_header_branch
    %12 = sbr.rel (%p10) target = $region8
  $region5: #{spatial_mamba_block.10} parent=0 // loop_body
    %s14 = ssub.s32 %s9, 1
    %s15 = ssub.s32 %s9, 2
    %s16 = sadd.s32 %s9, 1
    %s17 = ssub.s32 %s9, %s16
    %p18 = scmp.eq.s32.totalorder %s17, 0
    %s20 = sadd.s32 %s19, 1
    %s21 = scalar_select %p18, %s19, %s20
    %p24 = pneg %p18
    %p25 = scmp.eq.s32.totalorder %s9, 1
    %p26 = por %p24, %p25
    %p27 = scmp.ne.s32.totalorder %s19, %s22
    %p28 = scmp.eq.s32.totalorder %s9, 0
    %p29 = por %p27, %p28
    %p30 = scmp.ne.s32.totalorder %s19, %s22
    %p31 = scmp.eq.s32.totalorder %s14, 1
    %p32 = por %p30, %p31
    %p33 = scmp.ne.s32.totalorder %s22, %s23
    %p34 = scmp.eq.s32.totalorder %s14, 0
    %p35 = por %p33, %p34
    %p36 = scmp.ne.s32.totalorder %s22, %s23
    %p37 = scmp.eq.s32.totalorder %s15, 1
    %p38 = por %p36, %p37
    %p40 = scmp.ne.s32.totalorder %s23, %s39
    %p41 = scmp.eq.s32.totalorder %s15, 0
    %p42 = por %p40, %p41
    %s44 = sadd.s32 %s43, 1
    %p47 = scmp.eq.s32.totalorder %s9, 1
    %p48 = scmp.ne.s32.totalorder %s43, %s45
    %p49 = scmp.eq.s32.totalorder %s9, 0
    %p50 = por %p48, %p49
    %p51 = scmp.ne.s32.totalorder %s43, %s45
    %p52 = scmp.eq.s32.totalorder %s14, 1
    %p53 = por %p51, %p52
    %p54 = scmp.ne.s32.totalorder %s45, %s46
    %p55 = scmp.eq.s32.totalorder %s14, 0
    %p56 = por %p54, %p55
    %p57 = scmp.ne.s32.totalorder %s45, %s46
    %p58 = scmp.eq.s32.totalorder %s15, 1
    %p59 = por %p57, %p58
    %p61 = scmp.ne.s32.totalorder %s46, %s60
    %p62 = scmp.eq.s32.totalorder %s15, 0
    %p63 = por %p61, %p62
    %s65 = sadd.s32 %s64, 1
    %p68 = scmp.eq.s32.totalorder %s9, 1
    %p69 = scmp.ne.s32.totalorder %s64, %s66
    %p70 = scmp.eq.s32.totalorder %s9, 0
    %p71 = por %p69, %p70
    %p72 = scmp.ne.s32.totalorder %s64, %s66
    %p73 = scmp.eq.s32.totalorder %s14, 1
    %p74 = por %p72, %p73
    %p75 = scmp.ne.s32.totalorder %s66, %s67
    %p76 = scmp.eq.s32.totalorder %s14, 0
    %p77 = por %p75, %p76
    %p78 = scmp.ne.s32.totalorder %s66, %s67
    %p79 = scmp.eq.s32.totalorder %s15, 1
    %p80 = por %p78, %p79
    %p82 = scmp.ne.s32.totalorder %s67, %s81
    %p83 = scmp.eq.s32.totalorder %s15, 0
    %p84 = por %p82, %p83
    %s85 = ssub.s32 %s9, %s16
    %p86 = scmp.eq.s32.totalorder %s85, 0
    %s88 = sadd.s32 %s87, 1
    %s89 = scalar_select %p86, %s87, %s88
    %p92 = pneg %p86
    %p93 = scmp.eq.s32.totalorder %s9, 1
    %p94 = por %p92, %p93
    %p95 = scmp.ne.s32.totalorder %s87, %s90
    %p96 = scmp.eq.s32.totalorder %s9, 0
    %p97 = por %p95, %p96
    %p98 = scmp.ne.s32.totalorder %s87, %s90
    %p99 = scmp.eq.s32.totalorder %s14, 1
    %p100 = por %p98, %p99
    %p101 = scmp.ne.s32.totalorder %s90, %s91
    %p102 = scmp.eq.s32.totalorder %s14, 0
    %p103 = por %p101, %p102
    %p104 = scmp.ne.s32.totalorder %s90, %s91
    %p105 = scmp.eq.s32.totalorder %s15, 1
    %p106 = por %p104, %p105
    %p108 = scmp.ne.s32.totalorder %s91, %s107
    %p109 = scmp.eq.s32.totalorder %s15, 0
    %p110 = por %p108, %p109
    %p111 = scmp.le.s32.totalorder 1, %s9
    %p112 = scmp.lt.s32.totalorder %s9, 3
    %p113 = pnand %p111, %p112
    %p114 = pneg %p113
    // Predicated region
    $region9: #{spatial_mamba_block.10} parent=5 // pred_check
      _
    $region10: #{spatial_mamba_block.10} parent=5 // pred_check_branch
      %116 = sbr.rel (%p113) target = $region12
    $region11: #{spatial_mamba_block.10} parent=5 // pred_region
      %s117 = ssub.s32 %s9, 1
      // Predicated region
      $region13: #{spatial_mamba_block.10} parent=11 // pred_check
        %p118 = pneg %p56
      $region14: #{spatial_mamba_block.10} parent=11 // pred_check_branch
        %120 = sbr.rel (%p118) target = $region16
      $region15: #{spatial_mamba_block.10} parent=11 // pred_region
        _
      $region16: #{spatial_mamba_block.10} parent=11 // pred_fallthru
        _
      // Predicated region
      $region17: #{spatial_mamba_block.10} parent=11 // pred_check
        %p121 = pneg %p77
      $region18: #{spatial_mamba_block.10} parent=11 // pred_check_branch
        %123 = sbr.rel (%p121) target = $region20
      $region19: #{spatial_mamba_block.10} parent=11 // pred_region
        _
      $region20: #{spatial_mamba_block.10} parent=11 // pred_fallthru
        _
    $region12: #{spatial_mamba_block.10} parent=5 // pred_fallthru
      _
    %p124 = scmp.lt.s32.totalorder %s9, 2
    // Predicated region
    $region21: #{spatial_mamba_block.10} parent=5 // pred_check
      %p125 = pneg %p124
    $region22: #{spatial_mamba_block.10} parent=5 // pred_check_branch
      %127 = sbr.rel (%p125) target = $region24
    $region23: #{spatial_mamba_block.10} parent=5 // pred_region
      // Predicated region
      $region25: #{spatial_mamba_block.10} parent=23 // pred_check
        %p128 = pneg %p29
      $region26: #{spatial_mamba_block.10} parent=23 // pred_check_branch
        %130 = sbr.rel (%p128) target = $region28
      $region27: #{spatial_mamba_block.10} parent=23 // pred_region
        %p131 = scmp.lt.s32.totalorder %s9, 1
        %s132 = scalar_select %p131, %s9, 1
        %s133 = smul.addr %s132, 20
        %s134 = smul.addr %s133, 8
        %s135 = scalar_lea.vmem %s0, %s134
      $region28: #{spatial_mamba_block.10} parent=23 // pred_fallthru
        _
    $region24: #{spatial_mamba_block.10} parent=5 // pred_fallthru
      _
    %p136 = scmp.le.s32.totalorder 1, %s9
    %p137 = scmp.lt.s32.totalorder %s9, 3
    %p138 = pnand %p136, %p137
    %p139 = pneg %p138
    // Predicated region
    $region29: #{spatial_mamba_block.10} parent=5 // pred_check
      _
    $region30: #{spatial_mamba_block.10} parent=5 // pred_check_branch
      %141 = sbr.rel (%p138) target = $region32
    $region31: #{spatial_mamba_block.10} parent=5 // pred_region
      %s142 = ssub.s32 %s9, 1
      %p143 = scmp.lt.s32.totalorder %s14, 1
      %s144 = scalar_select %p143, %s14, 1
      %s145 = smul.addr %s144, 20
      %s146 = smul.addr %s145, 8
      %s147 = scalar_lea.vmem %s0, %s146
      %p148 = pneg %p35
      %p149 = pneg %p32
      %p150 = pneg %p56
      %p151 = pneg %p53
      %p152 = pneg %p77
      %p153 = pneg %p74
      %p154 = pneg %p103
      %p155 = pneg %p100
      %p156 = scmp.lt.s32.totalorder %s14, 1
      %s157 = scalar_select %p156, %s14, 1
      %s158 = smul.addr %s157, 8
      %s159 = smul.addr %s158, 8
      %s160 = scalar_lea.vmem %s3, %s159
      %p161 = scmp.lt.s32.totalorder %s14, 1
      %s162 = scalar_select %p161, %s14, 1
      %s163 = smul.addr %s162, 20
      %s164 = smul.addr %s163, 8
      %s165 = scalar_lea.vmem %s0, %s164
      %p166 = scmp.lt.s32.totalorder %s14, 1
      %s167 = scalar_select %p166, %s14, 1
      %s168 = smul.addr %s167, 8
      %s169 = smul.addr %s168, 8
      %s170 = scalar_lea.vmem %s3, %s169
      %v171 = vld [vmem:[%s165] sm:$0xff]
      %v172 = vld [vmem:[%s165 + $0x8] sm:$0x3]
      %v173 = vld [vmem:[%s165 + $0x10] sm:$0xff]
      %v174 = vld [vmem:[%s165 + $0x18] sm:$0x3]
      %v175 = vld [vmem:[%s165 + $0x20] sm:$0xff]
      %v176 = vld [vmem:[%s165 + $0x28] sm:$0x3]
      %v177 = vld [vmem:[%s165 + $0x30] sm:$0xff]
      %v178 = vld [vmem:[%s165 + $0x38] sm:$0x3]
      %v179 = vld [vmem:[%s165 + $0x40] sm:$0xff]
      %v180 = vld [vmem:[%s165 + $0x48] sm:$0x3]
      %v181 = vld [vmem:[%s165 + $0x50] sm:$0xff]
      %v182 = vld [vmem:[%s165 + $0x58] sm:$0x3]
      %v183 = vld [vmem:[%s165 + $0x60] sm:$0xff]
      %v184 = vld [vmem:[%s165 + $0x68] sm:$0x3]
      %v185 = vld [vmem:[%s165 + $0x70] sm:$0xff]
      %v186 = vld [vmem:[%s165 + $0x78] sm:$0x3]
      %v187 = vld [vmem:[%s165 + $0x80] sm:$0xff]
      %v188 = vld [vmem:[%s165 + $0x88] sm:$0x3]
      %v189 = vld [vmem:[%s165 + $0x90] sm:$0xff]
      %v190 = vld [vmem:[%s165 + $0x98] sm:$0x3]
      %v191 = vld [vmem:[%s1] sm:$0x1]
      %v192 = vlaneseq
      %v193 = vshrl.u32 %v192, 7
      %v194 = vsub.s32 0, %v193
      %v195 = vrot.slane %v191, %v194
      %v196 = vmul.f32 %v171, %v195
      %v197 = vmul.f32 %v173, %v195
      %v198 = vmul.f32 %v175, %v195
      %v199 = vmul.f32 %v177, %v195
      %v200 = vmul.f32 %v179, %v195
      %v201 = vmul.f32 %v181, %v195
      %v202 = vmul.f32 %v183, %v195
      %v203 = vmul.f32 %v185, %v195
      %v204 = vadd.f32 %v196, 0.0
      %v205 = vadd.f32 %v197, 0.0
      %v206 = vadd.f32 %v198, 0.0
      %v207 = vadd.f32 %v199, 0.0
      %v208 = vadd.f32 %v200, 0.0
      %v209 = vadd.f32 %v201, 0.0
      %v210 = vadd.f32 %v202, 0.0
      %v211 = vadd.f32 %v203, 0.0
      %v212 = vld [vmem:[%s1 + $0x1] sm:$0x1]
      %v213 = vlaneseq
      %v214 = vshrl.u32 %v213, 7
      %v215 = vsub.s32 0, %v214
      %v216 = vrot.slane %v212, %v215
      %v217 = vmul.f32 %v171, %v216
      %v218 = vmul.f32 %v172, %v216
      %v219 = vmul.f32 %v173, %v216
      %v220 = vmul.f32 %v174, %v216
      %v221 = vmul.f32 %v175, %v216
      %v222 = vmul.f32 %v176, %v216
      %v223 = vmul.f32 %v177, %v216
      %v224 = vmul.f32 %v178, %v216
      %v225 = vmul.f32 %v179, %v216
      %v226 = vmul.f32 %v180, %v216
      %v227 = vmul.f32 %v181, %v216
      %v228 = vmul.f32 %v182, %v216
      %v229 = vmul.f32 %v183, %v216
      %v230 = vmul.f32 %v184, %v216
      %v231 = vmul.f32 %v185, %v216
      %v232 = vmul.f32 %v186, %v216
      %vm249 = vcmask 1046528
      %v250 = vrot.slane %v217, 1
      %v251 = vrot.slane %v218, 1
      %v252 = vsel %vm249, %v250, %v251
      %v253 = vrot.slane %v219, 1
      %v254 = vrot.slane %v220, 1
      %v255 = vsel %vm249, %v253, %v254
      %v256 = vrot.slane %v221, 1
      %v257 = vrot.slane %v222, 1
      %v258 = vsel %vm249, %v256, %v257
      %v259 = vrot.slane %v223, 1
      %v260 = vrot.slane %v224, 1
      %v261 = vsel %vm249, %v259, %v260
      %v262 = vrot.slane %v225, 1
      %v263 = vrot.slane %v226, 1
      %v264 = vsel %vm249, %v262, %v263
      %v265 = vrot.slane %v227, 1
      %v266 = vrot.slane %v228, 1
      %v267 = vsel %vm249, %v265, %v266
      %v268 = vrot.slane %v229, 1
      %v269 = vrot.slane %v230, 1
      %v270 = vsel %vm249, %v268, %v269
      %v271 = vrot.slane %v231, 1
      %v272 = vrot.slane %v232, 1
      %v273 = vsel %vm249, %v271, %v272
      %v282 = vadd.f32 %v204, %v252
      %v283 = vadd.f32 %v205, %v255
      %v284 = vadd.f32 %v206, %v258
      %v285 = vadd.f32 %v207, %v261
      %v286 = vadd.f32 %v208, %v264
      %v287 = vadd.f32 %v209, %v267
      %v288 = vadd.f32 %v210, %v270
      %v289 = vadd.f32 %v211, %v273
      %v290 = vld [vmem:[%s1 + $0x2] sm:$0x1]
      %v291 = vlaneseq
      %v292 = vshrl.u32 %v291, 7
      %v293 = vsub.s32 0, %v292
      %v294 = vrot.slane %v290, %v293
      %v295 = vmul.f32 %v171, %v294
      %v296 = vmul.f32 %v172, %v294
      %v297 = vmul.f32 %v173, %v294
      %v298 = vmul.f32 %v174, %v294
      %v299 = vmul.f32 %v175, %v294
      %v300 = vmul.f32 %v176, %v294
      %v301 = vmul.f32 %v177, %v294
      %v302 = vmul.f32 %v178, %v294
      %v303 = vmul.f32 %v179, %v294
      %v304 = vmul.f32 %v180, %v294
      %v305 = vmul.f32 %v181, %v294
      %v306 = vmul.f32 %v182, %v294
      %v307 = vmul.f32 %v183, %v294
      %v308 = vmul.f32 %v184, %v294
      %v309 = vmul.f32 %v185, %v294
      %v310 = vmul.f32 %v186, %v294
      %vm327 = vcmask 1045504
      %v328 = vrot.slane %v295, 2
      %v329 = vrot.slane %v296, 2
      %v330 = vsel %vm327, %v328, %v329
      %v331 = vrot.slane %v297, 2
      %v332 = vrot.slane %v298, 2
      %v333 = vsel %vm327, %v331, %v332
      %v334 = vrot.slane %v299, 2
      %v335 = vrot.slane %v300, 2
      %v336 = vsel %vm327, %v334, %v335
      %v337 = vrot.slane %v301, 2
      %v338 = vrot.slane %v302, 2
      %v339 = vsel %vm327, %v337, %v338
      %v340 = vrot.slane %v303, 2
      %v341 = vrot.slane %v304, 2
      %v342 = vsel %vm327, %v340, %v341
      %v343 = vrot.slane %v305, 2
      %v344 = vrot.slane %v306, 2
      %v345 = vsel %vm327, %v343, %v344
      %v346 = vrot.slane %v307, 2
      %v347 = vrot.slane %v308, 2
      %v348 = vsel %vm327, %v346, %v347
      %v349 = vrot.slane %v309, 2
      %v350 = vrot.slane %v310, 2
      %v351 = vsel %vm327, %v349, %v350
      %v360 = vadd.f32 %v282, %v330
      %v361 = vadd.f32 %v283, %v333
      %v362 = vadd.f32 %v284, %v336
      %v363 = vadd.f32 %v285, %v339
      %v364 = vadd.f32 %v286, %v342
      %v365 = vadd.f32 %v287, %v345
      %v366 = vadd.f32 %v288, %v348
      %v367 = vadd.f32 %v289, %v351
      %s368 = scalar_lea.vmem %s1, 4
      %v369 = vld [vmem:[%s368] sm:$0x1]
      %v370 = vlaneseq
      %v371 = vshrl.u32 %v370, 7
      %v372 = vsub.s32 0, %v371
      %v373 = vrot.slane %v369, %v372
      %v374 = vmul.f32 %v173, %v373
      %v375 = vmul.f32 %v175, %v373
      %v376 = vmul.f32 %v177, %v373
      %v377 = vmul.f32 %v179, %v373
      %v378 = vmul.f32 %v181, %v373
      %v379 = vmul.f32 %v183, %v373
      %v380 = vmul.f32 %v185, %v373
      %v381 = vmul.f32 %v187, %v373
      %v382 = vadd.f32 %v360, %v374
      %v383 = vadd.f32 %v361, %v375
      %v384 = vadd.f32 %v362, %v376
      %v385 = vadd.f32 %v363, %v377
      %v386 = vadd.f32 %v364, %v378
      %v387 = vadd.f32 %v365, %v379
      %v388 = vadd.f32 %v366, %v380
      %v389 = vadd.f32 %v367, %v381
      %v390 = vld [vmem:[%s368 + $0x1] sm:$0x1]
      %v391 = vlaneseq
      %v392 = vshrl.u32 %v391, 7
      %v393 = vsub.s32 0, %v392
      %v394 = vrot.slane %v390, %v393
      %v395 = vmul.f32 %v173, %v394
      %v396 = vmul.f32 %v174, %v394
      %v397 = vmul.f32 %v175, %v394
      %v398 = vmul.f32 %v176, %v394
      %v399 = vmul.f32 %v177, %v394
      %v400 = vmul.f32 %v178, %v394
      %v401 = vmul.f32 %v179, %v394
      %v402 = vmul.f32 %v180, %v394
      %v403 = vmul.f32 %v181, %v394
      %v404 = vmul.f32 %v182, %v394
      %v405 = vmul.f32 %v183, %v394
      %v406 = vmul.f32 %v184, %v394
      %v407 = vmul.f32 %v185, %v394
      %v408 = vmul.f32 %v186, %v394
      %v409 = vmul.f32 %v187, %v394
      %v410 = vmul.f32 %v188, %v394
      %v427 = vrot.slane %v395, 1
      %v428 = vrot.slane %v396, 1
      %v429 = vsel %vm249, %v427, %v428
      %v430 = vrot.slane %v397, 1
      %v431 = vrot.slane %v398, 1
      %v432 = vsel %vm249, %v430, %v431
      %v433 = vrot.slane %v399, 1
      %v434 = vrot.slane %v400, 1
      %v435 = vsel %vm249, %v433, %v434
      %v436 = vrot.slane %v401, 1
      %v437 = vrot.slane %v402, 1
      %v438 = vsel %vm249, %v436, %v437
      %v439 = vrot.slane %v403, 1
      %v440 = vrot.slane %v404, 1
      %v441 = vsel %vm249, %v439, %v440
      %v442 = vrot.slane %v405, 1
      %v443 = vrot.slane %v406, 1
      %v444 = vsel %vm249, %v442, %v443
      %v445 = vrot.slane %v407, 1
      %v446 = vrot.slane %v408, 1
      %v447 = vsel %vm249, %v445, %v446
      %v448 = vrot.slane %v409, 1
      %v449 = vrot.slane %v410, 1
      %v450 = vsel %vm249, %v448, %v449
      %v459 = vadd.f32 %v382, %v429
      %v460 = vadd.f32 %v383, %v432
      %v461 = vadd.f32 %v384, %v435
      %v462 = vadd.f32 %v385, %v438
      %v463 = vadd.f32 %v386, %v441
      %v464 = vadd.f32 %v387, %v444
      %v465 = vadd.f32 %v388, %v447
      %v466 = vadd.f32 %v389, %v450
      %v467 = vld [vmem:[%s368 + $0x2] sm:$0x1]
      %v468 = vlaneseq
      %v469 = vshrl.u32 %v468, 7
      %v470 = vsub.s32 0, %v469
      %v471 = vrot.slane %v467, %v470
      %v472 = vmul.f32 %v173, %v471
      %v473 = vmul.f32 %v174, %v471
      %v474 = vmul.f32 %v175, %v471
      %v475 = vmul.f32 %v176, %v471
      %v476 = vmul.f32 %v177, %v471
      %v477 = vmul.f32 %v178, %v471
      %v478 = vmul.f32 %v179, %v471
      %v479 = vmul.f32 %v180, %v471
      %v480 = vmul.f32 %v181, %v471
      %v481 = vmul.f32 %v182, %v471
      %v482 = vmul.f32 %v183, %v471
      %v483 = vmul.f32 %v184, %v471
      %v484 = vmul.f32 %v185, %v471
      %v485 = vmul.f32 %v186, %v471
      %v486 = vmul.f32 %v187, %v471
      %v487 = vmul.f32 %v188, %v471
      %v504 = vrot.slane %v472, 2
      %v505 = vrot.slane %v473, 2
      %v506 = vsel %vm327, %v504, %v505
      %v507 = vrot.slane %v474, 2
      %v508 = vrot.slane %v475, 2
      %v509 = vsel %vm327, %v507, %v508
      %v510 = vrot.slane %v476, 2
      %v511 = vrot.slane %v477, 2
      %v512 = vsel %vm327, %v510, %v511
      %v513 = vrot.slane %v478, 2
      %v514 = vrot.slane %v479, 2
      %v515 = vsel %vm327, %v513, %v514
      %v516 = vrot.slane %v480, 2
      %v517 = vrot.slane %v481, 2
      %v518 = vsel %vm327, %v516, %v517
      %v519 = vrot.slane %v482, 2
      %v520 = vrot.slane %v483, 2
      %v521 = vsel %vm327, %v519, %v520
      %v522 = vrot.slane %v484, 2
      %v523 = vrot.slane %v485, 2
      %v524 = vsel %vm327, %v522, %v523
      %v525 = vrot.slane %v486, 2
      %v526 = vrot.slane %v487, 2
      %v527 = vsel %vm327, %v525, %v526
      %v536 = vadd.f32 %v459, %v506
      %v537 = vadd.f32 %v460, %v509
      %v538 = vadd.f32 %v461, %v512
      %v539 = vadd.f32 %v462, %v515
      %v540 = vadd.f32 %v463, %v518
      %v541 = vadd.f32 %v464, %v521
      %v542 = vadd.f32 %v465, %v524
      %v543 = vadd.f32 %v466, %v527
      %s544 = scalar_lea.vmem %s1, 8
      %v545 = vld [vmem:[%s544] sm:$0x1]
      %v546 = vlaneseq
      %v547 = vshrl.u32 %v546, 7
      %v548 = vsub.s32 0, %v547
      %v549 = vrot.slane %v545, %v548
      %v550 = vmul.f32 %v175, %v549
      %v551 = vmul.f32 %v177, %v549
      %v552 = vmul.f32 %v179, %v549
      %v553 = vmul.f32 %v181, %v549
      %v554 = vmul.f32 %v183, %v549
      %v555 = vmul.f32 %v185, %v549
      %v556 = vmul.f32 %v187, %v549
      %v557 = vmul.f32 %v189, %v549
      %v558 = vadd.f32 %v536, %v550
      %v559 = vadd.f32 %v537, %v551
      %v560 = vadd.f32 %v538, %v552
      %v561 = vadd.f32 %v539, %v553
      %v562 = vadd.f32 %v540, %v554
      %v563 = vadd.f32 %v541, %v555
      %v564 = vadd.f32 %v542, %v556
      %v565 = vadd.f32 %v543, %v557
      %v566 = vld [vmem:[%s544 + $0x1] sm:$0x1]
      %v567 = vlaneseq
      %v568 = vshrl.u32 %v567, 7
      %v569 = vsub.s32 0, %v568
      %v570 = vrot.slane %v566, %v569
      %v571 = vmul.f32 %v175, %v570
      %v572 = vmul.f32 %v176, %v570
      %v573 = vmul.f32 %v177, %v570
      %v574 = vmul.f32 %v178, %v570
      %v575 = vmul.f32 %v179, %v570
      %v576 = vmul.f32 %v180, %v570
      %v577 = vmul.f32 %v181, %v570
      %v578 = vmul.f32 %v182, %v570
      %v579 = vmul.f32 %v183, %v570
      %v580 = vmul.f32 %v184, %v570
      %v581 = vmul.f32 %v185, %v570
      %v582 = vmul.f32 %v186, %v570
      %v583 = vmul.f32 %v187, %v570
      %v584 = vmul.f32 %v188, %v570
      %v585 = vmul.f32 %v189, %v570
      %v586 = vmul.f32 %v190, %v570
      %v603 = vrot.slane %v571, 1
      %v604 = vrot.slane %v572, 1
      %v605 = vsel %vm249, %v603, %v604
      %v606 = vrot.slane %v573, 1
      %v607 = vrot.slane %v574, 1
      %v608 = vsel %vm249, %v606, %v607
      %v609 = vrot.slane %v575, 1
      %v610 = vrot.slane %v576, 1
      %v611 = vsel %vm249, %v609, %v610
      %v612 = vrot.slane %v577, 1
      %v613 = vrot.slane %v578, 1
      %v614 = vsel %vm249, %v612, %v613
      %v615 = vrot.slane %v579, 1
      %v616 = vrot.slane %v580, 1
      %v617 = vsel %vm249, %v615, %v616
      %v618 = vrot.slane %v581, 1
      %v619 = vrot.slane %v582, 1
      %v620 = vsel %vm249, %v618, %v619
      %v621 = vrot.slane %v583, 1
      %v622 = vrot.slane %v584, 1
      %v623 = vsel %vm249, %v621, %v622
      %v624 = vrot.slane %v585, 1
      %v625 = vrot.slane %v586, 1
      %v626 = vsel %vm249, %v624, %v625
      %v635 = vadd.f32 %v558, %v605
      %v636 = vadd.f32 %v559, %v608
      %v637 = vadd.f32 %v560, %v611
      %v638 = vadd.f32 %v561, %v614
      %v639 = vadd.f32 %v562, %v617
      %v640 = vadd.f32 %v563, %v620
      %v641 = vadd.f32 %v564, %v623
      %v642 = vadd.f32 %v565, %v626
      %v643 = vld [vmem:[%s544 + $0x2] sm:$0x1]
      %v644 = vlaneseq
      %v645 = vshrl.u32 %v644, 7
      %v646 = vsub.s32 0, %v645
      %v647 = vrot.slane %v643, %v646
      %v648 = vmul.f32 %v175, %v647
      %v649 = vmul.f32 %v176, %v647
      %v650 = vmul.f32 %v177, %v647
      %v651 = vmul.f32 %v178, %v647
      %v652 = vmul.f32 %v179, %v647
      %v653 = vmul.f32 %v180, %v647
      %v654 = vmul.f32 %v181, %v647
      %v655 = vmul.f32 %v182, %v647
      %v656 = vmul.f32 %v183, %v647
      %v657 = vmul.f32 %v184, %v647
      %v658 = vmul.f32 %v185, %v647
      %v659 = vmul.f32 %v186, %v647
      %v660 = vmul.f32 %v187, %v647
      %v661 = vmul.f32 %v188, %v647
      %v662 = vmul.f32 %v189, %v647
      %v663 = vmul.f32 %v190, %v647
      %v680 = vrot.slane %v648, 2
      %v681 = vrot.slane %v649, 2
      %v682 = vsel %vm327, %v680, %v681
      %v683 = vrot.slane %v650, 2
      %v684 = vrot.slane %v651, 2
      %v685 = vsel %vm327, %v683, %v684
      %v686 = vrot.slane %v652, 2
      %v687 = vrot.slane %v653, 2
      %v688 = vsel %vm327, %v686, %v687
      %v689 = vrot.slane %v654, 2
      %v690 = vrot.slane %v655, 2
      %v691 = vsel %vm327, %v689, %v690
      %v692 = vrot.slane %v656, 2
      %v693 = vrot.slane %v657, 2
      %v694 = vsel %vm327, %v692, %v693
      %v695 = vrot.slane %v658, 2
      %v696 = vrot.slane %v659, 2
      %v697 = vsel %vm327, %v695, %v696
      %v698 = vrot.slane %v660, 2
      %v699 = vrot.slane %v661, 2
      %v700 = vsel %vm327, %v698, %v699
      %v701 = vrot.slane %v662, 2
      %v702 = vrot.slane %v663, 2
      %v703 = vsel %vm327, %v701, %v702
      %v712 = vadd.f32 %v635, %v682
      %v713 = vadd.f32 %v636, %v685
      %v714 = vadd.f32 %v637, %v688
      %v715 = vadd.f32 %v638, %v691
      %v716 = vadd.f32 %v639, %v694
      %v717 = vadd.f32 %v640, %v697
      %v718 = vadd.f32 %v641, %v700
      %v719 = vadd.f32 %v642, %v703
      %v720 = vld [vmem:[%s2] sm:$0x1]
      %v722 = vlaneseq
      %v723 = vshrl.u32 %v722, 7
      %v724 = vsub.s32 0, %v723
      %v725 = vrot.slane %v720, %v724
      %v727 = vadd.f32 %v712, %v725
      %v728 = vadd.f32 %v713, %v725
      %v729 = vadd.f32 %v714, %v725
      %v730 = vadd.f32 %v715, %v725
      %v731 = vadd.f32 %v716, %v725
      %v732 = vadd.f32 %v717, %v725
      %v733 = vadd.f32 %v718, %v725
      %v734 = vadd.f32 %v719, %v725
      %v735 = vxor.u32 %v727, 2147483648
      %v736 = vxor.u32 %v728, 2147483648
      %v737 = vxor.u32 %v729, 2147483648
      %v738 = vxor.u32 %v730, 2147483648
      %v739 = vxor.u32 %v731, 2147483648
      %v740 = vxor.u32 %v732, 2147483648
      %v741 = vxor.u32 %v733, 2147483648
      %v742 = vxor.u32 %v734, 2147483648
      %v743 = vmul.f32 %v735, 1.442695
      %v744 = vpow.pop %v743
      %v745 = vmul.f32 %v736, 1.442695
      %v746 = vpow.pop %v745
      %v747 = vmul.f32 %v737, 1.442695
      %v748 = vpow.pop %v747
      %v749 = vmul.f32 %v738, 1.442695
      %v750 = vpow.pop %v749
      %v751 = vmul.f32 %v739, 1.442695
      %v752 = vpow.pop %v751
      %v753 = vmul.f32 %v740, 1.442695
      %v754 = vpow.pop %v753
      %v755 = vmul.f32 %v741, 1.442695
      %v756 = vpow.pop %v755
      %v757 = vmul.f32 %v742, 1.442695
      %v758 = vpow.pop %v757
      %v759 = vadd.f32 %v744, 1.0
      %v760 = vadd.f32 %v746, 1.0
      %v761 = vadd.f32 %v748, 1.0
      %v762 = vadd.f32 %v750, 1.0
      %v763 = vadd.f32 %v752, 1.0
      %v764 = vadd.f32 %v754, 1.0
      %v765 = vadd.f32 %v756, 1.0
      %v766 = vadd.f32 %v758, 1.0
      %v767 = vrcp.pop %v759
      %v768 = vmul.f32 1.0, %v767
      %v769 = vrcp.pop %v760
      %v770 = vmul.f32 1.0, %v769
      %v771 = vrcp.pop %v761
      %v772 = vmul.f32 1.0, %v771
      %v773 = vrcp.pop %v762
      %v774 = vmul.f32 1.0, %v773
      %v775 = vrcp.pop %v763
      %v776 = vmul.f32 1.0, %v775
      %v777 = vrcp.pop %v764
      %v778 = vmul.f32 1.0, %v777
      %v779 = vrcp.pop %v765
      %v780 = vmul.f32 1.0, %v779
      %v781 = vrcp.pop %v766
      %v782 = vmul.f32 1.0, %v781
      %v783 = vmul.f32 %v727, %v768
      %v784 = vmul.f32 %v728, %v770
      %v785 = vmul.f32 %v729, %v772
      %v786 = vmul.f32 %v730, %v774
      %v787 = vmul.f32 %v731, %v776
      %v788 = vmul.f32 %v732, %v778
      %v789 = vmul.f32 %v733, %v780
      %v790 = vmul.f32 %v734, %v782
      %vm791 = vcmask 523264
      %792 = vst.msk [vmem:[%s170] sm:$0xff] %vm791, %v783
      %793 = vst.msk [vmem:[%s170 + $0x8] sm:$0xff] %vm791, %v784
      %794 = vst.msk [vmem:[%s170 + $0x10] sm:$0xff] %vm791, %v785
      %795 = vst.msk [vmem:[%s170 + $0x18] sm:$0xff] %vm791, %v786
      %796 = vst.msk [vmem:[%s170 + $0x20] sm:$0xff] %vm791, %v787
      %797 = vst.msk [vmem:[%s170 + $0x28] sm:$0xff] %vm791, %v788
      %798 = vst.msk [vmem:[%s170 + $0x30] sm:$0xff] %vm791, %v789
      %799 = vst.msk [vmem:[%s170 + $0x38] sm:$0xff] %vm791, %v790
      %p800 = scmp.lt.s32.totalorder %s14, 1
      %s801 = scalar_select %p800, %s14, 1
      %s802 = smul.addr %s801, 8
      %s803 = smul.addr %s802, 8
      %s804 = scalar_lea.vmem %s3, %s803
      // Predicated region
      $region33: #{spatial_mamba_block.10} parent=31 // pred_check
        %p805 = pneg %p100
      $region34: #{spatial_mamba_block.10} parent=31 // pred_check_branch
        %807 = sbr.rel (%p805) target = $region36
      $region35: #{spatial_mamba_block.10} parent=31 // pred_region
        _
      $region36: #{spatial_mamba_block.10} parent=31 // pred_fallthru
        _
    $region32: #{spatial_mamba_block.10} parent=5 // pred_fallthru
      _
    %p808 = scmp.le.s32.totalorder 2, %s9
    // Predicated region
    $region37: #{spatial_mamba_block.10} parent=5 // pred_check
      %p809 = pneg %p808
    $region38: #{spatial_mamba_block.10} parent=5 // pred_check_branch
      %811 = sbr.rel (%p809) target = $region40
    $region39: #{spatial_mamba_block.10} parent=5 // pred_region
      %s812 = ssub.s32 %s9, 2
      // Predicated region
      $region41: #{spatial_mamba_block.10} parent=39 // pred_check
        %p813 = pneg %p106
      $region42: #{spatial_mamba_block.10} parent=39 // pred_check_branch
        %815 = sbr.rel (%p813) target = $region44
      $region43: #{spatial_mamba_block.10} parent=39 // pred_region
        %p816 = scmp.lt.s32.totalorder %s15, 1
        %s817 = scalar_select %p816, %s15, 1
        %s818 = smul.addr %s817, 8
        %s819 = smul.addr %s818, 8
        %s820 = scalar_lea.vmem %s3, %s819
      $region44: #{spatial_mamba_block.10} parent=39 // pred_fallthru
        _
    $region40: #{spatial_mamba_block.10} parent=5 // pred_fallthru
      _
  $region6: #{spatial_mamba_block.10} parent=0 // loop_footer
    %s13 = sadd.s32 1, %s9
  $region7: #{spatial_mamba_block.10} parent=0 // loop_footer_branch
    %8 = sbr.rel target = $region3
  $region8: #{spatial_mamba_block.10} parent=0 // loop_exit
    _

// kernel: spatial_mamba_block.11
$region0: #{spatial_mamba_block.11}
  #allocation0 [shape = 'u32[]', space=smem, size = 0x4, offset = 0x4, fixed_abs, tag = 'smem constant byte address 0x4 - core index']
  #allocation1 [shape = 'u32[144,128]{1,0:T(1,128)}', space=vmem, size = 0x12000, scoped, tag = 'internal scratch']
  #allocation2 [shape = 'f32[64,64]{1,0:T(8,128)}', space=vmem, size = 0x8000, scoped, tag = 'scratch operand']
  #allocation3 [shape = 'f32[64,64]{1,0:T(8,128)}', space=vmem, size = 0x8000, scoped, tag = 'scratch operand']
  #allocation4 [shape = 'f32[1,64]{1,0:T(1,128)}', space=vmem, size = 0x200, scoped, tag = 'scratch operand']
  #allocation5 [shape = 'f32[8,64]{1,0:T(8,128)}', space=vmem, size = 0x1000, scoped, tag = 'scratch operand']
  %s0 = inlined_call_operand.vmem [shape: f32[2,64,64], index: 0, kind: input, shape index: {}]
  %s1 = inlined_call_operand.vmem [shape: f32[64,64], index: 1, kind: input, shape index: {}]
  %s2 = inlined_call_operand.vmem [shape: f32[1,64], index: 2, kind: input, shape index: {}]
  %s3 = inlined_call_operand.vmem [shape: f32[1,64], index: 3, kind: input, shape index: {}]
  %s4 = inlined_call_operand.vmem [shape: f32[1,64], index: 4, kind: input, shape index: {}]
  %s5 = inlined_call_operand.vmem [shape: f32[2,64,64], index: 5, kind: output, shape index: {}]
  %s6 = sld [smem:[#allocation0]]
  $region64: #{spatial_mamba_block.11} parent=0
    _
  %s8 = ssub.s32 1, %s6
  %s9 = scalar_select 0, %s8, %s6
  loop: start=0, step=1, limit=4
  $region2: #{spatial_mamba_block.11} parent=0 // loop_pre_header
    _
  $region3: #{spatial_mamba_block.11} parent=0 // loop_header
    %s11 = sphi 0, %s15
    %p12 = scmp.ge.s32.totalorder %s11, 4
    %s18 = sphi 0, %s30
    %s19 = sphi 0, %s26
    %s20 = sphi 0, %s18
    %s21 = sphi 0, %s19
    %s22 = sphi 0, %s20
    %s23 = sphi 0, %s21
    %s35 = sphi 0, %s37
    %s38 = sphi 0, %s35
    %s39 = sphi 0, %s38
    %s55 = sphi 0, %s39
    %s59 = sphi 0, %s59
    %s61 = sphi 0, %s59
    %s62 = sphi 0, %s61
    %s76 = sphi 0, %s62
    %s80 = sphi 0, %s80
    %s82 = sphi 0, %s80
    %s83 = sphi 0, %s82
    %s97 = sphi 0, %s83
    %s101 = sphi 0, %s101
    %s103 = sphi 0, %s101
    %s104 = sphi 0, %s103
    %s118 = sphi 0, %s104
    %s122 = sphi 0, %s122
    %s124 = sphi 0, %s122
    %s125 = sphi 0, %s124
    %s139 = sphi 0, %s125
    %s147 = sphi 0, %s149
    %s150 = sphi 0, %s147
    %s151 = sphi 0, %s150
    %s167 = sphi 0, %s151
  $region4: #{spatial_mamba_block.11} parent=0 // loop_header_branch
    %14 = sbr.rel (%p12) target = $region8
  $region5: #{spatial_mamba_block.11} parent=0 // loop_body
    %s16 = ssub.s32 %s11, 1
    %s17 = ssub.s32 %s11, 2
    %s24 = sadd.s32 1, %s19
    %p25 = scmp.ge.s32.totalorder %s24, 1
    %s26 = scalar_select %p25, 0, %s24
    %s27 = sadd.s32 1, %s18
    %s28 = scalar_select %p25, %s27, %s18
    %p29 = scmp.ge.s32.totalorder %s28, 2
    %s30 = scalar_select %p29, 0, %s28
    %s31 = ssub.s32 %s18, %s30
    %s32 = ssub.s32 %s19, %s26
    %s33 = sor.u32 %s31, %s32
    %p34 = scmp.eq.s32.totalorder %s33, 0
    %s36 = sadd.s32 %s35, 1
    %s37 = scalar_select %p34, %s35, %s36
    %p40 = pneg %p34
    %p41 = scmp.eq.s32.totalorder %s11, 1
    %p42 = por %p40, %p41
    %p43 = scmp.ne.s32.totalorder %s35, %s38
    %p44 = scmp.eq.s32.totalorder %s11, 0
    %p45 = por %p43, %p44
    %p46 = scmp.ne.s32.totalorder %s35, %s38
    %p47 = scmp.eq.s32.totalorder %s16, 1
    %p48 = por %p46, %p47
    %p49 = scmp.ne.s32.totalorder %s38, %s39
    %p50 = scmp.eq.s32.totalorder %s16, 0
    %p51 = por %p49, %p50
    %p52 = scmp.ne.s32.totalorder %s38, %s39
    %p53 = scmp.eq.s32.totalorder %s17, 1
    %p54 = por %p52, %p53
    %p56 = scmp.ne.s32.totalorder %s39, %s55
    %p57 = scmp.eq.s32.totalorder %s17, 0
    %p58 = por %p56, %p57
    %s60 = sadd.s32 %s59, 1
    %p63 = scmp.eq.s32.totalorder %s11, 1
    %p64 = scmp.ne.s32.totalorder %s59, %s61
    %p65 = scmp.eq.s32.totalorder %s11, 0
    %p66 = por %p64, %p65
    %p67 = scmp.ne.s32.totalorder %s59, %s61
    %p68 = scmp.eq.s32.totalorder %s16, 1
    %p69 = por %p67, %p68
    %p70 = scmp.ne.s32.totalorder %s61, %s62
    %p71 = scmp.eq.s32.totalorder %s16, 0
    %p72 = por %p70, %p71
    %p73 = scmp.ne.s32.totalorder %s61, %s62
    %p74 = scmp.eq.s32.totalorder %s17, 1
    %p75 = por %p73, %p74
    %p77 = scmp.ne.s32.totalorder %s62, %s76
    %p78 = scmp.eq.s32.totalorder %s17, 0
    %p79 = por %p77, %p78
    %s81 = sadd.s32 %s80, 1
    %p84 = scmp.eq.s32.totalorder %s11, 1
    %p85 = scmp.ne.s32.totalorder %s80, %s82
    %p86 = scmp.eq.s32.totalorder %s11, 0
    %p87 = por %p85, %p86
    %p88 = scmp.ne.s32.totalorder %s80, %s82
    %p89 = scmp.eq.s32.totalorder %s16, 1
    %p90 = por %p88, %p89
    %p91 = scmp.ne.s32.totalorder %s82, %s83
    %p92 = scmp.eq.s32.totalorder %s16, 0
    %p93 = por %p91, %p92
    %p94 = scmp.ne.s32.totalorder %s82, %s83
    %p95 = scmp.eq.s32.totalorder %s17, 1
    %p96 = por %p94, %p95
    %p98 = scmp.ne.s32.totalorder %s83, %s97
    %p99 = scmp.eq.s32.totalorder %s17, 0
    %p100 = por %p98, %p99
    %s102 = sadd.s32 %s101, 1
    %p105 = scmp.eq.s32.totalorder %s11, 1
    %p106 = scmp.ne.s32.totalorder %s101, %s103
    %p107 = scmp.eq.s32.totalorder %s11, 0
    %p108 = por %p106, %p107
    %p109 = scmp.ne.s32.totalorder %s101, %s103
    %p110 = scmp.eq.s32.totalorder %s16, 1
    %p111 = por %p109, %p110
    %p112 = scmp.ne.s32.totalorder %s103, %s104
    %p113 = scmp.eq.s32.totalorder %s16, 0
    %p114 = por %p112, %p113
    %p115 = scmp.ne.s32.totalorder %s103, %s104
    %p116 = scmp.eq.s32.totalorder %s17, 1
    %p117 = por %p115, %p116
    %p119 = scmp.ne.s32.totalorder %s104, %s118
    %p120 = scmp.eq.s32.totalorder %s17, 0
    %p121 = por %p119, %p120
    %s123 = sadd.s32 %s122, 1
    %p126 = scmp.eq.s32.totalorder %s11, 1
    %p127 = scmp.ne.s32.totalorder %s122, %s124
    %p128 = scmp.eq.s32.totalorder %s11, 0
    %p129 = por %p127, %p128
    %p130 = scmp.ne.s32.totalorder %s122, %s124
    %p131 = scmp.eq.s32.totalorder %s16, 1
    %p132 = por %p130, %p131
    %p133 = scmp.ne.s32.totalorder %s124, %s125
    %p134 = scmp.eq.s32.totalorder %s16, 0
    %p135 = por %p133, %p134
    %p136 = scmp.ne.s32.totalorder %s124, %s125
    %p137 = scmp.eq.s32.totalorder %s17, 1
    %p138 = por %p136, %p137
    %p140 = scmp.ne.s32.totalorder %s125, %s139
    %p141 = scmp.eq.s32.totalorder %s17, 0
    %p142 = por %p140, %p141
    %s143 = ssub.s32 %s18, %s30
    %s144 = ssub.s32 %s19, %s26
    %s145 = sor.u32 %s143, %s144
    %p146 = scmp.eq.s32.totalorder %s145, 0
    %s148 = sadd.s32 %s147, 1
    %s149 = scalar_select %p146, %s147, %s148
    %p152 = pneg %p146
    %p153 = scmp.eq.s32.totalorder %s11, 1
    %p154 = por %p152, %p153
    %p155 = scmp.ne.s32.totalorder %s147, %s150
    %p156 = scmp.eq.s32.totalorder %s11, 0
    %p157 = por %p155, %p156
    %p158 = scmp.ne.s32.totalorder %s147, %s150
    %p159 = scmp.eq.s32.totalorder %s16, 1
    %p160 = por %p158, %p159
    %p161 = scmp.ne.s32.totalorder %s150, %s151
    %p162 = scmp.eq.s32.totalorder %s16, 0
    %p163 = por %p161, %p162
    %p164 = scmp.ne.s32.totalorder %s150, %s151
    %p165 = scmp.eq.s32.totalorder %s17, 1
    %p166 = por %p164, %p165
    %p168 = scmp.ne.s32.totalorder %s151, %s167
    %p169 = scmp.eq.s32.totalorder %s17, 0
    %p170 = por %p168, %p169
    %p171 = scmp.le.s32.totalorder 1, %s11
    %p172 = scmp.lt.s32.totalorder %s11, 3
    %p173 = pnand %p171, %p172
    %p174 = pneg %p173
    // Predicated region
    $region9: #{spatial_mamba_block.11} parent=5 // pred_check
      _
    $region10: #{spatial_mamba_block.11} parent=5 // pred_check_branch
      %176 = sbr.rel (%p173) target = $region12
    $region11: #{spatial_mamba_block.11} parent=5 // pred_region
      %s177 = ssub.s32 %s11, 1
      // Predicated region
      $region13: #{spatial_mamba_block.11} parent=11 // pred_check
        %p178 = pneg %p72
      $region14: #{spatial_mamba_block.11} parent=11 // pred_check_branch
        %180 = sbr.rel (%p178) target = $region16
      $region15: #{spatial_mamba_block.11} parent=11 // pred_region
        _
      $region16: #{spatial_mamba_block.11} parent=11 // pred_fallthru
        _
      // Predicated region
      $region17: #{spatial_mamba_block.11} parent=11 // pred_check
        %p181 = pneg %p93
      $region18: #{spatial_mamba_block.11} parent=11 // pred_check_branch
        %183 = sbr.rel (%p181) target = $region20
      $region19: #{spatial_mamba_block.11} parent=11 // pred_region
        _
      $region20: #{spatial_mamba_block.11} parent=11 // pred_fallthru
        _
      // Predicated region
      $region21: #{spatial_mamba_block.11} parent=11 // pred_check
        %p184 = pneg %p114
      $region22: #{spatial_mamba_block.11} parent=11 // pred_check_branch
        %186 = sbr.rel (%p184) target = $region24
      $region23: #{spatial_mamba_block.11} parent=11 // pred_region
        _
      $region24: #{spatial_mamba_block.11} parent=11 // pred_fallthru
        _
      // Predicated region
      $region25: #{spatial_mamba_block.11} parent=11 // pred_check
        %p187 = pneg %p135
      $region26: #{spatial_mamba_block.11} parent=11 // pred_check_branch
        %189 = sbr.rel (%p187) target = $region28
      $region27: #{spatial_mamba_block.11} parent=11 // pred_region
        _
      $region28: #{spatial_mamba_block.11} parent=11 // pred_fallthru
        _
    $region12: #{spatial_mamba_block.11} parent=5 // pred_fallthru
      _
    %p190 = scmp.lt.s32.totalorder %s11, 2
    // Predicated region
    $region29: #{spatial_mamba_block.11} parent=5 // pred_check
      %p191 = pneg %p190
    $region30: #{spatial_mamba_block.11} parent=5 // pred_check_branch
      %193 = sbr.rel (%p191) target = $region32
    $region31: #{spatial_mamba_block.11} parent=5 // pred_region
      // Predicated region
      $region33: #{spatial_mamba_block.11} parent=31 // pred_check
        %p194 = pneg %p45
      $region34: #{spatial_mamba_block.11} parent=31 // pred_check_branch
        %196 = sbr.rel (%p194) target = $region36
      $region35: #{spatial_mamba_block.11} parent=31 // pred_region
        %s197 = smul.u32 8, %s19
        %p198 = scmp.lt.s32.totalorder %s18, 1
        %s199 = scalar_select %p198, %s18, 1
        %p200 = scmp.lt.s32.totalorder %s197, 7
        %s201 = scalar_select %p200, %s197, 7
        %s202 = smul.addr %s199, 8
        %s203 = sadd.s32 %s201, %s202
        %s204 = smul.addr %s203, 8
        %s205 = scalar_lea.vmem %s0, %s204
        %s206 = smul.u32 8, %s19
      $region36: #{spatial_mamba_block.11} parent=31 // pred_fallthru
        _
    $region32: #{spatial_mamba_block.11} parent=5 // pred_fallthru
      _
    %p207 = scmp.le.s32.totalorder 1, %s11
    %p208 = scmp.lt.s32.totalorder %s11, 3
    %p209 = pnand %p207, %p208
    %p210 = pneg %p209
    // Predicated region
    $region37: #{spatial_mamba_block.11} parent=5 // pred_check
      _
    $region38: #{spatial_mamba_block.11} parent=5 // pred_check_branch
      %212 = sbr.rel (%p209) target = $region40
    $region39: #{spatial_mamba_block.11} parent=5 // pred_region
      %s213 = ssub.s32 %s11, 1
      %s214 = smul.u32 8, %s21
      %p215 = scmp.lt.s32.totalorder %s20, 1
      %s216 = scalar_select %p215, %s20, 1
      %p217 = scmp.lt.s32.totalorder %s214, 7
      %s218 = scalar_select %p217, %s214, 7
      %s219 = smul.addr %s216, 8
      %s220 = sadd.s32 %s218, %s219
      %s221 = smul.addr %s220, 8
      %s222 = scalar_lea.vmem %s0, %s221
      %p223 = pneg %p51
      %p224 = pneg %p48
      %p225 = pneg %p72
      %p226 = pneg %p69
      %p227 = pneg %p93
      %p228 = pneg %p90
      %p229 = pneg %p114
      %p230 = pneg %p111
      %p231 = pneg %p135
      %p232 = pneg %p132
      %p233 = pneg %p163
      %p234 = pneg %p160
      %s235 = smul.u32 8, %s21
      %p236 = scmp.lt.s32.totalorder %s20, 1
      %s237 = scalar_select %p236, %s20, 1
      %p238 = scmp.lt.s32.totalorder %s235, 7
      %s239 = scalar_select %p238, %s235, 7
      %s240 = smul.addr %s237, 8
      %s241 = sadd.s32 %s239, %s240
      %s242 = smul.addr %s241, 8
      %s243 = scalar_lea.vmem %s5, %s242
      %s244 = smul.u32 8, %s21
      %p245 = scmp.lt.s32.totalorder %s20, 1
      %s246 = scalar_select %p245, %s20, 1
      %p247 = scmp.lt.s32.totalorder %s244, 7
      %s248 = scalar_select %p247, %s244, 7
      %s249 = smul.addr %s246, 8
      %s250 = sadd.s32 %s248, %s249
      %s251 = smul.addr %s250, 8
      %s252 = scalar_lea.vmem %s0, %s251
      %s253 = smul.u32 8, %s21
      %s254 = smul.u32 8, %s21
      %p255 = scmp.lt.s32.totalorder %s20, 1
      %s256 = scalar_select %p255, %s20, 1
      %p257 = scmp.lt.s32.totalorder %s254, 7
      %s258 = scalar_select %p257, %s254, 7
      %s259 = smul.addr %s256, 8
      %s260 = sadd.s32 %s258, %s259
      %s261 = smul.addr %s260, 8
      %s262 = scalar_lea.vmem %s5, %s261
      %s263 = smul.u32 8, %s21
      %p264 = scmp.eq.s32.totalorder %s21, 0
      // Predicated region
      $region41: #{spatial_mamba_block.11} parent=39 // pred_check
        %p265 = pneg %p264
      $region42: #{spatial_mamba_block.11} parent=39 // pred_check_branch
        %267 = sbr.rel (%p265) target = $region44
      $region43: #{spatial_mamba_block.11} parent=39 // pred_region
        %vm268 = vcmask 516096
        %269 = vst.msk [vmem:[#allocation4] sm:$0x1] %vm268, 0.0
      $region44: #{spatial_mamba_block.11} parent=39 // pred_fallthru
        _
      %v270 = vld [vmem:[%s252] sm:$0xff]
      %v271 = vld [vmem:[%s252 + $0x8] sm:$0xff]
      %v272 = vld [vmem:[%s252 + $0x10] sm:$0xff]
      %v273 = vld [vmem:[%s252 + $0x18] sm:$0xff]
      %v274 = vld [vmem:[%s252 + $0x20] sm:$0xff]
      %v275 = vld [vmem:[%s252 + $0x28] sm:$0xff]
      %v276 = vld [vmem:[%s252 + $0x30] sm:$0xff]
      %v277 = vld [vmem:[%s252 + $0x38] sm:$0xff]
      %v278 = vld [vmem:[%s1] sm:$0xff]
      %v279 = vld [vmem:[%s1 + $0x8] sm:$0xff]
      %v280 = vld [vmem:[%s1 + $0x10] sm:$0xff]
      %v281 = vld [vmem:[%s1 + $0x18] sm:$0xff]
      %v282 = vld [vmem:[%s1 + $0x20] sm:$0xff]
      %v283 = vld [vmem:[%s1 + $0x28] sm:$0xff]
      %v284 = vld [vmem:[%s1 + $0x30] sm:$0xff]
      %v285 = vld [vmem:[%s1 + $0x38] sm:$0xff]
      %v286 = vld [vmem:[%s4] sm:$0x1]
      %v288 = vlaneseq
      %v289 = vshrl.u32 %v288, 7
      %v290 = vsub.s32 0, %v289
      %v291 = vrot.slane %v286, %v290
      %vm293 = vcmask 523264
      %v295 = vsel %vm293, %v270, 0
      %v298 = vsel %vm293, %v271, 0
      %v301 = vsel %vm293, %v272, 0
      %v304 = vsel %vm293, %v273, 0
      %v307 = vsel %vm293, %v274, 0
      %v310 = vsel %vm293, %v275, 0
      %v313 = vsel %vm293, %v276, 0
      %v316 = vsel %vm293, %v277, 0
      %318 = vmatprep.subr.mxu0 0.0
      %319 = vmatpush1.msra.mxu0 0.0
      %320 = vmatprep.subr.mxu0 0.0
      %321 = vmatpush1.msra.mxu0 0.0
      %322 = vmatprep.subr.mxu0 0.0
      %323 = vmatpush1.msra.mxu0 0.0
      %324 = vmatprep.subr.mxu0 0.0
      %325 = vmatpush1.msra.mxu0 0.0
      %326 = vmatprep.subr.mxu0 0.0
      %327 = vmatpush1.msra.mxu0 0.0
      %328 = vmatprep.subr.mxu0 0.0
      %329 = vmatpush1.msra.mxu0 0.0
      %330 = vmatprep.subr.mxu0 0.0
      %331 = vmatpush1.msra.mxu0 0.0
      %332 = vmatprep.subr.mxu0 0.0
      %333 = vmatpush1.msra.mxu0 0.0
      %334 = vmatprep.subr.mxu0 0.0
      %335 = vmatpush1.msra.mxu0 %v285
      %336 = vmatprep.subr.mxu0 0.0
      %337 = vmatpush1.msra.mxu0 %v284
      %338 = vmatprep.subr.mxu0 0.0
      %339 = vmatpush1.msra.mxu0 %v283
      %340 = vmatprep.subr.mxu0 0.0
      %341 = vmatpush1.msra.mxu0 %v282
      %342 = vmatprep.subr.mxu0 0.0
      %343 = vmatpush1.msra.mxu0 %v281
      %344 = vmatprep.subr.mxu0 0.0
      %345 = vmatpush1.msra.mxu0 %v280
      %346 = vmatprep.subr.mxu0 0.0
      %347 = vmatpush1.msra.mxu0 %v279
      %348 = vmatprep.subr.mxu0 0.0
      %349 = vmatpush1.msra.mxu0 %v278
      %350 = vmatprep.subr.mxu0 0.0
      %351 = vmatpush2.msra.mxu0 0.0
      %352 = vmatprep.subr.mxu0 0.0
      %353 = vmatpush2.msra.mxu0 0.0
      %354 = vmatprep.subr.mxu0 0.0
      %355 = vmatpush2.msra.mxu0 0.0
      %356 = vmatprep.subr.mxu0 0.0
      %357 = vmatpush2.msra.mxu0 0.0
      %358 = vmatprep.subr.mxu0 0.0
      %359 = vmatpush2.msra.mxu0 0.0
      %360 = vmatprep.subr.mxu0 0.0
      %361 = vmatpush2.msra.mxu0 0.0
      %362 = vmatprep.subr.mxu0 0.0
      %363 = vmatpush2.msra.mxu0 0.0
      %364 = vmatprep.subr.mxu0 0.0
      %365 = vmatpush2.msra.mxu0 0.0
      %366 = vmatprep.subr.mxu0 0.0
      %367 = vmatpush2.msra.mxu0 0.0
      %368 = vmatprep.subr.mxu0 0.0
      %369 = vmatpush2.msra.mxu0 0.0
      %370 = vmatprep.subr.mxu0 0.0
      %371 = vmatpush2.msra.mxu0 0.0
      %372 = vmatprep.subr.mxu0 0.0
      %373 = vmatpush2.msra.mxu0 0.0
      %374 = vmatprep.subr.mxu0 0.0
      %375 = vmatpush2.msra.mxu0 0.0
      %376 = vmatprep.subr.mxu0 0.0
      %377 = vmatpush2.msra.mxu0 0.0
      %378 = vmatprep.subr.mxu0 0.0
      %379 = vmatpush2.msra.mxu0 0.0
      %380 = vmatprep.subr.mxu0 0.0
      %381 = vmatpush2.msra.mxu0 0.0
      %382 = vmatprep.mubr.f32.mxu0 0.0
      %383 = vmatmul.mubr.f32.gmra.mxu0 %v295
      %v384 = vpop.f32.mrf.mxu0
      %v385 = vadd.f32 %v291, %v384
      %v386 = vpop.f32.mrf.mxu0
      %387 = vmatprep.mubr.f32.mxu0 0.0
      %388 = vmatmul.mubr.f32.gmra.mxu0 %v298
      %v389 = vpop.f32.mrf.mxu0
      %v390 = vadd.f32 %v291, %v389
      %v391 = vpop.f32.mrf.mxu0
      %392 = vmatprep.mubr.f32.mxu0 0.0
      %393 = vmatmul.mubr.f32.gmra.mxu0 %v301
      %v394 = vpop.f32.mrf.mxu0
      %v395 = vadd.f32 %v291, %v394
      %v396 = vpop.f32.mrf.mxu0
      %397 = vmatprep.mubr.f32.mxu0 0.0
      %398 = vmatmul.mubr.f32.gmra.mxu0 %v304
      %v399 = vpop.f32.mrf.mxu0
      %v400 = vadd.f32 %v291, %v399
      %v401 = vpop.f32.mrf.mxu0
      %402 = vmatprep.mubr.f32.mxu0 0.0
      %403 = vmatmul.mubr.f32.gmra.mxu0 %v307
      %v404 = vpop.f32.mrf.mxu0
      %v405 = vadd.f32 %v291, %v404
      %v406 = vpop.f32.mrf.mxu0
      %407 = vmatprep.mubr.f32.mxu0 0.0
      %408 = vmatmul.mubr.f32.gmra.mxu0 %v310
      %v409 = vpop.f32.mrf.mxu0
      %v410 = vadd.f32 %v291, %v409
      %v411 = vpop.f32.mrf.mxu0
      %412 = vmatprep.mubr.f32.mxu0 0.0
      %413 = vmatmul.mubr.f32.gmra.mxu0 %v313
      %v414 = vpop.f32.mrf.mxu0
      %v415 = vadd.f32 %v291, %v414
      %v416 = vpop.f32.mrf.mxu0
      %417 = vmatprep.mubr.f32.mxu0 0.0
      %418 = vmatmul.mubr.f32.gmra.mxu0 %v316
      %v419 = vpop.f32.mrf.mxu0
      %v420 = vadd.f32 %v291, %v419
      %v421 = vpop.f32.mrf.mxu0
      %422 = vdwg.mxu0
      %vm423 = vcmp.gt.f32.partialorder %v385, 20.0
      %vm424 = vcmp.gt.f32.partialorder %v390, 20.0
      %vm425 = vcmp.gt.f32.partialorder %v395, 20.0
      %vm426 = vcmp.gt.f32.partialorder %v400, 20.0
      %vm427 = vcmp.gt.f32.partialorder %v405, 20.0
      %vm428 = vcmp.gt.f32.partialorder %v410, 20.0
      %vm429 = vcmp.gt.f32.partialorder %v415, 20.0
      %vm430 = vcmp.gt.f32.partialorder %v420, 20.0
      %v431 = vmin.f32 %v385, 20.0
      %v432 = vmin.f32 %v390, 20.0
      %v433 = vmin.f32 %v395, 20.0
      %v434 = vmin.f32 %v400, 20.0
      %v435 = vmin.f32 %v405, 20.0
      %v436 = vmin.f32 %v410, 20.0
      %v437 = vmin.f32 %v415, 20.0
      %v438 = vmin.f32 %v420, 20.0
      %v439 = vmul.f32 %v431, 1.442695
      %v440 = vpow.pop %v439
      %v441 = vmul.f32 %v432, 1.442695
      %v442 = vpow.pop %v441
      %v443 = vmul.f32 %v433, 1.442695
      %v444 = vpow.pop %v443
      %v445 = vmul.f32 %v434, 1.442695
      %v446 = vpow.pop %v445
      %v447 = vmul.f32 %v435, 1.442695
      %v448 = vpow.pop %v447
      %v449 = vmul.f32 %v436, 1.442695
      %v450 = vpow.pop %v449
      %v451 = vmul.f32 %v437, 1.442695
      %v452 = vpow.pop %v451
      %v453 = vmul.f32 %v438, 1.442695
      %v454 = vpow.pop %v453
      %v455 = vadd.f32 %v440, 1.0
      %v456 = vlog2.pop %v455
      %v457 = vmul.f32 %v456, 0.6931472
      %v458 = vmul.f32 -0.5, %v440
      %v459 = vadd.f32 %v458, 1.0
      %v460 = vmul.f32 %v459, %v440
      %v461 = vand.u32 2147483647, %v440
      %vm462 = vcmp.lt.f32.partialorder %v461, 0.0004427343
      %v463 = vsel %vm462, %v460, %v457
      %v464 = vadd.f32 %v442, 1.0
      %v465 = vlog2.pop %v464
      %v466 = vmul.f32 %v465, 0.6931472
      %v467 = vmul.f32 -0.5, %v442
      %v468 = vadd.f32 %v467, 1.0
      %v469 = vmul.f32 %v468, %v442
      %v470 = vand.u32 2147483647, %v442
      %vm471 = vcmp.lt.f32.partialorder %v470, 0.0004427343
      %v472 = vsel %vm471, %v469, %v466
      %v473 = vadd.f32 %v444, 1.0
      %v474 = vlog2.pop %v473
      %v475 = vmul.f32 %v474, 0.6931472
      %v476 = vmul.f32 -0.5, %v444
      %v477 = vadd.f32 %v476, 1.0
      %v478 = vmul.f32 %v477, %v444
      %v479 = vand.u32 2147483647, %v444
      %vm480 = vcmp.lt.f32.partialorder %v479, 0.0004427343
      %v481 = vsel %vm480, %v478, %v475
      %v482 = vadd.f32 %v446, 1.0
      %v483 = vlog2.pop %v482
      %v484 = vmul.f32 %v483, 0.6931472
      %v485 = vmul.f32 -0.5, %v446
      %v486 = vadd.f32 %v485, 1.0
      %v487 = vmul.f32 %v486, %v446
      %v488 = vand.u32 2147483647, %v446
      %vm489 = vcmp.lt.f32.partialorder %v488, 0.0004427343
      %v490 = vsel %vm489, %v487, %v484
      %v491 = vadd.f32 %v448, 1.0
      %v492 = vlog2.pop %v491
      %v493 = vmul.f32 %v492, 0.6931472
      %v494 = vmul.f32 -0.5, %v448
      %v495 = vadd.f32 %v494, 1.0
      %v496 = vmul.f32 %v495, %v448
      %v497 = vand.u32 2147483647, %v448
      %vm498 = vcmp.lt.f32.partialorder %v497, 0.0004427343
      %v499 = vsel %vm498, %v496, %v493
      %v500 = vadd.f32 %v450, 1.0
      %v501 = vlog2.pop %v500
      %v502 = vmul.f32 %v501, 0.6931472
      %v503 = vmul.f32 -0.5, %v450
      %v504 = vadd.f32 %v503, 1.0
      %v505 = vmul.f32 %v504, %v450
      %v506 = vand.u32 2147483647, %v450
      %vm507 = vcmp.lt.f32.partialorder %v506, 0.0004427343
      %v508 = vsel %vm507, %v505, %v502
      %v509 = vadd.f32 %v452, 1.0
      %v510 = vlog2.pop %v509
      %v511 = vmul.f32 %v510, 0.6931472
      %v512 = vmul.f32 -0.5, %v452
      %v513 = vadd.f32 %v512, 1.0
      %v514 = vmul.f32 %v513, %v452
      %v515 = vand.u32 2147483647, %v452
      %vm516 = vcmp.lt.f32.partialorder %v515, 0.0004427343
      %v517 = vsel %vm516, %v514, %v511
      %v518 = vadd.f32 %v454, 1.0
      %v519 = vlog2.pop %v518
      %v520 = vmul.f32 %v519, 0.6931472
      %v521 = vmul.f32 -0.5, %v454
      %v522 = vadd.f32 %v521, 1.0
      %v523 = vmul.f32 %v522, %v454
      %v524 = vand.u32 2147483647, %v454
      %vm525 = vcmp.lt.f32.partialorder %v524, 0.0004427343
      %v526 = vsel %vm525, %v523, %v520
      %v527 = vsel %vm423, %v385, %v463
      %v528 = vsel %vm424, %v390, %v472
      %v529 = vsel %vm425, %v395, %v481
      %v530 = vsel %vm426, %v400, %v490
      %v531 = vsel %vm427, %v405, %v499
      %v532 = vsel %vm428, %v410, %v508
      %v533 = vsel %vm429, %v415, %v517
      %v534 = vsel %vm430, %v420, %v526
      %v535 = vld [vmem:[%s2] sm:$0x1]
      %v537 = vlaneseq
      %v538 = vshrl.u32 %v537, 7
      %v539 = vsub.s32 0, %v538
      %v540 = vrot.slane %v535, %v539
      %v542 = vmul.f32 %v270, %v540
      %v543 = vmul.f32 %v271, %v540
      %v544 = vmul.f32 %v272, %v540
      %v545 = vmul.f32 %v273, %v540
      %v546 = vmul.f32 %v274, %v540
      %v547 = vmul.f32 %v275, %v540
      %v548 = vmul.f32 %v276, %v540
      %v549 = vmul.f32 %v277, %v540
      %v550 = vsel %vm293, %v542, 0.0
      %551 = vadd.xlane.f32.xlu0 %v550
      %v552 = vpop.xlane.xlu0 %551
      %v553 = vsel %vm293, %v543, 0.0
      %554 = vadd.xlane.f32.xlu0 %v553
      %v555 = vpop.xlane.xlu0 %554
      %v556 = vsel %vm293, %v544, 0.0
      %557 = vadd.xlane.f32.xlu0 %v556
      %v558 = vpop.xlane.xlu0 %557
      %v559 = vsel %vm293, %v545, 0.0
      %560 = vadd.xlane.f32.xlu0 %v559
      %v561 = vpop.xlane.xlu0 %560
      %v562 = vsel %vm293, %v546, 0.0
      %563 = vadd.xlane.f32.xlu0 %v562
      %v564 = vpop.xlane.xlu0 %563
      %v565 = vsel %vm293, %v547, 0.0
      %566 = vadd.xlane.f32.xlu0 %v565
      %v567 = vpop.xlane.xlu0 %566
      %v568 = vsel %vm293, %v548, 0.0
      %569 = vadd.xlane.f32.xlu0 %v568
      %v570 = vpop.xlane.xlu0 %569
      %v571 = vsel %vm293, %v549, 0.0
      %572 = vadd.xlane.f32.xlu0 %v571
      %v573 = vpop.xlane.xlu0 %572
      %v574 = vld [vmem:[%s3] sm:$0x1]
      %v576 = vlaneseq
      %v577 = vshrl.u32 %v576, 7
      %v578 = vsub.s32 0, %v577
      %v579 = vrot.slane %v574, %v578
      %v581 = vmul.f32 %v527, %v579
      %v582 = vmul.f32 %v528, %v579
      %v583 = vmul.f32 %v529, %v579
      %v584 = vmul.f32 %v530, %v579
      %v585 = vmul.f32 %v531, %v579
      %v586 = vmul.f32 %v532, %v579
      %v587 = vmul.f32 %v533, %v579
      %v588 = vmul.f32 %v534, %v579
      %v589 = vmul.f32 %v581, 1.442695
      %v590 = vpow.pop %v589
      %v591 = vmul.f32 %v582, 1.442695
      %v592 = vpow.pop %v591
      %v593 = vmul.f32 %v583, 1.442695
      %v594 = vpow.pop %v593
      %v595 = vmul.f32 %v584, 1.442695
      %v596 = vpow.pop %v595
      %v597 = vmul.f32 %v585, 1.442695
      %v598 = vpow.pop %v597
      %v599 = vmul.f32 %v586, 1.442695
      %v600 = vpow.pop %v599
      %v601 = vmul.f32 %v587, 1.442695
      %v602 = vpow.pop %v601
      %v603 = vmul.f32 %v588, 1.442695
      %v604 = vpow.pop %v603
      %605 = vst.msk [vmem:[#allocation2] sm:$0xff] %vm293, %v590
      %606 = vst.msk [vmem:[#allocation2 + $0x8] sm:$0xff] %vm293, %v592
      %607 = vst.msk [vmem:[#allocation2 + $0x10] sm:$0xff] %vm293, %v594
      %608 = vst.msk [vmem:[#allocation2 + $0x18] sm:$0xff] %vm293, %v596
      %609 = vst.msk [vmem:[#allocation2 + $0x20] sm:$0xff] %vm293, %v598
      %610 = vst.msk [vmem:[#allocation2 + $0x28] sm:$0xff] %vm293, %v600
      %611 = vst.msk [vmem:[#allocation2 + $0x30] sm:$0xff] %vm293, %v602
      %612 = vst.msk [vmem:[#allocation2 + $0x38] sm:$0xff] %vm293, %v604
      %v613 = vmul.f32 %v527, %v552
      %v614 = vmul.f32 %v528, %v555
      %v615 = vmul.f32 %v529, %v558
      %v616 = vmul.f32 %v530, %v561
      %v617 = vmul.f32 %v531, %v564
      %v618 = vmul.f32 %v532, %v567
      %v619 = vmul.f32 %v533, %v570
      %v620 = vmul.f32 %v534, %v573
      %v621 = vmul.f32 %v613, %v270
      %v622 = vmul.f32 %v614, %v271
      %v623 = vmul.f32 %v615, %v272
      %v624 = vmul.f32 %v616, %v273
      %v625 = vmul.f32 %v617, %v274
      %v626 = vmul.f32 %v618, %v275
      %v627 = vmul.f32 %v619, %v276
      %v628 = vmul.f32 %v620, %v277
      %629 = vst.msk [vmem:[#allocation3] sm:$0xff] %vm293, %v621
      %630 = vst.msk [vmem:[#allocation3 + $0x8] sm:$0xff] %vm293, %v622
      %631 = vst.msk [vmem:[#allocation3 + $0x10] sm:$0xff] %vm293, %v623
      %632 = vst.msk [vmem:[#allocation3 + $0x18] sm:$0xff] %vm293, %v624
      %633 = vst.msk [vmem:[#allocation3 + $0x20] sm:$0xff] %vm293, %v625
      %634 = vst.msk [vmem:[#allocation3 + $0x28] sm:$0xff] %vm293, %v626
      %635 = vst.msk [vmem:[#allocation3 + $0x30] sm:$0xff] %vm293, %v627
      %636 = vst.msk [vmem:[#allocation3 + $0x38] sm:$0xff] %vm293, %v628
      %v637 = vld [vmem:[#allocation4] sm:$0x1]
      loop: start=0, step=1, limit=8
      $region45: #{spatial_mamba_block.11} parent=39 // loop_pre_header
        _
      $region46: #{spatial_mamba_block.11} parent=39 // loop_header
        %s639 = sphi 0, %s643
        %p640 = scmp.ge.s32.totalorder %s639, 8
        %v644 = vphi %v637, %v707
      $region47: #{spatial_mamba_block.11} parent=39 // loop_header_branch
        %642 = sbr.rel (%p640) target = $region51
      $region48: #{spatial_mamba_block.11} parent=39 // loop_body
        %s645 = smul.u32 %s639, 8
        %s646 = scalar_lea.vmem [#allocation2], %s645
        %v647 = vld [vmem:[%s646] sm:$0xff]
        %s648 = scalar_lea.vmem [#allocation3], %s645
        %v649 = vld [vmem:[%s648] sm:$0xff]
        %v650 = vmul.f32 %v647, %v644
        %v651 = vadd.f32 %v650, %v649
        %vm652 = vcmask 516096
        %653 = vst.msk [vmem:[#allocation5] sm:$0x1] %vm652, %v651
        %v655 = vrot.slane %v651, 7
        %v657 = vmul.f32 %v647, %v655
        %v658 = vadd.f32 %v657, %v649
        %vm659 = vcmask 517121
        %660 = vst.msk [vmem:[#allocation5] sm:$0x2] %vm659, %v658
        %v662 = vrot.slane %v658, 7
        %v664 = vmul.f32 %v647, %v662
        %v665 = vadd.f32 %v664, %v649
        %vm666 = vcmask 518146
        %667 = vst.msk [vmem:[#allocation5] sm:$0x4] %vm666, %v665
        %v669 = vrot.slane %v665, 7
        %v671 = vmul.f32 %v647, %v669
        %v672 = vadd.f32 %v671, %v649
        %vm673 = vcmask 519171
        %674 = vst.msk [vmem:[#allocation5] sm:$0x8] %vm673, %v672
        %v676 = vrot.slane %v672, 7
        %v678 = vmul.f32 %v647, %v676
        %v679 = vadd.f32 %v678, %v649
        %vm680 = vcmask 520196
        %681 = vst.msk [vmem:[#allocation5] sm:$0x10] %vm680, %v679
        %v683 = vrot.slane %v679, 7
        %v685 = vmul.f32 %v647, %v683
        %v686 = vadd.f32 %v685, %v649
        %vm687 = vcmask 521221
        %688 = vst.msk [vmem:[#allocation5] sm:$0x20] %vm687, %v686
        %v690 = vrot.slane %v686, 7
        %v692 = vmul.f32 %v647, %v690
        %v693 = vadd.f32 %v692, %v649
        %vm694 = vcmask 522246
        %695 = vst.msk [vmem:[#allocation5] sm:$0x40] %vm694, %v693
        %v697 = vrot.slane %v693, 7
        %v699 = vmul.f32 %v647, %v697
        %v700 = vadd.f32 %v699, %v649
        %vm701 = vcmask 523271
        %702 = vst.msk [vmem:[#allocation5] sm:$0x80] %vm701, %v700
        %v703 = vld [vmem:[#allocation5] sm:$0xff]
        %s704 = scalar_lea.vmem %s262, %s645
        %705 = vst.msk [vmem:[%s704] sm:$0xff] %vm293, %v703
        %v707 = vrot.slane %v700, 7
      $region49: #{spatial_mamba_block.11} parent=39 // loop_footer
        %s643 = sadd.s32 1, %s639
      $region50: #{spatial_mamba_block.11} parent=39 // loop_footer_branch
        %638 = sbr.rel target = $region46
      $region51: #{spatial_mamba_block.11} parent=39 // loop_exit
        _
      %vm709 = vcmask 516096
      %710 = vst.msk [vmem:[#allocation4] sm:$0x1] %vm709, %v644
      %s711 = smul.u32 8, %s21
      %p712 = scmp.lt.s32.totalorder %s20, 1
      %s713 = scalar_select %p712, %s20, 1
      %p714 = scmp.lt.s32.totalorder %s711, 7
      %s715 = scalar_select %p714, %s711, 7
      %s716 = smul.addr %s713, 8
      %s717 = sadd.s32 %s715, %s716
      %s718 = smul.addr %s717, 8
      %s719 = scalar_lea.vmem %s5, %s718
      // Predicated region
      $region52: #{spatial_mamba_block.11} parent=39 // pred_check
        %p720 = pneg %p160
      $region53: #{spatial_mamba_block.11} parent=39 // pred_check_branch
        %722 = sbr.rel (%p720) target = $region55
      $region54: #{spatial_mamba_block.11} parent=39 // pred_region
        %s723 = smul.u32 8, %s21
      $region55: #{spatial_mamba_block.11} parent=39 // pred_fallthru
        _
    $region40: #{spatial_mamba_block.11} parent=5 // pred_fallthru
      _
    %p724 = scmp.le.s32.totalorder 2, %s11
    // Predicated region
    $region56: #{spatial_mamba_block.11} parent=5 // pred_check
      %p725 = pneg %p724
    $region57: #{spatial_mamba_block.11} parent=5 // pred_check_branch
      %727 = sbr.rel (%p725) target = $region59
    $region58: #{spatial_mamba_block.11} parent=5 // pred_region
      %s728 = ssub.s32 %s11, 2
      // Predicated region
      $region60: #{spatial_mamba_block.11} parent=58 // pred_check
        %p729 = pneg %p166
      $region61: #{spatial_mamba_block.11} parent=58 // pred_check_branch
        %731 = sbr.rel (%p729) target = $region63
      $region62: #{spatial_mamba_block.11} parent=58 // pred_region
        %s732 = smul.u32 8, %s23
        %p733 = scmp.lt.s32.totalorder %s22, 1
        %s734 = scalar_select %p733, %s22, 1
        %p735 = scmp.lt.s32.totalorder %s732, 7
        %s736 = scalar_select %p735, %s732, 7
        %s737 = smul.addr %s734, 8
        %s738 = sadd.s32 %s736, %s737
        %s739 = smul.addr %s738, 8
        %s740 = scalar_lea.vmem %s5, %s739
      $region63: #{spatial_mamba_block.11} parent=58 // pred_fallthru
        _
    $region59: #{spatial_mamba_block.11} parent=5 // pred_fallthru
      _
  $region6: #{spatial_mamba_block.11} parent=0 // loop_footer
    %s15 = sadd.s32 1, %s11
  $region7: #{spatial_mamba_block.11} parent=0 // loop_footer_branch
    %10 = sbr.rel target = $region3
  $region8: #{spatial_mamba_block.11} parent=0 // loop_exit
    _

// kernel: spatial_mamba_block.13
$region0: #{spatial_mamba_block.13}
  #allocation0 [shape = 'u32[]', space=smem, size = 0x4, offset = 0x4, fixed_abs, tag = 'smem constant byte address 0x4 - core index']
  #allocation1 [shape = 'u32[144,128]{1,0:T(1,128)}', space=vmem, size = 0x12000, scoped, tag = 'internal scratch']
  %s0 = inlined_call_operand.vmem [shape: f32[128,64], index: 0, kind: input, shape index: {}]
  %s1 = inlined_call_operand.vmem [shape: f32[128,64], index: 1, kind: input, shape index: {}]
  %s2 = inlined_call_operand.vmem [shape: f32[128,64], index: 2, kind: input, shape index: {}]
  %s3 = inlined_call_operand.vmem [shape: f32[128,32], index: 3, kind: input, shape index: {}]
  %s4 = inlined_call_operand.vmem [shape: f32[1,64], index: 4, kind: input, shape index: {}]
  %s5 = inlined_call_operand.vmem [shape: f32[1,64], index: 5, kind: input, shape index: {}]
  %s6 = inlined_call_operand.vmem [shape: f32[1,64], index: 6, kind: input, shape index: {}]
  %s7 = inlined_call_operand.vmem [shape: f32[1,64], index: 7, kind: input, shape index: {}]
  %s8 = inlined_call_operand.vmem [shape: f32[64,32], index: 8, kind: input, shape index: {}]
  %s9 = inlined_call_operand.vmem [shape: f32[128,32], index: 9, kind: output, shape index: {}]
  %s10 = sld [smem:[#allocation0]]
  $region46: #{spatial_mamba_block.13} parent=0
    _
  %s12 = ssub.s32 1, %s10
  %s13 = scalar_select 0, %s12, %s10
  // Predicated region
  $region2: #{spatial_mamba_block.13} parent=0 // pred_check
    _
  $region3: #{spatial_mamba_block.13} parent=0 // pred_check_branch
    %15 = sbr.rel (0) target = $region5
  $region4: #{spatial_mamba_block.13} parent=0 // pred_region
    _
  $region5: #{spatial_mamba_block.13} parent=0 // pred_fallthru
    _
  // Predicated region
  $region6: #{spatial_mamba_block.13} parent=0 // pred_check
    _
  $region7: #{spatial_mamba_block.13} parent=0 // pred_check_branch
    %17 = sbr.rel (0) target = $region9
  $region8: #{spatial_mamba_block.13} parent=0 // pred_region
    _
  $region9: #{spatial_mamba_block.13} parent=0 // pred_fallthru
    _
  // Predicated region
  $region10: #{spatial_mamba_block.13} parent=0 // pred_check
    _
  $region11: #{spatial_mamba_block.13} parent=0 // pred_check_branch
    %19 = sbr.rel (0) target = $region13
  $region12: #{spatial_mamba_block.13} parent=0 // pred_region
    _
  $region13: #{spatial_mamba_block.13} parent=0 // pred_fallthru
    _
  // Predicated region
  $region14: #{spatial_mamba_block.13} parent=0 // pred_check
    _
  $region15: #{spatial_mamba_block.13} parent=0 // pred_check_branch
    %21 = sbr.rel (0) target = $region17
  $region16: #{spatial_mamba_block.13} parent=0 // pred_region
    _
  $region17: #{spatial_mamba_block.13} parent=0 // pred_fallthru
    _
  // Predicated region
  $region18: #{spatial_mamba_block.13} parent=0 // pred_check
    _
  $region19: #{spatial_mamba_block.13} parent=0 // pred_check_branch
    %23 = sbr.rel (0) target = $region21
  $region20: #{spatial_mamba_block.13} parent=0 // pred_region
    _
  $region21: #{spatial_mamba_block.13} parent=0 // pred_fallthru
    _
  // Predicated region
  $region22: #{spatial_mamba_block.13} parent=0 // pred_check
    _
  $region23: #{spatial_mamba_block.13} parent=0 // pred_check_branch
    %25 = sbr.rel (0) target = $region25
  $region24: #{spatial_mamba_block.13} parent=0 // pred_region
    _
  $region25: #{spatial_mamba_block.13} parent=0 // pred_fallthru
    _
  // Predicated region
  $region26: #{spatial_mamba_block.13} parent=0 // pred_check
    _
  $region27: #{spatial_mamba_block.13} parent=0 // pred_check_branch
    %27 = sbr.rel (0) target = $region29
  $region28: #{spatial_mamba_block.13} parent=0 // pred_region
    _
  $region29: #{spatial_mamba_block.13} parent=0 // pred_fallthru
    _
  // Predicated region
  $region30: #{spatial_mamba_block.13} parent=0 // pred_check
    _
  $region31: #{spatial_mamba_block.13} parent=0 // pred_check_branch
    %29 = sbr.rel (0) target = $region33
  $region32: #{spatial_mamba_block.13} parent=0 // pred_region
    _
  $region33: #{spatial_mamba_block.13} parent=0 // pred_fallthru
    _
  // Predicated region
  $region34: #{spatial_mamba_block.13} parent=0 // pred_check
    _
  $region35: #{spatial_mamba_block.13} parent=0 // pred_check_branch
    %31 = sbr.rel (0) target = $region37
  $region36: #{spatial_mamba_block.13} parent=0 // pred_region
    _
  $region37: #{spatial_mamba_block.13} parent=0 // pred_fallthru
    _
  %v32 = vld [vmem:[%s0] sm:$0xff]
  %v33 = vld [vmem:[%s0 + $0x8] sm:$0xff]
  %v34 = vld [vmem:[%s0 + $0x10] sm:$0xff]
  %v35 = vld [vmem:[%s0 + $0x18] sm:$0xff]
  %v36 = vld [vmem:[%s0 + $0x20] sm:$0xff]
  %v37 = vld [vmem:[%s0 + $0x28] sm:$0xff]
  %v38 = vld [vmem:[%s0 + $0x30] sm:$0xff]
  %v39 = vld [vmem:[%s0 + $0x38] sm:$0xff]
  %v40 = vld [vmem:[%s0 + $0x40] sm:$0xff]
  %v41 = vld [vmem:[%s0 + $0x48] sm:$0xff]
  %v42 = vld [vmem:[%s0 + $0x50] sm:$0xff]
  %v43 = vld [vmem:[%s0 + $0x58] sm:$0xff]
  %v44 = vld [vmem:[%s0 + $0x60] sm:$0xff]
  %v45 = vld [vmem:[%s0 + $0x68] sm:$0xff]
  %v46 = vld [vmem:[%s0 + $0x70] sm:$0xff]
  %v47 = vld [vmem:[%s0 + $0x78] sm:$0xff]
  %v48 = vld [vmem:[%s1] sm:$0xff]
  %v49 = vld [vmem:[%s1 + $0x8] sm:$0xff]
  %v50 = vld [vmem:[%s1 + $0x10] sm:$0xff]
  %v51 = vld [vmem:[%s1 + $0x18] sm:$0xff]
  %v52 = vld [vmem:[%s1 + $0x20] sm:$0xff]
  %v53 = vld [vmem:[%s1 + $0x28] sm:$0xff]
  %v54 = vld [vmem:[%s1 + $0x30] sm:$0xff]
  %v55 = vld [vmem:[%s1 + $0x38] sm:$0xff]
  %v56 = vld [vmem:[%s1 + $0x40] sm:$0xff]
  %v57 = vld [vmem:[%s1 + $0x48] sm:$0xff]
  %v58 = vld [vmem:[%s1 + $0x50] sm:$0xff]
  %v59 = vld [vmem:[%s1 + $0x58] sm:$0xff]
  %v60 = vld [vmem:[%s1 + $0x60] sm:$0xff]
  %v61 = vld [vmem:[%s1 + $0x68] sm:$0xff]
  %v62 = vld [vmem:[%s1 + $0x70] sm:$0xff]
  %v63 = vld [vmem:[%s1 + $0x78] sm:$0xff]
  %v64 = vld [vmem:[%s4] sm:$0x1]
  %v66 = vlaneseq
  %v67 = vshrl.u32 %v66, 7
  %v68 = vsub.s32 0, %v67
  %v69 = vrot.slane %v64, %v68
  %v71 = vmul.f32 %v48, %v69
  %v72 = vmul.f32 %v49, %v69
  %v73 = vmul.f32 %v50, %v69
  %v74 = vmul.f32 %v51, %v69
  %v75 = vmul.f32 %v52, %v69
  %v76 = vmul.f32 %v53, %v69
  %v77 = vmul.f32 %v54, %v69
  %v78 = vmul.f32 %v55, %v69
  %v79 = vmul.f32 %v56, %v69
  %v80 = vmul.f32 %v57, %v69
  %v81 = vmul.f32 %v58, %v69
  %v82 = vmul.f32 %v59, %v69
  %v83 = vmul.f32 %v60, %v69
  %v84 = vmul.f32 %v61, %v69
  %v85 = vmul.f32 %v62, %v69
  %v86 = vmul.f32 %v63, %v69
  %vm87 = vcmask 523264
  %v88 = vsel %vm87, %v71, 0.0
  %89 = vadd.xlane.f32.xlu0 %v88
  %v90 = vpop.xlane.xlu0 %89
  %v91 = vsel %vm87, %v72, 0.0
  %92 = vadd.xlane.f32.xlu0 %v91
  %v93 = vpop.xlane.xlu0 %92
  %v94 = vsel %vm87, %v73, 0.0
  %95 = vadd.xlane.f32.xlu0 %v94
  %v96 = vpop.xlane.xlu0 %95
  %v97 = vsel %vm87, %v74, 0.0
  %98 = vadd.xlane.f32.xlu0 %v97
  %v99 = vpop.xlane.xlu0 %98
  %v100 = vsel %vm87, %v75, 0.0
  %101 = vadd.xlane.f32.xlu0 %v100
  %v102 = vpop.xlane.xlu0 %101
  %v103 = vsel %vm87, %v76, 0.0
  %104 = vadd.xlane.f32.xlu0 %v103
  %v105 = vpop.xlane.xlu0 %104
  %v106 = vsel %vm87, %v77, 0.0
  %107 = vadd.xlane.f32.xlu0 %v106
  %v108 = vpop.xlane.xlu0 %107
  %v109 = vsel %vm87, %v78, 0.0
  %110 = vadd.xlane.f32.xlu0 %v109
  %v111 = vpop.xlane.xlu0 %110
  %v112 = vsel %vm87, %v79, 0.0
  %113 = vadd.xlane.f32.xlu0 %v112
  %v114 = vpop.xlane.xlu0 %113
  %v115 = vsel %vm87, %v80, 0.0
  %116 = vadd.xlane.f32.xlu0 %v115
  %v117 = vpop.xlane.xlu0 %116
  %v118 = vsel %vm87, %v81, 0.0
  %119 = vadd.xlane.f32.xlu0 %v118
  %v120 = vpop.xlane.xlu0 %119
  %v121 = vsel %vm87, %v82, 0.0
  %122 = vadd.xlane.f32.xlu0 %v121
  %v123 = vpop.xlane.xlu0 %122
  %v124 = vsel %vm87, %v83, 0.0
  %125 = vadd.xlane.f32.xlu0 %v124
  %v126 = vpop.xlane.xlu0 %125
  %v127 = vsel %vm87, %v84, 0.0
  %128 = vadd.xlane.f32.xlu0 %v127
  %v129 = vpop.xlane.xlu0 %128
  %v130 = vsel %vm87, %v85, 0.0
  %131 = vadd.xlane.f32.xlu0 %v130
  %v132 = vpop.xlane.xlu0 %131
  %v133 = vsel %vm87, %v86, 0.0
  %134 = vadd.xlane.f32.xlu0 %v133
  %v135 = vpop.xlane.xlu0 %134
  %v136 = vmul.f32 %v32, %v90
  %v137 = vmul.f32 %v33, %v93
  %v138 = vmul.f32 %v34, %v96
  %v139 = vmul.f32 %v35, %v99
  %v140 = vmul.f32 %v36, %v102
  %v141 = vmul.f32 %v37, %v105
  %v142 = vmul.f32 %v38, %v108
  %v143 = vmul.f32 %v39, %v111
  %v144 = vmul.f32 %v40, %v114
  %v145 = vmul.f32 %v41, %v117
  %v146 = vmul.f32 %v42, %v120
  %v147 = vmul.f32 %v43, %v123
  %v148 = vmul.f32 %v44, %v126
  %v149 = vmul.f32 %v45, %v129
  %v150 = vmul.f32 %v46, %v132
  %v151 = vmul.f32 %v47, %v135
  %v152 = vld [vmem:[%s5] sm:$0x1]
  %v154 = vlaneseq
  %v155 = vshrl.u32 %v154, 7
  %v156 = vsub.s32 0, %v155
  %v157 = vrot.slane %v152, %v156
  %v159 = vmul.f32 %v48, %v157
  %v160 = vmul.f32 %v49, %v157
  %v161 = vmul.f32 %v50, %v157
  %v162 = vmul.f32 %v51, %v157
  %v163 = vmul.f32 %v52, %v157
  %v164 = vmul.f32 %v53, %v157
  %v165 = vmul.f32 %v54, %v157
  %v166 = vmul.f32 %v55, %v157
  %v167 = vmul.f32 %v56, %v157
  %v168 = vmul.f32 %v57, %v157
  %v169 = vmul.f32 %v58, %v157
  %v170 = vmul.f32 %v59, %v157
  %v171 = vmul.f32 %v60, %v157
  %v172 = vmul.f32 %v61, %v157
  %v173 = vmul.f32 %v62, %v157
  %v174 = vmul.f32 %v63, %v157
  %v175 = vadd.f32 %v136, %v159
  %v176 = vadd.f32 %v137, %v160
  %v177 = vadd.f32 %v138, %v161
  %v178 = vadd.f32 %v139, %v162
  %v179 = vadd.f32 %v140, %v163
  %v180 = vadd.f32 %v141, %v164
  %v181 = vadd.f32 %v142, %v165
  %v182 = vadd.f32 %v143, %v166
  %v183 = vadd.f32 %v144, %v167
  %v184 = vadd.f32 %v145, %v168
  %v185 = vadd.f32 %v146, %v169
  %v186 = vadd.f32 %v147, %v170
  %v187 = vadd.f32 %v148, %v171
  %v188 = vadd.f32 %v149, %v172
  %v189 = vadd.f32 %v150, %v173
  %v190 = vadd.f32 %v151, %v174
  %v191 = vsel %vm87, %v175, 0.0
  %192 = vadd.xlane.f32.xlu0 %v191
  %v193 = vpop.xlane.xlu0 %192
  %v194 = vsel %vm87, %v176, 0.0
  %195 = vadd.xlane.f32.xlu0 %v194
  %v196 = vpop.xlane.xlu0 %195
  %v197 = vsel %vm87, %v177, 0.0
  %198 = vadd.xlane.f32.xlu0 %v197
  %v199 = vpop.xlane.xlu0 %198
  %v200 = vsel %vm87, %v178, 0.0
  %201 = vadd.xlane.f32.xlu0 %v200
  %v202 = vpop.xlane.xlu0 %201
  %v203 = vsel %vm87, %v179, 0.0
  %204 = vadd.xlane.f32.xlu0 %v203
  %v205 = vpop.xlane.xlu0 %204
  %v206 = vsel %vm87, %v180, 0.0
  %207 = vadd.xlane.f32.xlu0 %v206
  %v208 = vpop.xlane.xlu0 %207
  %v209 = vsel %vm87, %v181, 0.0
  %210 = vadd.xlane.f32.xlu0 %v209
  %v211 = vpop.xlane.xlu0 %210
  %v212 = vsel %vm87, %v182, 0.0
  %213 = vadd.xlane.f32.xlu0 %v212
  %v214 = vpop.xlane.xlu0 %213
  %v215 = vsel %vm87, %v183, 0.0
  %216 = vadd.xlane.f32.xlu0 %v215
  %v217 = vpop.xlane.xlu0 %216
  %v218 = vsel %vm87, %v184, 0.0
  %219 = vadd.xlane.f32.xlu0 %v218
  %v220 = vpop.xlane.xlu0 %219
  %v221 = vsel %vm87, %v185, 0.0
  %222 = vadd.xlane.f32.xlu0 %v221
  %v223 = vpop.xlane.xlu0 %222
  %v224 = vsel %vm87, %v186, 0.0
  %225 = vadd.xlane.f32.xlu0 %v224
  %v226 = vpop.xlane.xlu0 %225
  %v227 = vsel %vm87, %v187, 0.0
  %228 = vadd.xlane.f32.xlu0 %v227
  %v229 = vpop.xlane.xlu0 %228
  %v230 = vsel %vm87, %v188, 0.0
  %231 = vadd.xlane.f32.xlu0 %v230
  %v232 = vpop.xlane.xlu0 %231
  %v233 = vsel %vm87, %v189, 0.0
  %234 = vadd.xlane.f32.xlu0 %v233
  %v235 = vpop.xlane.xlu0 %234
  %v236 = vsel %vm87, %v190, 0.0
  %237 = vadd.xlane.f32.xlu0 %v236
  %v238 = vpop.xlane.xlu0 %237
  %v239 = vrcp.pop 64.0
  %v240 = vmul.f32 %v193, %v239
  %v241 = vmul.f32 %v196, %v239
  %v242 = vmul.f32 %v199, %v239
  %v243 = vmul.f32 %v202, %v239
  %v244 = vmul.f32 %v205, %v239
  %v245 = vmul.f32 %v208, %v239
  %v246 = vmul.f32 %v211, %v239
  %v247 = vmul.f32 %v214, %v239
  %v248 = vmul.f32 %v217, %v239
  %v249 = vmul.f32 %v220, %v239
  %v250 = vmul.f32 %v223, %v239
  %v251 = vmul.f32 %v226, %v239
  %v252 = vmul.f32 %v229, %v239
  %v253 = vmul.f32 %v232, %v239
  %v254 = vmul.f32 %v235, %v239
  %v255 = vmul.f32 %v238, %v239
  %v256 = vsub.f32 %v175, %v240
  %v257 = vsub.f32 %v176, %v241
  %v258 = vsub.f32 %v177, %v242
  %v259 = vsub.f32 %v178, %v243
  %v260 = vsub.f32 %v179, %v244
  %v261 = vsub.f32 %v180, %v245
  %v262 = vsub.f32 %v181, %v246
  %v263 = vsub.f32 %v182, %v247
  %v264 = vsub.f32 %v183, %v248
  %v265 = vsub.f32 %v184, %v249
  %v266 = vsub.f32 %v185, %v250
  %v267 = vsub.f32 %v186, %v251
  %v268 = vsub.f32 %v187, %v252
  %v269 = vsub.f32 %v188, %v253
  %v270 = vsub.f32 %v189, %v254
  %v271 = vsub.f32 %v190, %v255
  %v272 = vmul.f32 %v256, %v256
  %v273 = vmul.f32 %v257, %v257
  %v274 = vmul.f32 %v258, %v258
  %v275 = vmul.f32 %v259, %v259
  %v276 = vmul.f32 %v260, %v260
  %v277 = vmul.f32 %v261, %v261
  %v278 = vmul.f32 %v262, %v262
  %v279 = vmul.f32 %v263, %v263
  %v280 = vmul.f32 %v264, %v264
  %v281 = vmul.f32 %v265, %v265
  %v282 = vmul.f32 %v266, %v266
  %v283 = vmul.f32 %v267, %v267
  %v284 = vmul.f32 %v268, %v268
  %v285 = vmul.f32 %v269, %v269
  %v286 = vmul.f32 %v270, %v270
  %v287 = vmul.f32 %v271, %v271
  %v288 = vsel %vm87, %v272, 0.0
  %289 = vadd.xlane.f32.xlu0 %v288
  %v290 = vpop.xlane.xlu0 %289
  %v291 = vsel %vm87, %v273, 0.0
  %292 = vadd.xlane.f32.xlu0 %v291
  %v293 = vpop.xlane.xlu0 %292
  %v294 = vsel %vm87, %v274, 0.0
  %295 = vadd.xlane.f32.xlu0 %v294
  %v296 = vpop.xlane.xlu0 %295
  %v297 = vsel %vm87, %v275, 0.0
  %298 = vadd.xlane.f32.xlu0 %v297
  %v299 = vpop.xlane.xlu0 %298
  %v300 = vsel %vm87, %v276, 0.0
  %301 = vadd.xlane.f32.xlu0 %v300
  %v302 = vpop.xlane.xlu0 %301
  %v303 = vsel %vm87, %v277, 0.0
  %304 = vadd.xlane.f32.xlu0 %v303
  %v305 = vpop.xlane.xlu0 %304
  %v306 = vsel %vm87, %v278, 0.0
  %307 = vadd.xlane.f32.xlu0 %v306
  %v308 = vpop.xlane.xlu0 %307
  %v309 = vsel %vm87, %v279, 0.0
  %310 = vadd.xlane.f32.xlu0 %v309
  %v311 = vpop.xlane.xlu0 %310
  %v312 = vsel %vm87, %v280, 0.0
  %313 = vadd.xlane.f32.xlu0 %v312
  %v314 = vpop.xlane.xlu0 %313
  %v315 = vsel %vm87, %v281, 0.0
  %316 = vadd.xlane.f32.xlu0 %v315
  %v317 = vpop.xlane.xlu0 %316
  %v318 = vsel %vm87, %v282, 0.0
  %319 = vadd.xlane.f32.xlu0 %v318
  %v320 = vpop.xlane.xlu0 %319
  %v321 = vsel %vm87, %v283, 0.0
  %322 = vadd.xlane.f32.xlu0 %v321
  %v323 = vpop.xlane.xlu0 %322
  %v324 = vsel %vm87, %v284, 0.0
  %325 = vadd.xlane.f32.xlu0 %v324
  %v326 = vpop.xlane.xlu0 %325
  %v327 = vsel %vm87, %v285, 0.0
  %328 = vadd.xlane.f32.xlu0 %v327
  %v329 = vpop.xlane.xlu0 %328
  %v330 = vsel %vm87, %v286, 0.0
  %331 = vadd.xlane.f32.xlu0 %v330
  %v332 = vpop.xlane.xlu0 %331
  %v333 = vsel %vm87, %v287, 0.0
  %334 = vadd.xlane.f32.xlu0 %v333
  %v335 = vpop.xlane.xlu0 %334
  %v336 = vmul.f32 %v290, %v239
  %v337 = vmul.f32 %v293, %v239
  %v338 = vmul.f32 %v296, %v239
  %v339 = vmul.f32 %v299, %v239
  %v340 = vmul.f32 %v302, %v239
  %v341 = vmul.f32 %v305, %v239
  %v342 = vmul.f32 %v308, %v239
  %v343 = vmul.f32 %v311, %v239
  %v344 = vmul.f32 %v314, %v239
  %v345 = vmul.f32 %v317, %v239
  %v346 = vmul.f32 %v320, %v239
  %v347 = vmul.f32 %v323, %v239
  %v348 = vmul.f32 %v326, %v239
  %v349 = vmul.f32 %v329, %v239
  %v350 = vmul.f32 %v332, %v239
  %v351 = vmul.f32 %v335, %v239
  %v352 = vadd.f32 %v336, 1e-05
  %v353 = vadd.f32 %v337, 1e-05
  %v354 = vadd.f32 %v338, 1e-05
  %v355 = vadd.f32 %v339, 1e-05
  %v356 = vadd.f32 %v340, 1e-05
  %v357 = vadd.f32 %v341, 1e-05
  %v358 = vadd.f32 %v342, 1e-05
  %v359 = vadd.f32 %v343, 1e-05
  %v360 = vadd.f32 %v344, 1e-05
  %v361 = vadd.f32 %v345, 1e-05
  %v362 = vadd.f32 %v346, 1e-05
  %v363 = vadd.f32 %v347, 1e-05
  %v364 = vadd.f32 %v348, 1e-05
  %v365 = vadd.f32 %v349, 1e-05
  %v366 = vadd.f32 %v350, 1e-05
  %v367 = vadd.f32 %v351, 1e-05
  %v368 = vrsqrt.pop %v352
  %v369 = vrsqrt.pop %v353
  %v370 = vrsqrt.pop %v354
  %v371 = vrsqrt.pop %v355
  %v372 = vrsqrt.pop %v356
  %v373 = vrsqrt.pop %v357
  %v374 = vrsqrt.pop %v358
  %v375 = vrsqrt.pop %v359
  %v376 = vrsqrt.pop %v360
  %v377 = vrsqrt.pop %v361
  %v378 = vrsqrt.pop %v362
  %v379 = vrsqrt.pop %v363
  %v380 = vrsqrt.pop %v364
  %v381 = vrsqrt.pop %v365
  %v382 = vrsqrt.pop %v366
  %v383 = vrsqrt.pop %v367
  %v384 = vmul.f32 %v256, %v368
  %v385 = vmul.f32 %v257, %v369
  %v386 = vmul.f32 %v258, %v370
  %v387 = vmul.f32 %v259, %v371
  %v388 = vmul.f32 %v260, %v372
  %v389 = vmul.f32 %v261, %v373
  %v390 = vmul.f32 %v262, %v374
  %v391 = vmul.f32 %v263, %v375
  %v392 = vmul.f32 %v264, %v376
  %v393 = vmul.f32 %v265, %v377
  %v394 = vmul.f32 %v266, %v378
  %v395 = vmul.f32 %v267, %v379
  %v396 = vmul.f32 %v268, %v380
  %v397 = vmul.f32 %v269, %v381
  %v398 = vmul.f32 %v270, %v382
  %v399 = vmul.f32 %v271, %v383
  %v400 = vld [vmem:[%s6] sm:$0x1]
  %v402 = vlaneseq
  %v403 = vshrl.u32 %v402, 7
  %v404 = vsub.s32 0, %v403
  %v405 = vrot.slane %v400, %v404
  %v407 = vmul.f32 %v384, %v405
  %v408 = vmul.f32 %v385, %v405
  %v409 = vmul.f32 %v386, %v405
  %v410 = vmul.f32 %v387, %v405
  %v411 = vmul.f32 %v388, %v405
  %v412 = vmul.f32 %v389, %v405
  %v413 = vmul.f32 %v390, %v405
  %v414 = vmul.f32 %v391, %v405
  %v415 = vmul.f32 %v392, %v405
  %v416 = vmul.f32 %v393, %v405
  %v417 = vmul.f32 %v394, %v405
  %v418 = vmul.f32 %v395, %v405
  %v419 = vmul.f32 %v396, %v405
  %v420 = vmul.f32 %v397, %v405
  %v421 = vmul.f32 %v398, %v405
  %v422 = vmul.f32 %v399, %v405
  %v423 = vld [vmem:[%s7] sm:$0x1]
  %v425 = vlaneseq
  %v426 = vshrl.u32 %v425, 7
  %v427 = vsub.s32 0, %v426
  %v428 = vrot.slane %v423, %v427
  %v430 = vadd.f32 %v407, %v428
  %v431 = vadd.f32 %v408, %v428
  %v432 = vadd.f32 %v409, %v428
  %v433 = vadd.f32 %v410, %v428
  %v434 = vadd.f32 %v411, %v428
  %v435 = vadd.f32 %v412, %v428
  %v436 = vadd.f32 %v413, %v428
  %v437 = vadd.f32 %v414, %v428
  %v438 = vadd.f32 %v415, %v428
  %v439 = vadd.f32 %v416, %v428
  %v440 = vadd.f32 %v417, %v428
  %v441 = vadd.f32 %v418, %v428
  %v442 = vadd.f32 %v419, %v428
  %v443 = vadd.f32 %v420, %v428
  %v444 = vadd.f32 %v421, %v428
  %v445 = vadd.f32 %v422, %v428
  %v446 = vld [vmem:[%s2] sm:$0xff]
  %v447 = vld [vmem:[%s2 + $0x8] sm:$0xff]
  %v448 = vld [vmem:[%s2 + $0x10] sm:$0xff]
  %v449 = vld [vmem:[%s2 + $0x18] sm:$0xff]
  %v450 = vld [vmem:[%s2 + $0x20] sm:$0xff]
  %v451 = vld [vmem:[%s2 + $0x28] sm:$0xff]
  %v452 = vld [vmem:[%s2 + $0x30] sm:$0xff]
  %v453 = vld [vmem:[%s2 + $0x38] sm:$0xff]
  %v454 = vld [vmem:[%s2 + $0x40] sm:$0xff]
  %v455 = vld [vmem:[%s2 + $0x48] sm:$0xff]
  %v456 = vld [vmem:[%s2 + $0x50] sm:$0xff]
  %v457 = vld [vmem:[%s2 + $0x58] sm:$0xff]
  %v458 = vld [vmem:[%s2 + $0x60] sm:$0xff]
  %v459 = vld [vmem:[%s2 + $0x68] sm:$0xff]
  %v460 = vld [vmem:[%s2 + $0x70] sm:$0xff]
  %v461 = vld [vmem:[%s2 + $0x78] sm:$0xff]
  %v462 = vxor.u32 %v446, 2147483648
  %v463 = vxor.u32 %v447, 2147483648
  %v464 = vxor.u32 %v448, 2147483648
  %v465 = vxor.u32 %v449, 2147483648
  %v466 = vxor.u32 %v450, 2147483648
  %v467 = vxor.u32 %v451, 2147483648
  %v468 = vxor.u32 %v452, 2147483648
  %v469 = vxor.u32 %v453, 2147483648
  %v470 = vxor.u32 %v454, 2147483648
  %v471 = vxor.u32 %v455, 2147483648
  %v472 = vxor.u32 %v456, 2147483648
  %v473 = vxor.u32 %v457, 2147483648
  %v474 = vxor.u32 %v458, 2147483648
  %v475 = vxor.u32 %v459, 2147483648
  %v476 = vxor.u32 %v460, 2147483648
  %v477 = vxor.u32 %v461, 2147483648
  %v478 = vmul.f32 %v462, 1.442695
  %v479 = vpow.pop %v478
  %v480 = vmul.f32 %v463, 1.442695
  %v481 = vpow.pop %v480
  %v482 = vmul.f32 %v464, 1.442695
  %v483 = vpow.pop %v482
  %v484 = vmul.f32 %v465, 1.442695
  %v485 = vpow.pop %v484
  %v486 = vmul.f32 %v466, 1.442695
  %v487 = vpow.pop %v486
  %v488 = vmul.f32 %v467, 1.442695
  %v489 = vpow.pop %v488
  %v490 = vmul.f32 %v468, 1.442695
  %v491 = vpow.pop %v490
  %v492 = vmul.f32 %v469, 1.442695
  %v493 = vpow.pop %v492
  %v494 = vmul.f32 %v470, 1.442695
  %v495 = vpow.pop %v494
  %v496 = vmul.f32 %v471, 1.442695
  %v497 = vpow.pop %v496
  %v498 = vmul.f32 %v472, 1.442695
  %v499 = vpow.pop %v498
  %v500 = vmul.f32 %v473, 1.442695
  %v501 = vpow.pop %v500
  %v502 = vmul.f32 %v474, 1.442695
  %v503 = vpow.pop %v502
  %v504 = vmul.f32 %v475, 1.442695
  %v505 = vpow.pop %v504
  %v506 = vmul.f32 %v476, 1.442695
  %v507 = vpow.pop %v506
  %v508 = vmul.f32 %v477, 1.442695
  %v509 = vpow.pop %v508
  %v510 = vadd.f32 %v479, 1.0
  %v511 = vadd.f32 %v481, 1.0
  %v512 = vadd.f32 %v483, 1.0
  %v513 = vadd.f32 %v485, 1.0
  %v514 = vadd.f32 %v487, 1.0
  %v515 = vadd.f32 %v489, 1.0
  %v516 = vadd.f32 %v491, 1.0
  %v517 = vadd.f32 %v493, 1.0
  %v518 = vadd.f32 %v495, 1.0
  %v519 = vadd.f32 %v497, 1.0
  %v520 = vadd.f32 %v499, 1.0
  %v521 = vadd.f32 %v501, 1.0
  %v522 = vadd.f32 %v503, 1.0
  %v523 = vadd.f32 %v505, 1.0
  %v524 = vadd.f32 %v507, 1.0
  %v525 = vadd.f32 %v509, 1.0
  %v526 = vrcp.pop %v510
  %v527 = vmul.f32 1.0, %v526
  %v528 = vrcp.pop %v511
  %v529 = vmul.f32 1.0, %v528
  %v530 = vrcp.pop %v512
  %v531 = vmul.f32 1.0, %v530
  %v532 = vrcp.pop %v513
  %v533 = vmul.f32 1.0, %v532
  %v534 = vrcp.pop %v514
  %v535 = vmul.f32 1.0, %v534
  %v536 = vrcp.pop %v515
  %v537 = vmul.f32 1.0, %v536
  %v538 = vrcp.pop %v516
  %v539 = vmul.f32 1.0, %v538
  %v540 = vrcp.pop %v517
  %v541 = vmul.f32 1.0, %v540
  %v542 = vrcp.pop %v518
  %v543 = vmul.f32 1.0, %v542
  %v544 = vrcp.pop %v519
  %v545 = vmul.f32 1.0, %v544
  %v546 = vrcp.pop %v520
  %v547 = vmul.f32 1.0, %v546
  %v548 = vrcp.pop %v521
  %v549 = vmul.f32 1.0, %v548
  %v550 = vrcp.pop %v522
  %v551 = vmul.f32 1.0, %v550
  %v552 = vrcp.pop %v523
  %v553 = vmul.f32 1.0, %v552
  %v554 = vrcp.pop %v524
  %v555 = vmul.f32 1.0, %v554
  %v556 = vrcp.pop %v525
  %v557 = vmul.f32 1.0, %v556
  %v558 = vmul.f32 %v446, %v527
  %v559 = vmul.f32 %v447, %v529
  %v560 = vmul.f32 %v448, %v531
  %v561 = vmul.f32 %v449, %v533
  %v562 = vmul.f32 %v450, %v535
  %v563 = vmul.f32 %v451, %v537
  %v564 = vmul.f32 %v452, %v539
  %v565 = vmul.f32 %v453, %v541
  %v566 = vmul.f32 %v454, %v543
  %v567 = vmul.f32 %v455, %v545
  %v568 = vmul.f32 %v456, %v547
  %v569 = vmul.f32 %v457, %v549
  %v570 = vmul.f32 %v458, %v551
  %v571 = vmul.f32 %v459, %v553
  %v572 = vmul.f32 %v460, %v555
  %v573 = vmul.f32 %v461, %v557
  %v574 = vmul.f32 %v430, %v558
  %v575 = vmul.f32 %v431, %v559
  %v576 = vmul.f32 %v432, %v560
  %v577 = vmul.f32 %v433, %v561
  %v578 = vmul.f32 %v434, %v562
  %v579 = vmul.f32 %v435, %v563
  %v580 = vmul.f32 %v436, %v564
  %v581 = vmul.f32 %v437, %v565
  %v582 = vmul.f32 %v438, %v566
  %v583 = vmul.f32 %v439, %v567
  %v584 = vmul.f32 %v440, %v568
  %v585 = vmul.f32 %v441, %v569
  %v586 = vmul.f32 %v442, %v570
  %v587 = vmul.f32 %v443, %v571
  %v588 = vmul.f32 %v444, %v572
  %v589 = vmul.f32 %v445, %v573
  %v590 = vld [vmem:[%s3] sm:$0xff]
  %v591 = vld [vmem:[%s3 + $0x8] sm:$0xff]
  %v592 = vld [vmem:[%s3 + $0x10] sm:$0xff]
  %v593 = vld [vmem:[%s3 + $0x18] sm:$0xff]
  %v594 = vld [vmem:[%s3 + $0x20] sm:$0xff]
  %v595 = vld [vmem:[%s3 + $0x28] sm:$0xff]
  %v596 = vld [vmem:[%s3 + $0x30] sm:$0xff]
  %v597 = vld [vmem:[%s3 + $0x38] sm:$0xff]
  %v598 = vld [vmem:[%s3 + $0x40] sm:$0xff]
  %v599 = vld [vmem:[%s3 + $0x48] sm:$0xff]
  %v600 = vld [vmem:[%s3 + $0x50] sm:$0xff]
  %v601 = vld [vmem:[%s3 + $0x58] sm:$0xff]
  %v602 = vld [vmem:[%s3 + $0x60] sm:$0xff]
  %v603 = vld [vmem:[%s3 + $0x68] sm:$0xff]
  %v604 = vld [vmem:[%s3 + $0x70] sm:$0xff]
  %v605 = vld [vmem:[%s3 + $0x78] sm:$0xff]
  %v606 = vld [vmem:[%s8] sm:$0xff]
  %v607 = vld [vmem:[%s8 + $0x8] sm:$0xff]
  %v608 = vld [vmem:[%s8 + $0x10] sm:$0xff]
  %v609 = vld [vmem:[%s8 + $0x18] sm:$0xff]
  %v610 = vld [vmem:[%s8 + $0x20] sm:$0xff]
  %v611 = vld [vmem:[%s8 + $0x28] sm:$0xff]
  %v612 = vld [vmem:[%s8 + $0x30] sm:$0xff]
  %v613 = vld [vmem:[%s8 + $0x38] sm:$0xff]
  %v615 = vsel %vm87, %v574, 0
  %v618 = vsel %vm87, %v575, 0
  %v621 = vsel %vm87, %v576, 0
  %v624 = vsel %vm87, %v577, 0
  %v627 = vsel %vm87, %v578, 0
  %v630 = vsel %vm87, %v579, 0
  %v633 = vsel %vm87, %v580, 0
  %v636 = vsel %vm87, %v581, 0
  %v639 = vsel %vm87, %v582, 0
  %v642 = vsel %vm87, %v583, 0
  %v645 = vsel %vm87, %v584, 0
  %v648 = vsel %vm87, %v585, 0
  %v651 = vsel %vm87, %v586, 0
  %v654 = vsel %vm87, %v587, 0
  %v657 = vsel %vm87, %v588, 0
  %v660 = vsel %vm87, %v589, 0
  %662 = vmatprep.subr.mxu0 0.0
  %663 = vmatpush1.msra.mxu0 0.0
  %664 = vmatprep.subr.mxu0 0.0
  %665 = vmatpush1.msra.mxu0 0.0
  %666 = vmatprep.subr.mxu0 0.0
  %667 = vmatpush1.msra.mxu0 0.0
  %668 = vmatprep.subr.mxu0 0.0
  %669 = vmatpush1.msra.mxu0 0.0
  %670 = vmatprep.subr.mxu0 0.0
  %671 = vmatpush1.msra.mxu0 0.0
  %672 = vmatprep.subr.mxu0 0.0
  %673 = vmatpush1.msra.mxu0 0.0
  %674 = vmatprep.subr.mxu0 0.0
  %675 = vmatpush1.msra.mxu0 0.0
  %676 = vmatprep.subr.mxu0 0.0
  %677 = vmatpush1.msra.mxu0 0.0
  %678 = vmatprep.subr.mxu0 0.0
  %679 = vmatpush1.msra.mxu0 %v613
  %680 = vmatprep.subr.mxu0 0.0
  %681 = vmatpush1.msra.mxu0 %v612
  %682 = vmatprep.subr.mxu0 0.0
  %683 = vmatpush1.msra.mxu0 %v611
  %684 = vmatprep.subr.mxu0 0.0
  %685 = vmatpush1.msra.mxu0 %v610
  %686 = vmatprep.subr.mxu0 0.0
  %687 = vmatpush1.msra.mxu0 %v609
  %688 = vmatprep.subr.mxu0 0.0
  %689 = vmatpush1.msra.mxu0 %v608
  %690 = vmatprep.subr.mxu0 0.0
  %691 = vmatpush1.msra.mxu0 %v607
  %692 = vmatprep.subr.mxu0 0.0
  %693 = vmatpush1.msra.mxu0 %v606
  %694 = vmatprep.subr.mxu0 0.0
  %695 = vmatpush2.msra.mxu0 0.0
  %696 = vmatprep.subr.mxu0 0.0
  %697 = vmatpush2.msra.mxu0 0.0
  %698 = vmatprep.subr.mxu0 0.0
  %699 = vmatpush2.msra.mxu0 0.0
  %700 = vmatprep.subr.mxu0 0.0
  %701 = vmatpush2.msra.mxu0 0.0
  %702 = vmatprep.subr.mxu0 0.0
  %703 = vmatpush2.msra.mxu0 0.0
  %704 = vmatprep.subr.mxu0 0.0
  %705 = vmatpush2.msra.mxu0 0.0
  %706 = vmatprep.subr.mxu0 0.0
  %707 = vmatpush2.msra.mxu0 0.0
  %708 = vmatprep.subr.mxu0 0.0
  %709 = vmatpush2.msra.mxu0 0.0
  %710 = vmatprep.subr.mxu0 0.0
  %711 = vmatpush2.msra.mxu0 0.0
  %712 = vmatprep.subr.mxu0 0.0
  %713 = vmatpush2.msra.mxu0 0.0
  %714 = vmatprep.subr.mxu0 0.0
  %715 = vmatpush2.msra.mxu0 0.0
  %716 = vmatprep.subr.mxu0 0.0
  %717 = vmatpush2.msra.mxu0 0.0
  %718 = vmatprep.subr.mxu0 0.0
  %719 = vmatpush2.msra.mxu0 0.0
  %720 = vmatprep.subr.mxu0 0.0
  %721 = vmatpush2.msra.mxu0 0.0
  %722 = vmatprep.subr.mxu0 0.0
  %723 = vmatpush2.msra.mxu0 0.0
  %724 = vmatprep.subr.mxu0 0.0
  %725 = vmatpush2.msra.mxu0 0.0
  %726 = vmatprep.mubr.f32.mxu0 0.0
  %727 = vmatmul.mubr.f32.gmra.mxu0 %v615
  %v728 = vpop.f32.mrf.mxu0
  %v729 = vadd.f32 0.0, %v728
  %v730 = vpop.f32.mrf.mxu0
  %731 = vmatprep.mubr.f32.mxu0 0.0
  %732 = vmatmul.mubr.f32.gmra.mxu0 %v618
  %v733 = vpop.f32.mrf.mxu0
  %v734 = vadd.f32 0.0, %v733
  %v735 = vpop.f32.mrf.mxu0
  %736 = vmatprep.mubr.f32.mxu0 0.0
  %737 = vmatmul.mubr.f32.gmra.mxu0 %v621
  %v738 = vpop.f32.mrf.mxu0
  %v739 = vadd.f32 0.0, %v738
  %v740 = vpop.f32.mrf.mxu0
  %741 = vmatprep.mubr.f32.mxu0 0.0
  %742 = vmatmul.mubr.f32.gmra.mxu0 %v624
  %v743 = vpop.f32.mrf.mxu0
  %v744 = vadd.f32 0.0, %v743
  %v745 = vpop.f32.mrf.mxu0
  %746 = vmatprep.mubr.f32.mxu0 0.0
  %747 = vmatmul.mubr.f32.gmra.mxu0 %v627
  %v748 = vpop.f32.mrf.mxu0
  %v749 = vadd.f32 0.0, %v748
  %v750 = vpop.f32.mrf.mxu0
  %751 = vmatprep.mubr.f32.mxu0 0.0
  %752 = vmatmul.mubr.f32.gmra.mxu0 %v630
  %v753 = vpop.f32.mrf.mxu0
  %v754 = vadd.f32 0.0, %v753
  %v755 = vpop.f32.mrf.mxu0
  %756 = vmatprep.mubr.f32.mxu0 0.0
  %757 = vmatmul.mubr.f32.gmra.mxu0 %v633
  %v758 = vpop.f32.mrf.mxu0
  %v759 = vadd.f32 0.0, %v758
  %v760 = vpop.f32.mrf.mxu0
  %761 = vmatprep.mubr.f32.mxu0 0.0
  %762 = vmatmul.mubr.f32.gmra.mxu0 %v636
  %v763 = vpop.f32.mrf.mxu0
  %v764 = vadd.f32 0.0, %v763
  %v765 = vpop.f32.mrf.mxu0
  %766 = vmatprep.mubr.f32.mxu0 0.0
  %767 = vmatmul.mubr.f32.gmra.mxu0 %v639
  %v768 = vpop.f32.mrf.mxu0
  %v769 = vadd.f32 0.0, %v768
  %v770 = vpop.f32.mrf.mxu0
  %771 = vmatprep.mubr.f32.mxu0 0.0
  %772 = vmatmul.mubr.f32.gmra.mxu0 %v642
  %v773 = vpop.f32.mrf.mxu0
  %v774 = vadd.f32 0.0, %v773
  %v775 = vpop.f32.mrf.mxu0
  %776 = vmatprep.mubr.f32.mxu0 0.0
  %777 = vmatmul.mubr.f32.gmra.mxu0 %v645
  %v778 = vpop.f32.mrf.mxu0
  %v779 = vadd.f32 0.0, %v778
  %v780 = vpop.f32.mrf.mxu0
  %781 = vmatprep.mubr.f32.mxu0 0.0
  %782 = vmatmul.mubr.f32.gmra.mxu0 %v648
  %v783 = vpop.f32.mrf.mxu0
  %v784 = vadd.f32 0.0, %v783
  %v785 = vpop.f32.mrf.mxu0
  %786 = vmatprep.mubr.f32.mxu0 0.0
  %787 = vmatmul.mubr.f32.gmra.mxu0 %v651
  %v788 = vpop.f32.mrf.mxu0
  %v789 = vadd.f32 0.0, %v788
  %v790 = vpop.f32.mrf.mxu0
  %791 = vmatprep.mubr.f32.mxu0 0.0
  %792 = vmatmul.mubr.f32.gmra.mxu0 %v654
  %v793 = vpop.f32.mrf.mxu0
  %v794 = vadd.f32 0.0, %v793
  %v795 = vpop.f32.mrf.mxu0
  %796 = vmatprep.mubr.f32.mxu0 0.0
  %797 = vmatmul.mubr.f32.gmra.mxu0 %v657
  %v798 = vpop.f32.mrf.mxu0
  %v799 = vadd.f32 0.0, %v798
  %v800 = vpop.f32.mrf.mxu0
  %801 = vmatprep.mubr.f32.mxu0 0.0
  %802 = vmatmul.mubr.f32.gmra.mxu0 %v660
  %v803 = vpop.f32.mrf.mxu0
  %v804 = vadd.f32 0.0, %v803
  %v805 = vpop.f32.mrf.mxu0
  %806 = vdwg.mxu0
  %v807 = vadd.f32 %v590, %v729
  %v808 = vadd.f32 %v591, %v734
  %v809 = vadd.f32 %v592, %v739
  %v810 = vadd.f32 %v593, %v744
  %v811 = vadd.f32 %v594, %v749
  %v812 = vadd.f32 %v595, %v754
  %v813 = vadd.f32 %v596, %v759
  %v814 = vadd.f32 %v597, %v764
  %v815 = vadd.f32 %v598, %v769
  %v816 = vadd.f32 %v599, %v774
  %v817 = vadd.f32 %v600, %v779
  %v818 = vadd.f32 %v601, %v784
  %v819 = vadd.f32 %v602, %v789
  %v820 = vadd.f32 %v603, %v794
  %v821 = vadd.f32 %v604, %v799
  %v822 = vadd.f32 %v605, %v804
  %vm823 = vcmask 261120
  %824 = vst.msk [vmem:[%s9] sm:$0xff] %vm823, %v807
  %825 = vst.msk [vmem:[%s9 + $0x8] sm:$0xff] %vm823, %v808
  %826 = vst.msk [vmem:[%s9 + $0x10] sm:$0xff] %vm823, %v809
  %827 = vst.msk [vmem:[%s9 + $0x18] sm:$0xff] %vm823, %v810
  %828 = vst.msk [vmem:[%s9 + $0x20] sm:$0xff] %vm823, %v811
  %829 = vst.msk [vmem:[%s9 + $0x28] sm:$0xff] %vm823, %v812
  %830 = vst.msk [vmem:[%s9 + $0x30] sm:$0xff] %vm823, %v813
  %831 = vst.msk [vmem:[%s9 + $0x38] sm:$0xff] %vm823, %v814
  %832 = vst.msk [vmem:[%s9 + $0x40] sm:$0xff] %vm823, %v815
  %833 = vst.msk [vmem:[%s9 + $0x48] sm:$0xff] %vm823, %v816
  %834 = vst.msk [vmem:[%s9 + $0x50] sm:$0xff] %vm823, %v817
  %835 = vst.msk [vmem:[%s9 + $0x58] sm:$0xff] %vm823, %v818
  %836 = vst.msk [vmem:[%s9 + $0x60] sm:$0xff] %vm823, %v819
  %837 = vst.msk [vmem:[%s9 + $0x68] sm:$0xff] %vm823, %v820
  %838 = vst.msk [vmem:[%s9 + $0x70] sm:$0xff] %vm823, %v821
  %839 = vst.msk [vmem:[%s9 + $0x78] sm:$0xff] %vm823, %v822
  // Predicated region
  $region38: #{spatial_mamba_block.13} parent=0 // pred_check
    _
  $region39: #{spatial_mamba_block.13} parent=0 // pred_check_branch
    %841 = sbr.rel (0) target = $region41
  $region40: #{spatial_mamba_block.13} parent=0 // pred_region
    _
  $region41: #{spatial_mamba_block.13} parent=0 // pred_fallthru
    _
  // Predicated region
  $region42: #{spatial_mamba_block.13} parent=0 // pred_check
    _
  $region43: #{spatial_mamba_block.13} parent=0 // pred_check_branch
    %843 = sbr.rel (0) target = $region45
  $region44: #{spatial_mamba_block.13} parent=0 // pred_region
    _
  $region45: #{spatial_mamba_block.13} parent=0 // pred_fallthru
    _

// kernel: spatial_mamba_block.12
$region0: #{spatial_mamba_block.12}
  #allocation0 [shape = 'u32[]', space=smem, size = 0x4, offset = 0x4, fixed_abs, tag = 'smem constant byte address 0x4 - core index']
  #allocation1 [shape = 'u32[144,128]{1,0:T(1,128)}', space=vmem, size = 0x12000, scoped, tag = 'internal scratch']
  %s0 = inlined_call_operand.vmem [shape: f32[2,18,18,64], index: 0, kind: input, shape index: {}]
  %s1 = inlined_call_operand.vmem [shape: f32[3,3,64], index: 1, kind: input, shape index: {}]
  %s2 = inlined_call_operand.vmem [shape: f32[3,3,64], index: 2, kind: input, shape index: {}]
  %s3 = inlined_call_operand.vmem [shape: f32[3,3,64], index: 3, kind: input, shape index: {}]
  %s4 = inlined_call_operand.vmem [shape: f32[2,8,8,64], index: 4, kind: output, shape index: {}]
  %s5 = sld [smem:[#allocation0]]
  $region49: #{spatial_mamba_block.12} parent=0
    _
  %s7 = ssub.s32 1, %s5
  %s8 = scalar_select 0, %s7, %s5
  loop: start=0, step=1, limit=4
  $region2: #{spatial_mamba_block.12} parent=0 // loop_pre_header
    _
  $region3: #{spatial_mamba_block.12} parent=0 // loop_header
    %s10 = sphi 0, %s14
    %p11 = scmp.ge.s32.totalorder %s10, 4
    %s20 = sphi 0, %s22
    %s23 = sphi 0, %s20
    %s24 = sphi 0, %s23
    %s40 = sphi 0, %s24
    %s44 = sphi 0, %s44
    %s46 = sphi 0, %s44
    %s47 = sphi 0, %s46
    %s61 = sphi 0, %s47
    %s65 = sphi 0, %s65
    %s67 = sphi 0, %s65
    %s68 = sphi 0, %s67
    %s82 = sphi 0, %s68
    %s86 = sphi 0, %s86
    %s88 = sphi 0, %s86
    %s89 = sphi 0, %s88
    %s103 = sphi 0, %s89
    %s109 = sphi 0, %s111
    %s112 = sphi 0, %s109
    %s113 = sphi 0, %s112
    %s129 = sphi 0, %s113
  $region4: #{spatial_mamba_block.12} parent=0 // loop_header_branch
    %13 = sbr.rel (%p11) target = $region8
  $region5: #{spatial_mamba_block.12} parent=0 // loop_body
    %s15 = ssub.s32 %s10, 1
    %s16 = ssub.s32 %s10, 2
    %s17 = sadd.s32 %s10, 1
    %s18 = ssub.s32 %s10, %s17
    %p19 = scmp.eq.s32.totalorder %s18, 0
    %s21 = sadd.s32 %s20, 1
    %s22 = scalar_select %p19, %s20, %s21
    %p25 = pneg %p19
    %p26 = scmp.eq.s32.totalorder %s10, 1
    %p27 = por %p25, %p26
    %p28 = scmp.ne.s32.totalorder %s20, %s23
    %p29 = scmp.eq.s32.totalorder %s10, 0
    %p30 = por %p28, %p29
    %p31 = scmp.ne.s32.totalorder %s20, %s23
    %p32 = scmp.eq.s32.totalorder %s15, 1
    %p33 = por %p31, %p32
    %p34 = scmp.ne.s32.totalorder %s23, %s24
    %p35 = scmp.eq.s32.totalorder %s15, 0
    %p36 = por %p34, %p35
    %p37 = scmp.ne.s32.totalorder %s23, %s24
    %p38 = scmp.eq.s32.totalorder %s16, 1
    %p39 = por %p37, %p38
    %p41 = scmp.ne.s32.totalorder %s24, %s40
    %p42 = scmp.eq.s32.totalorder %s16, 0
    %p43 = por %p41, %p42
    %s45 = sadd.s32 %s44, 1
    %p48 = scmp.eq.s32.totalorder %s10, 1
    %p49 = scmp.ne.s32.totalorder %s44, %s46
    %p50 = scmp.eq.s32.totalorder %s10, 0
    %p51 = por %p49, %p50
    %p52 = scmp.ne.s32.totalorder %s44, %s46
    %p53 = scmp.eq.s32.totalorder %s15, 1
    %p54 = por %p52, %p53
    %p55 = scmp.ne.s32.totalorder %s46, %s47
    %p56 = scmp.eq.s32.totalorder %s15, 0
    %p57 = por %p55, %p56
    %p58 = scmp.ne.s32.totalorder %s46, %s47
    %p59 = scmp.eq.s32.totalorder %s16, 1
    %p60 = por %p58, %p59
    %p62 = scmp.ne.s32.totalorder %s47, %s61
    %p63 = scmp.eq.s32.totalorder %s16, 0
    %p64 = por %p62, %p63
    %s66 = sadd.s32 %s65, 1
    %p69 = scmp.eq.s32.totalorder %s10, 1
    %p70 = scmp.ne.s32.totalorder %s65, %s67
    %p71 = scmp.eq.s32.totalorder %s10, 0
    %p72 = por %p70, %p71
    %p73 = scmp.ne.s32.totalorder %s65, %s67
    %p74 = scmp.eq.s32.totalorder %s15, 1
    %p75 = por %p73, %p74
    %p76 = scmp.ne.s32.totalorder %s67, %s68
    %p77 = scmp.eq.s32.totalorder %s15, 0
    %p78 = por %p76, %p77
    %p79 = scmp.ne.s32.totalorder %s67, %s68
    %p80 = scmp.eq.s32.totalorder %s16, 1
    %p81 = por %p79, %p80
    %p83 = scmp.ne.s32.totalorder %s68, %s82
    %p84 = scmp.eq.s32.totalorder %s16, 0
    %p85 = por %p83, %p84
    %s87 = sadd.s32 %s86, 1
    %p90 = scmp.eq.s32.totalorder %s10, 1
    %p91 = scmp.ne.s32.totalorder %s86, %s88
    %p92 = scmp.eq.s32.totalorder %s10, 0
    %p93 = por %p91, %p92
    %p94 = scmp.ne.s32.totalorder %s86, %s88
    %p95 = scmp.eq.s32.totalorder %s15, 1
    %p96 = por %p94, %p95
    %p97 = scmp.ne.s32.totalorder %s88, %s89
    %p98 = scmp.eq.s32.totalorder %s15, 0
    %p99 = por %p97, %p98
    %p100 = scmp.ne.s32.totalorder %s88, %s89
    %p101 = scmp.eq.s32.totalorder %s16, 1
    %p102 = por %p100, %p101
    %p104 = scmp.ne.s32.totalorder %s89, %s103
    %p105 = scmp.eq.s32.totalorder %s16, 0
    %p106 = por %p104, %p105
    %s107 = ssub.s32 %s10, %s17
    %p108 = scmp.eq.s32.totalorder %s107, 0
    %s110 = sadd.s32 %s109, 1
    %s111 = scalar_select %p108, %s109, %s110
    %p114 = pneg %p108
    %p115 = scmp.eq.s32.totalorder %s10, 1
    %p116 = por %p114, %p115
    %p117 = scmp.ne.s32.totalorder %s109, %s112
    %p118 = scmp.eq.s32.totalorder %s10, 0
    %p119 = por %p117, %p118
    %p120 = scmp.ne.s32.totalorder %s109, %s112
    %p121 = scmp.eq.s32.totalorder %s15, 1
    %p122 = por %p120, %p121
    %p123 = scmp.ne.s32.totalorder %s112, %s113
    %p124 = scmp.eq.s32.totalorder %s15, 0
    %p125 = por %p123, %p124
    %p126 = scmp.ne.s32.totalorder %s112, %s113
    %p127 = scmp.eq.s32.totalorder %s16, 1
    %p128 = por %p126, %p127
    %p130 = scmp.ne.s32.totalorder %s113, %s129
    %p131 = scmp.eq.s32.totalorder %s16, 0
    %p132 = por %p130, %p131
    %p133 = scmp.le.s32.totalorder 1, %s10
    %p134 = scmp.lt.s32.totalorder %s10, 3
    %p135 = pnand %p133, %p134
    %p136 = pneg %p135
    // Predicated region
    $region9: #{spatial_mamba_block.12} parent=5 // pred_check
      _
    $region10: #{spatial_mamba_block.12} parent=5 // pred_check_branch
      %138 = sbr.rel (%p135) target = $region12
    $region11: #{spatial_mamba_block.12} parent=5 // pred_region
      %s139 = ssub.s32 %s10, 1
      // Predicated region
      $region13: #{spatial_mamba_block.12} parent=11 // pred_check
        %p140 = pneg %p57
      $region14: #{spatial_mamba_block.12} parent=11 // pred_check_branch
        %142 = sbr.rel (%p140) target = $region16
      $region15: #{spatial_mamba_block.12} parent=11 // pred_region
        _
      $region16: #{spatial_mamba_block.12} parent=11 // pred_fallthru
        _
      // Predicated region
      $region17: #{spatial_mamba_block.12} parent=11 // pred_check
        %p143 = pneg %p78
      $region18: #{spatial_mamba_block.12} parent=11 // pred_check_branch
        %145 = sbr.rel (%p143) target = $region20
      $region19: #{spatial_mamba_block.12} parent=11 // pred_region
        _
      $region20: #{spatial_mamba_block.12} parent=11 // pred_fallthru
        _
      // Predicated region
      $region21: #{spatial_mamba_block.12} parent=11 // pred_check
        %p146 = pneg %p99
      $region22: #{spatial_mamba_block.12} parent=11 // pred_check_branch
        %148 = sbr.rel (%p146) target = $region24
      $region23: #{spatial_mamba_block.12} parent=11 // pred_region
        _
      $region24: #{spatial_mamba_block.12} parent=11 // pred_fallthru
        _
    $region12: #{spatial_mamba_block.12} parent=5 // pred_fallthru
      _
    %p149 = scmp.lt.s32.totalorder %s10, 2
    // Predicated region
    $region25: #{spatial_mamba_block.12} parent=5 // pred_check
      %p150 = pneg %p149
    $region26: #{spatial_mamba_block.12} parent=5 // pred_check_branch
      %152 = sbr.rel (%p150) target = $region28
    $region27: #{spatial_mamba_block.12} parent=5 // pred_region
      // Predicated region
      $region29: #{spatial_mamba_block.12} parent=27 // pred_check
        %p153 = pneg %p30
      $region30: #{spatial_mamba_block.12} parent=27 // pred_check_branch
        %155 = sbr.rel (%p153) target = $region32
      $region31: #{spatial_mamba_block.12} parent=27 // pred_region
        %p156 = scmp.lt.s32.totalorder %s10, 1
        %s157 = scalar_select %p156, %s10, 1
        %s158 = smul.addr %s157, 54
        %s159 = smul.addr %s158, 8
        %s160 = scalar_lea.vmem %s0, %s159
      $region32: #{spatial_mamba_block.12} parent=27 // pred_fallthru
        _
    $region28: #{spatial_mamba_block.12} parent=5 // pred_fallthru
      _
    %p161 = scmp.le.s32.totalorder 1, %s10
    %p162 = scmp.lt.s32.totalorder %s10, 3
    %p163 = pnand %p161, %p162
    %p164 = pneg %p163
    // Predicated region
    $region33: #{spatial_mamba_block.12} parent=5 // pred_check
      _
    $region34: #{spatial_mamba_block.12} parent=5 // pred_check_branch
      %166 = sbr.rel (%p163) target = $region36
    $region35: #{spatial_mamba_block.12} parent=5 // pred_region
      %s167 = ssub.s32 %s10, 1
      %p168 = scmp.lt.s32.totalorder %s15, 1
      %s169 = scalar_select %p168, %s15, 1
      %s170 = smul.addr %s169, 54
      %s171 = smul.addr %s170, 8
      %s172 = scalar_lea.vmem %s0, %s171
      %p173 = pneg %p36
      %p174 = pneg %p33
      %p175 = pneg %p57
      %p176 = pneg %p54
      %p177 = pneg %p78
      %p178 = pneg %p75
      %p179 = pneg %p99
      %p180 = pneg %p96
      %p181 = pneg %p125
      %p182 = pneg %p122
      %p183 = scmp.lt.s32.totalorder %s15, 1
      %s184 = scalar_select %p183, %s15, 1
      %s185 = smul.addr %s184, 8
      %s186 = smul.addr %s185, 8
      %s187 = scalar_lea.vmem %s4, %s186
      %p188 = scmp.lt.s32.totalorder %s15, 1
      %s189 = scalar_select %p188, %s15, 1
      %s190 = smul.addr %s189, 54
      %s191 = smul.addr %s190, 8
      %s192 = scalar_lea.vmem %s0, %s191
      %p193 = scmp.lt.s32.totalorder %s15, 1
      %s194 = scalar_select %p193, %s15, 1
      %s195 = smul.addr %s194, 8
      %s196 = smul.addr %s195, 8
      %s197 = scalar_lea.vmem %s4, %s196
      %v198 = vld [vmem:[%s192] sm:$0xff]
      %v199 = vld [vmem:[%s192 + $0x8] sm:$0xff]
      %v200 = vld [vmem:[%s192 + $0x10] sm:$0x3]
      %v201 = vld [vmem:[%s192 + $0x18] sm:$0xff]
      %v202 = vld [vmem:[%s192 + $0x20] sm:$0xff]
      %v203 = vld [vmem:[%s192 + $0x28] sm:$0x3]
      %v204 = vld [vmem:[%s192 + $0x30] sm:$0xff]
      %v205 = vld [vmem:[%s192 + $0x38] sm:$0xff]
      %v206 = vld [vmem:[%s192 + $0x40] sm:$0x3]
      %v207 = vld [vmem:[%s192 + $0x48] sm:$0xff]
      %v208 = vld [vmem:[%s192 + $0x50] sm:$0xff]
      %v209 = vld [vmem:[%s192 + $0x58] sm:$0x3]
      %v210 = vld [vmem:[%s192 + $0x60] sm:$0xff]
      %v211 = vld [vmem:[%s192 + $0x68] sm:$0xff]
      %v212 = vld [vmem:[%s192 + $0x70] sm:$0x3]
      %v213 = vld [vmem:[%s192 + $0x78] sm:$0xff]
      %v214 = vld [vmem:[%s192 + $0x80] sm:$0xff]
      %v215 = vld [vmem:[%s192 + $0x88] sm:$0x3]
      %v216 = vld [vmem:[%s192 + $0x90] sm:$0xff]
      %v217 = vld [vmem:[%s192 + $0x98] sm:$0xff]
      %v218 = vld [vmem:[%s192 + $0xa0] sm:$0x3]
      %v219 = vld [vmem:[%s192 + $0xa8] sm:$0xff]
      %v220 = vld [vmem:[%s192 + $0xb0] sm:$0xff]
      %v221 = vld [vmem:[%s192 + $0xb8] sm:$0x3]
      %v222 = vld [vmem:[%s192 + $0xc0] sm:$0xff]
      %v223 = vld [vmem:[%s192 + $0xc8] sm:$0xff]
      %v224 = vld [vmem:[%s192 + $0xd0] sm:$0x3]
      %v225 = vld [vmem:[%s192 + $0xd8] sm:$0xff]
      %v226 = vld [vmem:[%s192 + $0xe0] sm:$0xff]
      %v227 = vld [vmem:[%s192 + $0xe8] sm:$0x3]
      %v228 = vld [vmem:[%s192 + $0xf0] sm:$0xff]
      %v229 = vld [vmem:[%s192 + $0xf8] sm:$0xff]
      %v230 = vld [vmem:[%s192 + $0x100] sm:$0x3]
      %v231 = vld [vmem:[%s192 + $0x108] sm:$0xff]
      %v232 = vld [vmem:[%s192 + $0x110] sm:$0xff]
      %v233 = vld [vmem:[%s192 + $0x118] sm:$0x3]
      %v234 = vld [vmem:[%s192 + $0x120] sm:$0xff]
      %v235 = vld [vmem:[%s192 + $0x128] sm:$0xff]
      %v236 = vld [vmem:[%s192 + $0x130] sm:$0x3]
      %v237 = vld [vmem:[%s192 + $0x138] sm:$0xff]
      %v238 = vld [vmem:[%s192 + $0x140] sm:$0xff]
      %v239 = vld [vmem:[%s192 + $0x148] sm:$0x3]
      %v240 = vld [vmem:[%s192 + $0x150] sm:$0xff]
      %v241 = vld [vmem:[%s192 + $0x158] sm:$0xff]
      %v242 = vld [vmem:[%s192 + $0x160] sm:$0x3]
      %v243 = vld [vmem:[%s192 + $0x168] sm:$0xff]
      %v244 = vld [vmem:[%s192 + $0x170] sm:$0xff]
      %v245 = vld [vmem:[%s192 + $0x178] sm:$0x3]
      %v246 = vld [vmem:[%s192 + $0x180] sm:$0xff]
      %v247 = vld [vmem:[%s192 + $0x188] sm:$0xff]
      %v248 = vld [vmem:[%s192 + $0x190] sm:$0x3]
      %v249 = vld [vmem:[%s192 + $0x198] sm:$0xff]
      %v250 = vld [vmem:[%s192 + $0x1a0] sm:$0xff]
      %v251 = vld [vmem:[%s192 + $0x1a8] sm:$0x3]
      %v252 = vld [vmem:[%s1] sm:$0x1]
      %v253 = vlaneseq
      %v254 = vshrl.u32 %v253, 7
      %v255 = vsub.s32 0, %v254
      %v256 = vrot.slane %v252, %v255
      %v257 = vmul.f32 %v210, %v256
      %v258 = vmul.f32 %v211, %v256
      %v259 = vmul.f32 %v213, %v256
      %v260 = vmul.f32 %v214, %v256
      %v261 = vmul.f32 %v216, %v256
      %v262 = vmul.f32 %v217, %v256
      %v263 = vmul.f32 %v219, %v256
      %v264 = vmul.f32 %v220, %v256
      %v265 = vmul.f32 %v222, %v256
      %v266 = vmul.f32 %v223, %v256
      %v267 = vmul.f32 %v225, %v256
      %v268 = vmul.f32 %v226, %v256
      %v269 = vmul.f32 %v228, %v256
      %v270 = vmul.f32 %v229, %v256
      %v271 = vmul.f32 %v231, %v256
      %v272 = vmul.f32 %v232, %v256
      %v273 = vadd.f32 %v257, 0.0
      %v274 = vadd.f32 %v258, 0.0
      %v275 = vadd.f32 %v259, 0.0
      %v276 = vadd.f32 %v260, 0.0
      %v277 = vadd.f32 %v261, 0.0
      %v278 = vadd.f32 %v262, 0.0
      %v279 = vadd.f32 %v263, 0.0
      %v280 = vadd.f32 %v264, 0.0
      %v281 = vadd.f32 %v265, 0.0
      %v282 = vadd.f32 %v266, 0.0
      %v283 = vadd.f32 %v267, 0.0
      %v284 = vadd.f32 %v268, 0.0
      %v285 = vadd.f32 %v269, 0.0
      %v286 = vadd.f32 %v270, 0.0
      %v287 = vadd.f32 %v271, 0.0
      %v288 = vadd.f32 %v272, 0.0
      %v289 = vld [vmem:[%s1 + $0x1] sm:$0x1]
      %v290 = vlaneseq
      %v291 = vshrl.u32 %v290, 7
      %v292 = vsub.s32 0, %v291
      %v293 = vrot.slane %v289, %v292
      %v294 = vmul.f32 %v210, %v293
      %v295 = vmul.f32 %v211, %v293
      %v296 = vmul.f32 %v213, %v293
      %v297 = vmul.f32 %v214, %v293
      %v298 = vmul.f32 %v216, %v293
      %v299 = vmul.f32 %v217, %v293
      %v300 = vmul.f32 %v219, %v293
      %v301 = vmul.f32 %v220, %v293
      %v302 = vmul.f32 %v222, %v293
      %v303 = vmul.f32 %v223, %v293
      %v304 = vmul.f32 %v225, %v293
      %v305 = vmul.f32 %v226, %v293
      %v306 = vmul.f32 %v228, %v293
      %v307 = vmul.f32 %v229, %v293
      %v308 = vmul.f32 %v231, %v293
      %v309 = vmul.f32 %v232, %v293
      %vm326 = vcmask 1046528
      %v327 = vrot.slane %v294, 1
      %v328 = vrot.slane %v295, 1
      %v329 = vsel %vm326, %v327, %v328
      %v330 = vrot.slane %v296, 1
      %v331 = vrot.slane %v297, 1
      %v332 = vsel %vm326, %v330, %v331
      %v333 = vrot.slane %v298, 1
      %v334 = vrot.slane %v299, 1
      %v335 = vsel %vm326, %v333, %v334
      %v336 = vrot.slane %v300, 1
      %v337 = vrot.slane %v301, 1
      %v338 = vsel %vm326, %v336, %v337
      %v339 = vrot.slane %v302, 1
      %v340 = vrot.slane %v303, 1
      %v341 = vsel %vm326, %v339, %v340
      %v342 = vrot.slane %v304, 1
      %v343 = vrot.slane %v305, 1
      %v344 = vsel %vm326, %v342, %v343
      %v345 = vrot.slane %v306, 1
      %v346 = vrot.slane %v307, 1
      %v347 = vsel %vm326, %v345, %v346
      %v348 = vrot.slane %v308, 1
      %v349 = vrot.slane %v309, 1
      %v350 = vsel %vm326, %v348, %v349
      %v367 = vadd.f32 %v273, %v329
      %v368 = vadd.f32 %v274, %v328
      %v369 = vadd.f32 %v275, %v332
      %v370 = vadd.f32 %v276, %v331
      %v371 = vadd.f32 %v277, %v335
      %v372 = vadd.f32 %v278, %v334
      %v373 = vadd.f32 %v279, %v338
      %v374 = vadd.f32 %v280, %v337
      %v375 = vadd.f32 %v281, %v341
      %v376 = vadd.f32 %v282, %v340
      %v377 = vadd.f32 %v283, %v344
      %v378 = vadd.f32 %v284, %v343
      %v379 = vadd.f32 %v285, %v347
      %v380 = vadd.f32 %v286, %v346
      %v381 = vadd.f32 %v287, %v350
      %v382 = vadd.f32 %v288, %v349
      %v383 = vld [vmem:[%s1 + $0x2] sm:$0x1]
      %v384 = vlaneseq
      %v385 = vshrl.u32 %v384, 7
      %v386 = vsub.s32 0, %v385
      %v387 = vrot.slane %v383, %v386
      %v388 = vmul.f32 %v210, %v387
      %v389 = vmul.f32 %v211, %v387
      %v390 = vmul.f32 %v213, %v387
      %v391 = vmul.f32 %v214, %v387
      %v392 = vmul.f32 %v216, %v387
      %v393 = vmul.f32 %v217, %v387
      %v394 = vmul.f32 %v219, %v387
      %v395 = vmul.f32 %v220, %v387
      %v396 = vmul.f32 %v222, %v387
      %v397 = vmul.f32 %v223, %v387
      %v398 = vmul.f32 %v225, %v387
      %v399 = vmul.f32 %v226, %v387
      %v400 = vmul.f32 %v228, %v387
      %v401 = vmul.f32 %v229, %v387
      %v402 = vmul.f32 %v231, %v387
      %v403 = vmul.f32 %v232, %v387
      %vm420 = vcmask 1045504
      %v421 = vrot.slane %v388, 2
      %v422 = vrot.slane %v389, 2
      %v423 = vsel %vm420, %v421, %v422
      %v424 = vrot.slane %v390, 2
      %v425 = vrot.slane %v391, 2
      %v426 = vsel %vm420, %v424, %v425
      %v427 = vrot.slane %v392, 2
      %v428 = vrot.slane %v393, 2
      %v429 = vsel %vm420, %v427, %v428
      %v430 = vrot.slane %v394, 2
      %v431 = vrot.slane %v395, 2
      %v432 = vsel %vm420, %v430, %v431
      %v433 = vrot.slane %v396, 2
      %v434 = vrot.slane %v397, 2
      %v435 = vsel %vm420, %v433, %v434
      %v436 = vrot.slane %v398, 2
      %v437 = vrot.slane %v399, 2
      %v438 = vsel %vm420, %v436, %v437
      %v439 = vrot.slane %v400, 2
      %v440 = vrot.slane %v401, 2
      %v441 = vsel %vm420, %v439, %v440
      %v442 = vrot.slane %v402, 2
      %v443 = vrot.slane %v403, 2
      %v444 = vsel %vm420, %v442, %v443
      %v461 = vadd.f32 %v367, %v423
      %v462 = vadd.f32 %v368, %v422
      %v463 = vadd.f32 %v369, %v426
      %v464 = vadd.f32 %v370, %v425
      %v465 = vadd.f32 %v371, %v429
      %v466 = vadd.f32 %v372, %v428
      %v467 = vadd.f32 %v373, %v432
      %v468 = vadd.f32 %v374, %v431
      %v469 = vadd.f32 %v375, %v435
      %v470 = vadd.f32 %v376, %v434
      %v471 = vadd.f32 %v377, %v438
      %v472 = vadd.f32 %v378, %v437
      %v473 = vadd.f32 %v379, %v441
      %v474 = vadd.f32 %v380, %v440
      %v475 = vadd.f32 %v381, %v444
      %v476 = vadd.f32 %v382, %v443
      %s477 = scalar_lea.vmem %s1, 4
      %v478 = vld [vmem:[%s477] sm:$0x1]
      %v479 = vlaneseq
      %v480 = vshrl.u32 %v479, 7
      %v481 = vsub.s32 0, %v480
      %v482 = vrot.slane %v478, %v481
      %v483 = vmul.f32 %v213, %v482
      %v484 = vmul.f32 %v214, %v482
      %v485 = vmul.f32 %v216, %v482
      %v486 = vmul.f32 %v217, %v482
      %v487 = vmul.f32 %v219, %v482
      %v488 = vmul.f32 %v220, %v482
      %v489 = vmul.f32 %v222, %v482
      %v490 = vmul.f32 %v223, %v482
      %v491 = vmul.f32 %v225, %v482
      %v492 = vmul.f32 %v226, %v482
      %v493 = vmul.f32 %v228, %v482
      %v494 = vmul.f32 %v229, %v482
      %v495 = vmul.f32 %v231, %v482
      %v496 = vmul.f32 %v232, %v482
      %v497 = vmul.f32 %v234, %v482
      %v498 = vmul.f32 %v235, %v482
      %v499 = vadd.f32 %v461, %v483
      %v500 = vadd.f32 %v462, %v484
      %v501 = vadd.f32 %v463, %v485
      %v502 = vadd.f32 %v464, %v486
      %v503 = vadd.f32 %v465, %v487
      %v504 = vadd.f32 %v466, %v488
      %v505 = vadd.f32 %v467, %v489
      %v506 = vadd.f32 %v468, %v490
      %v507 = vadd.f32 %v469, %v491
      %v508 = vadd.f32 %v470, %v492
      %v509 = vadd.f32 %v471, %v493
      %v510 = vadd.f32 %v472, %v494
      %v511 = vadd.f32 %v473, %v495
      %v512 = vadd.f32 %v474, %v496
      %v513 = vadd.f32 %v475, %v497
      %v514 = vadd.f32 %v476, %v498
      %v515 = vld [vmem:[%s477 + $0x1] sm:$0x1]
      %v516 = vlaneseq
      %v517 = vshrl.u32 %v516, 7
      %v518 = vsub.s32 0, %v517
      %v519 = vrot.slane %v515, %v518
      %v520 = vmul.f32 %v213, %v519
      %v521 = vmul.f32 %v214, %v519
      %v522 = vmul.f32 %v216, %v519
      %v523 = vmul.f32 %v217, %v519
      %v524 = vmul.f32 %v219, %v519
      %v525 = vmul.f32 %v220, %v519
      %v526 = vmul.f32 %v222, %v519
      %v527 = vmul.f32 %v223, %v519
      %v528 = vmul.f32 %v225, %v519
      %v529 = vmul.f32 %v226, %v519
      %v530 = vmul.f32 %v228, %v519
      %v531 = vmul.f32 %v229, %v519
      %v532 = vmul.f32 %v231, %v519
      %v533 = vmul.f32 %v232, %v519
      %v534 = vmul.f32 %v234, %v519
      %v535 = vmul.f32 %v235, %v519
      %v552 = vrot.slane %v520, 1
      %v553 = vrot.slane %v521, 1
      %v554 = vsel %vm326, %v552, %v553
      %v555 = vrot.slane %v522, 1
      %v556 = vrot.slane %v523, 1
      %v557 = vsel %vm326, %v555, %v556
      %v558 = vrot.slane %v524, 1
      %v559 = vrot.slane %v525, 1
      %v560 = vsel %vm326, %v558, %v559
      %v561 = vrot.slane %v526, 1
      %v562 = vrot.slane %v527, 1
      %v563 = vsel %vm326, %v561, %v562
      %v564 = vrot.slane %v528, 1
      %v565 = vrot.slane %v529, 1
      %v566 = vsel %vm326, %v564, %v565
      %v567 = vrot.slane %v530, 1
      %v568 = vrot.slane %v531, 1
      %v569 = vsel %vm326, %v567, %v568
      %v570 = vrot.slane %v532, 1
      %v571 = vrot.slane %v533, 1
      %v572 = vsel %vm326, %v570, %v571
      %v573 = vrot.slane %v534, 1
      %v574 = vrot.slane %v535, 1
      %v575 = vsel %vm326, %v573, %v574
      %v592 = vadd.f32 %v499, %v554
      %v593 = vadd.f32 %v500, %v553
      %v594 = vadd.f32 %v501, %v557
      %v595 = vadd.f32 %v502, %v556
      %v596 = vadd.f32 %v503, %v560
      %v597 = vadd.f32 %v504, %v559
      %v598 = vadd.f32 %v505, %v563
      %v599 = vadd.f32 %v506, %v562
      %v600 = vadd.f32 %v507, %v566
      %v601 = vadd.f32 %v508, %v565
      %v602 = vadd.f32 %v509, %v569
      %v603 = vadd.f32 %v510, %v568
      %v604 = vadd.f32 %v511, %v572
      %v605 = vadd.f32 %v512, %v571
      %v606 = vadd.f32 %v513, %v575
      %v607 = vadd.f32 %v514, %v574
      %v608 = vld [vmem:[%s477 + $0x2] sm:$0x1]
      %v609 = vlaneseq
      %v610 = vshrl.u32 %v609, 7
      %v611 = vsub.s32 0, %v610
      %v612 = vrot.slane %v608, %v611
      %v613 = vmul.f32 %v213, %v612
      %v614 = vmul.f32 %v214, %v612
      %v615 = vmul.f32 %v216, %v612
      %v616 = vmul.f32 %v217, %v612
      %v617 = vmul.f32 %v219, %v612
      %v618 = vmul.f32 %v220, %v612
      %v619 = vmul.f32 %v222, %v612
      %v620 = vmul.f32 %v223, %v612
      %v621 = vmul.f32 %v225, %v612
      %v622 = vmul.f32 %v226, %v612
      %v623 = vmul.f32 %v228, %v612
      %v624 = vmul.f32 %v229, %v612
      %v625 = vmul.f32 %v231, %v612
      %v626 = vmul.f32 %v232, %v612
      %v627 = vmul.f32 %v234, %v612
      %v628 = vmul.f32 %v235, %v612
      %v645 = vrot.slane %v613, 2
      %v646 = vrot.slane %v614, 2
      %v647 = vsel %vm420, %v645, %v646
      %v648 = vrot.slane %v615, 2
      %v649 = vrot.slane %v616, 2
      %v650 = vsel %vm420, %v648, %v649
      %v651 = vrot.slane %v617, 2
      %v652 = vrot.slane %v618, 2
      %v653 = vsel %vm420, %v651, %v652
      %v654 = vrot.slane %v619, 2
      %v655 = vrot.slane %v620, 2
      %v656 = vsel %vm420, %v654, %v655
      %v657 = vrot.slane %v621, 2
      %v658 = vrot.slane %v622, 2
      %v659 = vsel %vm420, %v657, %v658
      %v660 = vrot.slane %v623, 2
      %v661 = vrot.slane %v624, 2
      %v662 = vsel %vm420, %v660, %v661
      %v663 = vrot.slane %v625, 2
      %v664 = vrot.slane %v626, 2
      %v665 = vsel %vm420, %v663, %v664
      %v666 = vrot.slane %v627, 2
      %v667 = vrot.slane %v628, 2
      %v668 = vsel %vm420, %v666, %v667
      %v685 = vadd.f32 %v592, %v647
      %v686 = vadd.f32 %v593, %v646
      %v687 = vadd.f32 %v594, %v650
      %v688 = vadd.f32 %v595, %v649
      %v689 = vadd.f32 %v596, %v653
      %v690 = vadd.f32 %v597, %v652
      %v691 = vadd.f32 %v598, %v656
      %v692 = vadd.f32 %v599, %v655
      %v693 = vadd.f32 %v600, %v659
      %v694 = vadd.f32 %v601, %v658
      %v695 = vadd.f32 %v602, %v662
      %v696 = vadd.f32 %v603, %v661
      %v697 = vadd.f32 %v604, %v665
      %v698 = vadd.f32 %v605, %v664
      %v699 = vadd.f32 %v606, %v668
      %v700 = vadd.f32 %v607, %v667
      %s701 = scalar_lea.vmem %s1, 8
      %v702 = vld [vmem:[%s701] sm:$0x1]
      %v703 = vlaneseq
      %v704 = vshrl.u32 %v703, 7
      %v705 = vsub.s32 0, %v704
      %v706 = vrot.slane %v702, %v705
      %v707 = vmul.f32 %v216, %v706
      %v708 = vmul.f32 %v217, %v706
      %v709 = vmul.f32 %v219, %v706
      %v710 = vmul.f32 %v220, %v706
      %v711 = vmul.f32 %v222, %v706
      %v712 = vmul.f32 %v223, %v706
      %v713 = vmul.f32 %v225, %v706
      %v714 = vmul.f32 %v226, %v706
      %v715 = vmul.f32 %v228, %v706
      %v716 = vmul.f32 %v229, %v706
      %v717 = vmul.f32 %v231, %v706
      %v718 = vmul.f32 %v232, %v706
      %v719 = vmul.f32 %v234, %v706
      %v720 = vmul.f32 %v235, %v706
      %v721 = vmul.f32 %v237, %v706
      %v722 = vmul.f32 %v238, %v706
      %v723 = vadd.f32 %v685, %v707
      %v724 = vadd.f32 %v686, %v708
      %v725 = vadd.f32 %v687, %v709
      %v726 = vadd.f32 %v688, %v710
      %v727 = vadd.f32 %v689, %v711
      %v728 = vadd.f32 %v690, %v712
      %v729 = vadd.f32 %v691, %v713
      %v730 = vadd.f32 %v692, %v714
      %v731 = vadd.f32 %v693, %v715
      %v732 = vadd.f32 %v694, %v716
      %v733 = vadd.f32 %v695, %v717
      %v734 = vadd.f32 %v696, %v718
      %v735 = vadd.f32 %v697, %v719
      %v736 = vadd.f32 %v698, %v720
      %v737 = vadd.f32 %v699, %v721
      %v738 = vadd.f32 %v700, %v722
      %v739 = vld [vmem:[%s701 + $0x1] sm:$0x1]
      %v740 = vlaneseq
      %v741 = vshrl.u32 %v740, 7
      %v742 = vsub.s32 0, %v741
      %v743 = vrot.slane %v739, %v742
      %v744 = vmul.f32 %v216, %v743
      %v745 = vmul.f32 %v217, %v743
      %v746 = vmul.f32 %v219, %v743
      %v747 = vmul.f32 %v220, %v743
      %v748 = vmul.f32 %v222, %v743
      %v749 = vmul.f32 %v223, %v743
      %v750 = vmul.f32 %v225, %v743
      %v751 = vmul.f32 %v226, %v743
      %v752 = vmul.f32 %v228, %v743
      %v753 = vmul.f32 %v229, %v743
      %v754 = vmul.f32 %v231, %v743
      %v755 = vmul.f32 %v232, %v743
      %v756 = vmul.f32 %v234, %v743
      %v757 = vmul.f32 %v235, %v743
      %v758 = vmul.f32 %v237, %v743
      %v759 = vmul.f32 %v238, %v743
      %v776 = vrot.slane %v744, 1
      %v777 = vrot.slane %v745, 1
      %v778 = vsel %vm326, %v776, %v777
      %v779 = vrot.slane %v746, 1
      %v780 = vrot.slane %v747, 1
      %v781 = vsel %vm326, %v779, %v780
      %v782 = vrot.slane %v748, 1
      %v783 = vrot.slane %v749, 1
      %v784 = vsel %vm326, %v782, %v783
      %v785 = vrot.slane %v750, 1
      %v786 = vrot.slane %v751, 1
      %v787 = vsel %vm326, %v785, %v786
      %v788 = vrot.slane %v752, 1
      %v789 = vrot.slane %v753, 1
      %v790 = vsel %vm326, %v788, %v789
      %v791 = vrot.slane %v754, 1
      %v792 = vrot.slane %v755, 1
      %v793 = vsel %vm326, %v791, %v792
      %v794 = vrot.slane %v756, 1
      %v795 = vrot.slane %v757, 1
      %v796 = vsel %vm326, %v794, %v795
      %v797 = vrot.slane %v758, 1
      %v798 = vrot.slane %v759, 1
      %v799 = vsel %vm326, %v797, %v798
      %v816 = vadd.f32 %v723, %v778
      %v817 = vadd.f32 %v724, %v777
      %v818 = vadd.f32 %v725, %v781
      %v819 = vadd.f32 %v726, %v780
      %v820 = vadd.f32 %v727, %v784
      %v821 = vadd.f32 %v728, %v783
      %v822 = vadd.f32 %v729, %v787
      %v823 = vadd.f32 %v730, %v786
      %v824 = vadd.f32 %v731, %v790
      %v825 = vadd.f32 %v732, %v789
      %v826 = vadd.f32 %v733, %v793
      %v827 = vadd.f32 %v734, %v792
      %v828 = vadd.f32 %v735, %v796
      %v829 = vadd.f32 %v736, %v795
      %v830 = vadd.f32 %v737, %v799
      %v831 = vadd.f32 %v738, %v798
      %v832 = vld [vmem:[%s701 + $0x2] sm:$0x1]
      %v833 = vlaneseq
      %v834 = vshrl.u32 %v833, 7
      %v835 = vsub.s32 0, %v834
      %v836 = vrot.slane %v832, %v835
      %v837 = vmul.f32 %v216, %v836
      %v838 = vmul.f32 %v217, %v836
      %v839 = vmul.f32 %v219, %v836
      %v840 = vmul.f32 %v220, %v836
      %v841 = vmul.f32 %v222, %v836
      %v842 = vmul.f32 %v223, %v836
      %v843 = vmul.f32 %v225, %v836
      %v844 = vmul.f32 %v226, %v836
      %v845 = vmul.f32 %v228, %v836
      %v846 = vmul.f32 %v229, %v836
      %v847 = vmul.f32 %v231, %v836
      %v848 = vmul.f32 %v232, %v836
      %v849 = vmul.f32 %v234, %v836
      %v850 = vmul.f32 %v235, %v836
      %v851 = vmul.f32 %v237, %v836
      %v852 = vmul.f32 %v238, %v836
      %v869 = vrot.slane %v837, 2
      %v870 = vrot.slane %v838, 2
      %v871 = vsel %vm420, %v869, %v870
      %v872 = vrot.slane %v839, 2
      %v873 = vrot.slane %v840, 2
      %v874 = vsel %vm420, %v872, %v873
      %v875 = vrot.slane %v841, 2
      %v876 = vrot.slane %v842, 2
      %v877 = vsel %vm420, %v875, %v876
      %v878 = vrot.slane %v843, 2
      %v879 = vrot.slane %v844, 2
      %v880 = vsel %vm420, %v878, %v879
      %v881 = vrot.slane %v845, 2
      %v882 = vrot.slane %v846, 2
      %v883 = vsel %vm420, %v881, %v882
      %v884 = vrot.slane %v847, 2
      %v885 = vrot.slane %v848, 2
      %v886 = vsel %vm420, %v884, %v885
      %v887 = vrot.slane %v849, 2
      %v888 = vrot.slane %v850, 2
      %v889 = vsel %vm420, %v887, %v888
      %v890 = vrot.slane %v851, 2
      %v891 = vrot.slane %v852, 2
      %v892 = vsel %vm420, %v890, %v891
      %v909 = vadd.f32 %v816, %v871
      %v910 = vadd.f32 %v817, %v870
      %v911 = vadd.f32 %v818, %v874
      %v912 = vadd.f32 %v819, %v873
      %v913 = vadd.f32 %v820, %v877
      %v914 = vadd.f32 %v821, %v876
      %v915 = vadd.f32 %v822, %v880
      %v916 = vadd.f32 %v823, %v879
      %v917 = vadd.f32 %v824, %v883
      %v918 = vadd.f32 %v825, %v882
      %v919 = vadd.f32 %v826, %v886
      %v920 = vadd.f32 %v827, %v885
      %v921 = vadd.f32 %v828, %v889
      %v922 = vadd.f32 %v829, %v888
      %v923 = vadd.f32 %v830, %v892
      %v924 = vadd.f32 %v831, %v891
      %v925 = vld [vmem:[%s2] sm:$0x1]
      %v926 = vlaneseq
      %v927 = vshrl.u32 %v926, 7
      %v928 = vsub.s32 0, %v927
      %v929 = vrot.slane %v925, %v928
      %v930 = vmul.f32 %v204, %v929
      %v931 = vmul.f32 %v205, %v929
      %v932 = vmul.f32 %v207, %v929
      %v933 = vmul.f32 %v208, %v929
      %v934 = vmul.f32 %v210, %v929
      %v935 = vmul.f32 %v211, %v929
      %v936 = vmul.f32 %v213, %v929
      %v937 = vmul.f32 %v214, %v929
      %v938 = vmul.f32 %v216, %v929
      %v939 = vmul.f32 %v217, %v929
      %v940 = vmul.f32 %v219, %v929
      %v941 = vmul.f32 %v220, %v929
      %v942 = vmul.f32 %v222, %v929
      %v943 = vmul.f32 %v223, %v929
      %v944 = vmul.f32 %v225, %v929
      %v945 = vmul.f32 %v226, %v929
      %vm962 = vcmask 1041408
      %v963 = vrot.slane %v930, 6
      %v964 = vrot.slane %v931, 6
      %v965 = vsel %vm962, %v963, %v964
      %v966 = vrot.slane %v932, 6
      %v967 = vrot.slane %v933, 6
      %v968 = vsel %vm962, %v966, %v967
      %v969 = vrot.slane %v934, 6
      %v970 = vrot.slane %v935, 6
      %v971 = vsel %vm962, %v969, %v970
      %v972 = vrot.slane %v936, 6
      %v973 = vrot.slane %v937, 6
      %v974 = vsel %vm962, %v972, %v973
      %v975 = vrot.slane %v938, 6
      %v976 = vrot.slane %v939, 6
      %v977 = vsel %vm962, %v975, %v976
      %v978 = vrot.slane %v940, 6
      %v979 = vrot.slane %v941, 6
      %v980 = vsel %vm962, %v978, %v979
      %v981 = vrot.slane %v942, 6
      %v982 = vrot.slane %v943, 6
      %v983 = vsel %vm962, %v981, %v982
      %v984 = vrot.slane %v944, 6
      %v985 = vrot.slane %v945, 6
      %v986 = vsel %vm962, %v984, %v985
      %v1003 = vadd.f32 %v909, %v963
      %v1004 = vadd.f32 %v910, %v965
      %v1005 = vadd.f32 %v911, %v966
      %v1006 = vadd.f32 %v912, %v968
      %v1007 = vadd.f32 %v913, %v969
      %v1008 = vadd.f32 %v914, %v971
      %v1009 = vadd.f32 %v915, %v972
      %v1010 = vadd.f32 %v916, %v974
      %v1011 = vadd.f32 %v917, %v975
      %v1012 = vadd.f32 %v918, %v977
      %v1013 = vadd.f32 %v919, %v978
      %v1014 = vadd.f32 %v920, %v980
      %v1015 = vadd.f32 %v921, %v981
      %v1016 = vadd.f32 %v922, %v983
      %v1017 = vadd.f32 %v923, %v984
      %v1018 = vadd.f32 %v924, %v986
      %v1019 = vld [vmem:[%s2 + $0x1] sm:$0x1]
      %v1020 = vlaneseq
      %v1021 = vshrl.u32 %v1020, 7
      %v1022 = vsub.s32 0, %v1021
      %v1023 = vrot.slane %v1019, %v1022
      %v1024 = vmul.f32 %v204, %v1023
      %v1025 = vmul.f32 %v205, %v1023
      %v1026 = vmul.f32 %v207, %v1023
      %v1027 = vmul.f32 %v208, %v1023
      %v1028 = vmul.f32 %v210, %v1023
      %v1029 = vmul.f32 %v211, %v1023
      %v1030 = vmul.f32 %v213, %v1023
      %v1031 = vmul.f32 %v214, %v1023
      %v1032 = vmul.f32 %v216, %v1023
      %v1033 = vmul.f32 %v217, %v1023
      %v1034 = vmul.f32 %v219, %v1023
      %v1035 = vmul.f32 %v220, %v1023
      %v1036 = vmul.f32 %v222, %v1023
      %v1037 = vmul.f32 %v223, %v1023
      %v1038 = vmul.f32 %v225, %v1023
      %v1039 = vmul.f32 %v226, %v1023
      %v1056 = vrot.slane %v1024, 1
      %v1057 = vrot.slane %v1025, 1
      %v1058 = vsel %vm326, %v1056, %v1057
      %v1059 = vrot.slane %v1026, 1
      %v1060 = vrot.slane %v1027, 1
      %v1061 = vsel %vm326, %v1059, %v1060
      %v1062 = vrot.slane %v1028, 1
      %v1063 = vrot.slane %v1029, 1
      %v1064 = vsel %vm326, %v1062, %v1063
      %v1065 = vrot.slane %v1030, 1
      %v1066 = vrot.slane %v1031, 1
      %v1067 = vsel %vm326, %v1065, %v1066
      %v1068 = vrot.slane %v1032, 1
      %v1069 = vrot.slane %v1033, 1
      %v1070 = vsel %vm326, %v1068, %v1069
      %v1071 = vrot.slane %v1034, 1
      %v1072 = vrot.slane %v1035, 1
      %v1073 = vsel %vm326, %v1071, %v1072
      %v1074 = vrot.slane %v1036, 1
      %v1075 = vrot.slane %v1037, 1
      %v1076 = vsel %vm326, %v1074, %v1075
      %v1077 = vrot.slane %v1038, 1
      %v1078 = vrot.slane %v1039, 1
      %v1079 = vsel %vm326, %v1077, %v1078
      %v1096 = vadd.f32 %v1003, %v1058
      %v1097 = vadd.f32 %v1004, %v1057
      %v1098 = vadd.f32 %v1005, %v1061
      %v1099 = vadd.f32 %v1006, %v1060
      %v1100 = vadd.f32 %v1007, %v1064
      %v1101 = vadd.f32 %v1008, %v1063
      %v1102 = vadd.f32 %v1009, %v1067
      %v1103 = vadd.f32 %v1010, %v1066
      %v1104 = vadd.f32 %v1011, %v1070
      %v1105 = vadd.f32 %v1012, %v1069
      %v1106 = vadd.f32 %v1013, %v1073
      %v1107 = vadd.f32 %v1014, %v1072
      %v1108 = vadd.f32 %v1015, %v1076
      %v1109 = vadd.f32 %v1016, %v1075
      %v1110 = vadd.f32 %v1017, %v1079
      %v1111 = vadd.f32 %v1018, %v1078
      %v1112 = vld [vmem:[%s2 + $0x2] sm:$0x1]
      %v1113 = vlaneseq
      %v1114 = vshrl.u32 %v1113, 7
      %v1115 = vsub.s32 0, %v1114
      %v1116 = vrot.slane %v1112, %v1115
      %v1117 = vmul.f32 %v205, %v1116
      %v1118 = vmul.f32 %v208, %v1116
      %v1119 = vmul.f32 %v211, %v1116
      %v1120 = vmul.f32 %v214, %v1116
      %v1121 = vmul.f32 %v217, %v1116
      %v1122 = vmul.f32 %v220, %v1116
      %v1123 = vmul.f32 %v223, %v1116
      %v1124 = vmul.f32 %v226, %v1116
      %v1133 = vrot.slane %v1117, 4
      %v1134 = vrot.slane %v1118, 4
      %v1135 = vrot.slane %v1119, 4
      %v1136 = vrot.slane %v1120, 4
      %v1137 = vrot.slane %v1121, 4
      %v1138 = vrot.slane %v1122, 4
      %v1139 = vrot.slane %v1123, 4
      %v1140 = vrot.slane %v1124, 4
      %v1149 = vadd.f32 %v1096, %v1133
      %v1150 = vadd.f32 %v1097, %v1133
      %v1151 = vadd.f32 %v1098, %v1134
      %v1152 = vadd.f32 %v1099, %v1134
      %v1153 = vadd.f32 %v1100, %v1135
      %v1154 = vadd.f32 %v1101, %v1135
      %v1155 = vadd.f32 %v1102, %v1136
      %v1156 = vadd.f32 %v1103, %v1136
      %v1157 = vadd.f32 %v1104, %v1137
      %v1158 = vadd.f32 %v1105, %v1137
      %v1159 = vadd.f32 %v1106, %v1138
      %v1160 = vadd.f32 %v1107, %v1138
      %v1161 = vadd.f32 %v1108, %v1139
      %v1162 = vadd.f32 %v1109, %v1139
      %v1163 = vadd.f32 %v1110, %v1140
      %v1164 = vadd.f32 %v1111, %v1140
      %s1165 = scalar_lea.vmem %s2, 4
      %v1166 = vld [vmem:[%s1165] sm:$0x1]
      %v1167 = vlaneseq
      %v1168 = vshrl.u32 %v1167, 7
      %v1169 = vsub.s32 0, %v1168
      %v1170 = vrot.slane %v1166, %v1169
      %v1171 = vmul.f32 %v213, %v1170
      %v1172 = vmul.f32 %v214, %v1170
      %v1173 = vmul.f32 %v216, %v1170
      %v1174 = vmul.f32 %v217, %v1170
      %v1175 = vmul.f32 %v219, %v1170
      %v1176 = vmul.f32 %v220, %v1170
      %v1177 = vmul.f32 %v222, %v1170
      %v1178 = vmul.f32 %v223, %v1170
      %v1179 = vmul.f32 %v225, %v1170
      %v1180 = vmul.f32 %v226, %v1170
      %v1181 = vmul.f32 %v228, %v1170
      %v1182 = vmul.f32 %v229, %v1170
      %v1183 = vmul.f32 %v231, %v1170
      %v1184 = vmul.f32 %v232, %v1170
      %v1185 = vmul.f32 %v234, %v1170
      %v1186 = vmul.f32 %v235, %v1170
      %v1203 = vrot.slane %v1171, 6
      %v1204 = vrot.slane %v1172, 6
      %v1205 = vsel %vm962, %v1203, %v1204
      %v1206 = vrot.slane %v1173, 6
      %v1207 = vrot.slane %v1174, 6
      %v1208 = vsel %vm962, %v1206, %v1207
      %v1209 = vrot.slane %v1175, 6
      %v1210 = vrot.slane %v1176, 6
      %v1211 = vsel %vm962, %v1209, %v1210
      %v1212 = vrot.slane %v1177, 6
      %v1213 = vrot.slane %v1178, 6
      %v1214 = vsel %vm962, %v1212, %v1213
      %v1215 = vrot.slane %v1179, 6
      %v1216 = vrot.slane %v1180, 6
      %v1217 = vsel %vm962, %v1215, %v1216
      %v1218 = vrot.slane %v1181, 6
      %v1219 = vrot.slane %v1182, 6
      %v1220 = vsel %vm962, %v1218, %v1219
      %v1221 = vrot.slane %v1183, 6
      %v1222 = vrot.slane %v1184, 6
      %v1223 = vsel %vm962, %v1221, %v1222
      %v1224 = vrot.slane %v1185, 6
      %v1225 = vrot.slane %v1186, 6
      %v1226 = vsel %vm962, %v1224, %v1225
      %v1243 = vadd.f32 %v1149, %v1203
      %v1244 = vadd.f32 %v1150, %v1205
      %v1245 = vadd.f32 %v1151, %v1206
      %v1246 = vadd.f32 %v1152, %v1208
      %v1247 = vadd.f32 %v1153, %v1209
      %v1248 = vadd.f32 %v1154, %v1211
      %v1249 = vadd.f32 %v1155, %v1212
      %v1250 = vadd.f32 %v1156, %v1214
      %v1251 = vadd.f32 %v1157, %v1215
      %v1252 = vadd.f32 %v1158, %v1217
      %v1253 = vadd.f32 %v1159, %v1218
      %v1254 = vadd.f32 %v1160, %v1220
      %v1255 = vadd.f32 %v1161, %v1221
      %v1256 = vadd.f32 %v1162, %v1223
      %v1257 = vadd.f32 %v1163, %v1224
      %v1258 = vadd.f32 %v1164, %v1226
      %v1259 = vld [vmem:[%s1165 + $0x1] sm:$0x1]
      %v1260 = vlaneseq
      %v1261 = vshrl.u32 %v1260, 7
      %v1262 = vsub.s32 0, %v1261
      %v1263 = vrot.slane %v1259, %v1262
      %v1264 = vmul.f32 %v213, %v1263
      %v1265 = vmul.f32 %v214, %v1263
      %v1266 = vmul.f32 %v216, %v1263
      %v1267 = vmul.f32 %v217, %v1263
      %v1268 = vmul.f32 %v219, %v1263
      %v1269 = vmul.f32 %v220, %v1263
      %v1270 = vmul.f32 %v222, %v1263
      %v1271 = vmul.f32 %v223, %v1263
      %v1272 = vmul.f32 %v225, %v1263
      %v1273 = vmul.f32 %v226, %v1263
      %v1274 = vmul.f32 %v228, %v1263
      %v1275 = vmul.f32 %v229, %v1263
      %v1276 = vmul.f32 %v231, %v1263
      %v1277 = vmul.f32 %v232, %v1263
      %v1278 = vmul.f32 %v234, %v1263
      %v1279 = vmul.f32 %v235, %v1263
      %v1296 = vrot.slane %v1264, 1
      %v1297 = vrot.slane %v1265, 1
      %v1298 = vsel %vm326, %v1296, %v1297
      %v1299 = vrot.slane %v1266, 1
      %v1300 = vrot.slane %v1267, 1
      %v1301 = vsel %vm326, %v1299, %v1300
      %v1302 = vrot.slane %v1268, 1
      %v1303 = vrot.slane %v1269, 1
      %v1304 = vsel %vm326, %v1302, %v1303
      %v1305 = vrot.slane %v1270, 1
      %v1306 = vrot.slane %v1271, 1
      %v1307 = vsel %vm326, %v1305, %v1306
      %v1308 = vrot.slane %v1272, 1
      %v1309 = vrot.slane %v1273, 1
      %v1310 = vsel %vm326, %v1308, %v1309
      %v1311 = vrot.slane %v1274, 1
      %v1312 = vrot.slane %v1275, 1
      %v1313 = vsel %vm326, %v1311, %v1312
      %v1314 = vrot.slane %v1276, 1
      %v1315 = vrot.slane %v1277, 1
      %v1316 = vsel %vm326, %v1314, %v1315
      %v1317 = vrot.slane %v1278, 1
      %v1318 = vrot.slane %v1279, 1
      %v1319 = vsel %vm326, %v1317, %v1318
      %v1336 = vadd.f32 %v1243, %v1298
      %v1337 = vadd.f32 %v1244, %v1297
      %v1338 = vadd.f32 %v1245, %v1301
      %v1339 = vadd.f32 %v1246, %v1300
      %v1340 = vadd.f32 %v1247, %v1304
      %v1341 = vadd.f32 %v1248, %v1303
      %v1342 = vadd.f32 %v1249, %v1307
      %v1343 = vadd.f32 %v1250, %v1306
      %v1344 = vadd.f32 %v1251, %v1310
      %v1345 = vadd.f32 %v1252, %v1309
      %v1346 = vadd.f32 %v1253, %v1313
      %v1347 = vadd.f32 %v1254, %v1312
      %v1348 = vadd.f32 %v1255, %v1316
      %v1349 = vadd.f32 %v1256, %v1315
      %v1350 = vadd.f32 %v1257, %v1319
      %v1351 = vadd.f32 %v1258, %v1318
      %v1352 = vld [vmem:[%s1165 + $0x2] sm:$0x1]
      %v1353 = vlaneseq
      %v1354 = vshrl.u32 %v1353, 7
      %v1355 = vsub.s32 0, %v1354
      %v1356 = vrot.slane %v1352, %v1355
      %v1357 = vmul.f32 %v214, %v1356
      %v1358 = vmul.f32 %v217, %v1356
      %v1359 = vmul.f32 %v220, %v1356
      %v1360 = vmul.f32 %v223, %v1356
      %v1361 = vmul.f32 %v226, %v1356
      %v1362 = vmul.f32 %v229, %v1356
      %v1363 = vmul.f32 %v232, %v1356
      %v1364 = vmul.f32 %v235, %v1356
      %v1373 = vrot.slane %v1357, 4
      %v1374 = vrot.slane %v1358, 4
      %v1375 = vrot.slane %v1359, 4
      %v1376 = vrot.slane %v1360, 4
      %v1377 = vrot.slane %v1361, 4
      %v1378 = vrot.slane %v1362, 4
      %v1379 = vrot.slane %v1363, 4
      %v1380 = vrot.slane %v1364, 4
      %v1389 = vadd.f32 %v1336, %v1373
      %v1390 = vadd.f32 %v1337, %v1373
      %v1391 = vadd.f32 %v1338, %v1374
      %v1392 = vadd.f32 %v1339, %v1374
      %v1393 = vadd.f32 %v1340, %v1375
      %v1394 = vadd.f32 %v1341, %v1375
      %v1395 = vadd.f32 %v1342, %v1376
      %v1396 = vadd.f32 %v1343, %v1376
      %v1397 = vadd.f32 %v1344, %v1377
      %v1398 = vadd.f32 %v1345, %v1377
      %v1399 = vadd.f32 %v1346, %v1378
      %v1400 = vadd.f32 %v1347, %v1378
      %v1401 = vadd.f32 %v1348, %v1379
      %v1402 = vadd.f32 %v1349, %v1379
      %v1403 = vadd.f32 %v1350, %v1380
      %v1404 = vadd.f32 %v1351, %v1380
      %s1405 = scalar_lea.vmem %s2, 8
      %v1406 = vld [vmem:[%s1405] sm:$0x1]
      %v1407 = vlaneseq
      %v1408 = vshrl.u32 %v1407, 7
      %v1409 = vsub.s32 0, %v1408
      %v1410 = vrot.slane %v1406, %v1409
      %v1411 = vmul.f32 %v222, %v1410
      %v1412 = vmul.f32 %v223, %v1410
      %v1413 = vmul.f32 %v225, %v1410
      %v1414 = vmul.f32 %v226, %v1410
      %v1415 = vmul.f32 %v228, %v1410
      %v1416 = vmul.f32 %v229, %v1410
      %v1417 = vmul.f32 %v231, %v1410
      %v1418 = vmul.f32 %v232, %v1410
      %v1419 = vmul.f32 %v234, %v1410
      %v1420 = vmul.f32 %v235, %v1410
      %v1421 = vmul.f32 %v237, %v1410
      %v1422 = vmul.f32 %v238, %v1410
      %v1423 = vmul.f32 %v240, %v1410
      %v1424 = vmul.f32 %v241, %v1410
      %v1425 = vmul.f32 %v243, %v1410
      %v1426 = vmul.f32 %v244, %v1410
      %v1443 = vrot.slane %v1411, 6
      %v1444 = vrot.slane %v1412, 6
      %v1445 = vsel %vm962, %v1443, %v1444
      %v1446 = vrot.slane %v1413, 6
      %v1447 = vrot.slane %v1414, 6
      %v1448 = vsel %vm962, %v1446, %v1447
      %v1449 = vrot.slane %v1415, 6
      %v1450 = vrot.slane %v1416, 6
      %v1451 = vsel %vm962, %v1449, %v1450
      %v1452 = vrot.slane %v1417, 6
      %v1453 = vrot.slane %v1418, 6
      %v1454 = vsel %vm962, %v1452, %v1453
      %v1455 = vrot.slane %v1419, 6
      %v1456 = vrot.slane %v1420, 6
      %v1457 = vsel %vm962, %v1455, %v1456
      %v1458 = vrot.slane %v1421, 6
      %v1459 = vrot.slane %v1422, 6
      %v1460 = vsel %vm962, %v1458, %v1459
      %v1461 = vrot.slane %v1423, 6
      %v1462 = vrot.slane %v1424, 6
      %v1463 = vsel %vm962, %v1461, %v1462
      %v1464 = vrot.slane %v1425, 6
      %v1465 = vrot.slane %v1426, 6
      %v1466 = vsel %vm962, %v1464, %v1465
      %v1483 = vadd.f32 %v1389, %v1443
      %v1484 = vadd.f32 %v1390, %v1445
      %v1485 = vadd.f32 %v1391, %v1446
      %v1486 = vadd.f32 %v1392, %v1448
      %v1487 = vadd.f32 %v1393, %v1449
      %v1488 = vadd.f32 %v1394, %v1451
      %v1489 = vadd.f32 %v1395, %v1452
      %v1490 = vadd.f32 %v1396, %v1454
      %v1491 = vadd.f32 %v1397, %v1455
      %v1492 = vadd.f32 %v1398, %v1457
      %v1493 = vadd.f32 %v1399, %v1458
      %v1494 = vadd.f32 %v1400, %v1460
      %v1495 = vadd.f32 %v1401, %v1461
      %v1496 = vadd.f32 %v1402, %v1463
      %v1497 = vadd.f32 %v1403, %v1464
      %v1498 = vadd.f32 %v1404, %v1466
      %v1499 = vld [vmem:[%s1405 + $0x1] sm:$0x1]
      %v1500 = vlaneseq
      %v1501 = vshrl.u32 %v1500, 7
      %v1502 = vsub.s32 0, %v1501
      %v1503 = vrot.slane %v1499, %v1502
      %v1504 = vmul.f32 %v222, %v1503
      %v1505 = vmul.f32 %v223, %v1503
      %v1506 = vmul.f32 %v225, %v1503
      %v1507 = vmul.f32 %v226, %v1503
      %v1508 = vmul.f32 %v228, %v1503
      %v1509 = vmul.f32 %v229, %v1503
      %v1510 = vmul.f32 %v231, %v1503
      %v1511 = vmul.f32 %v232, %v1503
      %v1512 = vmul.f32 %v234, %v1503
      %v1513 = vmul.f32 %v235, %v1503
      %v1514 = vmul.f32 %v237, %v1503
      %v1515 = vmul.f32 %v238, %v1503
      %v1516 = vmul.f32 %v240, %v1503
      %v1517 = vmul.f32 %v241, %v1503
      %v1518 = vmul.f32 %v243, %v1503
      %v1519 = vmul.f32 %v244, %v1503
      %v1536 = vrot.slane %v1504, 1
      %v1537 = vrot.slane %v1505, 1
      %v1538 = vsel %vm326, %v1536, %v1537
      %v1539 = vrot.slane %v1506, 1
      %v1540 = vrot.slane %v1507, 1
      %v1541 = vsel %vm326, %v1539, %v1540
      %v1542 = vrot.slane %v1508, 1
      %v1543 = vrot.slane %v1509, 1
      %v1544 = vsel %vm326, %v1542, %v1543
      %v1545 = vrot.slane %v1510, 1
      %v1546 = vrot.slane %v1511, 1
      %v1547 = vsel %vm326, %v1545, %v1546
      %v1548 = vrot.slane %v1512, 1
      %v1549 = vrot.slane %v1513, 1
      %v1550 = vsel %vm326, %v1548, %v1549
      %v1551 = vrot.slane %v1514, 1
      %v1552 = vrot.slane %v1515, 1
      %v1553 = vsel %vm326, %v1551, %v1552
      %v1554 = vrot.slane %v1516, 1
      %v1555 = vrot.slane %v1517, 1
      %v1556 = vsel %vm326, %v1554, %v1555
      %v1557 = vrot.slane %v1518, 1
      %v1558 = vrot.slane %v1519, 1
      %v1559 = vsel %vm326, %v1557, %v1558
      %v1576 = vadd.f32 %v1483, %v1538
      %v1577 = vadd.f32 %v1484, %v1537
      %v1578 = vadd.f32 %v1485, %v1541
      %v1579 = vadd.f32 %v1486, %v1540
      %v1580 = vadd.f32 %v1487, %v1544
      %v1581 = vadd.f32 %v1488, %v1543
      %v1582 = vadd.f32 %v1489, %v1547
      %v1583 = vadd.f32 %v1490, %v1546
      %v1584 = vadd.f32 %v1491, %v1550
      %v1585 = vadd.f32 %v1492, %v1549
      %v1586 = vadd.f32 %v1493, %v1553
      %v1587 = vadd.f32 %v1494, %v1552
      %v1588 = vadd.f32 %v1495, %v1556
      %v1589 = vadd.f32 %v1496, %v1555
      %v1590 = vadd.f32 %v1497, %v1559
      %v1591 = vadd.f32 %v1498, %v1558
      %v1592 = vld [vmem:[%s1405 + $0x2] sm:$0x1]
      %v1593 = vlaneseq
      %v1594 = vshrl.u32 %v1593, 7
      %v1595 = vsub.s32 0, %v1594
      %v1596 = vrot.slane %v1592, %v1595
      %v1597 = vmul.f32 %v223, %v1596
      %v1598 = vmul.f32 %v226, %v1596
      %v1599 = vmul.f32 %v229, %v1596
      %v1600 = vmul.f32 %v232, %v1596
      %v1601 = vmul.f32 %v235, %v1596
      %v1602 = vmul.f32 %v238, %v1596
      %v1603 = vmul.f32 %v241, %v1596
      %v1604 = vmul.f32 %v244, %v1596
      %v1613 = vrot.slane %v1597, 4
      %v1614 = vrot.slane %v1598, 4
      %v1615 = vrot.slane %v1599, 4
      %v1616 = vrot.slane %v1600, 4
      %v1617 = vrot.slane %v1601, 4
      %v1618 = vrot.slane %v1602, 4
      %v1619 = vrot.slane %v1603, 4
      %v1620 = vrot.slane %v1604, 4
      %v1629 = vadd.f32 %v1576, %v1613
      %v1630 = vadd.f32 %v1577, %v1613
      %v1631 = vadd.f32 %v1578, %v1614
      %v1632 = vadd.f32 %v1579, %v1614
      %v1633 = vadd.f32 %v1580, %v1615
      %v1634 = vadd.f32 %v1581, %v1615
      %v1635 = vadd.f32 %v1582, %v1616
      %v1636 = vadd.f32 %v1583, %v1616
      %v1637 = vadd.f32 %v1584, %v1617
      %v1638 = vadd.f32 %v1585, %v1617
      %v1639 = vadd.f32 %v1586, %v1618
      %v1640 = vadd.f32 %v1587, %v1618
      %v1641 = vadd.f32 %v1588, %v1619
      %v1642 = vadd.f32 %v1589, %v1619
      %v1643 = vadd.f32 %v1590, %v1620
      %v1644 = vadd.f32 %v1591, %v1620
      %v1645 = vld [vmem:[%s3] sm:$0x1]
      %v1646 = vlaneseq
      %v1647 = vshrl.u32 %v1646, 7
      %v1648 = vsub.s32 0, %v1647
      %v1649 = vrot.slane %v1645, %v1648
      %v1650 = vmul.f32 %v198, %v1649
      %v1651 = vmul.f32 %v201, %v1649
      %v1652 = vmul.f32 %v204, %v1649
      %v1653 = vmul.f32 %v207, %v1649
      %v1654 = vmul.f32 %v210, %v1649
      %v1655 = vmul.f32 %v213, %v1649
      %v1656 = vmul.f32 %v216, %v1649
      %v1657 = vmul.f32 %v219, %v1649
      %v1666 = vrot.slane %v1650, 4
      %v1667 = vrot.slane %v1651, 4
      %v1668 = vrot.slane %v1652, 4
      %v1669 = vrot.slane %v1653, 4
      %v1670 = vrot.slane %v1654, 4
      %v1671 = vrot.slane %v1655, 4
      %v1672 = vrot.slane %v1656, 4
      %v1673 = vrot.slane %v1657, 4
      %v1682 = vadd.f32 %v1629, %v1666
      %v1683 = vadd.f32 %v1630, %v1666
      %v1684 = vadd.f32 %v1631, %v1667
      %v1685 = vadd.f32 %v1632, %v1667
      %v1686 = vadd.f32 %v1633, %v1668
      %v1687 = vadd.f32 %v1634, %v1668
      %v1688 = vadd.f32 %v1635, %v1669
      %v1689 = vadd.f32 %v1636, %v1669
      %v1690 = vadd.f32 %v1637, %v1670
      %v1691 = vadd.f32 %v1638, %v1670
      %v1692 = vadd.f32 %v1639, %v1671
      %v1693 = vadd.f32 %v1640, %v1671
      %v1694 = vadd.f32 %v1641, %v1672
      %v1695 = vadd.f32 %v1642, %v1672
      %v1696 = vadd.f32 %v1643, %v1673
      %v1697 = vadd.f32 %v1644, %v1673
      %v1698 = vld [vmem:[%s3 + $0x1] sm:$0x1]
      %v1699 = vlaneseq
      %v1700 = vshrl.u32 %v1699, 7
      %v1701 = vsub.s32 0, %v1700
      %v1702 = vrot.slane %v1698, %v1701
      %v1703 = vmul.f32 %v198, %v1702
      %v1704 = vmul.f32 %v199, %v1702
      %v1705 = vmul.f32 %v201, %v1702
      %v1706 = vmul.f32 %v202, %v1702
      %v1707 = vmul.f32 %v204, %v1702
      %v1708 = vmul.f32 %v205, %v1702
      %v1709 = vmul.f32 %v207, %v1702
      %v1710 = vmul.f32 %v208, %v1702
      %v1711 = vmul.f32 %v210, %v1702
      %v1712 = vmul.f32 %v211, %v1702
      %v1713 = vmul.f32 %v213, %v1702
      %v1714 = vmul.f32 %v214, %v1702
      %v1715 = vmul.f32 %v216, %v1702
      %v1716 = vmul.f32 %v217, %v1702
      %v1717 = vmul.f32 %v219, %v1702
      %v1718 = vmul.f32 %v220, %v1702
      %v1735 = vrot.slane %v1703, 1
      %v1736 = vrot.slane %v1704, 1
      %v1737 = vsel %vm326, %v1735, %v1736
      %v1738 = vrot.slane %v1705, 1
      %v1739 = vrot.slane %v1706, 1
      %v1740 = vsel %vm326, %v1738, %v1739
      %v1741 = vrot.slane %v1707, 1
      %v1742 = vrot.slane %v1708, 1
      %v1743 = vsel %vm326, %v1741, %v1742
      %v1744 = vrot.slane %v1709, 1
      %v1745 = vrot.slane %v1710, 1
      %v1746 = vsel %vm326, %v1744, %v1745
      %v1747 = vrot.slane %v1711, 1
      %v1748 = vrot.slane %v1712, 1
      %v1749 = vsel %vm326, %v1747, %v1748
      %v1750 = vrot.slane %v1713, 1
      %v1751 = vrot.slane %v1714, 1
      %v1752 = vsel %vm326, %v1750, %v1751
      %v1753 = vrot.slane %v1715, 1
      %v1754 = vrot.slane %v1716, 1
      %v1755 = vsel %vm326, %v1753, %v1754
      %v1756 = vrot.slane %v1717, 1
      %v1757 = vrot.slane %v1718, 1
      %v1758 = vsel %vm326, %v1756, %v1757
      %v1775 = vadd.f32 %v1682, %v1737
      %v1776 = vadd.f32 %v1683, %v1736
      %v1777 = vadd.f32 %v1684, %v1740
      %v1778 = vadd.f32 %v1685, %v1739
      %v1779 = vadd.f32 %v1686, %v1743
      %v1780 = vadd.f32 %v1687, %v1742
      %v1781 = vadd.f32 %v1688, %v1746
      %v1782 = vadd.f32 %v1689, %v1745
      %v1783 = vadd.f32 %v1690, %v1749
      %v1784 = vadd.f32 %v1691, %v1748
      %v1785 = vadd.f32 %v1692, %v1752
      %v1786 = vadd.f32 %v1693, %v1751
      %v1787 = vadd.f32 %v1694, %v1755
      %v1788 = vadd.f32 %v1695, %v1754
      %v1789 = vadd.f32 %v1696, %v1758
      %v1790 = vadd.f32 %v1697, %v1757
      %v1791 = vld [vmem:[%s3 + $0x2] sm:$0x1]
      %v1792 = vlaneseq
      %v1793 = vshrl.u32 %v1792, 7
      %v1794 = vsub.s32 0, %v1793
      %v1795 = vrot.slane %v1791, %v1794
      %v1796 = vmul.f32 %v199, %v1795
      %v1797 = vmul.f32 %v200, %v1795
      %v1798 = vmul.f32 %v202, %v1795
      %v1799 = vmul.f32 %v203, %v1795
      %v1800 = vmul.f32 %v205, %v1795
      %v1801 = vmul.f32 %v206, %v1795
      %v1802 = vmul.f32 %v208, %v1795
      %v1803 = vmul.f32 %v209, %v1795
      %v1804 = vmul.f32 %v211, %v1795
      %v1805 = vmul.f32 %v212, %v1795
      %v1806 = vmul.f32 %v214, %v1795
      %v1807 = vmul.f32 %v215, %v1795
      %v1808 = vmul.f32 %v217, %v1795
      %v1809 = vmul.f32 %v218, %v1795
      %v1810 = vmul.f32 %v220, %v1795
      %v1811 = vmul.f32 %v221, %v1795
      %v1828 = vrot.slane %v1796, 6
      %v1829 = vrot.slane %v1797, 6
      %v1830 = vsel %vm962, %v1828, %v1829
      %v1831 = vrot.slane %v1798, 6
      %v1832 = vrot.slane %v1799, 6
      %v1833 = vsel %vm962, %v1831, %v1832
      %v1834 = vrot.slane %v1800, 6
      %v1835 = vrot.slane %v1801, 6
      %v1836 = vsel %vm962, %v1834, %v1835
      %v1837 = vrot.slane %v1802, 6
      %v1838 = vrot.slane %v1803, 6
      %v1839 = vsel %vm962, %v1837, %v1838
      %v1840 = vrot.slane %v1804, 6
      %v1841 = vrot.slane %v1805, 6
      %v1842 = vsel %vm962, %v1840, %v1841
      %v1843 = vrot.slane %v1806, 6
      %v1844 = vrot.slane %v1807, 6
      %v1845 = vsel %vm962, %v1843, %v1844
      %v1846 = vrot.slane %v1808, 6
      %v1847 = vrot.slane %v1809, 6
      %v1848 = vsel %vm962, %v1846, %v1847
      %v1849 = vrot.slane %v1810, 6
      %v1850 = vrot.slane %v1811, 6
      %v1851 = vsel %vm962, %v1849, %v1850
      %v1868 = vadd.f32 %v1775, %v1828
      %v1869 = vadd.f32 %v1776, %v1830
      %v1870 = vadd.f32 %v1777, %v1831
      %v1871 = vadd.f32 %v1778, %v1833
      %v1872 = vadd.f32 %v1779, %v1834
      %v1873 = vadd.f32 %v1780, %v1836
      %v1874 = vadd.f32 %v1781, %v1837
      %v1875 = vadd.f32 %v1782, %v1839
      %v1876 = vadd.f32 %v1783, %v1840
      %v1877 = vadd.f32 %v1784, %v1842
      %v1878 = vadd.f32 %v1785, %v1843
      %v1879 = vadd.f32 %v1786, %v1845
      %v1880 = vadd.f32 %v1787, %v1846
      %v1881 = vadd.f32 %v1788, %v1848
      %v1882 = vadd.f32 %v1789, %v1849
      %v1883 = vadd.f32 %v1790, %v1851
      %s1884 = scalar_lea.vmem %s3, 4
      %v1885 = vld [vmem:[%s1884] sm:$0x1]
      %v1886 = vlaneseq
      %v1887 = vshrl.u32 %v1886, 7
      %v1888 = vsub.s32 0, %v1887
      %v1889 = vrot.slane %v1885, %v1888
      %v1890 = vmul.f32 %v213, %v1889
      %v1891 = vmul.f32 %v216, %v1889
      %v1892 = vmul.f32 %v219, %v1889
      %v1893 = vmul.f32 %v222, %v1889
      %v1894 = vmul.f32 %v225, %v1889
      %v1895 = vmul.f32 %v228, %v1889
      %v1896 = vmul.f32 %v231, %v1889
      %v1897 = vmul.f32 %v234, %v1889
      %v1906 = vrot.slane %v1890, 4
      %v1907 = vrot.slane %v1891, 4
      %v1908 = vrot.slane %v1892, 4
      %v1909 = vrot.slane %v1893, 4
      %v1910 = vrot.slane %v1894, 4
      %v1911 = vrot.slane %v1895, 4
      %v1912 = vrot.slane %v1896, 4
      %v1913 = vrot.slane %v1897, 4
      %v1922 = vadd.f32 %v1868, %v1906
      %v1923 = vadd.f32 %v1869, %v1906
      %v1924 = vadd.f32 %v1870, %v1907
      %v1925 = vadd.f32 %v1871, %v1907
      %v1926 = vadd.f32 %v1872, %v1908
      %v1927 = vadd.f32 %v1873, %v1908
      %v1928 = vadd.f32 %v1874, %v1909
      %v1929 = vadd.f32 %v1875, %v1909
      %v1930 = vadd.f32 %v1876, %v1910
      %v1931 = vadd.f32 %v1877, %v1910
      %v1932 = vadd.f32 %v1878, %v1911
      %v1933 = vadd.f32 %v1879, %v1911
      %v1934 = vadd.f32 %v1880, %v1912
      %v1935 = vadd.f32 %v1881, %v1912
      %v1936 = vadd.f32 %v1882, %v1913
      %v1937 = vadd.f32 %v1883, %v1913
      %v1938 = vld [vmem:[%s1884 + $0x1] sm:$0x1]
      %v1939 = vlaneseq
      %v1940 = vshrl.u32 %v1939, 7
      %v1941 = vsub.s32 0, %v1940
      %v1942 = vrot.slane %v1938, %v1941
      %v1943 = vmul.f32 %v213, %v1942
      %v1944 = vmul.f32 %v214, %v1942
      %v1945 = vmul.f32 %v216, %v1942
      %v1946 = vmul.f32 %v217, %v1942
      %v1947 = vmul.f32 %v219, %v1942
      %v1948 = vmul.f32 %v220, %v1942
      %v1949 = vmul.f32 %v222, %v1942
      %v1950 = vmul.f32 %v223, %v1942
      %v1951 = vmul.f32 %v225, %v1942
      %v1952 = vmul.f32 %v226, %v1942
      %v1953 = vmul.f32 %v228, %v1942
      %v1954 = vmul.f32 %v229, %v1942
      %v1955 = vmul.f32 %v231, %v1942
      %v1956 = vmul.f32 %v232, %v1942
      %v1957 = vmul.f32 %v234, %v1942
      %v1958 = vmul.f32 %v235, %v1942
      %v1975 = vrot.slane %v1943, 1
      %v1976 = vrot.slane %v1944, 1
      %v1977 = vsel %vm326, %v1975, %v1976
      %v1978 = vrot.slane %v1945, 1
      %v1979 = vrot.slane %v1946, 1
      %v1980 = vsel %vm326, %v1978, %v1979
      %v1981 = vrot.slane %v1947, 1
      %v1982 = vrot.slane %v1948, 1
      %v1983 = vsel %vm326, %v1981, %v1982
      %v1984 = vrot.slane %v1949, 1
      %v1985 = vrot.slane %v1950, 1
      %v1986 = vsel %vm326, %v1984, %v1985
      %v1987 = vrot.slane %v1951, 1
      %v1988 = vrot.slane %v1952, 1
      %v1989 = vsel %vm326, %v1987, %v1988
      %v1990 = vrot.slane %v1953, 1
      %v1991 = vrot.slane %v1954, 1
      %v1992 = vsel %vm326, %v1990, %v1991
      %v1993 = vrot.slane %v1955, 1
      %v1994 = vrot.slane %v1956, 1
      %v1995 = vsel %vm326, %v1993, %v1994
      %v1996 = vrot.slane %v1957, 1
      %v1997 = vrot.slane %v1958, 1
      %v1998 = vsel %vm326, %v1996, %v1997
      %v2015 = vadd.f32 %v1922, %v1977
      %v2016 = vadd.f32 %v1923, %v1976
      %v2017 = vadd.f32 %v1924, %v1980
      %v2018 = vadd.f32 %v1925, %v1979
      %v2019 = vadd.f32 %v1926, %v1983
      %v2020 = vadd.f32 %v1927, %v1982
      %v2021 = vadd.f32 %v1928, %v1986
      %v2022 = vadd.f32 %v1929, %v1985
      %v2023 = vadd.f32 %v1930, %v1989
      %v2024 = vadd.f32 %v1931, %v1988
      %v2025 = vadd.f32 %v1932, %v1992
      %v2026 = vadd.f32 %v1933, %v1991
      %v2027 = vadd.f32 %v1934, %v1995
      %v2028 = vadd.f32 %v1935, %v1994
      %v2029 = vadd.f32 %v1936, %v1998
      %v2030 = vadd.f32 %v1937, %v1997
      %v2031 = vld [vmem:[%s1884 + $0x2] sm:$0x1]
      %v2032 = vlaneseq
      %v2033 = vshrl.u32 %v2032, 7
      %v2034 = vsub.s32 0, %v2033
      %v2035 = vrot.slane %v2031, %v2034
      %v2036 = vmul.f32 %v214, %v2035
      %v2037 = vmul.f32 %v215, %v2035
      %v2038 = vmul.f32 %v217, %v2035
      %v2039 = vmul.f32 %v218, %v2035
      %v2040 = vmul.f32 %v220, %v2035
      %v2041 = vmul.f32 %v221, %v2035
      %v2042 = vmul.f32 %v223, %v2035
      %v2043 = vmul.f32 %v224, %v2035
      %v2044 = vmul.f32 %v226, %v2035
      %v2045 = vmul.f32 %v227, %v2035
      %v2046 = vmul.f32 %v229, %v2035
      %v2047 = vmul.f32 %v230, %v2035
      %v2048 = vmul.f32 %v232, %v2035
      %v2049 = vmul.f32 %v233, %v2035
      %v2050 = vmul.f32 %v235, %v2035
      %v2051 = vmul.f32 %v236, %v2035
      %v2068 = vrot.slane %v2036, 6
      %v2069 = vrot.slane %v2037, 6
      %v2070 = vsel %vm962, %v2068, %v2069
      %v2071 = vrot.slane %v2038, 6
      %v2072 = vrot.slane %v2039, 6
      %v2073 = vsel %vm962, %v2071, %v2072
      %v2074 = vrot.slane %v2040, 6
      %v2075 = vrot.slane %v2041, 6
      %v2076 = vsel %vm962, %v2074, %v2075
      %v2077 = vrot.slane %v2042, 6
      %v2078 = vrot.slane %v2043, 6
      %v2079 = vsel %vm962, %v2077, %v2078
      %v2080 = vrot.slane %v2044, 6
      %v2081 = vrot.slane %v2045, 6
      %v2082 = vsel %vm962, %v2080, %v2081
      %v2083 = vrot.slane %v2046, 6
      %v2084 = vrot.slane %v2047, 6
      %v2085 = vsel %vm962, %v2083, %v2084
      %v2086 = vrot.slane %v2048, 6
      %v2087 = vrot.slane %v2049, 6
      %v2088 = vsel %vm962, %v2086, %v2087
      %v2089 = vrot.slane %v2050, 6
      %v2090 = vrot.slane %v2051, 6
      %v2091 = vsel %vm962, %v2089, %v2090
      %v2108 = vadd.f32 %v2015, %v2068
      %v2109 = vadd.f32 %v2016, %v2070
      %v2110 = vadd.f32 %v2017, %v2071
      %v2111 = vadd.f32 %v2018, %v2073
      %v2112 = vadd.f32 %v2019, %v2074
      %v2113 = vadd.f32 %v2020, %v2076
      %v2114 = vadd.f32 %v2021, %v2077
      %v2115 = vadd.f32 %v2022, %v2079
      %v2116 = vadd.f32 %v2023, %v2080
      %v2117 = vadd.f32 %v2024, %v2082
      %v2118 = vadd.f32 %v2025, %v2083
      %v2119 = vadd.f32 %v2026, %v2085
      %v2120 = vadd.f32 %v2027, %v2086
      %v2121 = vadd.f32 %v2028, %v2088
      %v2122 = vadd.f32 %v2029, %v2089
      %v2123 = vadd.f32 %v2030, %v2091
      %s2124 = scalar_lea.vmem %s3, 8
      %v2125 = vld [vmem:[%s2124] sm:$0x1]
      %v2126 = vlaneseq
      %v2127 = vshrl.u32 %v2126, 7
      %v2128 = vsub.s32 0, %v2127
      %v2129 = vrot.slane %v2125, %v2128
      %v2130 = vmul.f32 %v228, %v2129
      %v2131 = vmul.f32 %v231, %v2129
      %v2132 = vmul.f32 %v234, %v2129
      %v2133 = vmul.f32 %v237, %v2129
      %v2134 = vmul.f32 %v240, %v2129
      %v2135 = vmul.f32 %v243, %v2129
      %v2136 = vmul.f32 %v246, %v2129
      %v2137 = vmul.f32 %v249, %v2129
      %v2146 = vrot.slane %v2130, 4
      %v2147 = vrot.slane %v2131, 4
      %v2148 = vrot.slane %v2132, 4
      %v2149 = vrot.slane %v2133, 4
      %v2150 = vrot.slane %v2134, 4
      %v2151 = vrot.slane %v2135, 4
      %v2152 = vrot.slane %v2136, 4
      %v2153 = vrot.slane %v2137, 4
      %v2162 = vadd.f32 %v2108, %v2146
      %v2163 = vadd.f32 %v2109, %v2146
      %v2164 = vadd.f32 %v2110, %v2147
      %v2165 = vadd.f32 %v2111, %v2147
      %v2166 = vadd.f32 %v2112, %v2148
      %v2167 = vadd.f32 %v2113, %v2148
      %v2168 = vadd.f32 %v2114, %v2149
      %v2169 = vadd.f32 %v2115, %v2149
      %v2170 = vadd.f32 %v2116, %v2150
      %v2171 = vadd.f32 %v2117, %v2150
      %v2172 = vadd.f32 %v2118, %v2151
      %v2173 = vadd.f32 %v2119, %v2151
      %v2174 = vadd.f32 %v2120, %v2152
      %v2175 = vadd.f32 %v2121, %v2152
      %v2176 = vadd.f32 %v2122, %v2153
      %v2177 = vadd.f32 %v2123, %v2153
      %v2178 = vld [vmem:[%s2124 + $0x1] sm:$0x1]
      %v2179 = vlaneseq
      %v2180 = vshrl.u32 %v2179, 7
      %v2181 = vsub.s32 0, %v2180
      %v2182 = vrot.slane %v2178, %v2181
      %v2183 = vmul.f32 %v228, %v2182
      %v2184 = vmul.f32 %v229, %v2182
      %v2185 = vmul.f32 %v231, %v2182
      %v2186 = vmul.f32 %v232, %v2182
      %v2187 = vmul.f32 %v234, %v2182
      %v2188 = vmul.f32 %v235, %v2182
      %v2189 = vmul.f32 %v237, %v2182
      %v2190 = vmul.f32 %v238, %v2182
      %v2191 = vmul.f32 %v240, %v2182
      %v2192 = vmul.f32 %v241, %v2182
      %v2193 = vmul.f32 %v243, %v2182
      %v2194 = vmul.f32 %v244, %v2182
      %v2195 = vmul.f32 %v246, %v2182
      %v2196 = vmul.f32 %v247, %v2182
      %v2197 = vmul.f32 %v249, %v2182
      %v2198 = vmul.f32 %v250, %v2182
      %v2215 = vrot.slane %v2183, 1
      %v2216 = vrot.slane %v2184, 1
      %v2217 = vsel %vm326, %v2215, %v2216
      %v2218 = vrot.slane %v2185, 1
      %v2219 = vrot.slane %v2186, 1
      %v2220 = vsel %vm326, %v2218, %v2219
      %v2221 = vrot.slane %v2187, 1
      %v2222 = vrot.slane %v2188, 1
      %v2223 = vsel %vm326, %v2221, %v2222
      %v2224 = vrot.slane %v2189, 1
      %v2225 = vrot.slane %v2190, 1
      %v2226 = vsel %vm326, %v2224, %v2225
      %v2227 = vrot.slane %v2191, 1
      %v2228 = vrot.slane %v2192, 1
      %v2229 = vsel %vm326, %v2227, %v2228
      %v2230 = vrot.slane %v2193, 1
      %v2231 = vrot.slane %v2194, 1
      %v2232 = vsel %vm326, %v2230, %v2231
      %v2233 = vrot.slane %v2195, 1
      %v2234 = vrot.slane %v2196, 1
      %v2235 = vsel %vm326, %v2233, %v2234
      %v2236 = vrot.slane %v2197, 1
      %v2237 = vrot.slane %v2198, 1
      %v2238 = vsel %vm326, %v2236, %v2237
      %v2255 = vadd.f32 %v2162, %v2217
      %v2256 = vadd.f32 %v2163, %v2216
      %v2257 = vadd.f32 %v2164, %v2220
      %v2258 = vadd.f32 %v2165, %v2219
      %v2259 = vadd.f32 %v2166, %v2223
      %v2260 = vadd.f32 %v2167, %v2222
      %v2261 = vadd.f32 %v2168, %v2226
      %v2262 = vadd.f32 %v2169, %v2225
      %v2263 = vadd.f32 %v2170, %v2229
      %v2264 = vadd.f32 %v2171, %v2228
      %v2265 = vadd.f32 %v2172, %v2232
      %v2266 = vadd.f32 %v2173, %v2231
      %v2267 = vadd.f32 %v2174, %v2235
      %v2268 = vadd.f32 %v2175, %v2234
      %v2269 = vadd.f32 %v2176, %v2238
      %v2270 = vadd.f32 %v2177, %v2237
      %v2271 = vld [vmem:[%s2124 + $0x2] sm:$0x1]
      %v2272 = vlaneseq
      %v2273 = vshrl.u32 %v2272, 7
      %v2274 = vsub.s32 0, %v2273
      %v2275 = vrot.slane %v2271, %v2274
      %v2276 = vmul.f32 %v229, %v2275
      %v2277 = vmul.f32 %v230, %v2275
      %v2278 = vmul.f32 %v232, %v2275
      %v2279 = vmul.f32 %v233, %v2275
      %v2280 = vmul.f32 %v235, %v2275
      %v2281 = vmul.f32 %v236, %v2275
      %v2282 = vmul.f32 %v238, %v2275
      %v2283 = vmul.f32 %v239, %v2275
      %v2284 = vmul.f32 %v241, %v2275
      %v2285 = vmul.f32 %v242, %v2275
      %v2286 = vmul.f32 %v244, %v2275
      %v2287 = vmul.f32 %v245, %v2275
      %v2288 = vmul.f32 %v247, %v2275
      %v2289 = vmul.f32 %v248, %v2275
      %v2290 = vmul.f32 %v250, %v2275
      %v2291 = vmul.f32 %v251, %v2275
      %v2308 = vrot.slane %v2276, 6
      %v2309 = vrot.slane %v2277, 6
      %v2310 = vsel %vm962, %v2308, %v2309
      %v2311 = vrot.slane %v2278, 6
      %v2312 = vrot.slane %v2279, 6
      %v2313 = vsel %vm962, %v2311, %v2312
      %v2314 = vrot.slane %v2280, 6
      %v2315 = vrot.slane %v2281, 6
      %v2316 = vsel %vm962, %v2314, %v2315
      %v2317 = vrot.slane %v2282, 6
      %v2318 = vrot.slane %v2283, 6
      %v2319 = vsel %vm962, %v2317, %v2318
      %v2320 = vrot.slane %v2284, 6
      %v2321 = vrot.slane %v2285, 6
      %v2322 = vsel %vm962, %v2320, %v2321
      %v2323 = vrot.slane %v2286, 6
      %v2324 = vrot.slane %v2287, 6
      %v2325 = vsel %vm962, %v2323, %v2324
      %v2326 = vrot.slane %v2288, 6
      %v2327 = vrot.slane %v2289, 6
      %v2328 = vsel %vm962, %v2326, %v2327
      %v2329 = vrot.slane %v2290, 6
      %v2330 = vrot.slane %v2291, 6
      %v2331 = vsel %vm962, %v2329, %v2330
      %v2348 = vadd.f32 %v2255, %v2308
      %v2349 = vadd.f32 %v2256, %v2310
      %v2350 = vadd.f32 %v2257, %v2311
      %v2351 = vadd.f32 %v2258, %v2313
      %v2352 = vadd.f32 %v2259, %v2314
      %v2353 = vadd.f32 %v2260, %v2316
      %v2354 = vadd.f32 %v2261, %v2317
      %v2355 = vadd.f32 %v2262, %v2319
      %v2356 = vadd.f32 %v2263, %v2320
      %v2357 = vadd.f32 %v2264, %v2322
      %v2358 = vadd.f32 %v2265, %v2323
      %v2359 = vadd.f32 %v2266, %v2325
      %v2360 = vadd.f32 %v2267, %v2326
      %v2361 = vadd.f32 %v2268, %v2328
      %v2362 = vadd.f32 %v2269, %v2329
      %v2363 = vadd.f32 %v2270, %v2331
      %vm2364 = vcmask 523268
      %2365 = vst.msk [vmem:[%s197 - $0x4] sm:$0xf0] %vm2364, %v2348
      %vm2366 = vcmask 519168
      %2367 = vst.msk [vmem:[%s197 + $0x4] sm:$0xf] %vm2366, %v2349
      %2368 = vst.msk [vmem:[%s197 + $0x4] sm:$0xf0] %vm2364, %v2350
      %2369 = vst.msk [vmem:[%s197 + $0xc] sm:$0xf] %vm2366, %v2351
      %2370 = vst.msk [vmem:[%s197 + $0xc] sm:$0xf0] %vm2364, %v2352
      %2371 = vst.msk [vmem:[%s197 + $0x14] sm:$0xf] %vm2366, %v2353
      %2372 = vst.msk [vmem:[%s197 + $0x14] sm:$0xf0] %vm2364, %v2354
      %2373 = vst.msk [vmem:[%s197 + $0x1c] sm:$0xf] %vm2366, %v2355
      %2374 = vst.msk [vmem:[%s197 + $0x1c] sm:$0xf0] %vm2364, %v2356
      %2375 = vst.msk [vmem:[%s197 + $0x24] sm:$0xf] %vm2366, %v2357
      %2376 = vst.msk [vmem:[%s197 + $0x24] sm:$0xf0] %vm2364, %v2358
      %2377 = vst.msk [vmem:[%s197 + $0x2c] sm:$0xf] %vm2366, %v2359
      %2378 = vst.msk [vmem:[%s197 + $0x2c] sm:$0xf0] %vm2364, %v2360
      %2379 = vst.msk [vmem:[%s197 + $0x34] sm:$0xf] %vm2366, %v2361
      %2380 = vst.msk [vmem:[%s197 + $0x34] sm:$0xf0] %vm2364, %v2362
      %2381 = vst.msk [vmem:[%s197 + $0x3c] sm:$0xf] %vm2366, %v2363
      %p2382 = scmp.lt.s32.totalorder %s15, 1
      %s2383 = scalar_select %p2382, %s15, 1
      %s2384 = smul.addr %s2383, 8
      %s2385 = smul.addr %s2384, 8
      %s2386 = scalar_lea.vmem %s4, %s2385
      // Predicated region
      $region37: #{spatial_mamba_block.12} parent=35 // pred_check
        %p2387 = pneg %p122
      $region38: #{spatial_mamba_block.12} parent=35 // pred_check_branch
        %2389 = sbr.rel (%p2387) target = $region40
      $region39: #{spatial_mamba_block.12} parent=35 // pred_region
        _
      $region40: #{spatial_mamba_block.12} parent=35 // pred_fallthru
        _
    $region36: #{spatial_mamba_block.12} parent=5 // pred_fallthru
      _
    %p2390 = scmp.le.s32.totalorder 2, %s10
    // Predicated region
    $region41: #{spatial_mamba_block.12} parent=5 // pred_check
      %p2391 = pneg %p2390
    $region42: #{spatial_mamba_block.12} parent=5 // pred_check_branch
      %2393 = sbr.rel (%p2391) target = $region44
    $region43: #{spatial_mamba_block.12} parent=5 // pred_region
      %s2394 = ssub.s32 %s10, 2
      // Predicated region
      $region45: #{spatial_mamba_block.12} parent=43 // pred_check
        %p2395 = pneg %p128
      $region46: #{spatial_mamba_block.12} parent=43 // pred_check_branch
        %2397 = sbr.rel (%p2395) target = $region48
      $region47: #{spatial_mamba_block.12} parent=43 // pred_region
        %p2398 = scmp.lt.s32.totalorder %s16, 1
        %s2399 = scalar_select %p2398, %s16, 1
        %s2400 = smul.addr %s2399, 8
        %s2401 = smul.addr %s2400, 8
        %s2402 = scalar_lea.vmem %s4, %s2401
      $region48: #{spatial_mamba_block.12} parent=43 // pred_fallthru
        _
    $region44: #{spatial_mamba_block.12} parent=5 // pred_fallthru
      _
  $region6: #{spatial_mamba_block.12} parent=0 // loop_footer
    %s14 = sadd.s32 1, %s10
  $region7: #{spatial_mamba_block.12} parent=0 // loop_footer_branch
    %9 = sbr.rel target = $region3
  $region8: #{spatial_mamba_block.12} parent=0 // loop_exit
    _

// kernel: spatial_mamba_block.15
$region0: #{spatial_mamba_block.15}
  #allocation0 [shape = 'u32[]', space=smem, size = 0x4, offset = 0x4, fixed_abs, tag = 'smem constant byte address 0x4 - core index']
  #allocation1 [shape = 'u32[144,128]{1,0:T(1,128)}', space=vmem, size = 0x12000, scoped, tag = 'internal scratch']
  %s0 = inlined_call_operand.vmem [shape: f32[128,32], index: 0, kind: input, shape index: {}]
  %s1 = inlined_call_operand.vmem [shape: f32[1,32], index: 1, kind: input, shape index: {}]
  %s2 = inlined_call_operand.vmem [shape: f32[1,32], index: 2, kind: input, shape index: {}]
  %s3 = inlined_call_operand.vmem [shape: f32[32,128], index: 3, kind: input, shape index: {}]
  %s4 = inlined_call_operand.vmem [shape: f32[1,128], index: 4, kind: input, shape index: {}]
  %s5 = inlined_call_operand.vmem [shape: f32[128,32], index: 5, kind: input, shape index: {}]
  %s6 = inlined_call_operand.vmem [shape: f32[1,32], index: 6, kind: input, shape index: {}]
  %s7 = inlined_call_operand.hbm [shape: f32[128,32], index: 7, kind: output, shape index: {}]
  %s8 = sld [smem:[#allocation0]]
  $region38: #{spatial_mamba_block.15} parent=0
    _
  %s10 = ssub.s32 1, %s8
  %s11 = scalar_select 0, %s10, %s8
  $region1: #{spatial_mamba_block.15} parent=0
    #allocation2 [shape = 'u8[65536]{0}', space=vmem, size = 0x10000, scoped, tag = 'output window, operand 0, single buffered']
    #allocation3 [shape = 's32[1]{0}', space=sflag, size = 0x4, scoped, tag = 'scoped memory for spatial_mamba_block.15']
    %12 = vsyncpa [#allocation3], 0
    // Predicated region
    $region2: #{spatial_mamba_block.15} parent=1 // pred_check
      _
    $region3: #{spatial_mamba_block.15} parent=1 // pred_check_branch
      %14 = sbr.rel (0) target = $region5
    $region4: #{spatial_mamba_block.15} parent=1 // pred_region
      _
    $region5: #{spatial_mamba_block.15} parent=1 // pred_fallthru
      _
    // Predicated region
    $region6: #{spatial_mamba_block.15} parent=1 // pred_check
      _
    $region7: #{spatial_mamba_block.15} parent=1 // pred_check_branch
      %16 = sbr.rel (0) target = $region9
    $region8: #{spatial_mamba_block.15} parent=1 // pred_region
      _
    $region9: #{spatial_mamba_block.15} parent=1 // pred_fallthru
      _
    // Predicated region
    $region10: #{spatial_mamba_block.15} parent=1 // pred_check
      _
    $region11: #{spatial_mamba_block.15} parent=1 // pred_check_branch
      %18 = sbr.rel (0) target = $region13
    $region12: #{spatial_mamba_block.15} parent=1 // pred_region
      _
    $region13: #{spatial_mamba_block.15} parent=1 // pred_fallthru
      _
    // Predicated region
    $region14: #{spatial_mamba_block.15} parent=1 // pred_check
      _
    $region15: #{spatial_mamba_block.15} parent=1 // pred_check_branch
      %20 = sbr.rel (0) target = $region17
    $region16: #{spatial_mamba_block.15} parent=1 // pred_region
      _
    $region17: #{spatial_mamba_block.15} parent=1 // pred_fallthru
      _
    // Predicated region
    $region18: #{spatial_mamba_block.15} parent=1 // pred_check
      _
    $region19: #{spatial_mamba_block.15} parent=1 // pred_check_branch
      %22 = sbr.rel (0) target = $region21
    $region20: #{spatial_mamba_block.15} parent=1 // pred_region
      _
    $region21: #{spatial_mamba_block.15} parent=1 // pred_fallthru
      _
    // Predicated region
    $region22: #{spatial_mamba_block.15} parent=1 // pred_check
      _
    $region23: #{spatial_mamba_block.15} parent=1 // pred_check_branch
      %24 = sbr.rel (0) target = $region25
    $region24: #{spatial_mamba_block.15} parent=1 // pred_region
      _
    $region25: #{spatial_mamba_block.15} parent=1 // pred_fallthru
      _
    // Predicated region
    $region26: #{spatial_mamba_block.15} parent=1 // pred_check
      _
    $region27: #{spatial_mamba_block.15} parent=1 // pred_check_branch
      %26 = sbr.rel (0) target = $region29
    $region28: #{spatial_mamba_block.15} parent=1 // pred_region
      _
    $region29: #{spatial_mamba_block.15} parent=1 // pred_fallthru
      _
    %v27 = vld [vmem:[%s0] sm:$0xff]
    %v28 = vld [vmem:[%s0 + $0x8] sm:$0xff]
    %v29 = vld [vmem:[%s0 + $0x10] sm:$0xff]
    %v30 = vld [vmem:[%s0 + $0x18] sm:$0xff]
    %v31 = vld [vmem:[%s0 + $0x20] sm:$0xff]
    %v32 = vld [vmem:[%s0 + $0x28] sm:$0xff]
    %v33 = vld [vmem:[%s0 + $0x30] sm:$0xff]
    %v34 = vld [vmem:[%s0 + $0x38] sm:$0xff]
    %v35 = vld [vmem:[%s0 + $0x40] sm:$0xff]
    %v36 = vld [vmem:[%s0 + $0x48] sm:$0xff]
    %v37 = vld [vmem:[%s0 + $0x50] sm:$0xff]
    %v38 = vld [vmem:[%s0 + $0x58] sm:$0xff]
    %v39 = vld [vmem:[%s0 + $0x60] sm:$0xff]
    %v40 = vld [vmem:[%s0 + $0x68] sm:$0xff]
    %v41 = vld [vmem:[%s0 + $0x70] sm:$0xff]
    %v42 = vld [vmem:[%s0 + $0x78] sm:$0xff]
    %vm43 = vcmask 261120
    %v44 = vsel %vm43, %v27, 0.0
    %45 = vadd.xlane.f32.xlu0 %v44
    %v46 = vpop.xlane.xlu0 %45
    %v47 = vsel %vm43, %v28, 0.0
    %48 = vadd.xlane.f32.xlu0 %v47
    %v49 = vpop.xlane.xlu0 %48
    %v50 = vsel %vm43, %v29, 0.0
    %51 = vadd.xlane.f32.xlu0 %v50
    %v52 = vpop.xlane.xlu0 %51
    %v53 = vsel %vm43, %v30, 0.0
    %54 = vadd.xlane.f32.xlu0 %v53
    %v55 = vpop.xlane.xlu0 %54
    %v56 = vsel %vm43, %v31, 0.0
    %57 = vadd.xlane.f32.xlu0 %v56
    %v58 = vpop.xlane.xlu0 %57
    %v59 = vsel %vm43, %v32, 0.0
    %60 = vadd.xlane.f32.xlu0 %v59
    %v61 = vpop.xlane.xlu0 %60
    %v62 = vsel %vm43, %v33, 0.0
    %63 = vadd.xlane.f32.xlu0 %v62
    %v64 = vpop.xlane.xlu0 %63
    %v65 = vsel %vm43, %v34, 0.0
    %66 = vadd.xlane.f32.xlu0 %v65
    %v67 = vpop.xlane.xlu0 %66
    %v68 = vsel %vm43, %v35, 0.0
    %69 = vadd.xlane.f32.xlu0 %v68
    %v70 = vpop.xlane.xlu0 %69
    %v71 = vsel %vm43, %v36, 0.0
    %72 = vadd.xlane.f32.xlu0 %v71
    %v73 = vpop.xlane.xlu0 %72
    %v74 = vsel %vm43, %v37, 0.0
    %75 = vadd.xlane.f32.xlu0 %v74
    %v76 = vpop.xlane.xlu0 %75
    %v77 = vsel %vm43, %v38, 0.0
    %78 = vadd.xlane.f32.xlu0 %v77
    %v79 = vpop.xlane.xlu0 %78
    %v80 = vsel %vm43, %v39, 0.0
    %81 = vadd.xlane.f32.xlu0 %v80
    %v82 = vpop.xlane.xlu0 %81
    %v83 = vsel %vm43, %v40, 0.0
    %84 = vadd.xlane.f32.xlu0 %v83
    %v85 = vpop.xlane.xlu0 %84
    %v86 = vsel %vm43, %v41, 0.0
    %87 = vadd.xlane.f32.xlu0 %v86
    %v88 = vpop.xlane.xlu0 %87
    %v89 = vsel %vm43, %v42, 0.0
    %90 = vadd.xlane.f32.xlu0 %v89
    %v91 = vpop.xlane.xlu0 %90
    %v92 = vrcp.pop 32.0
    %v93 = vmul.f32 %v46, %v92
    %v94 = vmul.f32 %v49, %v92
    %v95 = vmul.f32 %v52, %v92
    %v96 = vmul.f32 %v55, %v92
    %v97 = vmul.f32 %v58, %v92
    %v98 = vmul.f32 %v61, %v92
    %v99 = vmul.f32 %v64, %v92
    %v100 = vmul.f32 %v67, %v92
    %v101 = vmul.f32 %v70, %v92
    %v102 = vmul.f32 %v73, %v92
    %v103 = vmul.f32 %v76, %v92
    %v104 = vmul.f32 %v79, %v92
    %v105 = vmul.f32 %v82, %v92
    %v106 = vmul.f32 %v85, %v92
    %v107 = vmul.f32 %v88, %v92
    %v108 = vmul.f32 %v91, %v92
    %v109 = vsub.f32 %v27, %v93
    %v110 = vsub.f32 %v28, %v94
    %v111 = vsub.f32 %v29, %v95
    %v112 = vsub.f32 %v30, %v96
    %v113 = vsub.f32 %v31, %v97
    %v114 = vsub.f32 %v32, %v98
    %v115 = vsub.f32 %v33, %v99
    %v116 = vsub.f32 %v34, %v100
    %v117 = vsub.f32 %v35, %v101
    %v118 = vsub.f32 %v36, %v102
    %v119 = vsub.f32 %v37, %v103
    %v120 = vsub.f32 %v38, %v104
    %v121 = vsub.f32 %v39, %v105
    %v122 = vsub.f32 %v40, %v106
    %v123 = vsub.f32 %v41, %v107
    %v124 = vsub.f32 %v42, %v108
    %v125 = vmul.f32 %v109, %v109
    %v126 = vmul.f32 %v110, %v110
    %v127 = vmul.f32 %v111, %v111
    %v128 = vmul.f32 %v112, %v112
    %v129 = vmul.f32 %v113, %v113
    %v130 = vmul.f32 %v114, %v114
    %v131 = vmul.f32 %v115, %v115
    %v132 = vmul.f32 %v116, %v116
    %v133 = vmul.f32 %v117, %v117
    %v134 = vmul.f32 %v118, %v118
    %v135 = vmul.f32 %v119, %v119
    %v136 = vmul.f32 %v120, %v120
    %v137 = vmul.f32 %v121, %v121
    %v138 = vmul.f32 %v122, %v122
    %v139 = vmul.f32 %v123, %v123
    %v140 = vmul.f32 %v124, %v124
    %v141 = vsel %vm43, %v125, 0.0
    %142 = vadd.xlane.f32.xlu0 %v141
    %v143 = vpop.xlane.xlu0 %142
    %v144 = vsel %vm43, %v126, 0.0
    %145 = vadd.xlane.f32.xlu0 %v144
    %v146 = vpop.xlane.xlu0 %145
    %v147 = vsel %vm43, %v127, 0.0
    %148 = vadd.xlane.f32.xlu0 %v147
    %v149 = vpop.xlane.xlu0 %148
    %v150 = vsel %vm43, %v128, 0.0
    %151 = vadd.xlane.f32.xlu0 %v150
    %v152 = vpop.xlane.xlu0 %151
    %v153 = vsel %vm43, %v129, 0.0
    %154 = vadd.xlane.f32.xlu0 %v153
    %v155 = vpop.xlane.xlu0 %154
    %v156 = vsel %vm43, %v130, 0.0
    %157 = vadd.xlane.f32.xlu0 %v156
    %v158 = vpop.xlane.xlu0 %157
    %v159 = vsel %vm43, %v131, 0.0
    %160 = vadd.xlane.f32.xlu0 %v159
    %v161 = vpop.xlane.xlu0 %160
    %v162 = vsel %vm43, %v132, 0.0
    %163 = vadd.xlane.f32.xlu0 %v162
    %v164 = vpop.xlane.xlu0 %163
    %v165 = vsel %vm43, %v133, 0.0
    %166 = vadd.xlane.f32.xlu0 %v165
    %v167 = vpop.xlane.xlu0 %166
    %v168 = vsel %vm43, %v134, 0.0
    %169 = vadd.xlane.f32.xlu0 %v168
    %v170 = vpop.xlane.xlu0 %169
    %v171 = vsel %vm43, %v135, 0.0
    %172 = vadd.xlane.f32.xlu0 %v171
    %v173 = vpop.xlane.xlu0 %172
    %v174 = vsel %vm43, %v136, 0.0
    %175 = vadd.xlane.f32.xlu0 %v174
    %v176 = vpop.xlane.xlu0 %175
    %v177 = vsel %vm43, %v137, 0.0
    %178 = vadd.xlane.f32.xlu0 %v177
    %v179 = vpop.xlane.xlu0 %178
    %v180 = vsel %vm43, %v138, 0.0
    %181 = vadd.xlane.f32.xlu0 %v180
    %v182 = vpop.xlane.xlu0 %181
    %v183 = vsel %vm43, %v139, 0.0
    %184 = vadd.xlane.f32.xlu0 %v183
    %v185 = vpop.xlane.xlu0 %184
    %v186 = vsel %vm43, %v140, 0.0
    %187 = vadd.xlane.f32.xlu0 %v186
    %v188 = vpop.xlane.xlu0 %187
    %v189 = vmul.f32 %v143, %v92
    %v190 = vmul.f32 %v146, %v92
    %v191 = vmul.f32 %v149, %v92
    %v192 = vmul.f32 %v152, %v92
    %v193 = vmul.f32 %v155, %v92
    %v194 = vmul.f32 %v158, %v92
    %v195 = vmul.f32 %v161, %v92
    %v196 = vmul.f32 %v164, %v92
    %v197 = vmul.f32 %v167, %v92
    %v198 = vmul.f32 %v170, %v92
    %v199 = vmul.f32 %v173, %v92
    %v200 = vmul.f32 %v176, %v92
    %v201 = vmul.f32 %v179, %v92
    %v202 = vmul.f32 %v182, %v92
    %v203 = vmul.f32 %v185, %v92
    %v204 = vmul.f32 %v188, %v92
    %v205 = vadd.f32 %v189, 1e-06
    %v206 = vadd.f32 %v190, 1e-06
    %v207 = vadd.f32 %v191, 1e-06
    %v208 = vadd.f32 %v192, 1e-06
    %v209 = vadd.f32 %v193, 1e-06
    %v210 = vadd.f32 %v194, 1e-06
    %v211 = vadd.f32 %v195, 1e-06
    %v212 = vadd.f32 %v196, 1e-06
    %v213 = vadd.f32 %v197, 1e-06
    %v214 = vadd.f32 %v198, 1e-06
    %v215 = vadd.f32 %v199, 1e-06
    %v216 = vadd.f32 %v200, 1e-06
    %v217 = vadd.f32 %v201, 1e-06
    %v218 = vadd.f32 %v202, 1e-06
    %v219 = vadd.f32 %v203, 1e-06
    %v220 = vadd.f32 %v204, 1e-06
    %v221 = vrsqrt.pop %v205
    %v222 = vrsqrt.pop %v206
    %v223 = vrsqrt.pop %v207
    %v224 = vrsqrt.pop %v208
    %v225 = vrsqrt.pop %v209
    %v226 = vrsqrt.pop %v210
    %v227 = vrsqrt.pop %v211
    %v228 = vrsqrt.pop %v212
    %v229 = vrsqrt.pop %v213
    %v230 = vrsqrt.pop %v214
    %v231 = vrsqrt.pop %v215
    %v232 = vrsqrt.pop %v216
    %v233 = vrsqrt.pop %v217
    %v234 = vrsqrt.pop %v218
    %v235 = vrsqrt.pop %v219
    %v236 = vrsqrt.pop %v220
    %v237 = vmul.f32 %v109, %v221
    %v238 = vmul.f32 %v110, %v222
    %v239 = vmul.f32 %v111, %v223
    %v240 = vmul.f32 %v112, %v224
    %v241 = vmul.f32 %v113, %v225
    %v242 = vmul.f32 %v114, %v226
    %v243 = vmul.f32 %v115, %v227
    %v244 = vmul.f32 %v116, %v228
    %v245 = vmul.f32 %v117, %v229
    %v246 = vmul.f32 %v118, %v230
    %v247 = vmul.f32 %v119, %v231
    %v248 = vmul.f32 %v120, %v232
    %v249 = vmul.f32 %v121, %v233
    %v250 = vmul.f32 %v122, %v234
    %v251 = vmul.f32 %v123, %v235
    %v252 = vmul.f32 %v124, %v236
    %v253 = vld [vmem:[%s1] sm:$0x1]
    %v255 = vlaneseq
    %v256 = vshrl.u32 %v255, 7
    %v257 = vsub.s32 0, %v256
    %v258 = vrot.slane %v253, %v257
    %v260 = vmul.f32 %v237, %v258
    %v261 = vmul.f32 %v238, %v258
    %v262 = vmul.f32 %v239, %v258
    %v263 = vmul.f32 %v240, %v258
    %v264 = vmul.f32 %v241, %v258
    %v265 = vmul.f32 %v242, %v258
    %v266 = vmul.f32 %v243, %v258
    %v267 = vmul.f32 %v244, %v258
    %v268 = vmul.f32 %v245, %v258
    %v269 = vmul.f32 %v246, %v258
    %v270 = vmul.f32 %v247, %v258
    %v271 = vmul.f32 %v248, %v258
    %v272 = vmul.f32 %v249, %v258
    %v273 = vmul.f32 %v250, %v258
    %v274 = vmul.f32 %v251, %v258
    %v275 = vmul.f32 %v252, %v258
    %v276 = vld [vmem:[%s2] sm:$0x1]
    %v278 = vlaneseq
    %v279 = vshrl.u32 %v278, 7
    %v280 = vsub.s32 0, %v279
    %v281 = vrot.slane %v276, %v280
    %v283 = vadd.f32 %v260, %v281
    %v284 = vadd.f32 %v261, %v281
    %v285 = vadd.f32 %v262, %v281
    %v286 = vadd.f32 %v263, %v281
    %v287 = vadd.f32 %v264, %v281
    %v288 = vadd.f32 %v265, %v281
    %v289 = vadd.f32 %v266, %v281
    %v290 = vadd.f32 %v267, %v281
    %v291 = vadd.f32 %v268, %v281
    %v292 = vadd.f32 %v269, %v281
    %v293 = vadd.f32 %v270, %v281
    %v294 = vadd.f32 %v271, %v281
    %v295 = vadd.f32 %v272, %v281
    %v296 = vadd.f32 %v273, %v281
    %v297 = vadd.f32 %v274, %v281
    %v298 = vadd.f32 %v275, %v281
    %v299 = vld [vmem:[%s3] sm:$0xff]
    %v300 = vld [vmem:[%s3 + $0x8] sm:$0xff]
    %v301 = vld [vmem:[%s3 + $0x10] sm:$0xff]
    %v302 = vld [vmem:[%s3 + $0x18] sm:$0xff]
    %v303 = vld [vmem:[%s4] sm:$0x1]
    %v305 = vlaneseq
    %v306 = vshrl.u32 %v305, 7
    %v307 = vsub.s32 0, %v306
    %v308 = vrot.slane %v303, %v307
    %v311 = vsel %vm43, %v283, 0
    %v314 = vsel %vm43, %v284, 0
    %v317 = vsel %vm43, %v285, 0
    %v320 = vsel %vm43, %v286, 0
    %v323 = vsel %vm43, %v287, 0
    %v326 = vsel %vm43, %v288, 0
    %v329 = vsel %vm43, %v289, 0
    %v332 = vsel %vm43, %v290, 0
    %v335 = vsel %vm43, %v291, 0
    %v338 = vsel %vm43, %v292, 0
    %v341 = vsel %vm43, %v293, 0
    %v344 = vsel %vm43, %v294, 0
    %v347 = vsel %vm43, %v295, 0
    %v350 = vsel %vm43, %v296, 0
    %v353 = vsel %vm43, %v297, 0
    %v356 = vsel %vm43, %v298, 0
    %358 = vmatprep.subr.mxu0 0.0
    %359 = vmatpush1.msra.mxu0 0.0
    %360 = vmatprep.subr.mxu0 0.0
    %361 = vmatpush1.msra.mxu0 0.0
    %362 = vmatprep.subr.mxu0 0.0
    %363 = vmatpush1.msra.mxu0 0.0
    %364 = vmatprep.subr.mxu0 0.0
    %365 = vmatpush1.msra.mxu0 0.0
    %366 = vmatprep.subr.mxu0 0.0
    %367 = vmatpush1.msra.mxu0 0.0
    %368 = vmatprep.subr.mxu0 0.0
    %369 = vmatpush1.msra.mxu0 0.0
    %370 = vmatprep.subr.mxu0 0.0
    %371 = vmatpush1.msra.mxu0 0.0
    %372 = vmatprep.subr.mxu0 0.0
    %373 = vmatpush1.msra.mxu0 0.0
    %374 = vmatprep.subr.mxu0 0.0
    %375 = vmatpush1.msra.mxu0 0.0
    %376 = vmatprep.subr.mxu0 0.0
    %377 = vmatpush1.msra.mxu0 0.0
    %378 = vmatprep.subr.mxu0 0.0
    %379 = vmatpush1.msra.mxu0 0.0
    %380 = vmatprep.subr.mxu0 0.0
    %381 = vmatpush1.msra.mxu0 0.0
    %382 = vmatprep.subr.mxu0 0.0
    %383 = vmatpush1.msra.mxu0 %v302
    %384 = vmatprep.subr.mxu0 0.0
    %385 = vmatpush1.msra.mxu0 %v301
    %386 = vmatprep.subr.mxu0 0.0
    %387 = vmatpush1.msra.mxu0 %v300
    %388 = vmatprep.subr.mxu0 0.0
    %389 = vmatpush1.msra.mxu0 %v299
    %390 = vmatprep.subr.mxu0 0.0
    %391 = vmatpush2.msra.mxu0 0.0
    %392 = vmatprep.subr.mxu0 0.0
    %393 = vmatpush2.msra.mxu0 0.0
    %394 = vmatprep.subr.mxu0 0.0
    %395 = vmatpush2.msra.mxu0 0.0
    %396 = vmatprep.subr.mxu0 0.0
    %397 = vmatpush2.msra.mxu0 0.0
    %398 = vmatprep.subr.mxu0 0.0
    %399 = vmatpush2.msra.mxu0 0.0
    %400 = vmatprep.subr.mxu0 0.0
    %401 = vmatpush2.msra.mxu0 0.0
    %402 = vmatprep.subr.mxu0 0.0
    %403 = vmatpush2.msra.mxu0 0.0
    %404 = vmatprep.subr.mxu0 0.0
    %405 = vmatpush2.msra.mxu0 0.0
    %406 = vmatprep.subr.mxu0 0.0
    %407 = vmatpush2.msra.mxu0 0.0
    %408 = vmatprep.subr.mxu0 0.0
    %409 = vmatpush2.msra.mxu0 0.0
    %410 = vmatprep.subr.mxu0 0.0
    %411 = vmatpush2.msra.mxu0 0.0
    %412 = vmatprep.subr.mxu0 0.0
    %413 = vmatpush2.msra.mxu0 0.0
    %414 = vmatprep.subr.mxu0 0.0
    %415 = vmatpush2.msra.mxu0 0.0
    %416 = vmatprep.subr.mxu0 0.0
    %417 = vmatpush2.msra.mxu0 0.0
    %418 = vmatprep.subr.mxu0 0.0
    %419 = vmatpush2.msra.mxu0 0.0
    %420 = vmatprep.subr.mxu0 0.0
    %421 = vmatpush2.msra.mxu0 0.0
    %422 = vmatprep.mubr.f32.mxu0 0.0
    %423 = vmatmul.mubr.f32.gmra.mxu0 %v311
    %v424 = vpop.f32.mrf.mxu0
    %v425 = vadd.f32 %v308, %v424
    %v426 = vpop.f32.mrf.mxu0
    %427 = vmatprep.mubr.f32.mxu0 0.0
    %428 = vmatmul.mubr.f32.gmra.mxu0 %v314
    %v429 = vpop.f32.mrf.mxu0
    %v430 = vadd.f32 %v308, %v429
    %v431 = vpop.f32.mrf.mxu0
    %432 = vmatprep.mubr.f32.mxu0 0.0
    %433 = vmatmul.mubr.f32.gmra.mxu0 %v317
    %v434 = vpop.f32.mrf.mxu0
    %v435 = vadd.f32 %v308, %v434
    %v436 = vpop.f32.mrf.mxu0
    %437 = vmatprep.mubr.f32.mxu0 0.0
    %438 = vmatmul.mubr.f32.gmra.mxu0 %v320
    %v439 = vpop.f32.mrf.mxu0
    %v440 = vadd.f32 %v308, %v439
    %v441 = vpop.f32.mrf.mxu0
    %442 = vmatprep.mubr.f32.mxu0 0.0
    %443 = vmatmul.mubr.f32.gmra.mxu0 %v323
    %v444 = vpop.f32.mrf.mxu0
    %v445 = vadd.f32 %v308, %v444
    %v446 = vpop.f32.mrf.mxu0
    %447 = vmatprep.mubr.f32.mxu0 0.0
    %448 = vmatmul.mubr.f32.gmra.mxu0 %v326
    %v449 = vpop.f32.mrf.mxu0
    %v450 = vadd.f32 %v308, %v449
    %v451 = vpop.f32.mrf.mxu0
    %452 = vmatprep.mubr.f32.mxu0 0.0
    %453 = vmatmul.mubr.f32.gmra.mxu0 %v329
    %v454 = vpop.f32.mrf.mxu0
    %v455 = vadd.f32 %v308, %v454
    %v456 = vpop.f32.mrf.mxu0
    %457 = vmatprep.mubr.f32.mxu0 0.0
    %458 = vmatmul.mubr.f32.gmra.mxu0 %v332
    %v459 = vpop.f32.mrf.mxu0
    %v460 = vadd.f32 %v308, %v459
    %v461 = vpop.f32.mrf.mxu0
    %462 = vmatprep.mubr.f32.mxu0 0.0
    %463 = vmatmul.mubr.f32.gmra.mxu0 %v335
    %v464 = vpop.f32.mrf.mxu0
    %v465 = vadd.f32 %v308, %v464
    %v466 = vpop.f32.mrf.mxu0
    %467 = vmatprep.mubr.f32.mxu0 0.0
    %468 = vmatmul.mubr.f32.gmra.mxu0 %v338
    %v469 = vpop.f32.mrf.mxu0
    %v470 = vadd.f32 %v308, %v469
    %v471 = vpop.f32.mrf.mxu0
    %472 = vmatprep.mubr.f32.mxu0 0.0
    %473 = vmatmul.mubr.f32.gmra.mxu0 %v341
    %v474 = vpop.f32.mrf.mxu0
    %v475 = vadd.f32 %v308, %v474
    %v476 = vpop.f32.mrf.mxu0
    %477 = vmatprep.mubr.f32.mxu0 0.0
    %478 = vmatmul.mubr.f32.gmra.mxu0 %v344
    %v479 = vpop.f32.mrf.mxu0
    %v480 = vadd.f32 %v308, %v479
    %v481 = vpop.f32.mrf.mxu0
    %482 = vmatprep.mubr.f32.mxu0 0.0
    %483 = vmatmul.mubr.f32.gmra.mxu0 %v347
    %v484 = vpop.f32.mrf.mxu0
    %v485 = vadd.f32 %v308, %v484
    %v486 = vpop.f32.mrf.mxu0
    %487 = vmatprep.mubr.f32.mxu0 0.0
    %488 = vmatmul.mubr.f32.gmra.mxu0 %v350
    %v489 = vpop.f32.mrf.mxu0
    %v490 = vadd.f32 %v308, %v489
    %v491 = vpop.f32.mrf.mxu0
    %492 = vmatprep.mubr.f32.mxu0 0.0
    %493 = vmatmul.mubr.f32.gmra.mxu0 %v353
    %v494 = vpop.f32.mrf.mxu0
    %v495 = vadd.f32 %v308, %v494
    %v496 = vpop.f32.mrf.mxu0
    %497 = vmatprep.mubr.f32.mxu0 0.0
    %498 = vmatmul.mubr.f32.gmra.mxu0 %v356
    %v499 = vpop.f32.mrf.mxu0
    %v500 = vadd.f32 %v308, %v499
    %v501 = vpop.f32.mrf.mxu0
    %502 = vdwg.mxu0
    %v503 = vmul.f32 %v425, 0.70710677
    %v504 = vmul.f32 %v430, 0.70710677
    %v505 = vmul.f32 %v435, 0.70710677
    %v506 = vmul.f32 %v440, 0.70710677
    %v507 = vmul.f32 %v445, 0.70710677
    %v508 = vmul.f32 %v450, 0.70710677
    %v509 = vmul.f32 %v455, 0.70710677
    %v510 = vmul.f32 %v460, 0.70710677
    %v511 = vmul.f32 %v465, 0.70710677
    %v512 = vmul.f32 %v470, 0.70710677
    %v513 = vmul.f32 %v475, 0.70710677
    %v514 = vmul.f32 %v480, 0.70710677
    %v515 = vmul.f32 %v485, 0.70710677
    %v516 = vmul.f32 %v490, 0.70710677
    %v517 = vmul.f32 %v495, 0.70710677
    %v518 = vmul.f32 %v500, 0.70710677
    %v519 = vand.u32 2147483647, %v503
    %v520 = vand.u32 2147483647, %v504
    %v521 = vand.u32 2147483647, %v505
    %v522 = vand.u32 2147483647, %v506
    %v523 = vand.u32 2147483647, %v507
    %v524 = vand.u32 2147483647, %v508
    %v525 = vand.u32 2147483647, %v509
    %v526 = vand.u32 2147483647, %v510
    %v527 = vand.u32 2147483647, %v511
    %v528 = vand.u32 2147483647, %v512
    %v529 = vand.u32 2147483647, %v513
    %v530 = vand.u32 2147483647, %v514
    %v531 = vand.u32 2147483647, %v515
    %v532 = vand.u32 2147483647, %v516
    %v533 = vand.u32 2147483647, %v517
    %v534 = vand.u32 2147483647, %v518
    %v535 = vmul.f32 %v519, 0.3275911
    %v536 = vmul.f32 %v520, 0.3275911
    %v537 = vmul.f32 %v521, 0.3275911
    %v538 = vmul.f32 %v522, 0.3275911
    %v539 = vmul.f32 %v523, 0.3275911
    %v540 = vmul.f32 %v524, 0.3275911
    %v541 = vmul.f32 %v525, 0.3275911
    %v542 = vmul.f32 %v526, 0.3275911
    %v543 = vmul.f32 %v527, 0.3275911
    %v544 = vmul.f32 %v528, 0.3275911
    %v545 = vmul.f32 %v529, 0.3275911
    %v546 = vmul.f32 %v530, 0.3275911
    %v547 = vmul.f32 %v531, 0.3275911
    %v548 = vmul.f32 %v532, 0.3275911
    %v549 = vmul.f32 %v533, 0.3275911
    %v550 = vmul.f32 %v534, 0.3275911
    %v551 = vadd.f32 %v535, 1.0
    %v552 = vadd.f32 %v536, 1.0
    %v553 = vadd.f32 %v537, 1.0
    %v554 = vadd.f32 %v538, 1.0
    %v555 = vadd.f32 %v539, 1.0
    %v556 = vadd.f32 %v540, 1.0
    %v557 = vadd.f32 %v541, 1.0
    %v558 = vadd.f32 %v542, 1.0
    %v559 = vadd.f32 %v543, 1.0
    %v560 = vadd.f32 %v544, 1.0
    %v561 = vadd.f32 %v545, 1.0
    %v562 = vadd.f32 %v546, 1.0
    %v563 = vadd.f32 %v547, 1.0
    %v564 = vadd.f32 %v548, 1.0
    %v565 = vadd.f32 %v549, 1.0
    %v566 = vadd.f32 %v550, 1.0
    %v567 = vrcp.pop %v551
    %v568 = vmul.f32 1.0, %v567
    %v569 = vrcp.pop %v552
    %v570 = vmul.f32 1.0, %v569
    %v571 = vrcp.pop %v553
    %v572 = vmul.f32 1.0, %v571
    %v573 = vrcp.pop %v554
    %v574 = vmul.f32 1.0, %v573
    %v575 = vrcp.pop %v555
    %v576 = vmul.f32 1.0, %v575
    %v577 = vrcp.pop %v556
    %v578 = vmul.f32 1.0, %v577
    %v579 = vrcp.pop %v557
    %v580 = vmul.f32 1.0, %v579
    %v581 = vrcp.pop %v558
    %v582 = vmul.f32 1.0, %v581
    %v583 = vrcp.pop %v559
    %v584 = vmul.f32 1.0, %v583
    %v585 = vrcp.pop %v560
    %v586 = vmul.f32 1.0, %v585
    %v587 = vrcp.pop %v561
    %v588 = vmul.f32 1.0, %v587
    %v589 = vrcp.pop %v562
    %v590 = vmul.f32 1.0, %v589
    %v591 = vrcp.pop %v563
    %v592 = vmul.f32 1.0, %v591
    %v593 = vrcp.pop %v564
    %v594 = vmul.f32 1.0, %v593
    %v595 = vrcp.pop %v565
    %v596 = vmul.f32 1.0, %v595
    %v597 = vrcp.pop %v566
    %v598 = vmul.f32 1.0, %v597
    %v599 = vmul.f32 %v568, 1.0614054
    %v600 = vmul.f32 %v570, 1.0614054
    %v601 = vmul.f32 %v572, 1.0614054
    %v602 = vmul.f32 %v574, 1.0614054
    %v603 = vmul.f32 %v576, 1.0614054
    %v604 = vmul.f32 %v578, 1.0614054
    %v605 = vmul.f32 %v580, 1.0614054
    %v606 = vmul.f32 %v582, 1.0614054
    %v607 = vmul.f32 %v584, 1.0614054
    %v608 = vmul.f32 %v586, 1.0614054
    %v609 = vmul.f32 %v588, 1.0614054
    %v610 = vmul.f32 %v590, 1.0614054
    %v611 = vmul.f32 %v592, 1.0614054
    %v612 = vmul.f32 %v594, 1.0614054
    %v613 = vmul.f32 %v596, 1.0614054
    %v614 = vmul.f32 %v598, 1.0614054
    %v615 = vsub.f32 %v599, 1.4531521
    %v616 = vsub.f32 %v600, 1.4531521
    %v617 = vsub.f32 %v601, 1.4531521
    %v618 = vsub.f32 %v602, 1.4531521
    %v619 = vsub.f32 %v603, 1.4531521
    %v620 = vsub.f32 %v604, 1.4531521
    %v621 = vsub.f32 %v605, 1.4531521
    %v622 = vsub.f32 %v606, 1.4531521
    %v623 = vsub.f32 %v607, 1.4531521
    %v624 = vsub.f32 %v608, 1.4531521
    %v625 = vsub.f32 %v609, 1.4531521
    %v626 = vsub.f32 %v610, 1.4531521
    %v627 = vsub.f32 %v611, 1.4531521
    %v628 = vsub.f32 %v612, 1.4531521
    %v629 = vsub.f32 %v613, 1.4531521
    %v630 = vsub.f32 %v614, 1.4531521
    %v631 = vmul.f32 %v615, %v568
    %v632 = vmul.f32 %v616, %v570
    %v633 = vmul.f32 %v617, %v572
    %v634 = vmul.f32 %v618, %v574
    %v635 = vmul.f32 %v619, %v576
    %v636 = vmul.f32 %v620, %v578
    %v637 = vmul.f32 %v621, %v580
    %v638 = vmul.f32 %v622, %v582
    %v639 = vmul.f32 %v623, %v584
    %v640 = vmul.f32 %v624, %v586
    %v641 = vmul.f32 %v625, %v588
    %v642 = vmul.f32 %v626, %v590
    %v643 = vmul.f32 %v627, %v592
    %v644 = vmul.f32 %v628, %v594
    %v645 = vmul.f32 %v629, %v596
    %v646 = vmul.f32 %v630, %v598
    %v647 = vadd.f32 %v631, 1.4214138
    %v648 = vadd.f32 %v632, 1.4214138
    %v649 = vadd.f32 %v633, 1.4214138
    %v650 = vadd.f32 %v634, 1.4214138
    %v651 = vadd.f32 %v635, 1.4214138
    %v652 = vadd.f32 %v636, 1.4214138
    %v653 = vadd.f32 %v637, 1.4214138
    %v654 = vadd.f32 %v638, 1.4214138
    %v655 = vadd.f32 %v639, 1.4214138
    %v656 = vadd.f32 %v640, 1.4214138
    %v657 = vadd.f32 %v641, 1.4214138
    %v658 = vadd.f32 %v642, 1.4214138
    %v659 = vadd.f32 %v643, 1.4214138
    %v660 = vadd.f32 %v644, 1.4214138
    %v661 = vadd.f32 %v645, 1.4214138
    %v662 = vadd.f32 %v646, 1.4214138
    %v663 = vmul.f32 %v647, %v568
    %v664 = vmul.f32 %v648, %v570
    %v665 = vmul.f32 %v649, %v572
    %v666 = vmul.f32 %v650, %v574
    %v667 = vmul.f32 %v651, %v576
    %v668 = vmul.f32 %v652, %v578
    %v669 = vmul.f32 %v653, %v580
    %v670 = vmul.f32 %v654, %v582
    %v671 = vmul.f32 %v655, %v584
    %v672 = vmul.f32 %v656, %v586
    %v673 = vmul.f32 %v657, %v588
    %v674 = vmul.f32 %v658, %v590
    %v675 = vmul.f32 %v659, %v592
    %v676 = vmul.f32 %v660, %v594
    %v677 = vmul.f32 %v661, %v596
    %v678 = vmul.f32 %v662, %v598
    %v679 = vsub.f32 %v663, 0.28449672
    %v680 = vsub.f32 %v664, 0.28449672
    %v681 = vsub.f32 %v665, 0.28449672
    %v682 = vsub.f32 %v666, 0.28449672
    %v683 = vsub.f32 %v667, 0.28449672
    %v684 = vsub.f32 %v668, 0.28449672
    %v685 = vsub.f32 %v669, 0.28449672
    %v686 = vsub.f32 %v670, 0.28449672
    %v687 = vsub.f32 %v671, 0.28449672
    %v688 = vsub.f32 %v672, 0.28449672
    %v689 = vsub.f32 %v673, 0.28449672
    %v690 = vsub.f32 %v674, 0.28449672
    %v691 = vsub.f32 %v675, 0.28449672
    %v692 = vsub.f32 %v676, 0.28449672
    %v693 = vsub.f32 %v677, 0.28449672
    %v694 = vsub.f32 %v678, 0.28449672
    %v695 = vmul.f32 %v679, %v568
    %v696 = vmul.f32 %v680, %v570
    %v697 = vmul.f32 %v681, %v572
    %v698 = vmul.f32 %v682, %v574
    %v699 = vmul.f32 %v683, %v576
    %v700 = vmul.f32 %v684, %v578
    %v701 = vmul.f32 %v685, %v580
    %v702 = vmul.f32 %v686, %v582
    %v703 = vmul.f32 %v687, %v584
    %v704 = vmul.f32 %v688, %v586
    %v705 = vmul.f32 %v689, %v588
    %v706 = vmul.f32 %v690, %v590
    %v707 = vmul.f32 %v691, %v592
    %v708 = vmul.f32 %v692, %v594
    %v709 = vmul.f32 %v693, %v596
    %v710 = vmul.f32 %v694, %v598
    %v711 = vadd.f32 %v695, 0.2548296
    %v712 = vadd.f32 %v696, 0.2548296
    %v713 = vadd.f32 %v697, 0.2548296
    %v714 = vadd.f32 %v698, 0.2548296
    %v715 = vadd.f32 %v699, 0.2548296
    %v716 = vadd.f32 %v700, 0.2548296
    %v717 = vadd.f32 %v701, 0.2548296
    %v718 = vadd.f32 %v702, 0.2548296
    %v719 = vadd.f32 %v703, 0.2548296
    %v720 = vadd.f32 %v704, 0.2548296
    %v721 = vadd.f32 %v705, 0.2548296
    %v722 = vadd.f32 %v706, 0.2548296
    %v723 = vadd.f32 %v707, 0.2548296
    %v724 = vadd.f32 %v708, 0.2548296
    %v725 = vadd.f32 %v709, 0.2548296
    %v726 = vadd.f32 %v710, 0.2548296
    %v727 = vmul.f32 %v711, %v568
    %v728 = vmul.f32 %v712, %v570
    %v729 = vmul.f32 %v713, %v572
    %v730 = vmul.f32 %v714, %v574
    %v731 = vmul.f32 %v715, %v576
    %v732 = vmul.f32 %v716, %v578
    %v733 = vmul.f32 %v717, %v580
    %v734 = vmul.f32 %v718, %v582
    %v735 = vmul.f32 %v719, %v584
    %v736 = vmul.f32 %v720, %v586
    %v737 = vmul.f32 %v721, %v588
    %v738 = vmul.f32 %v722, %v590
    %v739 = vmul.f32 %v723, %v592
    %v740 = vmul.f32 %v724, %v594
    %v741 = vmul.f32 %v725, %v596
    %v742 = vmul.f32 %v726, %v598
    %v743 = vsub.f32 0.0, %v519
    %v744 = vsub.f32 0.0, %v520
    %v745 = vsub.f32 0.0, %v521
    %v746 = vsub.f32 0.0, %v522
    %v747 = vsub.f32 0.0, %v523
    %v748 = vsub.f32 0.0, %v524
    %v749 = vsub.f32 0.0, %v525
    %v750 = vsub.f32 0.0, %v526
    %v751 = vsub.f32 0.0, %v527
    %v752 = vsub.f32 0.0, %v528
    %v753 = vsub.f32 0.0, %v529
    %v754 = vsub.f32 0.0, %v530
    %v755 = vsub.f32 0.0, %v531
    %v756 = vsub.f32 0.0, %v532
    %v757 = vsub.f32 0.0, %v533
    %v758 = vsub.f32 0.0, %v534
    %v759 = vmul.f32 %v743, %v519
    %v760 = vmul.f32 %v744, %v520
    %v761 = vmul.f32 %v745, %v521
    %v762 = vmul.f32 %v746, %v522
    %v763 = vmul.f32 %v747, %v523
    %v764 = vmul.f32 %v748, %v524
    %v765 = vmul.f32 %v749, %v525
    %v766 = vmul.f32 %v750, %v526
    %v767 = vmul.f32 %v751, %v527
    %v768 = vmul.f32 %v752, %v528
    %v769 = vmul.f32 %v753, %v529
    %v770 = vmul.f32 %v754, %v530
    %v771 = vmul.f32 %v755, %v531
    %v772 = vmul.f32 %v756, %v532
    %v773 = vmul.f32 %v757, %v533
    %v774 = vmul.f32 %v758, %v534
    %v775 = vmul.f32 %v759, 1.442695
    %v776 = vpow.pop %v775
    %v777 = vmul.f32 %v760, 1.442695
    %v778 = vpow.pop %v777
    %v779 = vmul.f32 %v761, 1.442695
    %v780 = vpow.pop %v779
    %v781 = vmul.f32 %v762, 1.442695
    %v782 = vpow.pop %v781
    %v783 = vmul.f32 %v763, 1.442695
    %v784 = vpow.pop %v783
    %v785 = vmul.f32 %v764, 1.442695
    %v786 = vpow.pop %v785
    %v787 = vmul.f32 %v765, 1.442695
    %v788 = vpow.pop %v787
    %v789 = vmul.f32 %v766, 1.442695
    %v790 = vpow.pop %v789
    %v791 = vmul.f32 %v767, 1.442695
    %v792 = vpow.pop %v791
    %v793 = vmul.f32 %v768, 1.442695
    %v794 = vpow.pop %v793
    %v795 = vmul.f32 %v769, 1.442695
    %v796 = vpow.pop %v795
    %v797 = vmul.f32 %v770, 1.442695
    %v798 = vpow.pop %v797
    %v799 = vmul.f32 %v771, 1.442695
    %v800 = vpow.pop %v799
    %v801 = vmul.f32 %v772, 1.442695
    %v802 = vpow.pop %v801
    %v803 = vmul.f32 %v773, 1.442695
    %v804 = vpow.pop %v803
    %v805 = vmul.f32 %v774, 1.442695
    %v806 = vpow.pop %v805
    %v807 = vmul.f32 %v727, %v776
    %v808 = vmul.f32 %v728, %v778
    %v809 = vmul.f32 %v729, %v780
    %v810 = vmul.f32 %v730, %v782
    %v811 = vmul.f32 %v731, %v784
    %v812 = vmul.f32 %v732, %v786
    %v813 = vmul.f32 %v733, %v788
    %v814 = vmul.f32 %v734, %v790
    %v815 = vmul.f32 %v735, %v792
    %v816 = vmul.f32 %v736, %v794
    %v817 = vmul.f32 %v737, %v796
    %v818 = vmul.f32 %v738, %v798
    %v819 = vmul.f32 %v739, %v800
    %v820 = vmul.f32 %v740, %v802
    %v821 = vmul.f32 %v741, %v804
    %v822 = vmul.f32 %v742, %v806
    %v823 = vsub.f32 1.0, %v807
    %v824 = vsub.f32 1.0, %v808
    %v825 = vsub.f32 1.0, %v809
    %v826 = vsub.f32 1.0, %v810
    %v827 = vsub.f32 1.0, %v811
    %v828 = vsub.f32 1.0, %v812
    %v829 = vsub.f32 1.0, %v813
    %v830 = vsub.f32 1.0, %v814
    %v831 = vsub.f32 1.0, %v815
    %v832 = vsub.f32 1.0, %v816
    %v833 = vsub.f32 1.0, %v817
    %v834 = vsub.f32 1.0, %v818
    %v835 = vsub.f32 1.0, %v819
    %v836 = vsub.f32 1.0, %v820
    %v837 = vsub.f32 1.0, %v821
    %v838 = vsub.f32 1.0, %v822
    %vm839 = vcmp.ge.f32.partialorder %v503, 0.0
    %vm840 = vcmp.ge.f32.partialorder %v504, 0.0
    %vm841 = vcmp.ge.f32.partialorder %v505, 0.0
    %vm842 = vcmp.ge.f32.partialorder %v506, 0.0
    %vm843 = vcmp.ge.f32.partialorder %v507, 0.0
    %vm844 = vcmp.ge.f32.partialorder %v508, 0.0
    %vm845 = vcmp.ge.f32.partialorder %v509, 0.0
    %vm846 = vcmp.ge.f32.partialorder %v510, 0.0
    %vm847 = vcmp.ge.f32.partialorder %v511, 0.0
    %vm848 = vcmp.ge.f32.partialorder %v512, 0.0
    %vm849 = vcmp.ge.f32.partialorder %v513, 0.0
    %vm850 = vcmp.ge.f32.partialorder %v514, 0.0
    %vm851 = vcmp.ge.f32.partialorder %v515, 0.0
    %vm852 = vcmp.ge.f32.partialorder %v516, 0.0
    %vm853 = vcmp.ge.f32.partialorder %v517, 0.0
    %vm854 = vcmp.ge.f32.partialorder %v518, 0.0
    %v855 = vsub.f32 0.0, %v823
    %v856 = vsub.f32 0.0, %v824
    %v857 = vsub.f32 0.0, %v825
    %v858 = vsub.f32 0.0, %v826
    %v859 = vsub.f32 0.0, %v827
    %v860 = vsub.f32 0.0, %v828
    %v861 = vsub.f32 0.0, %v829
    %v862 = vsub.f32 0.0, %v830
    %v863 = vsub.f32 0.0, %v831
    %v864 = vsub.f32 0.0, %v832
    %v865 = vsub.f32 0.0, %v833
    %v866 = vsub.f32 0.0, %v834
    %v867 = vsub.f32 0.0, %v835
    %v868 = vsub.f32 0.0, %v836
    %v869 = vsub.f32 0.0, %v837
    %v870 = vsub.f32 0.0, %v838
    %v871 = vsel %vm839, %v823, %v855
    %v872 = vsel %vm840, %v824, %v856
    %v873 = vsel %vm841, %v825, %v857
    %v874 = vsel %vm842, %v826, %v858
    %v875 = vsel %vm843, %v827, %v859
    %v876 = vsel %vm844, %v828, %v860
    %v877 = vsel %vm845, %v829, %v861
    %v878 = vsel %vm846, %v830, %v862
    %v879 = vsel %vm847, %v831, %v863
    %v880 = vsel %vm848, %v832, %v864
    %v881 = vsel %vm849, %v833, %v865
    %v882 = vsel %vm850, %v834, %v866
    %v883 = vsel %vm851, %v835, %v867
    %v884 = vsel %vm852, %v836, %v868
    %v885 = vsel %vm853, %v837, %v869
    %v886 = vsel %vm854, %v838, %v870
    %v887 = vmul.f32 %v425, 0.5
    %v888 = vmul.f32 %v430, 0.5
    %v889 = vmul.f32 %v435, 0.5
    %v890 = vmul.f32 %v440, 0.5
    %v891 = vmul.f32 %v445, 0.5
    %v892 = vmul.f32 %v450, 0.5
    %v893 = vmul.f32 %v455, 0.5
    %v894 = vmul.f32 %v460, 0.5
    %v895 = vmul.f32 %v465, 0.5
    %v896 = vmul.f32 %v470, 0.5
    %v897 = vmul.f32 %v475, 0.5
    %v898 = vmul.f32 %v480, 0.5
    %v899 = vmul.f32 %v485, 0.5
    %v900 = vmul.f32 %v490, 0.5
    %v901 = vmul.f32 %v495, 0.5
    %v902 = vmul.f32 %v500, 0.5
    %v903 = vadd.f32 %v871, 1.0
    %v904 = vadd.f32 %v872, 1.0
    %v905 = vadd.f32 %v873, 1.0
    %v906 = vadd.f32 %v874, 1.0
    %v907 = vadd.f32 %v875, 1.0
    %v908 = vadd.f32 %v876, 1.0
    %v909 = vadd.f32 %v877, 1.0
    %v910 = vadd.f32 %v878, 1.0
    %v911 = vadd.f32 %v879, 1.0
    %v912 = vadd.f32 %v880, 1.0
    %v913 = vadd.f32 %v881, 1.0
    %v914 = vadd.f32 %v882, 1.0
    %v915 = vadd.f32 %v883, 1.0
    %v916 = vadd.f32 %v884, 1.0
    %v917 = vadd.f32 %v885, 1.0
    %v918 = vadd.f32 %v886, 1.0
    %v919 = vmul.f32 %v887, %v903
    %v920 = vmul.f32 %v888, %v904
    %v921 = vmul.f32 %v889, %v905
    %v922 = vmul.f32 %v890, %v906
    %v923 = vmul.f32 %v891, %v907
    %v924 = vmul.f32 %v892, %v908
    %v925 = vmul.f32 %v893, %v909
    %v926 = vmul.f32 %v894, %v910
    %v927 = vmul.f32 %v895, %v911
    %v928 = vmul.f32 %v896, %v912
    %v929 = vmul.f32 %v897, %v913
    %v930 = vmul.f32 %v898, %v914
    %v931 = vmul.f32 %v899, %v915
    %v932 = vmul.f32 %v900, %v916
    %v933 = vmul.f32 %v901, %v917
    %v934 = vmul.f32 %v902, %v918
    %v935 = vld [vmem:[%s5] sm:$0xff]
    %v936 = vld [vmem:[%s5 + $0x8] sm:$0xff]
    %v937 = vld [vmem:[%s5 + $0x10] sm:$0xff]
    %v938 = vld [vmem:[%s5 + $0x18] sm:$0xff]
    %v939 = vld [vmem:[%s5 + $0x20] sm:$0xff]
    %v940 = vld [vmem:[%s5 + $0x28] sm:$0xff]
    %v941 = vld [vmem:[%s5 + $0x30] sm:$0xff]
    %v942 = vld [vmem:[%s5 + $0x38] sm:$0xff]
    %v943 = vld [vmem:[%s5 + $0x40] sm:$0xff]
    %v944 = vld [vmem:[%s5 + $0x48] sm:$0xff]
    %v945 = vld [vmem:[%s5 + $0x50] sm:$0xff]
    %v946 = vld [vmem:[%s5 + $0x58] sm:$0xff]
    %v947 = vld [vmem:[%s5 + $0x60] sm:$0xff]
    %v948 = vld [vmem:[%s5 + $0x68] sm:$0xff]
    %v949 = vld [vmem:[%s5 + $0x70] sm:$0xff]
    %v950 = vld [vmem:[%s5 + $0x78] sm:$0xff]
    %v951 = vld [vmem:[%s6] sm:$0x1]
    %v953 = vlaneseq
    %v954 = vshrl.u32 %v953, 7
    %v955 = vsub.s32 0, %v954
    %v956 = vrot.slane %v951, %v955
    %958 = vmatprep.subr.mxu0 0.0
    %959 = vmatpush1.msra.mxu0 %v950
    %960 = vmatprep.subr.mxu0 0.0
    %961 = vmatpush1.msra.mxu0 %v949
    %962 = vmatprep.subr.mxu0 0.0
    %963 = vmatpush1.msra.mxu0 %v948
    %964 = vmatprep.subr.mxu0 0.0
    %965 = vmatpush1.msra.mxu0 %v947
    %966 = vmatprep.subr.mxu0 0.0
    %967 = vmatpush1.msra.mxu0 %v946
    %968 = vmatprep.subr.mxu0 0.0
    %969 = vmatpush1.msra.mxu0 %v945
    %970 = vmatprep.subr.mxu0 0.0
    %971 = vmatpush1.msra.mxu0 %v944
    %972 = vmatprep.subr.mxu0 0.0
    %973 = vmatpush1.msra.mxu0 %v943
    %974 = vmatprep.subr.mxu0 0.0
    %975 = vmatpush1.msra.mxu0 %v942
    %976 = vmatprep.subr.mxu0 0.0
    %977 = vmatpush1.msra.mxu0 %v941
    %978 = vmatprep.subr.mxu0 0.0
    %979 = vmatpush1.msra.mxu0 %v940
    %980 = vmatprep.subr.mxu0 0.0
    %981 = vmatpush1.msra.mxu0 %v939
    %982 = vmatprep.subr.mxu0 0.0
    %983 = vmatpush1.msra.mxu0 %v938
    %984 = vmatprep.subr.mxu0 0.0
    %985 = vmatpush1.msra.mxu0 %v937
    %986 = vmatprep.subr.mxu0 0.0
    %987 = vmatpush1.msra.mxu0 %v936
    %988 = vmatprep.subr.mxu0 0.0
    %989 = vmatpush1.msra.mxu0 %v935
    %990 = vmatprep.subr.mxu0 0.0
    %991 = vmatpush2.msra.mxu0 0.0
    %992 = vmatprep.subr.mxu0 0.0
    %993 = vmatpush2.msra.mxu0 0.0
    %994 = vmatprep.subr.mxu0 0.0
    %995 = vmatpush2.msra.mxu0 0.0
    %996 = vmatprep.subr.mxu0 0.0
    %997 = vmatpush2.msra.mxu0 0.0
    %998 = vmatprep.subr.mxu0 0.0
    %999 = vmatpush2.msra.mxu0 0.0
    %1000 = vmatprep.subr.mxu0 0.0
    %1001 = vmatpush2.msra.mxu0 0.0
    %1002 = vmatprep.subr.mxu0 0.0
    %1003 = vmatpush2.msra.mxu0 0.0
    %1004 = vmatprep.subr.mxu0 0.0
    %1005 = vmatpush2.msra.mxu0 0.0
    %1006 = vmatprep.subr.mxu0 0.0
    %1007 = vmatpush2.msra.mxu0 0.0
    %1008 = vmatprep.subr.mxu0 0.0
    %1009 = vmatpush2.msra.mxu0 0.0
    %1010 = vmatprep.subr.mxu0 0.0
    %1011 = vmatpush2.msra.mxu0 0.0
    %1012 = vmatprep.subr.mxu0 0.0
    %1013 = vmatpush2.msra.mxu0 0.0
    %1014 = vmatprep.subr.mxu0 0.0
    %1015 = vmatpush2.msra.mxu0 0.0
    %1016 = vmatprep.subr.mxu0 0.0
    %1017 = vmatpush2.msra.mxu0 0.0
    %1018 = vmatprep.subr.mxu0 0.0
    %1019 = vmatpush2.msra.mxu0 0.0
    %1020 = vmatprep.subr.mxu0 0.0
    %1021 = vmatpush2.msra.mxu0 0.0
    %1022 = vmatprep.mubr.f32.mxu0 0.0
    %1023 = vmatmul.mubr.f32.gmra.mxu0 %v919
    %v1024 = vpop.f32.mrf.mxu0
    %v1025 = vadd.f32 %v956, %v1024
    %v1026 = vpop.f32.mrf.mxu0
    %1027 = vmatprep.mubr.f32.mxu0 0.0
    %1028 = vmatmul.mubr.f32.gmra.mxu0 %v920
    %v1029 = vpop.f32.mrf.mxu0
    %v1030 = vadd.f32 %v956, %v1029
    %v1031 = vpop.f32.mrf.mxu0
    %1032 = vmatprep.mubr.f32.mxu0 0.0
    %1033 = vmatmul.mubr.f32.gmra.mxu0 %v921
    %v1034 = vpop.f32.mrf.mxu0
    %v1035 = vadd.f32 %v956, %v1034
    %v1036 = vpop.f32.mrf.mxu0
    %1037 = vmatprep.mubr.f32.mxu0 0.0
    %1038 = vmatmul.mubr.f32.gmra.mxu0 %v922
    %v1039 = vpop.f32.mrf.mxu0
    %v1040 = vadd.f32 %v956, %v1039
    %v1041 = vpop.f32.mrf.mxu0
    %1042 = vmatprep.mubr.f32.mxu0 0.0
    %1043 = vmatmul.mubr.f32.gmra.mxu0 %v923
    %v1044 = vpop.f32.mrf.mxu0
    %v1045 = vadd.f32 %v956, %v1044
    %v1046 = vpop.f32.mrf.mxu0
    %1047 = vmatprep.mubr.f32.mxu0 0.0
    %1048 = vmatmul.mubr.f32.gmra.mxu0 %v924
    %v1049 = vpop.f32.mrf.mxu0
    %v1050 = vadd.f32 %v956, %v1049
    %v1051 = vpop.f32.mrf.mxu0
    %1052 = vmatprep.mubr.f32.mxu0 0.0
    %1053 = vmatmul.mubr.f32.gmra.mxu0 %v925
    %v1054 = vpop.f32.mrf.mxu0
    %v1055 = vadd.f32 %v956, %v1054
    %v1056 = vpop.f32.mrf.mxu0
    %1057 = vmatprep.mubr.f32.mxu0 0.0
    %1058 = vmatmul.mubr.f32.gmra.mxu0 %v926
    %v1059 = vpop.f32.mrf.mxu0
    %v1060 = vadd.f32 %v956, %v1059
    %v1061 = vpop.f32.mrf.mxu0
    %1062 = vmatprep.mubr.f32.mxu0 0.0
    %1063 = vmatmul.mubr.f32.gmra.mxu0 %v927
    %v1064 = vpop.f32.mrf.mxu0
    %v1065 = vadd.f32 %v956, %v1064
    %v1066 = vpop.f32.mrf.mxu0
    %1067 = vmatprep.mubr.f32.mxu0 0.0
    %1068 = vmatmul.mubr.f32.gmra.mxu0 %v928
    %v1069 = vpop.f32.mrf.mxu0
    %v1070 = vadd.f32 %v956, %v1069
    %v1071 = vpop.f32.mrf.mxu0
    %1072 = vmatprep.mubr.f32.mxu0 0.0
    %1073 = vmatmul.mubr.f32.gmra.mxu0 %v929
    %v1074 = vpop.f32.mrf.mxu0
    %v1075 = vadd.f32 %v956, %v1074
    %v1076 = vpop.f32.mrf.mxu0
    %1077 = vmatprep.mubr.f32.mxu0 0.0
    %1078 = vmatmul.mubr.f32.gmra.mxu0 %v930
    %v1079 = vpop.f32.mrf.mxu0
    %v1080 = vadd.f32 %v956, %v1079
    %v1081 = vpop.f32.mrf.mxu0
    %1082 = vmatprep.mubr.f32.mxu0 0.0
    %1083 = vmatmul.mubr.f32.gmra.mxu0 %v931
    %v1084 = vpop.f32.mrf.mxu0
    %v1085 = vadd.f32 %v956, %v1084
    %v1086 = vpop.f32.mrf.mxu0
    %1087 = vmatprep.mubr.f32.mxu0 0.0
    %1088 = vmatmul.mubr.f32.gmra.mxu0 %v932
    %v1089 = vpop.f32.mrf.mxu0
    %v1090 = vadd.f32 %v956, %v1089
    %v1091 = vpop.f32.mrf.mxu0
    %1092 = vmatprep.mubr.f32.mxu0 0.0
    %1093 = vmatmul.mubr.f32.gmra.mxu0 %v933
    %v1094 = vpop.f32.mrf.mxu0
    %v1095 = vadd.f32 %v956, %v1094
    %v1096 = vpop.f32.mrf.mxu0
    %1097 = vmatprep.mubr.f32.mxu0 0.0
    %1098 = vmatmul.mubr.f32.gmra.mxu0 %v934
    %v1099 = vpop.f32.mrf.mxu0
    %v1100 = vadd.f32 %v956, %v1099
    %v1101 = vpop.f32.mrf.mxu0
    %1102 = vdwg.mxu0
    %v1103 = vadd.f32 %v27, %v1025
    %v1104 = vadd.f32 %v28, %v1030
    %v1105 = vadd.f32 %v29, %v1035
    %v1106 = vadd.f32 %v30, %v1040
    %v1107 = vadd.f32 %v31, %v1045
    %v1108 = vadd.f32 %v32, %v1050
    %v1109 = vadd.f32 %v33, %v1055
    %v1110 = vadd.f32 %v34, %v1060
    %v1111 = vadd.f32 %v35, %v1065
    %v1112 = vadd.f32 %v36, %v1070
    %v1113 = vadd.f32 %v37, %v1075
    %v1114 = vadd.f32 %v38, %v1080
    %v1115 = vadd.f32 %v39, %v1085
    %v1116 = vadd.f32 %v40, %v1090
    %v1117 = vadd.f32 %v41, %v1095
    %v1118 = vadd.f32 %v42, %v1100
    %1119 = vst.msk [vmem:[#allocation2] sm:$0xff] %vm43, %v1103
    %1120 = vst.msk [vmem:[#allocation2 + $0x8] sm:$0xff] %vm43, %v1104
    %1121 = vst.msk [vmem:[#allocation2 + $0x10] sm:$0xff] %vm43, %v1105
    %1122 = vst.msk [vmem:[#allocation2 + $0x18] sm:$0xff] %vm43, %v1106
    %1123 = vst.msk [vmem:[#allocation2 + $0x20] sm:$0xff] %vm43, %v1107
    %1124 = vst.msk [vmem:[#allocation2 + $0x28] sm:$0xff] %vm43, %v1108
    %1125 = vst.msk [vmem:[#allocation2 + $0x30] sm:$0xff] %vm43, %v1109
    %1126 = vst.msk [vmem:[#allocation2 + $0x38] sm:$0xff] %vm43, %v1110
    %1127 = vst.msk [vmem:[#allocation2 + $0x40] sm:$0xff] %vm43, %v1111
    %1128 = vst.msk [vmem:[#allocation2 + $0x48] sm:$0xff] %vm43, %v1112
    %1129 = vst.msk [vmem:[#allocation2 + $0x50] sm:$0xff] %vm43, %v1113
    %1130 = vst.msk [vmem:[#allocation2 + $0x58] sm:$0xff] %vm43, %v1114
    %1131 = vst.msk [vmem:[#allocation2 + $0x60] sm:$0xff] %vm43, %v1115
    %1132 = vst.msk [vmem:[#allocation2 + $0x68] sm:$0xff] %vm43, %v1116
    %1133 = vst.msk [vmem:[#allocation2 + $0x70] sm:$0xff] %vm43, %v1117
    %1134 = vst.msk [vmem:[#allocation2 + $0x78] sm:$0xff] %vm43, %v1118
    // Predicated region
    $region30: #{spatial_mamba_block.15} parent=1 // pred_check
      _
    $region31: #{spatial_mamba_block.15} parent=1 // pred_check_branch
      %1136 = sbr.rel (0) target = $region33
    $region32: #{spatial_mamba_block.15} parent=1 // pred_region
      %s1138 = ssub.s32 2048, 2048
      %1139 = vsyncadd [#allocation3], %s1138
      %s1140 = sshll.u32 [#allocation2], 4
      %s1141 = int_to_ptr.vmem [resolvable:$true] %s1140
      %1146 = dma.vmem_to_hbm [thread:$0]  %s1141, 2048, %s7, [#allocation3], 128, 128, 8
    $region33: #{spatial_mamba_block.15} parent=1 // pred_fallthru
      _
    // Predicated region
    $region34: #{spatial_mamba_block.15} parent=1 // pred_check
      _
    $region35: #{spatial_mamba_block.15} parent=1 // pred_check_branch
      %1148 = sbr.rel (0) target = $region37
    $region36: #{spatial_mamba_block.15} parent=1 // pred_region
      %1149 = dma.done [#allocation3], 2048
    $region37: #{spatial_mamba_block.15} parent=1 // pred_fallthru
      _
    %1150 = vsyncpa [#allocation3], 1

</llo_original>
